<compile_context>
chip_gen: v7x
topology: tpu7x:2x2x1
jax: 0.10.0
libtpu: 0.0.40
codegen_flags: <defaults>
</compile_context>

<pallas_src>
import jax
import jax.numpy as jnp
import numpy as np
from jax.experimental import pallas as pl
from jax.experimental.pallas import tpu as pltpu


def _round_up(x, m):
    return (x + m - 1) // m * m


def _pick_tile(total, unit, cap):
    """Largest multiple-of-`unit` divisor of `total` that is <= cap (total if small)."""
    if total <= cap:
        return total
    best, t = unit, unit
    while t <= cap:
        if total % t == 0:
            best = t
        t += unit
    return best


# ----------------------------------------------------------------------------
# Conv layer: NHWC im2col (feature order (kh, kw, Cin)) + one GEMM+bias+ReLU.
# ----------------------------------------------------------------------------
def conv2d_relu(x, w, b, *, kh, kw, stride, cout):
    """x: (N,H,W,Cin) bf16 NHWC -> (N,Ho,Wo,cout) bf16 NHWC."""
    N, H, W, C = x.shape
    Ho = (H - kh) // stride + 1
    Wo = (W - kw) // stride + 1
    cols = []
    for ki in range(kh):
        for kj in range(kw):
            cols.append(x[:, ki:ki + stride * (Ho - 1) + 1:stride,
                            kj:kj + stride * (Wo - 1) + 1:stride, :])
    patches = jnp.stack(cols, axis=3).reshape(N * Ho * Wo, kh * kw * C)

    M, K = patches.shape
    Kp, Np = w.shape                                   # pre-padded weight
    Mp = _round_up(M, 8)
    a = jnp.pad(patches, ((0, Mp - M), (0, Kp - K)))
    tm = _pick_tile(Mp, 8, 512)

    def kernel(a_ref, w_ref, b_ref, o_ref):
        r = jnp.dot(a_ref[...], w_ref[...], preferred_element_type=jnp.float32)
        o_ref[...] = jnp.maximum(r + b_ref[...], 0.0).astype(o_ref.dtype)

    out = pl.pallas_call(
        kernel,
        out_shape=jax.ShapeDtypeStruct((Mp, Np), jnp.bfloat16),
        grid_spec=pltpu.PrefetchScalarGridSpec(
            num_scalar_prefetch=0,
            grid=(Mp // tm,),
            in_specs=[pl.BlockSpec((tm, Kp), lambda i: (i, 0)),
                      pl.BlockSpec((Kp, Np), lambda i: (0, 0)),
                      pl.BlockSpec((1, Np), lambda i: (0, 0))],
            out_specs=pl.BlockSpec((tm, Np), lambda i: (i, 0)),
        ),
        compiler_params=pltpu.CompilerParams(dimension_semantics=("parallel",)),
    )(a, w, b)
    return out[:M, :cout].reshape(N, Ho, Wo, cout)


# ----------------------------------------------------------------------------
# Fused dueling head: per branch g, out = relu(relu(x@W1+b1)@W2+b2)@W3+b3.
# Grid (branch, M-tile, K-tile of fc1); W2/W3 stay VMEM-resident across K.
# ----------------------------------------------------------------------------
def dueling_head(flat, w1, b1, w2, b2, w3, b3):
    """flat: (N, 3136) bf16 (NHWC flatten order) -> (2, Mp, 128) f32."""
    N, K = flat.shape
    G, Kp, Hd = w1.shape                               # (2, 3328, 1024)
    No = w3.shape[-1]                                  # 128
    Mp = _round_up(N, 8)
    a = jnp.pad(flat, ((0, Mp - N), (0, Kp - K)))[None]   # (1, Mp, Kp)

    tm = _pick_tile(Mp, 8, 256)
    tk = Kp // 2                                       # 1664 (= 13*128)
    nk = Kp // tk

    def kernel(a_ref, w1_ref, b1_ref, w2_ref, b2_ref, w3_ref, b3_ref,
               o_ref, acc_ref):
        k = pl.program_id(2)

        @pl.when(k == 0)
        def _():
            acc_ref[...] = jnp.zeros_like(acc_ref)

        acc_ref[...] += jnp.dot(a_ref[0], w1_ref[0],
                                preferred_element_type=jnp.float32)

        @pl.when(k == nk - 1)
        def _():
            h1 = jnp.maximum(acc_ref[...] + b1_ref[0], 0.0).astype(jnp.bfloat16)
            h2 = jnp.dot(h1, w2_ref[0], preferred_element_type=jnp.float32) + b2_ref[0]
            h2 = jnp.maximum(h2, 0.0).astype(jnp.bfloat16)
            o_ref[0] = (jnp.dot(h2, w3_ref[0], preferred_element_type=jnp.float32)
                        + b3_ref[0]).astype(o_ref.dtype)

    return pl.pallas_call(
        kernel,
        out_shape=jax.ShapeDtypeStruct((G, Mp, No), jnp.float32),
        grid_spec=pltpu.PrefetchScalarGridSpec(
            num_scalar_prefetch=0,
            grid=(G, Mp // tm, nk),
            in_specs=[
                pl.BlockSpec((1, tm, tk), lambda g, i, k: (0, i, k)),
                pl.BlockSpec((1, tk, Hd), lambda g, i, k: (g, k, 0)),
                pl.BlockSpec((1, 1, Hd), lambda g, i, k: (g, 0, 0)),
                pl.BlockSpec((1, Hd, Hd), lambda g, i, k: (g, 0, 0)),
                pl.BlockSpec((1, 1, Hd), lambda g, i, k: (g, 0, 0)),
                pl.BlockSpec((1, Hd, No), lambda g, i, k: (g, 0, 0)),
                pl.BlockSpec((1, 1, No), lambda g, i, k: (g, 0, 0)),
            ],
            out_specs=pl.BlockSpec((1, tm, No), lambda g, i, k: (g, i, 0)),
            scratch_shapes=[pltpu.VMEM((tm, Hd), jnp.float32)],
        ),
        compiler_params=pltpu.CompilerParams(
            dimension_semantics=("parallel", "parallel", "arbitrary"),
            vmem_limit_bytes=32 * 1024 * 1024,
        ),
    )(a, w1, b1, w2, b2, w3, b3)


# ----------------------------------------------------------------------------
# Parameters: PyTorch-style init, packed once into kernel-ready layouts.
# ----------------------------------------------------------------------------
def pack_params(raw):
    """raw: conv w (Cout,Cin,kh,kw); linear w (in,out) (transpose of torch);
    -> bf16, padded, branch-stacked, kernel-layout params (arrays only)."""
    p = {}

    def pack_conv(prefix, w, b):
        Cout, Cin, kh, kw = w.shape
        K = Cin * kh * kw
        Kp, Np = _round_up(K, 128), _round_up(Cout, 128)
        w2 = jnp.transpose(w, (2, 3, 1, 0)).reshape(K, Cout)       # (kh,kw,Cin) x Cout
        p[prefix + "_w"] = jnp.pad(w2, ((0, Kp - K), (0, Np - Cout))).astype(jnp.bfloat16)
        p[prefix + "_b"] = jnp.pad(b, (0, Np - Cout)).reshape(1, Np).astype(jnp.float32)

    pack_conv("c1", raw["c1_w"], raw["c1_b"])
    pack_conv("c2", raw["c2_w"], raw["c2_b"])
    pack_conv("c3", raw["c3_w"], raw["c3_b"])

    # Dueling head: group 0 = action branch, group 1 = state branch.
    # fc1 rows permuted from torch's NCHW flatten order (c,h,w) to our NHWC
    # flatten order (h,w,c); K padded 3136 -> 3328 (= 2 * 1664, both % 128).
    perm = np.arange(3136).reshape(64, 7, 7).transpose(1, 2, 0).reshape(-1)
    Kp = 3328

    def pad_k(w):
        return jnp.pad(w[perm], ((0, Kp - 3136), (0, 0)))

    p["fc1_w"] = jnp.stack([pad_k(raw["av1_w"]), pad_k(raw["sv1_w"])]).astype(jnp.bfloat16)
    p["fc1_b"] = jnp.stack([raw["av1_b"], raw["sv1_b"]]).reshape(2, 1, 1024)

    p["fc2_w"] = jnp.stack([raw["av2_w"], raw["sv2_w"]]).astype(jnp.bfloat16)
    p["fc2_b"] = jnp.stack([raw["av2_b"], raw["sv2_b"]]).reshape(2, 1, 1024)

    # fc3: lane-pad each head to 128 output columns ([adv(4)|0] / [val(1)|0]).
    w3 = jnp.zeros((2, 1024, 128), jnp.float32)
    w3 = w3.at[0, :, 0:4].set(raw["av3_w"]).at[1, :, 0:1].set(raw["sv3_w"])
    p["fc3_w"] = w3.astype(jnp.bfloat16)
    b3 = jnp.zeros((2, 1, 128), jnp.float32)
    b3 = b3.at[0, 0, 0:4].set(raw["av3_b"]).at[1, 0, 0].set(raw["sv3_b"][0])
    p["fc3_b"] = b3
    return p


def init_params(key):
    """PyTorch default init: uniform(+-1/sqrt(fan_in)) for weights and biases."""
    keys = iter(jax.random.split(key, 18))

    def u(shape, fan_in):
        bound = 1.0 / np.sqrt(fan_in)
        return jax.random.uniform(next(keys), shape, minval=-bound,
                                  maxval=bound, dtype=jnp.float32)

    raw = dict(
        c1_w=u((32, 1, 8, 8), 1 * 8 * 8),   c1_b=u((32,), 1 * 8 * 8),
        c2_w=u((64, 32, 4, 4), 32 * 4 * 4), c2_b=u((64,), 32 * 4 * 4),
        c3_w=u((64, 64, 3, 3), 64 * 3 * 3), c3_b=u((64,), 64 * 3 * 3),
        av1_w=u((3136, 1024), 3136), av1_b=u((1024,), 3136),
        av2_w=u((1024, 1024), 1024), av2_b=u((1024,), 1024),
        av3_w=u((1024, 4), 1024),    av3_b=u((4,), 1024),
        sv1_w=u((3136, 1024), 3136), sv1_b=u((1024,), 3136),
        sv2_w=u((1024, 1024), 1024), sv2_b=u((1024,), 1024),
        sv3_w=u((1024, 1), 1024),    sv3_b=u((1,), 1024),
    )
    return pack_params(raw)


# ----------------------------------------------------------------------------
# Forward pass (mirrors AtariNet.forward, eval mode).
# ----------------------------------------------------------------------------
def atari_net_forward(params, x):
    # x: (N, 1, 84, 84) float32 NCHW, same layout as the PyTorch module.
    N = x.shape[0]
    x = jnp.transpose(x, (0, 2, 3, 1)).astype(jnp.bfloat16)                           # NHWC bf16

    x = conv2d_relu(x, params["c1_w"], params["c1_b"], kh=8, kw=8, stride=4, cout=32)  # (N,20,20,32)
    x = conv2d_relu(x, params["c2_w"], params["c2_b"], kh=4, kw=4, stride=2, cout=64)  # (N, 9, 9,64)
    x = conv2d_relu(x, params["c3_w"], params["c3_b"], kh=3, kw=3, stride=1, cout=64)  # (N, 7, 7,64)
    flat = x.reshape(N, 7 * 7 * 64)   # (h,w,c) order; fc1 rows pre-permuted to match nn.Flatten

    # TODO(synk): nn.Dropout(p=0.2) treated as eval-mode identity (inference).
    heads = dueling_head(flat, params["fc1_w"], params["fc1_b"],
                         params["fc2_w"], params["fc2_b"],
                         params["fc3_w"], params["fc3_b"])          # (2, Mp, 128) f32

    action_value = heads[0, :N, 0:4]                   # action_value3: no ReLU (matches torch)
    state_value = jnp.maximum(heads[1, :N, 0:1], 0.0)  # relu(state_value3(.)) (matches torch)
    # Dueling combine (plain jnp): torch .mean() reduces over batch AND actions.
    return state_value + (action_value - jnp.mean(action_value))


# ----------------------------------------------------------------------------
if __name__ == "__main__":
    key = jax.random.PRNGKey(0)
    pkey, xkey = jax.random.split(key)
    params = init_params(pkey)

    # Input implied by the module (3136 = 64*7*7 -> 84x84, 1 channel). Batch=2.
    x = jax.random.uniform(xkey, (2, 1, 84, 84), dtype=jnp.float32)

    out = jax.block_until_ready(jax.jit(atari_net_forward)(params, x))
    assert out.shape == (2, 4) and out.dtype == jnp.float32
    assert bool(jnp.all(jnp.isfinite(out)))
    print("KERNEL_OK")
</pallas_src>

<mosaic_0001>
module attributes {stable_mosaic.version = 11 : i64} {
  func.func @kernel(%arg0: i32, %arg1: memref<400x128xbf16, #tpu.memory_space<vmem>>, %arg2: memref<128x128xbf16, #tpu.memory_space<vmem>>, %arg3: memref<1x128xf32, #tpu.memory_space<vmem>>, %arg4: memref<400x128xbf16, #tpu.memory_space<vmem>>) attributes {dimension_semantics = [#tpu.dimension_semantics<parallel>], iteration_bounds = array<i64: 2>, scalar_prefetch = 0 : i64, scratch_operands = 0 : i64, tpu.core_type = #tpu.core_type<tc>, window_params = [{transform_indices = @transform_0, window_bounds = array<i64: 400, 128>}, {pipeline_mode = #tpu.pipeline_mode<synchronous>, transform_indices = @transform_1, window_bounds = array<i64: 128, 128>}, {pipeline_mode = #tpu.pipeline_mode<synchronous>, transform_indices = @transform_2, window_bounds = array<i64: 1, 128>}, {transform_indices = @transform_3, window_bounds = array<i64: 400, 128>}]} {
    %c0 = arith.constant 0 : index
    %c0_0 = arith.constant 0 : index
    %0 = vector.load %arg1[%c0, %c0_0] : memref<400x128xbf16, #tpu.memory_space<vmem>>, vector<400x128xbf16>
    %c0_1 = arith.constant 0 : index
    %c0_2 = arith.constant 0 : index
    %1 = vector.load %arg2[%c0_1, %c0_2] : memref<128x128xbf16, #tpu.memory_space<vmem>>, vector<128x128xbf16>
    %cst = arith.constant dense<0.000000e+00> : vector<400x128xf32>
    %2 = tpu.matmul %0, %1, %cst {dimension_numbers = #tpu.dot_dimension_numbers<[1], [0], [0], [1], [0, 0, 1, 1], [], []>} : vector<400x128xbf16>, vector<128x128xbf16>, vector<400x128xf32> -> vector<400x128xf32>
    %c0_3 = arith.constant 0 : index
    %c0_4 = arith.constant 0 : index
    %3 = vector.load %arg3[%c0_3, %c0_4] : memref<1x128xf32, #tpu.memory_space<vmem>>, vector<1x128xf32>
    %4 = vector.broadcast %3 : vector<1x128xf32> to vector<400x128xf32>
    %5 = arith.addf %2, %4 : vector<400x128xf32>
    %cst_5 = arith.constant 0.000000e+00 : f32
    %6 = vector.broadcast %cst_5 : f32 to vector<400x128xf32>
    %7 = arith.maximumf %5, %6 : vector<400x128xf32>
    %8 = arith.truncf %7 : vector<400x128xf32> to vector<400x128xbf16>
    %c0_6 = arith.constant 0 : index
    %c0_7 = arith.constant 0 : index
    %9 = vector.load %arg4[%c0_6, %c0_7] : memref<400x128xbf16, #tpu.memory_space<vmem>>, vector<400x128xbf16>
    tpu.vector_store %arg4[%c0_6, %c0_7], %8 {strides = array<i32>} : memref<400x128xbf16, #tpu.memory_space<vmem>>, vector<400x128xbf16>,
    return
  }
  func.func @transform_0(%arg0: i32) -> (i32, i32) {
    %c0_i32 = arith.constant 0 : i32
    %c0_i32_0 = arith.constant 0 : i32
    return %arg0, %c0_i32 : i32, i32
  }
  func.func @transform_1(%arg0: i32) -> (i32, i32) {
    %c0_i32 = arith.constant 0 : i32
    %c0_i32_0 = arith.constant 0 : i32
    %c0_i32_1 = arith.constant 0 : i32
    return %c0_i32, %c0_i32_0 : i32, i32
  }
  func.func @transform_2(%arg0: i32) -> (i32, i32) {
    %c0_i32 = arith.constant 0 : i32
    %c0_i32_0 = arith.constant 0 : i32
    %c0_i32_1 = arith.constant 0 : i32
    return %c0_i32, %c0_i32_0 : i32, i32
  }
  func.func @transform_3(%arg0: i32) -> (i32, i32) {
    %c0_i32 = arith.constant 0 : i32
    %c0_i32_0 = arith.constant 0 : i32
    return %arg0, %c0_i32 : i32, i32
  }
}

module attributes {stable_mosaic.version = 11 : i64} {
  func.func @kernel(%arg0: i32, %arg1: memref<168x512xbf16, #tpu.memory_space<vmem>>, %arg2: memref<512x128xbf16, #tpu.memory_space<vmem>>, %arg3: memref<1x128xf32, #tpu.memory_space<vmem>>, %arg4: memref<168x128xbf16, #tpu.memory_space<vmem>>) attributes {dimension_semantics = [#tpu.dimension_semantics<parallel>], iteration_bounds = array<i64: 1>, scalar_prefetch = 0 : i64, scratch_operands = 0 : i64, tpu.core_type = #tpu.core_type<tc>, window_params = [{transform_indices = @transform_0, window_bounds = array<i64: 168, 512>}, {pipeline_mode = #tpu.pipeline_mode<synchronous>, transform_indices = @transform_1, window_bounds = array<i64: 512, 128>}, {pipeline_mode = #tpu.pipeline_mode<synchronous>, transform_indices = @transform_2, window_bounds = array<i64: 1, 128>}, {transform_indices = @transform_3, window_bounds = array<i64: 168, 128>}]} {
    %c0 = arith.constant 0 : index
    %c0_0 = arith.constant 0 : index
    %0 = vector.load %arg1[%c0, %c0_0] : memref<168x512xbf16, #tpu.memory_space<vmem>>, vector<168x512xbf16>
    %c0_1 = arith.constant 0 : index
    %c0_2 = arith.constant 0 : index
    %1 = vector.load %arg2[%c0_1, %c0_2] : memref<512x128xbf16, #tpu.memory_space<vmem>>, vector<512x128xbf16>
    %cst = arith.constant dense<0.000000e+00> : vector<168x128xf32>
    %2 = tpu.matmul %0, %1, %cst {dimension_numbers = #tpu.dot_dimension_numbers<[1], [0], [0], [1], [0, 0, 1, 1], [], []>} : vector<168x512xbf16>, vector<512x128xbf16>, vector<168x128xf32> -> vector<168x128xf32>
    %c0_3 = arith.constant 0 : index
    %c0_4 = arith.constant 0 : index
    %3 = vector.load %arg3[%c0_3, %c0_4] : memref<1x128xf32, #tpu.memory_space<vmem>>, vector<1x128xf32>
    %4 = vector.broadcast %3 : vector<1x128xf32> to vector<168x128xf32>
    %5 = arith.addf %2, %4 : vector<168x128xf32>
    %cst_5 = arith.constant 0.000000e+00 : f32
    %6 = vector.broadcast %cst_5 : f32 to vector<168x128xf32>
    %7 = arith.maximumf %5, %6 : vector<168x128xf32>
    %8 = arith.truncf %7 : vector<168x128xf32> to vector<168x128xbf16>
    %c0_6 = arith.constant 0 : index
    %c0_7 = arith.constant 0 : index
    %9 = vector.load %arg4[%c0_6, %c0_7] : memref<168x128xbf16, #tpu.memory_space<vmem>>, vector<168x128xbf16>
    tpu.vector_store %arg4[%c0_6, %c0_7], %8 {strides = array<i32>} : memref<168x128xbf16, #tpu.memory_space<vmem>>, vector<168x128xbf16>,
    return
  }
  func.func @transform_0(%arg0: i32) -> (i32, i32) {
    %c0_i32 = arith.constant 0 : i32
    %c0_i32_0 = arith.constant 0 : i32
    return %arg0, %c0_i32 : i32, i32
  }
  func.func @transform_1(%arg0: i32) -> (i32, i32) {
    %c0_i32 = arith.constant 0 : i32
    %c0_i32_0 = arith.constant 0 : i32
    %c0_i32_1 = arith.constant 0 : i32
    return %c0_i32, %c0_i32_0 : i32, i32
  }
  func.func @transform_2(%arg0: i32) -> (i32, i32) {
    %c0_i32 = arith.constant 0 : i32
    %c0_i32_0 = arith.constant 0 : i32
    %c0_i32_1 = arith.constant 0 : i32
    return %c0_i32, %c0_i32_0 : i32, i32
  }
  func.func @transform_3(%arg0: i32) -> (i32, i32) {
    %c0_i32 = arith.constant 0 : i32
    %c0_i32_0 = arith.constant 0 : i32
    return %arg0, %c0_i32 : i32, i32
  }
}

module attributes {stable_mosaic.version = 11 : i64} {
  func.func @kernel(%arg0: i32, %arg1: memref<104x640xbf16, #tpu.memory_space<vmem>>, %arg2: memref<640x128xbf16, #tpu.memory_space<vmem>>, %arg3: memref<1x128xf32, #tpu.memory_space<vmem>>, %arg4: memref<104x128xbf16, #tpu.memory_space<vmem>>) attributes {dimension_semantics = [#tpu.dimension_semantics<parallel>], iteration_bounds = array<i64: 1>, scalar_prefetch = 0 : i64, scratch_operands = 0 : i64, tpu.core_type = #tpu.core_type<tc>, window_params = [{transform_indices = @transform_0, window_bounds = array<i64: 104, 640>}, {pipeline_mode = #tpu.pipeline_mode<synchronous>, transform_indices = @transform_1, window_bounds = array<i64: 640, 128>}, {pipeline_mode = #tpu.pipeline_mode<synchronous>, transform_indices = @transform_2, window_bounds = array<i64: 1, 128>}, {transform_indices = @transform_3, window_bounds = array<i64: 104, 128>}]} {
    %c0 = arith.constant 0 : index
    %c0_0 = arith.constant 0 : index
    %0 = vector.load %arg1[%c0, %c0_0] : memref<104x640xbf16, #tpu.memory_space<vmem>>, vector<104x640xbf16>
    %c0_1 = arith.constant 0 : index
    %c0_2 = arith.constant 0 : index
    %1 = vector.load %arg2[%c0_1, %c0_2] : memref<640x128xbf16, #tpu.memory_space<vmem>>, vector<640x128xbf16>
    %cst = arith.constant dense<0.000000e+00> : vector<104x128xf32>
    %2 = tpu.matmul %0, %1, %cst {dimension_numbers = #tpu.dot_dimension_numbers<[1], [0], [0], [1], [0, 0, 1, 1], [], []>} : vector<104x640xbf16>, vector<640x128xbf16>, vector<104x128xf32> -> vector<104x128xf32>
    %c0_3 = arith.constant 0 : index
    %c0_4 = arith.constant 0 : index
    %3 = vector.load %arg3[%c0_3, %c0_4] : memref<1x128xf32, #tpu.memory_space<vmem>>, vector<1x128xf32>
    %4 = vector.broadcast %3 : vector<1x128xf32> to vector<104x128xf32>
    %5 = arith.addf %2, %4 : vector<104x128xf32>
    %cst_5 = arith.constant 0.000000e+00 : f32
    %6 = vector.broadcast %cst_5 : f32 to vector<104x128xf32>
    %7 = arith.maximumf %5, %6 : vector<104x128xf32>
    %8 = arith.truncf %7 : vector<104x128xf32> to vector<104x128xbf16>
    %c0_6 = arith.constant 0 : index
    %c0_7 = arith.constant 0 : index
    %9 = vector.load %arg4[%c0_6, %c0_7] : memref<104x128xbf16, #tpu.memory_space<vmem>>, vector<104x128xbf16>
    tpu.vector_store %arg4[%c0_6, %c0_7], %8 {strides = array<i32>} : memref<104x128xbf16, #tpu.memory_space<vmem>>, vector<104x128xbf16>,
    return
  }
  func.func @transform_0(%arg0: i32) -> (i32, i32) {
    %c0_i32 = arith.constant 0 : i32
    %c0_i32_0 = arith.constant 0 : i32
    return %arg0, %c0_i32 : i32, i32
  }
  func.func @transform_1(%arg0: i32) -> (i32, i32) {
    %c0_i32 = arith.constant 0 : i32
    %c0_i32_0 = arith.constant 0 : i32
    %c0_i32_1 = arith.constant 0 : i32
    return %c0_i32, %c0_i32_0 : i32, i32
  }
  func.func @transform_2(%arg0: i32) -> (i32, i32) {
    %c0_i32 = arith.constant 0 : i32
    %c0_i32_0 = arith.constant 0 : i32
    %c0_i32_1 = arith.constant 0 : i32
    return %c0_i32, %c0_i32_0 : i32, i32
  }
  func.func @transform_3(%arg0: i32) -> (i32, i32) {
    %c0_i32 = arith.constant 0 : i32
    %c0_i32_0 = arith.constant 0 : i32
    return %arg0, %c0_i32 : i32, i32
  }
}

module attributes {stable_mosaic.version = 11 : i64} {
  func.func @kernel(%arg0: i32, %arg1: i32, %arg2: i32, %arg3: memref<1x8x1664xbf16, #tpu.memory_space<vmem>>, %arg4: memref<1x1664x1024xbf16, #tpu.memory_space<vmem>>, %arg5: memref<1x1x1024xf32, #tpu.memory_space<vmem>>, %arg6: memref<1x1024x1024xbf16, #tpu.memory_space<vmem>>, %arg7: memref<1x1x1024xf32, #tpu.memory_space<vmem>>, %arg8: memref<1x1024x128xbf16, #tpu.memory_space<vmem>>, %arg9: memref<1x1x128xf32, #tpu.memory_space<vmem>>, %arg10: memref<1x8x128xf32, #tpu.memory_space<vmem>>, %arg11: memref<8x1024xf32, #tpu.memory_space<vmem>>) attributes {dimension_semantics = [#tpu.dimension_semantics<parallel>, #tpu.dimension_semantics<parallel>, #tpu.dimension_semantics<arbitrary>], iteration_bounds = array<i64: 2, 1, 2>, scalar_prefetch = 0 : i64, scratch_operands = 1 : i64, tpu.core_type = #tpu.core_type<tc>, window_params = [{transform_indices = @transform_0, window_bounds = array<i64: 1, 8, 1664>}, {transform_indices = @transform_1, window_bounds = array<i64: 1, 1664, 1024>}, {transform_indices = @transform_2, window_bounds = array<i64: 1, 1, 1024>}, {transform_indices = @transform_3, window_bounds = array<i64: 1, 1024, 1024>}, {transform_indices = @transform_4, window_bounds = array<i64: 1, 1, 1024>}, {transform_indices = @transform_5, window_bounds = array<i64: 1, 1024, 128>}, {transform_indices = @transform_6, window_bounds = array<i64: 1, 1, 128>}, {transform_indices = @transform_7, window_bounds = array<i64: 1, 8, 128>}]} {
    %c0_i32 = arith.constant 0 : i32
    %0 = arith.cmpi eq, %arg2, %c0_i32 : i32
    %1 = arith.extui %0 : i1 to i32
    %c0_i32_0 = arith.constant 0 : i32
    %2 = arith.cmpi ne, %1, %c0_i32_0 : i32
    scf.if %2 {
      %cst_11 = arith.constant 0.000000e+00 : f32
      %14 = vector.broadcast %cst_11 : f32 to vector<8x1024xf32>
      %c0_12 = arith.constant 0 : index
      %c0_13 = arith.constant 0 : index
      %15 = vector.load %arg11[%c0_12, %c0_13] : memref<8x1024xf32, #tpu.memory_space<vmem>>, vector<8x1024xf32>
      tpu.vector_store %arg11[%c0_12, %c0_13], %14 {strides = array<i32>} : memref<8x1024xf32, #tpu.memory_space<vmem>>, vector<8x1024xf32>,
    } else {
    }
    %c0 = arith.constant 0 : index
    %c0_1 = arith.constant 0 : index
    %3 = vector.load %arg11[%c0, %c0_1] : memref<8x1024xf32, #tpu.memory_space<vmem>>, vector<8x1024xf32>
    %c0_2 = arith.constant 0 : index
    %c0_3 = arith.constant 0 : index
    %c0_4 = arith.constant 0 : index
    %4 = vector.load %arg3[%c0_2, %c0_3, %c0_4] : memref<1x8x1664xbf16, #tpu.memory_space<vmem>>, vector<1x8x1664xbf16>
    %5 = vector.shape_cast %4 : vector<1x8x1664xbf16> to vector<8x1664xbf16>
    %c0_5 = arith.constant 0 : index
    %c0_6 = arith.constant 0 : index
    %c0_7 = arith.constant 0 : index
    %6 = vector.load %arg4[%c0_5, %c0_6, %c0_7] : memref<1x1664x1024xbf16, #tpu.memory_space<vmem>>, vector<1x1664x1024xbf16>
    %7 = vector.shape_cast %6 : vector<1x1664x1024xbf16> to vector<1664x1024xbf16>
    %cst = arith.constant dense<0.000000e+00> : vector<8x1024xf32>
    %8 = tpu.matmul %5, %7, %cst {dimension_numbers = #tpu.dot_dimension_numbers<[1], [0], [0], [1], [0, 0, 1, 1], [], []>} : vector<8x1664xbf16>, vector<1664x1024xbf16>, vector<8x1024xf32> -> vector<8x1024xf32>
    %9 = arith.addf %3, %8 : vector<8x1024xf32>
    %c0_8 = arith.constant 0 : index
    %c0_9 = arith.constant 0 : index
    %10 = vector.load %arg11[%c0_8, %c0_9] : memref<8x1024xf32, #tpu.memory_space<vmem>>, vector<8x1024xf32>
    tpu.vector_store %arg11[%c0_8, %c0_9], %9 {strides = array<i32>} : memref<8x1024xf32, #tpu.memory_space<vmem>>, vector<8x1024xf32>,
    %c1_i32 = arith.constant 1 : i32
    %11 = arith.cmpi eq, %arg2, %c1_i32 : i32
    %12 = arith.extui %11 : i1 to i32
    %c0_i32_10 = arith.constant 0 : i32
    %13 = arith.cmpi ne, %12, %c0_i32_10 : i32
    scf.if %13 {
      %c0_11 = arith.constant 0 : index
      %c0_12 = arith.constant 0 : index
      %14 = vector.load %arg11[%c0_11, %c0_12] : memref<8x1024xf32, #tpu.memory_space<vmem>>, vector<8x1024xf32>
      %c0_13 = arith.constant 0 : index
      %c0_14 = arith.constant 0 : index
      %c0_15 = arith.constant 0 : index
      %15 = vector.load %arg5[%c0_13, %c0_14, %c0_15] : memref<1x1x1024xf32, #tpu.memory_space<vmem>>, vector<1x1x1024xf32>
      %16 = vector.shape_cast %15 : vector<1x1x1024xf32> to vector<1x1024xf32>
      %17 = vector.broadcast %16 : vector<1x1024xf32> to vector<8x1024xf32>
      %18 = arith.addf %14, %17 : vector<8x1024xf32>
      %cst_16 = arith.constant 0.000000e+00 : f32
      %19 = vector.broadcast %cst_16 : f32 to vector<8x1024xf32>
      %20 = arith.maximumf %18, %19 : vector<8x1024xf32>
      %21 = arith.truncf %20 : vector<8x1024xf32> to vector<8x1024xbf16>
      %c0_17 = arith.constant 0 : index
      %c0_18 = arith.constant 0 : index
      %c0_19 = arith.constant 0 : index
      %22 = vector.load %arg6[%c0_17, %c0_18, %c0_19] : memref<1x1024x1024xbf16, #tpu.memory_space<vmem>>, vector<1x1024x1024xbf16>
      %23 = vector.shape_cast %22 : vector<1x1024x1024xbf16> to vector<1024x1024xbf16>
      %cst_20 = arith.constant dense<0.000000e+00> : vector<8x1024xf32>
      %24 = tpu.matmul %21, %23, %cst_20 {dimension_numbers = #tpu.dot_dimension_numbers<[1], [0], [0], [1], [0, 0, 1, 1], [], []>} : vector<8x1024xbf16>, vector<1024x1024xbf16>, vector<8x1024xf32> -> vector<8x1024xf32>
      %c0_21 = arith.constant 0 : index
      %c0_22 = arith.constant 0 : index
      %c0_23 = arith.constant 0 : index
      %25 = vector.load %arg7[%c0_21, %c0_22, %c0_23] : memref<1x1x1024xf32, #tpu.memory_space<vmem>>, vector<1x1x1024xf32>
      %26 = vector.shape_cast %25 : vector<1x1x1024xf32> to vector<1x1024xf32>
      %27 = vector.broadcast %26 : vector<1x1024xf32> to vector<8x1024xf32>
      %28 = arith.addf %24, %27 : vector<8x1024xf32>
      %cst_24 = arith.constant 0.000000e+00 : f32
      %29 = vector.broadcast %cst_24 : f32 to vector<8x1024xf32>
      %30 = arith.maximumf %28, %29 : vector<8x1024xf32>
      %31 = arith.truncf %30 : vector<8x1024xf32> to vector<8x1024xbf16>
      %c0_25 = arith.constant 0 : index
      %c0_26 = arith.constant 0 : index
      %c0_27 = arith.constant 0 : index
      %32 = vector.load %arg8[%c0_25, %c0_26, %c0_27] : memref<1x1024x128xbf16, #tpu.memory_space<vmem>>, vector<1x1024x128xbf16>
      %33 = vector.shape_cast %32 : vector<1x1024x128xbf16> to vector<1024x128xbf16>
      %cst_28 = arith.constant dense<0.000000e+00> : vector<8x128xf32>
      %34 = tpu.matmul %31, %33, %cst_28 {dimension_numbers = #tpu.dot_dimension_numbers<[1], [0], [0], [1], [0, 0, 1, 1], [], []>} : vector<8x1024xbf16>, vector<1024x128xbf16>, vector<8x128xf32> -> vector<8x128xf32>
      %c0_29 = arith.constant 0 : index
      %c0_30 = arith.constant 0 : index
      %c0_31 = arith.constant 0 : index
      %35 = vector.load %arg9[%c0_29, %c0_30, %c0_31] : memref<1x1x128xf32, #tpu.memory_space<vmem>>, vector<1x1x128xf32>
      %36 = vector.shape_cast %35 : vector<1x1x128xf32> to vector<1x128xf32>
      %37 = vector.broadcast %36 : vector<1x128xf32> to vector<8x128xf32>
      %38 = arith.addf %34, %37 : vector<8x128xf32>
      %c0_32 = arith.constant 0 : index
      %c0_33 = arith.constant 0 : index
      %c0_34 = arith.constant 0 : index
      %39 = vector.load %arg10[%c0_32, %c0_33, %c0_34] : memref<1x8x128xf32, #tpu.memory_space<vmem>>, vector<1x8x128xf32>
      %40 = vector.shape_cast %39 : vector<1x8x128xf32> to vector<8x128xf32>
      %41 = vector.shape_cast %38 : vector<8x128xf32> to vector<1x8x128xf32>
      tpu.vector_store %arg10[%c0_32, %c0_33, %c0_34], %41 {strides = array<i32>} : memref<1x8x128xf32, #tpu.memory_space<vmem>>, vector<1x8x128xf32>,
    } else {
    }
    return
  }
  func.func @transform_0(%arg0: i32, %arg1: i32, %arg2: i32) -> (i32, i32, i32) {
    %c0_i32 = arith.constant 0 : i32
    %c0_i32_0 = arith.constant 0 : i32
    return %c0_i32, %arg1, %arg2 : i32, i32, i32
  }
  func.func @transform_1(%arg0: i32, %arg1: i32, %arg2: i32) -> (i32, i32, i32) {
    %c0_i32 = arith.constant 0 : i32
    %c0_i32_0 = arith.constant 0 : i32
    return %arg0, %arg2, %c0_i32 : i32, i32, i32
  }
  func.func @transform_2(%arg0: i32, %arg1: i32, %arg2: i32) -> (i32, i32, i32) {
    %c0_i32 = arith.constant 0 : i32
    %c0_i32_0 = arith.constant 0 : i32
    %c0_i32_1 = arith.constant 0 : i32
    return %arg0, %c0_i32, %c0_i32_0 : i32, i32, i32
  }
  func.func @transform_3(%arg0: i32, %arg1: i32, %arg2: i32) -> (i32, i32, i32) {
    %c0_i32 = arith.constant 0 : i32
    %c0_i32_0 = arith.constant 0 : i32
    %c0_i32_1 = arith.constant 0 : i32
    return %arg0, %c0_i32, %c0_i32_0 : i32, i32, i32
  }
  func.func @transform_4(%arg0: i32, %arg1: i32, %arg2: i32) -> (i32, i32, i32) {
    %c0_i32 = arith.constant 0 : i32
    %c0_i32_0 = arith.constant 0 : i32
    %c0_i32_1 = arith.constant 0 : i32
    return %arg0, %c0_i32, %c0_i32_0 : i32, i32, i32
  }
  func.func @transform_5(%arg0: i32, %arg1: i32, %arg2: i32) -> (i32, i32, i32) {
    %c0_i32 = arith.constant 0 : i32
    %c0_i32_0 = arith.constant 0 : i32
    %c0_i32_1 = arith.constant 0 : i32
    return %arg0, %c0_i32, %c0_i32_0 : i32, i32, i32
  }
  func.func @transform_6(%arg0: i32, %arg1: i32, %arg2: i32) -> (i32, i32, i32) {
    %c0_i32 = arith.constant 0 : i32
    %c0_i32_0 = arith.constant 0 : i32
    %c0_i32_1 = arith.constant 0 : i32
    return %arg0, %c0_i32, %c0_i32_0 : i32, i32, i32
  }
  func.func @transform_7(%arg0: i32, %arg1: i32, %arg2: i32) -> (i32, i32, i32) {
    %c0_i32 = arith.constant 0 : i32
    %c0_i32_0 = arith.constant 0 : i32
    return %arg0, %arg1, %c0_i32 : i32, i32, i32
  }
}

</mosaic_0001>

<llo_original>
// kernel: atari_net_forward.4
$region0: #{atari_net_forward.4}
  #allocation0 [shape = 'u32[]', space=smem, size = 0x4, offset = 0x4, fixed_abs, tag = 'smem constant byte address 0x4 - core index']
  #allocation1 [shape = 'u32[144,128]{1,0:T(1,128)}', space=vmem, size = 0x12000, scoped, tag = 'internal scratch']
  %s0 = inlined_call_operand.vmem [shape: bf16[800,128], index: 0, kind: input, shape index: {}]
  %s1 = inlined_call_operand.vmem [shape: bf16[128,128], index: 1, kind: input, shape index: {}]
  %s2 = inlined_call_operand.vmem [shape: f32[1,128], index: 2, kind: input, shape index: {}]
  %s3 = inlined_call_operand.vmem [shape: bf16[800,128], index: 3, kind: output, shape index: {}]
  %s4 = sld [smem:[#allocation0]]
  $region45: #{atari_net_forward.4} parent=0
    _
  %s6 = ssub.s32 1, %s4
  %s7 = scalar_select 0, %s6, %s4
  loop: start=0, step=1, limit=4
  $region2: #{atari_net_forward.4} parent=0 // loop_pre_header
    _
  $region3: #{atari_net_forward.4} parent=0 // loop_header
    %s9 = sphi 0, %s13
    %p10 = scmp.ge.s32.totalorder %s9, 4
    %s19 = sphi 0, %s21
    %s22 = sphi 0, %s19
    %s23 = sphi 0, %s22
    %s39 = sphi 0, %s23
    %s43 = sphi 0, %s43
    %s45 = sphi 0, %s43
    %s46 = sphi 0, %s45
    %s60 = sphi 0, %s46
    %s64 = sphi 0, %s64
    %s66 = sphi 0, %s64
    %s67 = sphi 0, %s66
    %s81 = sphi 0, %s67
    %s87 = sphi 0, %s89
    %s90 = sphi 0, %s87
    %s91 = sphi 0, %s90
    %s107 = sphi 0, %s91
  $region4: #{atari_net_forward.4} parent=0 // loop_header_branch
    %12 = sbr.rel (%p10) target = $region8
  $region5: #{atari_net_forward.4} parent=0 // loop_body
    %s14 = ssub.s32 %s9, 1
    %s15 = ssub.s32 %s9, 2
    %s16 = sadd.s32 %s9, 1
    %s17 = ssub.s32 %s9, %s16
    %p18 = scmp.eq.s32.totalorder %s17, 0
    %s20 = sadd.s32 %s19, 1
    %s21 = scalar_select %p18, %s19, %s20
    %p24 = pneg %p18
    %p25 = scmp.eq.s32.totalorder %s9, 1
    %p26 = por %p24, %p25
    %p27 = scmp.ne.s32.totalorder %s19, %s22
    %p28 = scmp.eq.s32.totalorder %s9, 0
    %p29 = por %p27, %p28
    %p30 = scmp.ne.s32.totalorder %s19, %s22
    %p31 = scmp.eq.s32.totalorder %s14, 1
    %p32 = por %p30, %p31
    %p33 = scmp.ne.s32.totalorder %s22, %s23
    %p34 = scmp.eq.s32.totalorder %s14, 0
    %p35 = por %p33, %p34
    %p36 = scmp.ne.s32.totalorder %s22, %s23
    %p37 = scmp.eq.s32.totalorder %s15, 1
    %p38 = por %p36, %p37
    %p40 = scmp.ne.s32.totalorder %s23, %s39
    %p41 = scmp.eq.s32.totalorder %s15, 0
    %p42 = por %p40, %p41
    %s44 = sadd.s32 %s43, 1
    %p47 = scmp.eq.s32.totalorder %s9, 1
    %p48 = scmp.ne.s32.totalorder %s43, %s45
    %p49 = scmp.eq.s32.totalorder %s9, 0
    %p50 = por %p48, %p49
    %p51 = scmp.ne.s32.totalorder %s43, %s45
    %p52 = scmp.eq.s32.totalorder %s14, 1
    %p53 = por %p51, %p52
    %p54 = scmp.ne.s32.totalorder %s45, %s46
    %p55 = scmp.eq.s32.totalorder %s14, 0
    %p56 = por %p54, %p55
    %p57 = scmp.ne.s32.totalorder %s45, %s46
    %p58 = scmp.eq.s32.totalorder %s15, 1
    %p59 = por %p57, %p58
    %p61 = scmp.ne.s32.totalorder %s46, %s60
    %p62 = scmp.eq.s32.totalorder %s15, 0
    %p63 = por %p61, %p62
    %s65 = sadd.s32 %s64, 1
    %p68 = scmp.eq.s32.totalorder %s9, 1
    %p69 = scmp.ne.s32.totalorder %s64, %s66
    %p70 = scmp.eq.s32.totalorder %s9, 0
    %p71 = por %p69, %p70
    %p72 = scmp.ne.s32.totalorder %s64, %s66
    %p73 = scmp.eq.s32.totalorder %s14, 1
    %p74 = por %p72, %p73
    %p75 = scmp.ne.s32.totalorder %s66, %s67
    %p76 = scmp.eq.s32.totalorder %s14, 0
    %p77 = por %p75, %p76
    %p78 = scmp.ne.s32.totalorder %s66, %s67
    %p79 = scmp.eq.s32.totalorder %s15, 1
    %p80 = por %p78, %p79
    %p82 = scmp.ne.s32.totalorder %s67, %s81
    %p83 = scmp.eq.s32.totalorder %s15, 0
    %p84 = por %p82, %p83
    %s85 = ssub.s32 %s9, %s16
    %p86 = scmp.eq.s32.totalorder %s85, 0
    %s88 = sadd.s32 %s87, 1
    %s89 = scalar_select %p86, %s87, %s88
    %p92 = pneg %p86
    %p93 = scmp.eq.s32.totalorder %s9, 1
    %p94 = por %p92, %p93
    %p95 = scmp.ne.s32.totalorder %s87, %s90
    %p96 = scmp.eq.s32.totalorder %s9, 0
    %p97 = por %p95, %p96
    %p98 = scmp.ne.s32.totalorder %s87, %s90
    %p99 = scmp.eq.s32.totalorder %s14, 1
    %p100 = por %p98, %p99
    %p101 = scmp.ne.s32.totalorder %s90, %s91
    %p102 = scmp.eq.s32.totalorder %s14, 0
    %p103 = por %p101, %p102
    %p104 = scmp.ne.s32.totalorder %s90, %s91
    %p105 = scmp.eq.s32.totalorder %s15, 1
    %p106 = por %p104, %p105
    %p108 = scmp.ne.s32.totalorder %s91, %s107
    %p109 = scmp.eq.s32.totalorder %s15, 0
    %p110 = por %p108, %p109
    %p111 = scmp.le.s32.totalorder 1, %s9
    %p112 = scmp.lt.s32.totalorder %s9, 3
    %p113 = pnand %p111, %p112
    %p114 = pneg %p113
    // Predicated region
    $region9: #{atari_net_forward.4} parent=5 // pred_check
      _
    $region10: #{atari_net_forward.4} parent=5 // pred_check_branch
      %116 = sbr.rel (%p113) target = $region12
    $region11: #{atari_net_forward.4} parent=5 // pred_region
      %s117 = ssub.s32 %s9, 1
      // Predicated region
      $region13: #{atari_net_forward.4} parent=11 // pred_check
        %p118 = pneg %p56
      $region14: #{atari_net_forward.4} parent=11 // pred_check_branch
        %120 = sbr.rel (%p118) target = $region16
      $region15: #{atari_net_forward.4} parent=11 // pred_region
        _
      $region16: #{atari_net_forward.4} parent=11 // pred_fallthru
        _
      // Predicated region
      $region17: #{atari_net_forward.4} parent=11 // pred_check
        %p121 = pneg %p77
      $region18: #{atari_net_forward.4} parent=11 // pred_check_branch
        %123 = sbr.rel (%p121) target = $region20
      $region19: #{atari_net_forward.4} parent=11 // pred_region
        _
      $region20: #{atari_net_forward.4} parent=11 // pred_fallthru
        _
    $region12: #{atari_net_forward.4} parent=5 // pred_fallthru
      _
    %p124 = scmp.lt.s32.totalorder %s9, 2
    // Predicated region
    $region21: #{atari_net_forward.4} parent=5 // pred_check
      %p125 = pneg %p124
    $region22: #{atari_net_forward.4} parent=5 // pred_check_branch
      %127 = sbr.rel (%p125) target = $region24
    $region23: #{atari_net_forward.4} parent=5 // pred_region
      // Predicated region
      $region25: #{atari_net_forward.4} parent=23 // pred_check
        %p128 = pneg %p29
      $region26: #{atari_net_forward.4} parent=23 // pred_check_branch
        %130 = sbr.rel (%p128) target = $region28
      $region27: #{atari_net_forward.4} parent=23 // pred_region
        %s131 = smul.u32 50, %s9
        %p132 = scmp.lt.s32.totalorder %s131, 99
        %s133 = scalar_select %p132, %s131, 99
        %s134 = smul.addr %s133, 4
        %s135 = scalar_lea.vmem %s0, %s134
        %s136 = smul.u32 50, %s9
      $region28: #{atari_net_forward.4} parent=23 // pred_fallthru
        _
    $region24: #{atari_net_forward.4} parent=5 // pred_fallthru
      _
    %p137 = scmp.le.s32.totalorder 1, %s9
    %p138 = scmp.lt.s32.totalorder %s9, 3
    %p139 = pnand %p137, %p138
    %p140 = pneg %p139
    // Predicated region
    $region29: #{atari_net_forward.4} parent=5 // pred_check
      _
    $region30: #{atari_net_forward.4} parent=5 // pred_check_branch
      %142 = sbr.rel (%p139) target = $region32
    $region31: #{atari_net_forward.4} parent=5 // pred_region
      %s143 = ssub.s32 %s9, 1
      %s144 = smul.u32 50, %s14
      %p145 = scmp.lt.s32.totalorder %s144, 99
      %s146 = scalar_select %p145, %s144, 99
      %s147 = smul.addr %s146, 4
      %s148 = scalar_lea.vmem %s0, %s147
      %p149 = pneg %p35
      %p150 = pneg %p32
      %p151 = pneg %p56
      %p152 = pneg %p53
      %p153 = pneg %p77
      %p154 = pneg %p74
      %p155 = pneg %p103
      %p156 = pneg %p100
      %s157 = smul.u32 50, %s14
      %p158 = scmp.lt.s32.totalorder %s157, 99
      %s159 = scalar_select %p158, %s157, 99
      %s160 = smul.addr %s159, 4
      %s161 = scalar_lea.vmem %s3, %s160
      %s162 = smul.u32 50, %s14
      %p163 = scmp.lt.s32.totalorder %s162, 99
      %s164 = scalar_select %p163, %s162, 99
      %s165 = smul.addr %s164, 4
      %s166 = scalar_lea.vmem %s0, %s165
      %s167 = smul.u32 50, %s14
      %s168 = smul.u32 50, %s14
      %p169 = scmp.lt.s32.totalorder %s168, 99
      %s170 = scalar_select %p169, %s168, 99
      %s171 = smul.addr %s170, 4
      %s172 = scalar_lea.vmem %s3, %s171
      %s173 = smul.u32 50, %s14
      %v175 = vld [vmem:[%s166] sm:$0xf]
      %v176 = vld [vmem:[%s166 + $0x4] sm:$0xf]
      %v177 = vld [vmem:[%s166 + $0x8] sm:$0xf]
      %v178 = vld [vmem:[%s166 + $0xc] sm:$0xf]
      %v179 = vld [vmem:[%s166 + $0x10] sm:$0xf]
      %v180 = vld [vmem:[%s166 + $0x14] sm:$0xf]
      %v181 = vld [vmem:[%s166 + $0x18] sm:$0xf]
      %v182 = vld [vmem:[%s166 + $0x1c] sm:$0xf]
      %v183 = vld [vmem:[%s166 + $0x20] sm:$0xf]
      %v184 = vld [vmem:[%s166 + $0x24] sm:$0xf]
      %v185 = vld [vmem:[%s166 + $0x28] sm:$0xf]
      %v186 = vld [vmem:[%s166 + $0x2c] sm:$0xf]
      %v187 = vld [vmem:[%s166 + $0x30] sm:$0xf]
      %v188 = vld [vmem:[%s166 + $0x34] sm:$0xf]
      %v189 = vld [vmem:[%s166 + $0x38] sm:$0xf]
      %v190 = vld [vmem:[%s166 + $0x3c] sm:$0xf]
      %v191 = vld [vmem:[%s166 + $0x40] sm:$0xf]
      %v192 = vld [vmem:[%s166 + $0x44] sm:$0xf]
      %v193 = vld [vmem:[%s166 + $0x48] sm:$0xf]
      %v194 = vld [vmem:[%s166 + $0x4c] sm:$0xf]
      %v195 = vld [vmem:[%s166 + $0x50] sm:$0xf]
      %v196 = vld [vmem:[%s166 + $0x54] sm:$0xf]
      %v197 = vld [vmem:[%s166 + $0x58] sm:$0xf]
      %v198 = vld [vmem:[%s166 + $0x5c] sm:$0xf]
      %v199 = vld [vmem:[%s166 + $0x60] sm:$0xf]
      %v200 = vld [vmem:[%s166 + $0x64] sm:$0xf]
      %v201 = vld [vmem:[%s166 + $0x68] sm:$0xf]
      %v202 = vld [vmem:[%s166 + $0x6c] sm:$0xf]
      %v203 = vld [vmem:[%s166 + $0x70] sm:$0xf]
      %v204 = vld [vmem:[%s166 + $0x74] sm:$0xf]
      %v205 = vld [vmem:[%s166 + $0x78] sm:$0xf]
      %v206 = vld [vmem:[%s166 + $0x7c] sm:$0xf]
      %v207 = vld [vmem:[%s166 + $0x80] sm:$0xf]
      %v208 = vld [vmem:[%s166 + $0x84] sm:$0xf]
      %v209 = vld [vmem:[%s166 + $0x88] sm:$0xf]
      %v210 = vld [vmem:[%s166 + $0x8c] sm:$0xf]
      %v211 = vld [vmem:[%s166 + $0x90] sm:$0xf]
      %v212 = vld [vmem:[%s166 + $0x94] sm:$0xf]
      %v213 = vld [vmem:[%s166 + $0x98] sm:$0xf]
      %v214 = vld [vmem:[%s166 + $0x9c] sm:$0xf]
      %v215 = vld [vmem:[%s166 + $0xa0] sm:$0xf]
      %v216 = vld [vmem:[%s166 + $0xa4] sm:$0xf]
      %v217 = vld [vmem:[%s166 + $0xa8] sm:$0xf]
      %v218 = vld [vmem:[%s166 + $0xac] sm:$0xf]
      %v219 = vld [vmem:[%s166 + $0xb0] sm:$0xf]
      %v220 = vld [vmem:[%s166 + $0xb4] sm:$0xf]
      %v221 = vld [vmem:[%s166 + $0xb8] sm:$0xf]
      %v222 = vld [vmem:[%s166 + $0xbc] sm:$0xf]
      %v223 = vld [vmem:[%s166 + $0xc0] sm:$0xf]
      %v224 = vld [vmem:[%s166 + $0xc4] sm:$0xf]
      %v225 = vld [vmem:[%s1] sm:$0xf]
      %v226 = vld [vmem:[%s1 + $0x4] sm:$0xf]
      %v227 = vld [vmem:[%s1 + $0x8] sm:$0xf]
      %v228 = vld [vmem:[%s1 + $0xc] sm:$0xf]
      %v229 = vld [vmem:[%s1 + $0x10] sm:$0xf]
      %v230 = vld [vmem:[%s1 + $0x14] sm:$0xf]
      %v231 = vld [vmem:[%s1 + $0x18] sm:$0xf]
      %v232 = vld [vmem:[%s1 + $0x1c] sm:$0xf]
      %v233 = vld [vmem:[%s1 + $0x20] sm:$0xf]
      %v234 = vld [vmem:[%s1 + $0x24] sm:$0xf]
      %v235 = vld [vmem:[%s1 + $0x28] sm:$0xf]
      %v236 = vld [vmem:[%s1 + $0x2c] sm:$0xf]
      %v237 = vld [vmem:[%s1 + $0x30] sm:$0xf]
      %v238 = vld [vmem:[%s1 + $0x34] sm:$0xf]
      %v239 = vld [vmem:[%s1 + $0x38] sm:$0xf]
      %v240 = vld [vmem:[%s1 + $0x3c] sm:$0xf]
      %v241 = vld [vmem:[%s2] sm:$0x1]
      %v243 = vlaneseq
      %v244 = vshrl.u32 %v243, 7
      %v245 = vsub.s32 0, %v244
      %v246 = vrot.slane %v241, %v245
      %v298 = vunpack.c.l.b16 %v175
      %v299 = vunpack.c.l.b16 %v176
      %v300 = vunpack.c.l.b16 %v177
      %v301 = vunpack.c.l.b16 %v178
      %v302 = vunpack.c.l.b16 %v179
      %v303 = vunpack.c.l.b16 %v180
      %v304 = vunpack.c.l.b16 %v181
      %v305 = vunpack.c.l.b16 %v182
      %v306 = vunpack.c.l.b16 %v183
      %v307 = vunpack.c.l.b16 %v184
      %v308 = vunpack.c.l.b16 %v185
      %v309 = vunpack.c.l.b16 %v186
      %v310 = vunpack.c.l.b16 %v187
      %v311 = vunpack.c.l.b16 %v188
      %v312 = vunpack.c.l.b16 %v189
      %v313 = vunpack.c.l.b16 %v190
      %v314 = vunpack.c.l.b16 %v191
      %v315 = vunpack.c.l.b16 %v192
      %v316 = vunpack.c.l.b16 %v193
      %v317 = vunpack.c.l.b16 %v194
      %v318 = vunpack.c.l.b16 %v195
      %v319 = vunpack.c.l.b16 %v196
      %v320 = vunpack.c.l.b16 %v197
      %v321 = vunpack.c.l.b16 %v198
      %v322 = vunpack.c.l.b16 %v199
      %v323 = vunpack.c.l.b16 %v200
      %v324 = vunpack.c.l.b16 %v201
      %v325 = vunpack.c.l.b16 %v202
      %v326 = vunpack.c.l.b16 %v203
      %v327 = vunpack.c.l.b16 %v204
      %v328 = vunpack.c.l.b16 %v205
      %v329 = vunpack.c.l.b16 %v206
      %v330 = vunpack.c.l.b16 %v207
      %v331 = vunpack.c.l.b16 %v208
      %v332 = vunpack.c.l.b16 %v209
      %v333 = vunpack.c.l.b16 %v210
      %v334 = vunpack.c.l.b16 %v211
      %v335 = vunpack.c.l.b16 %v212
      %v336 = vunpack.c.l.b16 %v213
      %v337 = vunpack.c.l.b16 %v214
      %v338 = vunpack.c.l.b16 %v215
      %v339 = vunpack.c.l.b16 %v216
      %v340 = vunpack.c.l.b16 %v217
      %v341 = vunpack.c.l.b16 %v218
      %v342 = vunpack.c.l.b16 %v219
      %v343 = vunpack.c.l.b16 %v220
      %v344 = vunpack.c.l.b16 %v221
      %v345 = vunpack.c.l.b16 %v222
      %v346 = vunpack.c.l.b16 %v223
      %v347 = vunpack.c.l.b16 %v224
      %v348 = vpack.c.b16 %v299, %v298
      %v349 = vpack.c.b16 %v301, %v300
      %v350 = vpack.c.b16 %v303, %v302
      %v351 = vpack.c.b16 %v305, %v304
      %v352 = vpack.c.b16 %v307, %v306
      %v353 = vpack.c.b16 %v309, %v308
      %v354 = vpack.c.b16 %v311, %v310
      %v355 = vpack.c.b16 %v313, %v312
      %v356 = vpack.c.b16 %v315, %v314
      %v357 = vpack.c.b16 %v317, %v316
      %v358 = vpack.c.b16 %v319, %v318
      %v359 = vpack.c.b16 %v321, %v320
      %v360 = vpack.c.b16 %v323, %v322
      %v361 = vpack.c.b16 %v325, %v324
      %v362 = vpack.c.b16 %v327, %v326
      %v363 = vpack.c.b16 %v329, %v328
      %v364 = vpack.c.b16 %v331, %v330
      %v365 = vpack.c.b16 %v333, %v332
      %v366 = vpack.c.b16 %v335, %v334
      %v367 = vpack.c.b16 %v337, %v336
      %v368 = vpack.c.b16 %v339, %v338
      %v369 = vpack.c.b16 %v341, %v340
      %v370 = vpack.c.b16 %v343, %v342
      %v371 = vpack.c.b16 %v345, %v344
      %v372 = vpack.c.b16 %v347, %v346
      %v414 = vunpack.c.l.b16 %v225
      %v415 = vunpack.c.l.b16 %v226
      %v416 = vunpack.c.l.b16 %v227
      %v417 = vunpack.c.l.b16 %v228
      %v418 = vunpack.c.l.b16 %v229
      %v419 = vunpack.c.l.b16 %v230
      %v420 = vunpack.c.l.b16 %v231
      %v421 = vunpack.c.l.b16 %v232
      %v422 = vunpack.c.l.b16 %v233
      %v423 = vunpack.c.l.b16 %v234
      %v424 = vunpack.c.l.b16 %v235
      %v425 = vunpack.c.l.b16 %v236
      %v426 = vunpack.c.l.b16 %v237
      %v427 = vunpack.c.l.b16 %v238
      %v428 = vunpack.c.l.b16 %v239
      %v429 = vunpack.c.l.b16 %v240
      %v430 = vpack.c.b16 %v415, %v414
      %v431 = vpack.c.b16 %v417, %v416
      %v432 = vpack.c.b16 %v419, %v418
      %v433 = vpack.c.b16 %v421, %v420
      %v434 = vpack.c.b16 %v423, %v422
      %v435 = vpack.c.b16 %v425, %v424
      %v436 = vpack.c.b16 %v427, %v426
      %v437 = vpack.c.b16 %v429, %v428
      %446 = vmatprep.subr.bf16.mxu0 0
      %447 = vmatpush1.bf16.msra.mxu0 %v430
      %448 = vmatprep.subr.bf16.mxu0 0
      %449 = vmatpush1.bf16.msra.mxu0 %v431
      %450 = vmatprep.subr.bf16.mxu0 0
      %451 = vmatpush1.bf16.msra.mxu0 %v432
      %452 = vmatprep.subr.bf16.mxu0 0
      %453 = vmatpush1.bf16.msra.mxu0 %v433
      %454 = vmatprep.subr.bf16.mxu0 0
      %455 = vmatpush1.bf16.msra.mxu0 %v434
      %456 = vmatprep.subr.bf16.mxu0 0
      %457 = vmatpush1.bf16.msra.mxu0 %v435
      %458 = vmatprep.subr.bf16.mxu0 0
      %459 = vmatpush1.bf16.msra.mxu0 %v436
      %460 = vmatprep.subr.bf16.mxu0 0
      %461 = vmatpush1.bf16.msra.mxu0 %v437
      %462 = vmatprep.subr.bf16.mxu0 0
      %463 = vmatpush1.bf16.msra.mxu0 0
      %464 = vmatprep.subr.bf16.mxu0 0
      %465 = vmatpush1.bf16.msra.mxu0 0
      %466 = vmatprep.subr.bf16.mxu0 0
      %467 = vmatpush1.bf16.msra.mxu0 0
      %468 = vmatprep.subr.bf16.mxu0 0
      %469 = vmatpush1.bf16.msra.mxu0 0
      %470 = vmatprep.subr.bf16.mxu0 0
      %471 = vmatpush1.bf16.msra.mxu0 0
      %472 = vmatprep.subr.bf16.mxu0 0
      %473 = vmatpush1.bf16.msra.mxu0 0
      %474 = vmatprep.subr.bf16.mxu0 0
      %475 = vmatpush1.bf16.msra.mxu0 0
      %476 = vmatprep.subr.bf16.mxu0 0
      %477 = vmatpush1.bf16.msra.mxu0 0
      %478 = vmatprep.mubr.bf16.mxu0 0
      %479 = vmatmul.mubr.bf16.gmra.mrb[0].mxu0 %v348
      %v480 = vpop.f32.mrb[0].mxu0
      %v481 = vadd.f32 %v246, %v480
      %v482 = vpop.f32.mrb[0].mxu0
      %v483 = vpop.f32.mrb[0].mxu0
      %v484 = vadd.f32 %v246, %v483
      %v485 = vpop.f32.mrb[0].mxu0
      %486 = vmatprep.mubr.bf16.mxu0 0
      %487 = vmatmul.mubr.bf16.gmra.mrb[0].mxu0 %v349
      %v488 = vpop.f32.mrb[0].mxu0
      %v489 = vadd.f32 %v246, %v488
      %v490 = vpop.f32.mrb[0].mxu0
      %v491 = vpop.f32.mrb[0].mxu0
      %v492 = vadd.f32 %v246, %v491
      %v493 = vpop.f32.mrb[0].mxu0
      %494 = vmatprep.mubr.bf16.mxu0 0
      %495 = vmatmul.mubr.bf16.gmra.mrb[0].mxu0 %v350
      %v496 = vpop.f32.mrb[0].mxu0
      %v497 = vadd.f32 %v246, %v496
      %v498 = vpop.f32.mrb[0].mxu0
      %v499 = vpop.f32.mrb[0].mxu0
      %v500 = vadd.f32 %v246, %v499
      %v501 = vpop.f32.mrb[0].mxu0
      %502 = vmatprep.mubr.bf16.mxu0 0
      %503 = vmatmul.mubr.bf16.gmra.mrb[0].mxu0 %v351
      %v504 = vpop.f32.mrb[0].mxu0
      %v505 = vadd.f32 %v246, %v504
      %v506 = vpop.f32.mrb[0].mxu0
      %v507 = vpop.f32.mrb[0].mxu0
      %v508 = vadd.f32 %v246, %v507
      %v509 = vpop.f32.mrb[0].mxu0
      %510 = vmatprep.mubr.bf16.mxu0 0
      %511 = vmatmul.mubr.bf16.gmra.mrb[0].mxu0 %v352
      %v512 = vpop.f32.mrb[0].mxu0
      %v513 = vadd.f32 %v246, %v512
      %v514 = vpop.f32.mrb[0].mxu0
      %v515 = vpop.f32.mrb[0].mxu0
      %v516 = vadd.f32 %v246, %v515
      %v517 = vpop.f32.mrb[0].mxu0
      %518 = vmatprep.mubr.bf16.mxu0 0
      %519 = vmatmul.mubr.bf16.gmra.mrb[0].mxu0 %v353
      %v520 = vpop.f32.mrb[0].mxu0
      %v521 = vadd.f32 %v246, %v520
      %v522 = vpop.f32.mrb[0].mxu0
      %v523 = vpop.f32.mrb[0].mxu0
      %v524 = vadd.f32 %v246, %v523
      %v525 = vpop.f32.mrb[0].mxu0
      %526 = vmatprep.mubr.bf16.mxu0 0
      %527 = vmatmul.mubr.bf16.gmra.mrb[0].mxu0 %v354
      %v528 = vpop.f32.mrb[0].mxu0
      %v529 = vadd.f32 %v246, %v528
      %v530 = vpop.f32.mrb[0].mxu0
      %v531 = vpop.f32.mrb[0].mxu0
      %v532 = vadd.f32 %v246, %v531
      %v533 = vpop.f32.mrb[0].mxu0
      %534 = vmatprep.mubr.bf16.mxu0 0
      %535 = vmatmul.mubr.bf16.gmra.mrb[0].mxu0 %v355
      %v536 = vpop.f32.mrb[0].mxu0
      %v537 = vadd.f32 %v246, %v536
      %v538 = vpop.f32.mrb[0].mxu0
      %v539 = vpop.f32.mrb[0].mxu0
      %v540 = vadd.f32 %v246, %v539
      %v541 = vpop.f32.mrb[0].mxu0
      %542 = vmatprep.mubr.bf16.mxu0 0
      %543 = vmatmul.mubr.bf16.gmra.mrb[0].mxu0 %v356
      %v544 = vpop.f32.mrb[0].mxu0
      %v545 = vadd.f32 %v246, %v544
      %v546 = vpop.f32.mrb[0].mxu0
      %v547 = vpop.f32.mrb[0].mxu0
      %v548 = vadd.f32 %v246, %v547
      %v549 = vpop.f32.mrb[0].mxu0
      %550 = vmatprep.mubr.bf16.mxu0 0
      %551 = vmatmul.mubr.bf16.gmra.mrb[0].mxu0 %v357
      %v552 = vpop.f32.mrb[0].mxu0
      %v553 = vadd.f32 %v246, %v552
      %v554 = vpop.f32.mrb[0].mxu0
      %v555 = vpop.f32.mrb[0].mxu0
      %v556 = vadd.f32 %v246, %v555
      %v557 = vpop.f32.mrb[0].mxu0
      %558 = vmatprep.mubr.bf16.mxu0 0
      %559 = vmatmul.mubr.bf16.gmra.mrb[0].mxu0 %v358
      %v560 = vpop.f32.mrb[0].mxu0
      %v561 = vadd.f32 %v246, %v560
      %v562 = vpop.f32.mrb[0].mxu0
      %v563 = vpop.f32.mrb[0].mxu0
      %v564 = vadd.f32 %v246, %v563
      %v565 = vpop.f32.mrb[0].mxu0
      %566 = vmatprep.mubr.bf16.mxu0 0
      %567 = vmatmul.mubr.bf16.gmra.mrb[0].mxu0 %v359
      %v568 = vpop.f32.mrb[0].mxu0
      %v569 = vadd.f32 %v246, %v568
      %v570 = vpop.f32.mrb[0].mxu0
      %v571 = vpop.f32.mrb[0].mxu0
      %v572 = vadd.f32 %v246, %v571
      %v573 = vpop.f32.mrb[0].mxu0
      %574 = vmatprep.mubr.bf16.mxu0 0
      %575 = vmatmul.mubr.bf16.gmra.mrb[0].mxu0 %v360
      %v576 = vpop.f32.mrb[0].mxu0
      %v577 = vadd.f32 %v246, %v576
      %v578 = vpop.f32.mrb[0].mxu0
      %v579 = vpop.f32.mrb[0].mxu0
      %v580 = vadd.f32 %v246, %v579
      %v581 = vpop.f32.mrb[0].mxu0
      %582 = vmatprep.mubr.bf16.mxu0 0
      %583 = vmatmul.mubr.bf16.gmra.mrb[0].mxu0 %v361
      %v584 = vpop.f32.mrb[0].mxu0
      %v585 = vadd.f32 %v246, %v584
      %v586 = vpop.f32.mrb[0].mxu0
      %v587 = vpop.f32.mrb[0].mxu0
      %v588 = vadd.f32 %v246, %v587
      %v589 = vpop.f32.mrb[0].mxu0
      %590 = vmatprep.mubr.bf16.mxu0 0
      %591 = vmatmul.mubr.bf16.gmra.mrb[0].mxu0 %v362
      %v592 = vpop.f32.mrb[0].mxu0
      %v593 = vadd.f32 %v246, %v592
      %v594 = vpop.f32.mrb[0].mxu0
      %v595 = vpop.f32.mrb[0].mxu0
      %v596 = vadd.f32 %v246, %v595
      %v597 = vpop.f32.mrb[0].mxu0
      %598 = vmatprep.mubr.bf16.mxu0 0
      %599 = vmatmul.mubr.bf16.gmra.mrb[0].mxu0 %v363
      %v600 = vpop.f32.mrb[0].mxu0
      %v601 = vadd.f32 %v246, %v600
      %v602 = vpop.f32.mrb[0].mxu0
      %v603 = vpop.f32.mrb[0].mxu0
      %v604 = vadd.f32 %v246, %v603
      %v605 = vpop.f32.mrb[0].mxu0
      %606 = vmatprep.mubr.bf16.mxu0 0
      %607 = vmatmul.mubr.bf16.gmra.mrb[0].mxu0 %v364
      %v608 = vpop.f32.mrb[0].mxu0
      %v609 = vadd.f32 %v246, %v608
      %v610 = vpop.f32.mrb[0].mxu0
      %v611 = vpop.f32.mrb[0].mxu0
      %v612 = vadd.f32 %v246, %v611
      %v613 = vpop.f32.mrb[0].mxu0
      %614 = vmatprep.mubr.bf16.mxu0 0
      %615 = vmatmul.mubr.bf16.gmra.mrb[0].mxu0 %v365
      %v616 = vpop.f32.mrb[0].mxu0
      %v617 = vadd.f32 %v246, %v616
      %v618 = vpop.f32.mrb[0].mxu0
      %v619 = vpop.f32.mrb[0].mxu0
      %v620 = vadd.f32 %v246, %v619
      %v621 = vpop.f32.mrb[0].mxu0
      %622 = vmatprep.mubr.bf16.mxu0 0
      %623 = vmatmul.mubr.bf16.gmra.mrb[0].mxu0 %v366
      %v624 = vpop.f32.mrb[0].mxu0
      %v625 = vadd.f32 %v246, %v624
      %v626 = vpop.f32.mrb[0].mxu0
      %v627 = vpop.f32.mrb[0].mxu0
      %v628 = vadd.f32 %v246, %v627
      %v629 = vpop.f32.mrb[0].mxu0
      %630 = vmatprep.mubr.bf16.mxu0 0
      %631 = vmatmul.mubr.bf16.gmra.mrb[0].mxu0 %v367
      %v632 = vpop.f32.mrb[0].mxu0
      %v633 = vadd.f32 %v246, %v632
      %v634 = vpop.f32.mrb[0].mxu0
      %v635 = vpop.f32.mrb[0].mxu0
      %v636 = vadd.f32 %v246, %v635
      %v637 = vpop.f32.mrb[0].mxu0
      %638 = vmatprep.mubr.bf16.mxu0 0
      %639 = vmatmul.mubr.bf16.gmra.mrb[0].mxu0 %v368
      %v640 = vpop.f32.mrb[0].mxu0
      %v641 = vadd.f32 %v246, %v640
      %v642 = vpop.f32.mrb[0].mxu0
      %v643 = vpop.f32.mrb[0].mxu0
      %v644 = vadd.f32 %v246, %v643
      %v645 = vpop.f32.mrb[0].mxu0
      %646 = vmatprep.mubr.bf16.mxu0 0
      %647 = vmatmul.mubr.bf16.gmra.mrb[0].mxu0 %v369
      %v648 = vpop.f32.mrb[0].mxu0
      %v649 = vadd.f32 %v246, %v648
      %v650 = vpop.f32.mrb[0].mxu0
      %v651 = vpop.f32.mrb[0].mxu0
      %v652 = vadd.f32 %v246, %v651
      %v653 = vpop.f32.mrb[0].mxu0
      %654 = vmatprep.mubr.bf16.mxu0 0
      %655 = vmatmul.mubr.bf16.gmra.mrb[0].mxu0 %v370
      %v656 = vpop.f32.mrb[0].mxu0
      %v657 = vadd.f32 %v246, %v656
      %v658 = vpop.f32.mrb[0].mxu0
      %v659 = vpop.f32.mrb[0].mxu0
      %v660 = vadd.f32 %v246, %v659
      %v661 = vpop.f32.mrb[0].mxu0
      %662 = vmatprep.mubr.bf16.mxu0 0
      %663 = vmatmul.mubr.bf16.gmra.mrb[0].mxu0 %v371
      %v664 = vpop.f32.mrb[0].mxu0
      %v665 = vadd.f32 %v246, %v664
      %v666 = vpop.f32.mrb[0].mxu0
      %v667 = vpop.f32.mrb[0].mxu0
      %v668 = vadd.f32 %v246, %v667
      %v669 = vpop.f32.mrb[0].mxu0
      %670 = vmatprep.mubr.bf16.mxu0 0
      %671 = vmatmul.mubr.bf16.gmra.mrb[0].mxu0 %v372
      %v672 = vpop.f32.mrb[0].mxu0
      %v673 = vadd.f32 %v246, %v672
      %v674 = vpop.f32.mrb[0].mxu0
      %v675 = vpop.f32.mrb[0].mxu0
      %v676 = vadd.f32 %v246, %v675
      %v677 = vpop.f32.mrb[0].mxu0
      %678 = vdwg.mxu0
      %v679 = vmax.f32 %v481, 0.0
      %v680 = vmax.f32 %v484, 0.0
      %v681 = vmax.f32 %v489, 0.0
      %v682 = vmax.f32 %v492, 0.0
      %v683 = vmax.f32 %v497, 0.0
      %v684 = vmax.f32 %v500, 0.0
      %v685 = vmax.f32 %v505, 0.0
      %v686 = vmax.f32 %v508, 0.0
      %v687 = vmax.f32 %v513, 0.0
      %v688 = vmax.f32 %v516, 0.0
      %v689 = vmax.f32 %v521, 0.0
      %v690 = vmax.f32 %v524, 0.0
      %v691 = vmax.f32 %v529, 0.0
      %v692 = vmax.f32 %v532, 0.0
      %v693 = vmax.f32 %v537, 0.0
      %v694 = vmax.f32 %v540, 0.0
      %v695 = vmax.f32 %v545, 0.0
      %v696 = vmax.f32 %v548, 0.0
      %v697 = vmax.f32 %v553, 0.0
      %v698 = vmax.f32 %v556, 0.0
      %v699 = vmax.f32 %v561, 0.0
      %v700 = vmax.f32 %v564, 0.0
      %v701 = vmax.f32 %v569, 0.0
      %v702 = vmax.f32 %v572, 0.0
      %v703 = vmax.f32 %v577, 0.0
      %v704 = vmax.f32 %v580, 0.0
      %v705 = vmax.f32 %v585, 0.0
      %v706 = vmax.f32 %v588, 0.0
      %v707 = vmax.f32 %v593, 0.0
      %v708 = vmax.f32 %v596, 0.0
      %v709 = vmax.f32 %v601, 0.0
      %v710 = vmax.f32 %v604, 0.0
      %v711 = vmax.f32 %v609, 0.0
      %v712 = vmax.f32 %v612, 0.0
      %v713 = vmax.f32 %v617, 0.0
      %v714 = vmax.f32 %v620, 0.0
      %v715 = vmax.f32 %v625, 0.0
      %v716 = vmax.f32 %v628, 0.0
      %v717 = vmax.f32 %v633, 0.0
      %v718 = vmax.f32 %v636, 0.0
      %v719 = vmax.f32 %v641, 0.0
      %v720 = vmax.f32 %v644, 0.0
      %v721 = vmax.f32 %v649, 0.0
      %v722 = vmax.f32 %v652, 0.0
      %v723 = vmax.f32 %v657, 0.0
      %v724 = vmax.f32 %v660, 0.0
      %v725 = vmax.f32 %v665, 0.0
      %v726 = vmax.f32 %v668, 0.0
      %v727 = vmax.f32 %v673, 0.0
      %v728 = vmax.f32 %v676, 0.0
      %v729 = vpack.c.bf16 %v680, %v679
      %v730 = vpack.c.bf16 %v682, %v681
      %v731 = vpack.c.bf16 %v684, %v683
      %v732 = vpack.c.bf16 %v686, %v685
      %v733 = vpack.c.bf16 %v688, %v687
      %v734 = vpack.c.bf16 %v690, %v689
      %v735 = vpack.c.bf16 %v692, %v691
      %v736 = vpack.c.bf16 %v694, %v693
      %v737 = vpack.c.bf16 %v696, %v695
      %v738 = vpack.c.bf16 %v698, %v697
      %v739 = vpack.c.bf16 %v700, %v699
      %v740 = vpack.c.bf16 %v702, %v701
      %v741 = vpack.c.bf16 %v704, %v703
      %v742 = vpack.c.bf16 %v706, %v705
      %v743 = vpack.c.bf16 %v708, %v707
      %v744 = vpack.c.bf16 %v710, %v709
      %v745 = vpack.c.bf16 %v712, %v711
      %v746 = vpack.c.bf16 %v714, %v713
      %v747 = vpack.c.bf16 %v716, %v715
      %v748 = vpack.c.bf16 %v718, %v717
      %v749 = vpack.c.bf16 %v720, %v719
      %v750 = vpack.c.bf16 %v722, %v721
      %v751 = vpack.c.bf16 %v724, %v723
      %v752 = vpack.c.bf16 %v726, %v725
      %v753 = vpack.c.bf16 %v728, %v727
      %v779 = vunpack.c.l.b16 %v729
      %v780 = vunpack.c.h.b16 %v729
      %v781 = vunpack.c.l.b16 %v730
      %v782 = vunpack.c.h.b16 %v730
      %v783 = vunpack.c.l.b16 %v731
      %v784 = vunpack.c.h.b16 %v731
      %v785 = vunpack.c.l.b16 %v732
      %v786 = vunpack.c.h.b16 %v732
      %v787 = vunpack.c.l.b16 %v733
      %v788 = vunpack.c.h.b16 %v733
      %v789 = vunpack.c.l.b16 %v734
      %v790 = vunpack.c.h.b16 %v734
      %v791 = vunpack.c.l.b16 %v735
      %v792 = vunpack.c.h.b16 %v735
      %v793 = vunpack.c.l.b16 %v736
      %v794 = vunpack.c.h.b16 %v736
      %v795 = vunpack.c.l.b16 %v737
      %v796 = vunpack.c.h.b16 %v737
      %v797 = vunpack.c.l.b16 %v738
      %v798 = vunpack.c.h.b16 %v738
      %v799 = vunpack.c.l.b16 %v739
      %v800 = vunpack.c.h.b16 %v739
      %v801 = vunpack.c.l.b16 %v740
      %v802 = vunpack.c.h.b16 %v740
      %v803 = vunpack.c.l.b16 %v741
      %v804 = vunpack.c.h.b16 %v741
      %v805 = vunpack.c.l.b16 %v742
      %v806 = vunpack.c.h.b16 %v742
      %v807 = vunpack.c.l.b16 %v743
      %v808 = vunpack.c.h.b16 %v743
      %v809 = vunpack.c.l.b16 %v744
      %v810 = vunpack.c.h.b16 %v744
      %v811 = vunpack.c.l.b16 %v745
      %v812 = vunpack.c.h.b16 %v745
      %v813 = vunpack.c.l.b16 %v746
      %v814 = vunpack.c.h.b16 %v746
      %v815 = vunpack.c.l.b16 %v747
      %v816 = vunpack.c.h.b16 %v747
      %v817 = vunpack.c.l.b16 %v748
      %v818 = vunpack.c.h.b16 %v748
      %v819 = vunpack.c.l.b16 %v749
      %v820 = vunpack.c.h.b16 %v749
      %v821 = vunpack.c.l.b16 %v750
      %v822 = vunpack.c.h.b16 %v750
      %v823 = vunpack.c.l.b16 %v751
      %v824 = vunpack.c.h.b16 %v751
      %v825 = vunpack.c.l.b16 %v752
      %v826 = vunpack.c.h.b16 %v752
      %v827 = vunpack.c.l.b16 %v753
      %v828 = vunpack.c.h.b16 %v753
      %v829 = vpack.c.b16 %v779, %v779
      %v830 = vpack.c.b16 %v780, %v780
      %v831 = vpack.c.b16 %v781, %v781
      %v832 = vpack.c.b16 %v782, %v782
      %v833 = vpack.c.b16 %v783, %v783
      %v834 = vpack.c.b16 %v784, %v784
      %v835 = vpack.c.b16 %v785, %v785
      %v836 = vpack.c.b16 %v786, %v786
      %v837 = vpack.c.b16 %v787, %v787
      %v838 = vpack.c.b16 %v788, %v788
      %v839 = vpack.c.b16 %v789, %v789
      %v840 = vpack.c.b16 %v790, %v790
      %v841 = vpack.c.b16 %v791, %v791
      %v842 = vpack.c.b16 %v792, %v792
      %v843 = vpack.c.b16 %v793, %v793
      %v844 = vpack.c.b16 %v794, %v794
      %v845 = vpack.c.b16 %v795, %v795
      %v846 = vpack.c.b16 %v796, %v796
      %v847 = vpack.c.b16 %v797, %v797
      %v848 = vpack.c.b16 %v798, %v798
      %v849 = vpack.c.b16 %v799, %v799
      %v850 = vpack.c.b16 %v800, %v800
      %v851 = vpack.c.b16 %v801, %v801
      %v852 = vpack.c.b16 %v802, %v802
      %v853 = vpack.c.b16 %v803, %v803
      %v854 = vpack.c.b16 %v804, %v804
      %v855 = vpack.c.b16 %v805, %v805
      %v856 = vpack.c.b16 %v806, %v806
      %v857 = vpack.c.b16 %v807, %v807
      %v858 = vpack.c.b16 %v808, %v808
      %v859 = vpack.c.b16 %v809, %v809
      %v860 = vpack.c.b16 %v810, %v810
      %v861 = vpack.c.b16 %v811, %v811
      %v862 = vpack.c.b16 %v812, %v812
      %v863 = vpack.c.b16 %v813, %v813
      %v864 = vpack.c.b16 %v814, %v814
      %v865 = vpack.c.b16 %v815, %v815
      %v866 = vpack.c.b16 %v816, %v816
      %v867 = vpack.c.b16 %v817, %v817
      %v868 = vpack.c.b16 %v818, %v818
      %v869 = vpack.c.b16 %v819, %v819
      %v870 = vpack.c.b16 %v820, %v820
      %v871 = vpack.c.b16 %v821, %v821
      %v872 = vpack.c.b16 %v822, %v822
      %v873 = vpack.c.b16 %v823, %v823
      %v874 = vpack.c.b16 %v824, %v824
      %v875 = vpack.c.b16 %v825, %v825
      %v876 = vpack.c.b16 %v826, %v826
      %v877 = vpack.c.b16 %v827, %v827
      %v878 = vpack.c.b16 %v828, %v828
      %929 = vst [vmem:[%s172] sm:$0xf] %v829
      %930 = vst [vmem:[%s172 + $0x4] sm:$0xf] %v830
      %931 = vst [vmem:[%s172 + $0x8] sm:$0xf] %v831
      %932 = vst [vmem:[%s172 + $0xc] sm:$0xf] %v832
      %933 = vst [vmem:[%s172 + $0x10] sm:$0xf] %v833
      %934 = vst [vmem:[%s172 + $0x14] sm:$0xf] %v834
      %935 = vst [vmem:[%s172 + $0x18] sm:$0xf] %v835
      %936 = vst [vmem:[%s172 + $0x1c] sm:$0xf] %v836
      %937 = vst [vmem:[%s172 + $0x20] sm:$0xf] %v837
      %938 = vst [vmem:[%s172 + $0x24] sm:$0xf] %v838
      %939 = vst [vmem:[%s172 + $0x28] sm:$0xf] %v839
      %940 = vst [vmem:[%s172 + $0x2c] sm:$0xf] %v840
      %941 = vst [vmem:[%s172 + $0x30] sm:$0xf] %v841
      %942 = vst [vmem:[%s172 + $0x34] sm:$0xf] %v842
      %943 = vst [vmem:[%s172 + $0x38] sm:$0xf] %v843
      %944 = vst [vmem:[%s172 + $0x3c] sm:$0xf] %v844
      %945 = vst [vmem:[%s172 + $0x40] sm:$0xf] %v845
      %946 = vst [vmem:[%s172 + $0x44] sm:$0xf] %v846
      %947 = vst [vmem:[%s172 + $0x48] sm:$0xf] %v847
      %948 = vst [vmem:[%s172 + $0x4c] sm:$0xf] %v848
      %949 = vst [vmem:[%s172 + $0x50] sm:$0xf] %v849
      %950 = vst [vmem:[%s172 + $0x54] sm:$0xf] %v850
      %951 = vst [vmem:[%s172 + $0x58] sm:$0xf] %v851
      %952 = vst [vmem:[%s172 + $0x5c] sm:$0xf] %v852
      %953 = vst [vmem:[%s172 + $0x60] sm:$0xf] %v853
      %954 = vst [vmem:[%s172 + $0x64] sm:$0xf] %v854
      %955 = vst [vmem:[%s172 + $0x68] sm:$0xf] %v855
      %956 = vst [vmem:[%s172 + $0x6c] sm:$0xf] %v856
      %957 = vst [vmem:[%s172 + $0x70] sm:$0xf] %v857
      %958 = vst [vmem:[%s172 + $0x74] sm:$0xf] %v858
      %959 = vst [vmem:[%s172 + $0x78] sm:$0xf] %v859
      %960 = vst [vmem:[%s172 + $0x7c] sm:$0xf] %v860
      %961 = vst [vmem:[%s172 + $0x80] sm:$0xf] %v861
      %962 = vst [vmem:[%s172 + $0x84] sm:$0xf] %v862
      %963 = vst [vmem:[%s172 + $0x88] sm:$0xf] %v863
      %964 = vst [vmem:[%s172 + $0x8c] sm:$0xf] %v864
      %965 = vst [vmem:[%s172 + $0x90] sm:$0xf] %v865
      %966 = vst [vmem:[%s172 + $0x94] sm:$0xf] %v866
      %967 = vst [vmem:[%s172 + $0x98] sm:$0xf] %v867
      %968 = vst [vmem:[%s172 + $0x9c] sm:$0xf] %v868
      %969 = vst [vmem:[%s172 + $0xa0] sm:$0xf] %v869
      %970 = vst [vmem:[%s172 + $0xa4] sm:$0xf] %v870
      %971 = vst [vmem:[%s172 + $0xa8] sm:$0xf] %v871
      %972 = vst [vmem:[%s172 + $0xac] sm:$0xf] %v872
      %973 = vst [vmem:[%s172 + $0xb0] sm:$0xf] %v873
      %974 = vst [vmem:[%s172 + $0xb4] sm:$0xf] %v874
      %975 = vst [vmem:[%s172 + $0xb8] sm:$0xf] %v875
      %976 = vst [vmem:[%s172 + $0xbc] sm:$0xf] %v876
      %977 = vst [vmem:[%s172 + $0xc0] sm:$0xf] %v877
      %978 = vst [vmem:[%s172 + $0xc4] sm:$0xf] %v878
      %s979 = smul.u32 50, %s14
      %p980 = scmp.lt.s32.totalorder %s979, 99
      %s981 = scalar_select %p980, %s979, 99
      %s982 = smul.addr %s981, 4
      %s983 = scalar_lea.vmem %s3, %s982
      // Predicated region
      $region33: #{atari_net_forward.4} parent=31 // pred_check
        %p984 = pneg %p100
      $region34: #{atari_net_forward.4} parent=31 // pred_check_branch
        %986 = sbr.rel (%p984) target = $region36
      $region35: #{atari_net_forward.4} parent=31 // pred_region
        %s987 = smul.u32 50, %s14
      $region36: #{atari_net_forward.4} parent=31 // pred_fallthru
        _
    $region32: #{atari_net_forward.4} parent=5 // pred_fallthru
      _
    %p988 = scmp.le.s32.totalorder 2, %s9
    // Predicated region
    $region37: #{atari_net_forward.4} parent=5 // pred_check
      %p989 = pneg %p988
    $region38: #{atari_net_forward.4} parent=5 // pred_check_branch
      %991 = sbr.rel (%p989) target = $region40
    $region39: #{atari_net_forward.4} parent=5 // pred_region
      %s992 = ssub.s32 %s9, 2
      // Predicated region
      $region41: #{atari_net_forward.4} parent=39 // pred_check
        %p993 = pneg %p106
      $region42: #{atari_net_forward.4} parent=39 // pred_check_branch
        %995 = sbr.rel (%p993) target = $region44
      $region43: #{atari_net_forward.4} parent=39 // pred_region
        %s996 = smul.u32 50, %s15
        %p997 = scmp.lt.s32.totalorder %s996, 99
        %s998 = scalar_select %p997, %s996, 99
        %s999 = smul.addr %s998, 4
        %s1000 = scalar_lea.vmem %s3, %s999
      $region44: #{atari_net_forward.4} parent=39 // pred_fallthru
        _
    $region40: #{atari_net_forward.4} parent=5 // pred_fallthru
      _
  $region6: #{atari_net_forward.4} parent=0 // loop_footer
    %s13 = sadd.s32 1, %s9
  $region7: #{atari_net_forward.4} parent=0 // loop_footer_branch
    %8 = sbr.rel target = $region3
  $region8: #{atari_net_forward.4} parent=0 // loop_exit
    _

// kernel: atari_net_forward.5
$region0: #{atari_net_forward.5}
  #allocation0 [shape = 'u32[]', space=smem, size = 0x4, offset = 0x4, fixed_abs, tag = 'smem constant byte address 0x4 - core index']
  #allocation1 [shape = 'u32[144,128]{1,0:T(1,128)}', space=vmem, size = 0x12000, scoped, tag = 'internal scratch']
  %s0 = inlined_call_operand.vmem [shape: bf16[168,512], index: 0, kind: input, shape index: {}]
  %s1 = inlined_call_operand.vmem [shape: bf16[512,128], index: 1, kind: input, shape index: {}]
  %s2 = inlined_call_operand.vmem [shape: f32[1,128], index: 2, kind: input, shape index: {}]
  %s3 = inlined_call_operand.vmem [shape: bf16[168,128], index: 3, kind: output, shape index: {}]
  %s4 = sld [smem:[#allocation0]]
  $region22: #{atari_net_forward.5} parent=0
    _
  %s6 = ssub.s32 1, %s4
  %s7 = scalar_select 0, %s6, %s4
  // Predicated region
  $region2: #{atari_net_forward.5} parent=0 // pred_check
    _
  $region3: #{atari_net_forward.5} parent=0 // pred_check_branch
    %9 = sbr.rel (0) target = $region5
  $region4: #{atari_net_forward.5} parent=0 // pred_region
    _
  $region5: #{atari_net_forward.5} parent=0 // pred_fallthru
    _
  // Predicated region
  $region6: #{atari_net_forward.5} parent=0 // pred_check
    _
  $region7: #{atari_net_forward.5} parent=0 // pred_check_branch
    %11 = sbr.rel (0) target = $region9
  $region8: #{atari_net_forward.5} parent=0 // pred_region
    _
  $region9: #{atari_net_forward.5} parent=0 // pred_fallthru
    _
  // Predicated region
  $region10: #{atari_net_forward.5} parent=0 // pred_check
    _
  $region11: #{atari_net_forward.5} parent=0 // pred_check_branch
    %13 = sbr.rel (0) target = $region13
  $region12: #{atari_net_forward.5} parent=0 // pred_region
    _
  $region13: #{atari_net_forward.5} parent=0 // pred_fallthru
    _
  %v15 = vld [vmem:[%s0] sm:$0xff]
  %v16 = vld [vmem:[%s0 + $0x8] sm:$0xff]
  %v17 = vld [vmem:[%s0 + $0x10] sm:$0xff]
  %v18 = vld [vmem:[%s0 + $0x18] sm:$0xff]
  %v19 = vld [vmem:[%s0 + $0x20] sm:$0xff]
  %v20 = vld [vmem:[%s0 + $0x28] sm:$0xff]
  %v21 = vld [vmem:[%s0 + $0x30] sm:$0xff]
  %v22 = vld [vmem:[%s0 + $0x38] sm:$0xff]
  %v23 = vld [vmem:[%s0 + $0x40] sm:$0xff]
  %v24 = vld [vmem:[%s0 + $0x48] sm:$0xff]
  %v25 = vld [vmem:[%s0 + $0x50] sm:$0xff]
  %v26 = vld [vmem:[%s0 + $0x58] sm:$0xff]
  %v27 = vld [vmem:[%s0 + $0x60] sm:$0xff]
  %v28 = vld [vmem:[%s0 + $0x68] sm:$0xff]
  %v29 = vld [vmem:[%s0 + $0x70] sm:$0xff]
  %v30 = vld [vmem:[%s0 + $0x78] sm:$0xff]
  %v31 = vld [vmem:[%s0 + $0x80] sm:$0xff]
  %v32 = vld [vmem:[%s0 + $0x88] sm:$0xff]
  %v33 = vld [vmem:[%s0 + $0x90] sm:$0xff]
  %v34 = vld [vmem:[%s0 + $0x98] sm:$0xff]
  %v35 = vld [vmem:[%s0 + $0xa0] sm:$0xff]
  %v36 = vld [vmem:[%s0 + $0xa8] sm:$0xff]
  %v37 = vld [vmem:[%s0 + $0xb0] sm:$0xff]
  %v38 = vld [vmem:[%s0 + $0xb8] sm:$0xff]
  %v39 = vld [vmem:[%s0 + $0xc0] sm:$0xff]
  %v40 = vld [vmem:[%s0 + $0xc8] sm:$0xff]
  %v41 = vld [vmem:[%s0 + $0xd0] sm:$0xff]
  %v42 = vld [vmem:[%s0 + $0xd8] sm:$0xff]
  %v43 = vld [vmem:[%s0 + $0xe0] sm:$0xff]
  %v44 = vld [vmem:[%s0 + $0xe8] sm:$0xff]
  %v45 = vld [vmem:[%s0 + $0xf0] sm:$0xff]
  %v46 = vld [vmem:[%s0 + $0xf8] sm:$0xff]
  %v47 = vld [vmem:[%s0 + $0x100] sm:$0xff]
  %v48 = vld [vmem:[%s0 + $0x108] sm:$0xff]
  %v49 = vld [vmem:[%s0 + $0x110] sm:$0xff]
  %v50 = vld [vmem:[%s0 + $0x118] sm:$0xff]
  %v51 = vld [vmem:[%s0 + $0x120] sm:$0xff]
  %v52 = vld [vmem:[%s0 + $0x128] sm:$0xff]
  %v53 = vld [vmem:[%s0 + $0x130] sm:$0xff]
  %v54 = vld [vmem:[%s0 + $0x138] sm:$0xff]
  %v55 = vld [vmem:[%s0 + $0x140] sm:$0xff]
  %v56 = vld [vmem:[%s0 + $0x148] sm:$0xff]
  %v57 = vld [vmem:[%s1] sm:$0xf]
  %v58 = vld [vmem:[%s1 + $0x4] sm:$0xf]
  %v59 = vld [vmem:[%s1 + $0x8] sm:$0xf]
  %v60 = vld [vmem:[%s1 + $0xc] sm:$0xf]
  %v61 = vld [vmem:[%s1 + $0x10] sm:$0xf]
  %v62 = vld [vmem:[%s1 + $0x14] sm:$0xf]
  %v63 = vld [vmem:[%s1 + $0x18] sm:$0xf]
  %v64 = vld [vmem:[%s1 + $0x1c] sm:$0xf]
  %v65 = vld [vmem:[%s1 + $0x20] sm:$0xf]
  %v66 = vld [vmem:[%s1 + $0x24] sm:$0xf]
  %v67 = vld [vmem:[%s1 + $0x28] sm:$0xf]
  %v68 = vld [vmem:[%s1 + $0x2c] sm:$0xf]
  %v69 = vld [vmem:[%s1 + $0x30] sm:$0xf]
  %v70 = vld [vmem:[%s1 + $0x34] sm:$0xf]
  %v71 = vld [vmem:[%s1 + $0x38] sm:$0xf]
  %v72 = vld [vmem:[%s1 + $0x3c] sm:$0xf]
  %v73 = vld [vmem:[%s1 + $0x40] sm:$0xf]
  %v74 = vld [vmem:[%s1 + $0x44] sm:$0xf]
  %v75 = vld [vmem:[%s1 + $0x48] sm:$0xf]
  %v76 = vld [vmem:[%s1 + $0x4c] sm:$0xf]
  %v77 = vld [vmem:[%s1 + $0x50] sm:$0xf]
  %v78 = vld [vmem:[%s1 + $0x54] sm:$0xf]
  %v79 = vld [vmem:[%s1 + $0x58] sm:$0xf]
  %v80 = vld [vmem:[%s1 + $0x5c] sm:$0xf]
  %v81 = vld [vmem:[%s1 + $0x60] sm:$0xf]
  %v82 = vld [vmem:[%s1 + $0x64] sm:$0xf]
  %v83 = vld [vmem:[%s1 + $0x68] sm:$0xf]
  %v84 = vld [vmem:[%s1 + $0x6c] sm:$0xf]
  %v85 = vld [vmem:[%s1 + $0x70] sm:$0xf]
  %v86 = vld [vmem:[%s1 + $0x74] sm:$0xf]
  %v87 = vld [vmem:[%s1 + $0x78] sm:$0xf]
  %v88 = vld [vmem:[%s1 + $0x7c] sm:$0xf]
  %v89 = vld [vmem:[%s1 + $0x80] sm:$0xf]
  %v90 = vld [vmem:[%s1 + $0x84] sm:$0xf]
  %v91 = vld [vmem:[%s1 + $0x88] sm:$0xf]
  %v92 = vld [vmem:[%s1 + $0x8c] sm:$0xf]
  %v93 = vld [vmem:[%s1 + $0x90] sm:$0xf]
  %v94 = vld [vmem:[%s1 + $0x94] sm:$0xf]
  %v95 = vld [vmem:[%s1 + $0x98] sm:$0xf]
  %v96 = vld [vmem:[%s1 + $0x9c] sm:$0xf]
  %v97 = vld [vmem:[%s1 + $0xa0] sm:$0xf]
  %v98 = vld [vmem:[%s1 + $0xa4] sm:$0xf]
  %v99 = vld [vmem:[%s1 + $0xa8] sm:$0xf]
  %v100 = vld [vmem:[%s1 + $0xac] sm:$0xf]
  %v101 = vld [vmem:[%s1 + $0xb0] sm:$0xf]
  %v102 = vld [vmem:[%s1 + $0xb4] sm:$0xf]
  %v103 = vld [vmem:[%s1 + $0xb8] sm:$0xf]
  %v104 = vld [vmem:[%s1 + $0xbc] sm:$0xf]
  %v105 = vld [vmem:[%s1 + $0xc0] sm:$0xf]
  %v106 = vld [vmem:[%s1 + $0xc4] sm:$0xf]
  %v107 = vld [vmem:[%s1 + $0xc8] sm:$0xf]
  %v108 = vld [vmem:[%s1 + $0xcc] sm:$0xf]
  %v109 = vld [vmem:[%s1 + $0xd0] sm:$0xf]
  %v110 = vld [vmem:[%s1 + $0xd4] sm:$0xf]
  %v111 = vld [vmem:[%s1 + $0xd8] sm:$0xf]
  %v112 = vld [vmem:[%s1 + $0xdc] sm:$0xf]
  %v113 = vld [vmem:[%s1 + $0xe0] sm:$0xf]
  %v114 = vld [vmem:[%s1 + $0xe4] sm:$0xf]
  %v115 = vld [vmem:[%s1 + $0xe8] sm:$0xf]
  %v116 = vld [vmem:[%s1 + $0xec] sm:$0xf]
  %v117 = vld [vmem:[%s1 + $0xf0] sm:$0xf]
  %v118 = vld [vmem:[%s1 + $0xf4] sm:$0xf]
  %v119 = vld [vmem:[%s1 + $0xf8] sm:$0xf]
  %v120 = vld [vmem:[%s1 + $0xfc] sm:$0xf]
  %v121 = vld [vmem:[%s2] sm:$0x1]
  %v123 = vlaneseq
  %v124 = vshrl.u32 %v123, 7
  %v125 = vsub.s32 0, %v124
  %v126 = vrot.slane %v121, %v125
  %v170 = vunpack.c.l.b16 %v15
  %v171 = vunpack.c.h.b16 %v15
  %v172 = vunpack.c.l.b16 %v16
  %v173 = vunpack.c.h.b16 %v16
  %v174 = vunpack.c.l.b16 %v17
  %v175 = vunpack.c.h.b16 %v17
  %v176 = vunpack.c.l.b16 %v18
  %v177 = vunpack.c.h.b16 %v18
  %v178 = vunpack.c.l.b16 %v19
  %v179 = vunpack.c.h.b16 %v19
  %v180 = vunpack.c.l.b16 %v20
  %v181 = vunpack.c.h.b16 %v20
  %v182 = vunpack.c.l.b16 %v21
  %v183 = vunpack.c.h.b16 %v21
  %v184 = vunpack.c.l.b16 %v22
  %v185 = vunpack.c.h.b16 %v22
  %v186 = vunpack.c.l.b16 %v23
  %v187 = vunpack.c.h.b16 %v23
  %v188 = vunpack.c.l.b16 %v24
  %v189 = vunpack.c.h.b16 %v24
  %v190 = vunpack.c.l.b16 %v25
  %v191 = vunpack.c.h.b16 %v25
  %v192 = vunpack.c.l.b16 %v26
  %v193 = vunpack.c.h.b16 %v26
  %v194 = vunpack.c.l.b16 %v27
  %v195 = vunpack.c.h.b16 %v27
  %v196 = vunpack.c.l.b16 %v28
  %v197 = vunpack.c.h.b16 %v28
  %v198 = vunpack.c.l.b16 %v29
  %v199 = vunpack.c.h.b16 %v29
  %v200 = vunpack.c.l.b16 %v30
  %v201 = vunpack.c.h.b16 %v30
  %v202 = vunpack.c.l.b16 %v31
  %v203 = vunpack.c.h.b16 %v31
  %v204 = vunpack.c.l.b16 %v32
  %v205 = vunpack.c.h.b16 %v32
  %v206 = vunpack.c.l.b16 %v33
  %v207 = vunpack.c.h.b16 %v33
  %v208 = vunpack.c.l.b16 %v34
  %v209 = vunpack.c.h.b16 %v34
  %v210 = vunpack.c.l.b16 %v35
  %v211 = vunpack.c.h.b16 %v35
  %v212 = vunpack.c.l.b16 %v36
  %v213 = vunpack.c.h.b16 %v36
  %v214 = vunpack.c.l.b16 %v37
  %v215 = vunpack.c.h.b16 %v37
  %v216 = vunpack.c.l.b16 %v38
  %v217 = vunpack.c.h.b16 %v38
  %v218 = vunpack.c.l.b16 %v39
  %v219 = vunpack.c.h.b16 %v39
  %v220 = vunpack.c.l.b16 %v40
  %v221 = vunpack.c.h.b16 %v40
  %v222 = vunpack.c.l.b16 %v41
  %v223 = vunpack.c.h.b16 %v41
  %v224 = vunpack.c.l.b16 %v42
  %v225 = vunpack.c.h.b16 %v42
  %v226 = vunpack.c.l.b16 %v43
  %v227 = vunpack.c.h.b16 %v43
  %v228 = vunpack.c.l.b16 %v44
  %v229 = vunpack.c.h.b16 %v44
  %v230 = vunpack.c.l.b16 %v45
  %v231 = vunpack.c.h.b16 %v45
  %v232 = vunpack.c.l.b16 %v46
  %v233 = vunpack.c.h.b16 %v46
  %v234 = vunpack.c.l.b16 %v47
  %v235 = vunpack.c.h.b16 %v47
  %v236 = vunpack.c.l.b16 %v48
  %v237 = vunpack.c.h.b16 %v48
  %v238 = vunpack.c.l.b16 %v49
  %v239 = vunpack.c.h.b16 %v49
  %v240 = vunpack.c.l.b16 %v50
  %v241 = vunpack.c.h.b16 %v50
  %v242 = vunpack.c.l.b16 %v51
  %v243 = vunpack.c.h.b16 %v51
  %v244 = vunpack.c.l.b16 %v52
  %v245 = vunpack.c.h.b16 %v52
  %v246 = vunpack.c.l.b16 %v53
  %v247 = vunpack.c.h.b16 %v53
  %v248 = vunpack.c.l.b16 %v54
  %v249 = vunpack.c.h.b16 %v54
  %v250 = vunpack.c.l.b16 %v55
  %v251 = vunpack.c.h.b16 %v55
  %v252 = vunpack.c.l.b16 %v56
  %v253 = vunpack.c.h.b16 %v56
  %v254 = vpack.c.b16 %v174, %v170
  %v255 = vpack.c.b16 %v175, %v171
  %v256 = vpack.c.b16 %v176, %v172
  %v257 = vpack.c.b16 %v177, %v173
  %v258 = vpack.c.b16 %v182, %v178
  %v259 = vpack.c.b16 %v183, %v179
  %v260 = vpack.c.b16 %v184, %v180
  %v261 = vpack.c.b16 %v185, %v181
  %v262 = vpack.c.b16 %v190, %v186
  %v263 = vpack.c.b16 %v191, %v187
  %v264 = vpack.c.b16 %v192, %v188
  %v265 = vpack.c.b16 %v193, %v189
  %v266 = vpack.c.b16 %v198, %v194
  %v267 = vpack.c.b16 %v199, %v195
  %v268 = vpack.c.b16 %v200, %v196
  %v269 = vpack.c.b16 %v201, %v197
  %v270 = vpack.c.b16 %v206, %v202
  %v271 = vpack.c.b16 %v207, %v203
  %v272 = vpack.c.b16 %v208, %v204
  %v273 = vpack.c.b16 %v209, %v205
  %v274 = vpack.c.b16 %v214, %v210
  %v275 = vpack.c.b16 %v215, %v211
  %v276 = vpack.c.b16 %v216, %v212
  %v277 = vpack.c.b16 %v217, %v213
  %v278 = vpack.c.b16 %v222, %v218
  %v279 = vpack.c.b16 %v223, %v219
  %v280 = vpack.c.b16 %v224, %v220
  %v281 = vpack.c.b16 %v225, %v221
  %v282 = vpack.c.b16 %v230, %v226
  %v283 = vpack.c.b16 %v231, %v227
  %v284 = vpack.c.b16 %v232, %v228
  %v285 = vpack.c.b16 %v233, %v229
  %v286 = vpack.c.b16 %v238, %v234
  %v287 = vpack.c.b16 %v239, %v235
  %v288 = vpack.c.b16 %v240, %v236
  %v289 = vpack.c.b16 %v241, %v237
  %v290 = vpack.c.b16 %v246, %v242
  %v291 = vpack.c.b16 %v247, %v243
  %v292 = vpack.c.b16 %v248, %v244
  %v293 = vpack.c.b16 %v249, %v245
  %v294 = vpack.c.b16 %v250, %v250
  %v295 = vpack.c.b16 %v251, %v251
  %v296 = vpack.c.b16 %v252, %v252
  %v297 = vpack.c.b16 %v253, %v253
  %v406 = vunpack.c.l.b16 %v57
  %v407 = vunpack.c.l.b16 %v58
  %v408 = vunpack.c.l.b16 %v59
  %v409 = vunpack.c.l.b16 %v60
  %v410 = vunpack.c.l.b16 %v61
  %v411 = vunpack.c.l.b16 %v62
  %v412 = vunpack.c.l.b16 %v63
  %v413 = vunpack.c.l.b16 %v64
  %v414 = vunpack.c.l.b16 %v65
  %v415 = vunpack.c.l.b16 %v66
  %v416 = vunpack.c.l.b16 %v67
  %v417 = vunpack.c.l.b16 %v68
  %v418 = vunpack.c.l.b16 %v69
  %v419 = vunpack.c.l.b16 %v70
  %v420 = vunpack.c.l.b16 %v71
  %v421 = vunpack.c.l.b16 %v72
  %v422 = vunpack.c.l.b16 %v73
  %v423 = vunpack.c.l.b16 %v74
  %v424 = vunpack.c.l.b16 %v75
  %v425 = vunpack.c.l.b16 %v76
  %v426 = vunpack.c.l.b16 %v77
  %v427 = vunpack.c.l.b16 %v78
  %v428 = vunpack.c.l.b16 %v79
  %v429 = vunpack.c.l.b16 %v80
  %v430 = vunpack.c.l.b16 %v81
  %v431 = vunpack.c.l.b16 %v82
  %v432 = vunpack.c.l.b16 %v83
  %v433 = vunpack.c.l.b16 %v84
  %v434 = vunpack.c.l.b16 %v85
  %v435 = vunpack.c.l.b16 %v86
  %v436 = vunpack.c.l.b16 %v87
  %v437 = vunpack.c.l.b16 %v88
  %v438 = vunpack.c.l.b16 %v89
  %v439 = vunpack.c.l.b16 %v90
  %v440 = vunpack.c.l.b16 %v91
  %v441 = vunpack.c.l.b16 %v92
  %v442 = vunpack.c.l.b16 %v93
  %v443 = vunpack.c.l.b16 %v94
  %v444 = vunpack.c.l.b16 %v95
  %v445 = vunpack.c.l.b16 %v96
  %v446 = vunpack.c.l.b16 %v97
  %v447 = vunpack.c.l.b16 %v98
  %v448 = vunpack.c.l.b16 %v99
  %v449 = vunpack.c.l.b16 %v100
  %v450 = vunpack.c.l.b16 %v101
  %v451 = vunpack.c.l.b16 %v102
  %v452 = vunpack.c.l.b16 %v103
  %v453 = vunpack.c.l.b16 %v104
  %v454 = vunpack.c.l.b16 %v105
  %v455 = vunpack.c.l.b16 %v106
  %v456 = vunpack.c.l.b16 %v107
  %v457 = vunpack.c.l.b16 %v108
  %v458 = vunpack.c.l.b16 %v109
  %v459 = vunpack.c.l.b16 %v110
  %v460 = vunpack.c.l.b16 %v111
  %v461 = vunpack.c.l.b16 %v112
  %v462 = vunpack.c.l.b16 %v113
  %v463 = vunpack.c.l.b16 %v114
  %v464 = vunpack.c.l.b16 %v115
  %v465 = vunpack.c.l.b16 %v116
  %v466 = vunpack.c.l.b16 %v117
  %v467 = vunpack.c.l.b16 %v118
  %v468 = vunpack.c.l.b16 %v119
  %v469 = vunpack.c.l.b16 %v120
  %v470 = vpack.c.b16 %v407, %v406
  %v471 = vpack.c.b16 %v409, %v408
  %v472 = vpack.c.b16 %v411, %v410
  %v473 = vpack.c.b16 %v413, %v412
  %v474 = vpack.c.b16 %v415, %v414
  %v475 = vpack.c.b16 %v417, %v416
  %v476 = vpack.c.b16 %v419, %v418
  %v477 = vpack.c.b16 %v421, %v420
  %v478 = vpack.c.b16 %v423, %v422
  %v479 = vpack.c.b16 %v425, %v424
  %v480 = vpack.c.b16 %v427, %v426
  %v481 = vpack.c.b16 %v429, %v428
  %v482 = vpack.c.b16 %v431, %v430
  %v483 = vpack.c.b16 %v433, %v432
  %v484 = vpack.c.b16 %v435, %v434
  %v485 = vpack.c.b16 %v437, %v436
  %v486 = vpack.c.b16 %v439, %v438
  %v487 = vpack.c.b16 %v441, %v440
  %v488 = vpack.c.b16 %v443, %v442
  %v489 = vpack.c.b16 %v445, %v444
  %v490 = vpack.c.b16 %v447, %v446
  %v491 = vpack.c.b16 %v449, %v448
  %v492 = vpack.c.b16 %v451, %v450
  %v493 = vpack.c.b16 %v453, %v452
  %v494 = vpack.c.b16 %v455, %v454
  %v495 = vpack.c.b16 %v457, %v456
  %v496 = vpack.c.b16 %v459, %v458
  %v497 = vpack.c.b16 %v461, %v460
  %v498 = vpack.c.b16 %v463, %v462
  %v499 = vpack.c.b16 %v465, %v464
  %v500 = vpack.c.b16 %v467, %v466
  %v501 = vpack.c.b16 %v469, %v468
  %534 = vmatprep.subr.bf16.mxu0 0
  %535 = vmatpush1.bf16.msra.mxu0 %v470
  %536 = vmatprep.subr.bf16.mxu0 0
  %537 = vmatpush1.bf16.msra.mxu0 %v471
  %538 = vmatprep.subr.bf16.mxu0 0
  %539 = vmatpush1.bf16.msra.mxu0 %v472
  %540 = vmatprep.subr.bf16.mxu0 0
  %541 = vmatpush1.bf16.msra.mxu0 %v473
  %542 = vmatprep.subr.bf16.mxu0 0
  %543 = vmatpush1.bf16.msra.mxu0 %v474
  %544 = vmatprep.subr.bf16.mxu0 0
  %545 = vmatpush1.bf16.msra.mxu0 %v475
  %546 = vmatprep.subr.bf16.mxu0 0
  %547 = vmatpush1.bf16.msra.mxu0 %v476
  %548 = vmatprep.subr.bf16.mxu0 0
  %549 = vmatpush1.bf16.msra.mxu0 %v477
  %550 = vmatprep.subr.bf16.mxu0 0
  %551 = vmatpush1.bf16.msra.mxu0 %v478
  %552 = vmatprep.subr.bf16.mxu0 0
  %553 = vmatpush1.bf16.msra.mxu0 %v479
  %554 = vmatprep.subr.bf16.mxu0 0
  %555 = vmatpush1.bf16.msra.mxu0 %v480
  %556 = vmatprep.subr.bf16.mxu0 0
  %557 = vmatpush1.bf16.msra.mxu0 %v481
  %558 = vmatprep.subr.bf16.mxu0 0
  %559 = vmatpush1.bf16.msra.mxu0 %v482
  %560 = vmatprep.subr.bf16.mxu0 0
  %561 = vmatpush1.bf16.msra.mxu0 %v483
  %562 = vmatprep.subr.bf16.mxu0 0
  %563 = vmatpush1.bf16.msra.mxu0 %v484
  %564 = vmatprep.subr.bf16.mxu0 0
  %565 = vmatpush1.bf16.msra.mxu0 %v485
  %566 = vmatprep.mubr.bf16.mxu0 %v255
  %567 = vmatmul.mubr.bf16.gmra.mrb[0].mxu0 %v254
  %v568 = vpop.f32.mrb[0].mxu0
  %v569 = vadd.f32 %v126, %v568
  %v570 = vpop.f32.mrb[0].mxu0
  %v571 = vpop.f32.mrb[0].mxu0
  %v572 = vadd.f32 %v126, %v571
  %v573 = vpop.f32.mrb[0].mxu0
  %574 = vmatprep.mubr.bf16.mxu0 %v259
  %575 = vmatmul.mubr.bf16.gmra.mrb[0].mxu0 %v258
  %v576 = vpop.f32.mrb[0].mxu0
  %v577 = vadd.f32 %v126, %v576
  %v578 = vpop.f32.mrb[0].mxu0
  %v579 = vpop.f32.mrb[0].mxu0
  %v580 = vadd.f32 %v126, %v579
  %v581 = vpop.f32.mrb[0].mxu0
  %582 = vmatprep.mubr.bf16.mxu0 %v263
  %583 = vmatmul.mubr.bf16.gmra.mrb[0].mxu0 %v262
  %v584 = vpop.f32.mrb[0].mxu0
  %v585 = vadd.f32 %v126, %v584
  %v586 = vpop.f32.mrb[0].mxu0
  %v587 = vpop.f32.mrb[0].mxu0
  %v588 = vadd.f32 %v126, %v587
  %v589 = vpop.f32.mrb[0].mxu0
  %590 = vmatprep.mubr.bf16.mxu0 %v267
  %591 = vmatmul.mubr.bf16.gmra.mrb[0].mxu0 %v266
  %v592 = vpop.f32.mrb[0].mxu0
  %v593 = vadd.f32 %v126, %v592
  %v594 = vpop.f32.mrb[0].mxu0
  %v595 = vpop.f32.mrb[0].mxu0
  %v596 = vadd.f32 %v126, %v595
  %v597 = vpop.f32.mrb[0].mxu0
  %598 = vmatprep.mubr.bf16.mxu0 %v271
  %599 = vmatmul.mubr.bf16.gmra.mrb[0].mxu0 %v270
  %v600 = vpop.f32.mrb[0].mxu0
  %v601 = vadd.f32 %v126, %v600
  %v602 = vpop.f32.mrb[0].mxu0
  %v603 = vpop.f32.mrb[0].mxu0
  %v604 = vadd.f32 %v126, %v603
  %v605 = vpop.f32.mrb[0].mxu0
  %606 = vmatprep.mubr.bf16.mxu0 %v275
  %607 = vmatmul.mubr.bf16.gmra.mrb[0].mxu0 %v274
  %v608 = vpop.f32.mrb[0].mxu0
  %v609 = vadd.f32 %v126, %v608
  %v610 = vpop.f32.mrb[0].mxu0
  %v611 = vpop.f32.mrb[0].mxu0
  %v612 = vadd.f32 %v126, %v611
  %v613 = vpop.f32.mrb[0].mxu0
  %614 = vmatprep.mubr.bf16.mxu0 %v279
  %615 = vmatmul.mubr.bf16.gmra.mrb[0].mxu0 %v278
  %v616 = vpop.f32.mrb[0].mxu0
  %v617 = vadd.f32 %v126, %v616
  %v618 = vpop.f32.mrb[0].mxu0
  %v619 = vpop.f32.mrb[0].mxu0
  %v620 = vadd.f32 %v126, %v619
  %v621 = vpop.f32.mrb[0].mxu0
  %622 = vmatprep.mubr.bf16.mxu0 %v283
  %623 = vmatmul.mubr.bf16.gmra.mrb[0].mxu0 %v282
  %v624 = vpop.f32.mrb[0].mxu0
  %v625 = vadd.f32 %v126, %v624
  %v626 = vpop.f32.mrb[0].mxu0
  %v627 = vpop.f32.mrb[0].mxu0
  %v628 = vadd.f32 %v126, %v627
  %v629 = vpop.f32.mrb[0].mxu0
  %630 = vmatprep.mubr.bf16.mxu0 %v287
  %631 = vmatmul.mubr.bf16.gmra.mrb[0].mxu0 %v286
  %v632 = vpop.f32.mrb[0].mxu0
  %v633 = vadd.f32 %v126, %v632
  %v634 = vpop.f32.mrb[0].mxu0
  %v635 = vpop.f32.mrb[0].mxu0
  %v636 = vadd.f32 %v126, %v635
  %v637 = vpop.f32.mrb[0].mxu0
  %638 = vmatprep.mubr.bf16.mxu0 %v291
  %639 = vmatmul.mubr.bf16.gmra.mrb[0].mxu0 %v290
  %v640 = vpop.f32.mrb[0].mxu0
  %v641 = vadd.f32 %v126, %v640
  %v642 = vpop.f32.mrb[0].mxu0
  %v643 = vpop.f32.mrb[0].mxu0
  %v644 = vadd.f32 %v126, %v643
  %v645 = vpop.f32.mrb[0].mxu0
  %646 = vmatprep.mubr.bf16.mxu0 %v295
  %647 = vmatmul.mubr.bf16.gmra.mrb[0].mxu0 %v294
  %v648 = vpop.f32.mrb[0].mxu0
  %v649 = vadd.f32 %v126, %v648
  %v650 = vpop.f32.mrb[0].mxu0
  %v651 = vpop.f32.mrb[0].mxu0
  %v652 = vpop.f32.mrb[0].mxu0
  %653 = vdwg.mxu0
  %654 = vmatprep.subr.bf16.mxu0 0
  %655 = vmatpush1.bf16.msra.mxu0 %v486
  %656 = vmatprep.subr.bf16.mxu0 0
  %657 = vmatpush1.bf16.msra.mxu0 %v487
  %658 = vmatprep.subr.bf16.mxu0 0
  %659 = vmatpush1.bf16.msra.mxu0 %v488
  %660 = vmatprep.subr.bf16.mxu0 0
  %661 = vmatpush1.bf16.msra.mxu0 %v489
  %662 = vmatprep.subr.bf16.mxu0 0
  %663 = vmatpush1.bf16.msra.mxu0 %v490
  %664 = vmatprep.subr.bf16.mxu0 0
  %665 = vmatpush1.bf16.msra.mxu0 %v491
  %666 = vmatprep.subr.bf16.mxu0 0
  %667 = vmatpush1.bf16.msra.mxu0 %v492
  %668 = vmatprep.subr.bf16.mxu0 0
  %669 = vmatpush1.bf16.msra.mxu0 %v493
  %670 = vmatprep.subr.bf16.mxu0 0
  %671 = vmatpush1.bf16.msra.mxu0 %v494
  %672 = vmatprep.subr.bf16.mxu0 0
  %673 = vmatpush1.bf16.msra.mxu0 %v495
  %674 = vmatprep.subr.bf16.mxu0 0
  %675 = vmatpush1.bf16.msra.mxu0 %v496
  %676 = vmatprep.subr.bf16.mxu0 0
  %677 = vmatpush1.bf16.msra.mxu0 %v497
  %678 = vmatprep.subr.bf16.mxu0 0
  %679 = vmatpush1.bf16.msra.mxu0 %v498
  %680 = vmatprep.subr.bf16.mxu0 0
  %681 = vmatpush1.bf16.msra.mxu0 %v499
  %682 = vmatprep.subr.bf16.mxu0 0
  %683 = vmatpush1.bf16.msra.mxu0 %v500
  %684 = vmatprep.subr.bf16.mxu0 0
  %685 = vmatpush1.bf16.msra.mxu0 %v501
  %686 = vmatprep.mubr.bf16.mxu0 %v257
  %687 = vmatmul.mubr.bf16.gmra.mrb[0].mxu0 %v256
  %v688 = vpop.f32.mrb[0].mxu0
  %v689 = vadd.f32 %v569, %v688
  %v690 = vpop.f32.mrb[0].mxu0
  %v691 = vpop.f32.mrb[0].mxu0
  %v692 = vadd.f32 %v572, %v691
  %v693 = vpop.f32.mrb[0].mxu0
  %694 = vmatprep.mubr.bf16.mxu0 %v261
  %695 = vmatmul.mubr.bf16.gmra.mrb[0].mxu0 %v260
  %v696 = vpop.f32.mrb[0].mxu0
  %v697 = vadd.f32 %v577, %v696
  %v698 = vpop.f32.mrb[0].mxu0
  %v699 = vpop.f32.mrb[0].mxu0
  %v700 = vadd.f32 %v580, %v699
  %v701 = vpop.f32.mrb[0].mxu0
  %702 = vmatprep.mubr.bf16.mxu0 %v265
  %703 = vmatmul.mubr.bf16.gmra.mrb[0].mxu0 %v264
  %v704 = vpop.f32.mrb[0].mxu0
  %v705 = vadd.f32 %v585, %v704
  %v706 = vpop.f32.mrb[0].mxu0
  %v707 = vpop.f32.mrb[0].mxu0
  %v708 = vadd.f32 %v588, %v707
  %v709 = vpop.f32.mrb[0].mxu0
  %710 = vmatprep.mubr.bf16.mxu0 %v269
  %711 = vmatmul.mubr.bf16.gmra.mrb[0].mxu0 %v268
  %v712 = vpop.f32.mrb[0].mxu0
  %v713 = vadd.f32 %v593, %v712
  %v714 = vpop.f32.mrb[0].mxu0
  %v715 = vpop.f32.mrb[0].mxu0
  %v716 = vadd.f32 %v596, %v715
  %v717 = vpop.f32.mrb[0].mxu0
  %718 = vmatprep.mubr.bf16.mxu0 %v273
  %719 = vmatmul.mubr.bf16.gmra.mrb[0].mxu0 %v272
  %v720 = vpop.f32.mrb[0].mxu0
  %v721 = vadd.f32 %v601, %v720
  %v722 = vpop.f32.mrb[0].mxu0
  %v723 = vpop.f32.mrb[0].mxu0
  %v724 = vadd.f32 %v604, %v723
  %v725 = vpop.f32.mrb[0].mxu0
  %726 = vmatprep.mubr.bf16.mxu0 %v277
  %727 = vmatmul.mubr.bf16.gmra.mrb[0].mxu0 %v276
  %v728 = vpop.f32.mrb[0].mxu0
  %v729 = vadd.f32 %v609, %v728
  %v730 = vpop.f32.mrb[0].mxu0
  %v731 = vpop.f32.mrb[0].mxu0
  %v732 = vadd.f32 %v612, %v731
  %v733 = vpop.f32.mrb[0].mxu0
  %734 = vmatprep.mubr.bf16.mxu0 %v281
  %735 = vmatmul.mubr.bf16.gmra.mrb[0].mxu0 %v280
  %v736 = vpop.f32.mrb[0].mxu0
  %v737 = vadd.f32 %v617, %v736
  %v738 = vpop.f32.mrb[0].mxu0
  %v739 = vpop.f32.mrb[0].mxu0
  %v740 = vadd.f32 %v620, %v739
  %v741 = vpop.f32.mrb[0].mxu0
  %742 = vmatprep.mubr.bf16.mxu0 %v285
  %743 = vmatmul.mubr.bf16.gmra.mrb[0].mxu0 %v284
  %v744 = vpop.f32.mrb[0].mxu0
  %v745 = vadd.f32 %v625, %v744
  %v746 = vpop.f32.mrb[0].mxu0
  %v747 = vpop.f32.mrb[0].mxu0
  %v748 = vadd.f32 %v628, %v747
  %v749 = vpop.f32.mrb[0].mxu0
  %750 = vmatprep.mubr.bf16.mxu0 %v289
  %751 = vmatmul.mubr.bf16.gmra.mrb[0].mxu0 %v288
  %v752 = vpop.f32.mrb[0].mxu0
  %v753 = vadd.f32 %v633, %v752
  %v754 = vpop.f32.mrb[0].mxu0
  %v755 = vpop.f32.mrb[0].mxu0
  %v756 = vadd.f32 %v636, %v755
  %v757 = vpop.f32.mrb[0].mxu0
  %758 = vmatprep.mubr.bf16.mxu0 %v293
  %759 = vmatmul.mubr.bf16.gmra.mrb[0].mxu0 %v292
  %v760 = vpop.f32.mrb[0].mxu0
  %v761 = vadd.f32 %v641, %v760
  %v762 = vpop.f32.mrb[0].mxu0
  %v763 = vpop.f32.mrb[0].mxu0
  %v764 = vadd.f32 %v644, %v763
  %v765 = vpop.f32.mrb[0].mxu0
  %766 = vmatprep.mubr.bf16.mxu0 %v297
  %767 = vmatmul.mubr.bf16.gmra.mrb[0].mxu0 %v296
  %v768 = vpop.f32.mrb[0].mxu0
  %v769 = vadd.f32 %v649, %v768
  %v770 = vpop.f32.mrb[0].mxu0
  %v771 = vpop.f32.mrb[0].mxu0
  %v772 = vpop.f32.mrb[0].mxu0
  %773 = vdwg.mxu0
  %v774 = vmax.f32 %v689, 0.0
  %v775 = vmax.f32 %v692, 0.0
  %v776 = vmax.f32 %v697, 0.0
  %v777 = vmax.f32 %v700, 0.0
  %v778 = vmax.f32 %v705, 0.0
  %v779 = vmax.f32 %v708, 0.0
  %v780 = vmax.f32 %v713, 0.0
  %v781 = vmax.f32 %v716, 0.0
  %v782 = vmax.f32 %v721, 0.0
  %v783 = vmax.f32 %v724, 0.0
  %v784 = vmax.f32 %v729, 0.0
  %v785 = vmax.f32 %v732, 0.0
  %v786 = vmax.f32 %v737, 0.0
  %v787 = vmax.f32 %v740, 0.0
  %v788 = vmax.f32 %v745, 0.0
  %v789 = vmax.f32 %v748, 0.0
  %v790 = vmax.f32 %v753, 0.0
  %v791 = vmax.f32 %v756, 0.0
  %v792 = vmax.f32 %v761, 0.0
  %v793 = vmax.f32 %v764, 0.0
  %v794 = vmax.f32 %v769, 0.0
  %v795 = vpack.c.bf16 %v775, %v774
  %v796 = vpack.c.bf16 %v777, %v776
  %v797 = vpack.c.bf16 %v779, %v778
  %v798 = vpack.c.bf16 %v781, %v780
  %v799 = vpack.c.bf16 %v783, %v782
  %v800 = vpack.c.bf16 %v785, %v784
  %v801 = vpack.c.bf16 %v787, %v786
  %v802 = vpack.c.bf16 %v789, %v788
  %v803 = vpack.c.bf16 %v791, %v790
  %v804 = vpack.c.bf16 %v793, %v792
  %v805 = vpack.c.bf16 %v794, %v794
  %v817 = vunpack.c.l.b16 %v795
  %v818 = vunpack.c.h.b16 %v795
  %v819 = vunpack.c.l.b16 %v796
  %v820 = vunpack.c.h.b16 %v796
  %v821 = vunpack.c.l.b16 %v797
  %v822 = vunpack.c.h.b16 %v797
  %v823 = vunpack.c.l.b16 %v798
  %v824 = vunpack.c.h.b16 %v798
  %v825 = vunpack.c.l.b16 %v799
  %v826 = vunpack.c.h.b16 %v799
  %v827 = vunpack.c.l.b16 %v800
  %v828 = vunpack.c.h.b16 %v800
  %v829 = vunpack.c.l.b16 %v801
  %v830 = vunpack.c.h.b16 %v801
  %v831 = vunpack.c.l.b16 %v802
  %v832 = vunpack.c.h.b16 %v802
  %v833 = vunpack.c.l.b16 %v803
  %v834 = vunpack.c.h.b16 %v803
  %v835 = vunpack.c.l.b16 %v804
  %v836 = vunpack.c.h.b16 %v804
  %v837 = vunpack.c.l.b16 %v805
  %v838 = vpack.c.b16 %v817, %v817
  %v839 = vpack.c.b16 %v818, %v818
  %v840 = vpack.c.b16 %v819, %v819
  %v841 = vpack.c.b16 %v820, %v820
  %v842 = vpack.c.b16 %v821, %v821
  %v843 = vpack.c.b16 %v822, %v822
  %v844 = vpack.c.b16 %v823, %v823
  %v845 = vpack.c.b16 %v824, %v824
  %v846 = vpack.c.b16 %v825, %v825
  %v847 = vpack.c.b16 %v826, %v826
  %v848 = vpack.c.b16 %v827, %v827
  %v849 = vpack.c.b16 %v828, %v828
  %v850 = vpack.c.b16 %v829, %v829
  %v851 = vpack.c.b16 %v830, %v830
  %v852 = vpack.c.b16 %v831, %v831
  %v853 = vpack.c.b16 %v832, %v832
  %v854 = vpack.c.b16 %v833, %v833
  %v855 = vpack.c.b16 %v834, %v834
  %v856 = vpack.c.b16 %v835, %v835
  %v857 = vpack.c.b16 %v836, %v836
  %v858 = vpack.c.b16 %v837, %v837
  %880 = vst [vmem:[%s3] sm:$0xf] %v838
  %881 = vst [vmem:[%s3 + $0x4] sm:$0xf] %v839
  %882 = vst [vmem:[%s3 + $0x8] sm:$0xf] %v840
  %883 = vst [vmem:[%s3 + $0xc] sm:$0xf] %v841
  %884 = vst [vmem:[%s3 + $0x10] sm:$0xf] %v842
  %885 = vst [vmem:[%s3 + $0x14] sm:$0xf] %v843
  %886 = vst [vmem:[%s3 + $0x18] sm:$0xf] %v844
  %887 = vst [vmem:[%s3 + $0x1c] sm:$0xf] %v845
  %888 = vst [vmem:[%s3 + $0x20] sm:$0xf] %v846
  %889 = vst [vmem:[%s3 + $0x24] sm:$0xf] %v847
  %890 = vst [vmem:[%s3 + $0x28] sm:$0xf] %v848
  %891 = vst [vmem:[%s3 + $0x2c] sm:$0xf] %v849
  %892 = vst [vmem:[%s3 + $0x30] sm:$0xf] %v850
  %893 = vst [vmem:[%s3 + $0x34] sm:$0xf] %v851
  %894 = vst [vmem:[%s3 + $0x38] sm:$0xf] %v852
  %895 = vst [vmem:[%s3 + $0x3c] sm:$0xf] %v853
  %896 = vst [vmem:[%s3 + $0x40] sm:$0xf] %v854
  %897 = vst [vmem:[%s3 + $0x44] sm:$0xf] %v855
  %898 = vst [vmem:[%s3 + $0x48] sm:$0xf] %v856
  %899 = vst [vmem:[%s3 + $0x4c] sm:$0xf] %v857
  %900 = vst [vmem:[%s3 + $0x50] sm:$0xf] %v858
  // Predicated region
  $region14: #{atari_net_forward.5} parent=0 // pred_check
    _
  $region15: #{atari_net_forward.5} parent=0 // pred_check_branch
    %902 = sbr.rel (0) target = $region17
  $region16: #{atari_net_forward.5} parent=0 // pred_region
    _
  $region17: #{atari_net_forward.5} parent=0 // pred_fallthru
    _
  // Predicated region
  $region18: #{atari_net_forward.5} parent=0 // pred_check
    _
  $region19: #{atari_net_forward.5} parent=0 // pred_check_branch
    %904 = sbr.rel (0) target = $region21
  $region20: #{atari_net_forward.5} parent=0 // pred_region
    _
  $region21: #{atari_net_forward.5} parent=0 // pred_fallthru
    _

// kernel: atari_net_forward.6
$region0: #{atari_net_forward.6}
  #allocation0 [shape = 'u32[]', space=smem, size = 0x4, offset = 0x4, fixed_abs, tag = 'smem constant byte address 0x4 - core index']
  #allocation1 [shape = 'u32[144,128]{1,0:T(1,128)}', space=vmem, size = 0x12000, scoped, tag = 'internal scratch']
  %s0 = inlined_call_operand.vmem [shape: bf16[104,640], index: 0, kind: input, shape index: {}]
  %s1 = inlined_call_operand.vmem [shape: bf16[640,128], index: 1, kind: input, shape index: {}]
  %s2 = inlined_call_operand.vmem [shape: f32[1,128], index: 2, kind: input, shape index: {}]
  %s3 = inlined_call_operand.vmem [shape: bf16[104,128], index: 3, kind: output, shape index: {}]
  %s4 = sld [smem:[#allocation0]]
  $region22: #{atari_net_forward.6} parent=0
    _
  %s6 = ssub.s32 1, %s4
  %s7 = scalar_select 0, %s6, %s4
  // Predicated region
  $region2: #{atari_net_forward.6} parent=0 // pred_check
    _
  $region3: #{atari_net_forward.6} parent=0 // pred_check_branch
    %9 = sbr.rel (0) target = $region5
  $region4: #{atari_net_forward.6} parent=0 // pred_region
    _
  $region5: #{atari_net_forward.6} parent=0 // pred_fallthru
    _
  // Predicated region
  $region6: #{atari_net_forward.6} parent=0 // pred_check
    _
  $region7: #{atari_net_forward.6} parent=0 // pred_check_branch
    %11 = sbr.rel (0) target = $region9
  $region8: #{atari_net_forward.6} parent=0 // pred_region
    _
  $region9: #{atari_net_forward.6} parent=0 // pred_fallthru
    _
  // Predicated region
  $region10: #{atari_net_forward.6} parent=0 // pred_check
    _
  $region11: #{atari_net_forward.6} parent=0 // pred_check_branch
    %13 = sbr.rel (0) target = $region13
  $region12: #{atari_net_forward.6} parent=0 // pred_region
    _
  $region13: #{atari_net_forward.6} parent=0 // pred_fallthru
    _
  %v15 = vld [vmem:[%s0] sm:$0xff]
  %v16 = vld [vmem:[%s0 + $0x8] sm:$0xff]
  %v17 = vld [vmem:[%s0 + $0x10] sm:$0xf]
  %v18 = vld [vmem:[%s0 + $0x14] sm:$0xff]
  %v19 = vld [vmem:[%s0 + $0x1c] sm:$0xff]
  %v20 = vld [vmem:[%s0 + $0x24] sm:$0xf]
  %v21 = vld [vmem:[%s0 + $0x28] sm:$0xff]
  %v22 = vld [vmem:[%s0 + $0x30] sm:$0xff]
  %v23 = vld [vmem:[%s0 + $0x38] sm:$0xf]
  %v24 = vld [vmem:[%s0 + $0x3c] sm:$0xff]
  %v25 = vld [vmem:[%s0 + $0x44] sm:$0xff]
  %v26 = vld [vmem:[%s0 + $0x4c] sm:$0xf]
  %v27 = vld [vmem:[%s0 + $0x50] sm:$0xff]
  %v28 = vld [vmem:[%s0 + $0x58] sm:$0xff]
  %v29 = vld [vmem:[%s0 + $0x60] sm:$0xf]
  %v30 = vld [vmem:[%s0 + $0x64] sm:$0xff]
  %v31 = vld [vmem:[%s0 + $0x6c] sm:$0xff]
  %v32 = vld [vmem:[%s0 + $0x74] sm:$0xf]
  %v33 = vld [vmem:[%s0 + $0x78] sm:$0xff]
  %v34 = vld [vmem:[%s0 + $0x80] sm:$0xff]
  %v35 = vld [vmem:[%s0 + $0x88] sm:$0xf]
  %v36 = vld [vmem:[%s0 + $0x8c] sm:$0xff]
  %v37 = vld [vmem:[%s0 + $0x94] sm:$0xff]
  %v38 = vld [vmem:[%s0 + $0x9c] sm:$0xf]
  %v39 = vld [vmem:[%s0 + $0xa0] sm:$0xff]
  %v40 = vld [vmem:[%s0 + $0xa8] sm:$0xff]
  %v41 = vld [vmem:[%s0 + $0xb0] sm:$0xf]
  %v42 = vld [vmem:[%s0 + $0xb4] sm:$0xff]
  %v43 = vld [vmem:[%s0 + $0xbc] sm:$0xff]
  %v44 = vld [vmem:[%s0 + $0xc4] sm:$0xf]
  %v45 = vld [vmem:[%s0 + $0xc8] sm:$0xff]
  %v46 = vld [vmem:[%s0 + $0xd0] sm:$0xff]
  %v47 = vld [vmem:[%s0 + $0xd8] sm:$0xf]
  %v48 = vld [vmem:[%s0 + $0xdc] sm:$0xff]
  %v49 = vld [vmem:[%s0 + $0xe4] sm:$0xff]
  %v50 = vld [vmem:[%s0 + $0xec] sm:$0xf]
  %v51 = vld [vmem:[%s0 + $0xf0] sm:$0xff]
  %v52 = vld [vmem:[%s0 + $0xf8] sm:$0xff]
  %v53 = vld [vmem:[%s0 + $0x100] sm:$0xf]
  %v54 = vld [vmem:[%s1] sm:$0xf]
  %v55 = vld [vmem:[%s1 + $0x4] sm:$0xf]
  %v56 = vld [vmem:[%s1 + $0x8] sm:$0xf]
  %v57 = vld [vmem:[%s1 + $0xc] sm:$0xf]
  %v58 = vld [vmem:[%s1 + $0x10] sm:$0xf]
  %v59 = vld [vmem:[%s1 + $0x14] sm:$0xf]
  %v60 = vld [vmem:[%s1 + $0x18] sm:$0xf]
  %v61 = vld [vmem:[%s1 + $0x1c] sm:$0xf]
  %v62 = vld [vmem:[%s1 + $0x20] sm:$0xf]
  %v63 = vld [vmem:[%s1 + $0x24] sm:$0xf]
  %v64 = vld [vmem:[%s1 + $0x28] sm:$0xf]
  %v65 = vld [vmem:[%s1 + $0x2c] sm:$0xf]
  %v66 = vld [vmem:[%s1 + $0x30] sm:$0xf]
  %v67 = vld [vmem:[%s1 + $0x34] sm:$0xf]
  %v68 = vld [vmem:[%s1 + $0x38] sm:$0xf]
  %v69 = vld [vmem:[%s1 + $0x3c] sm:$0xf]
  %v70 = vld [vmem:[%s1 + $0x40] sm:$0xf]
  %v71 = vld [vmem:[%s1 + $0x44] sm:$0xf]
  %v72 = vld [vmem:[%s1 + $0x48] sm:$0xf]
  %v73 = vld [vmem:[%s1 + $0x4c] sm:$0xf]
  %v74 = vld [vmem:[%s1 + $0x50] sm:$0xf]
  %v75 = vld [vmem:[%s1 + $0x54] sm:$0xf]
  %v76 = vld [vmem:[%s1 + $0x58] sm:$0xf]
  %v77 = vld [vmem:[%s1 + $0x5c] sm:$0xf]
  %v78 = vld [vmem:[%s1 + $0x60] sm:$0xf]
  %v79 = vld [vmem:[%s1 + $0x64] sm:$0xf]
  %v80 = vld [vmem:[%s1 + $0x68] sm:$0xf]
  %v81 = vld [vmem:[%s1 + $0x6c] sm:$0xf]
  %v82 = vld [vmem:[%s1 + $0x70] sm:$0xf]
  %v83 = vld [vmem:[%s1 + $0x74] sm:$0xf]
  %v84 = vld [vmem:[%s1 + $0x78] sm:$0xf]
  %v85 = vld [vmem:[%s1 + $0x7c] sm:$0xf]
  %v86 = vld [vmem:[%s1 + $0x80] sm:$0xf]
  %v87 = vld [vmem:[%s1 + $0x84] sm:$0xf]
  %v88 = vld [vmem:[%s1 + $0x88] sm:$0xf]
  %v89 = vld [vmem:[%s1 + $0x8c] sm:$0xf]
  %v90 = vld [vmem:[%s1 + $0x90] sm:$0xf]
  %v91 = vld [vmem:[%s1 + $0x94] sm:$0xf]
  %v92 = vld [vmem:[%s1 + $0x98] sm:$0xf]
  %v93 = vld [vmem:[%s1 + $0x9c] sm:$0xf]
  %v94 = vld [vmem:[%s1 + $0xa0] sm:$0xf]
  %v95 = vld [vmem:[%s1 + $0xa4] sm:$0xf]
  %v96 = vld [vmem:[%s1 + $0xa8] sm:$0xf]
  %v97 = vld [vmem:[%s1 + $0xac] sm:$0xf]
  %v98 = vld [vmem:[%s1 + $0xb0] sm:$0xf]
  %v99 = vld [vmem:[%s1 + $0xb4] sm:$0xf]
  %v100 = vld [vmem:[%s1 + $0xb8] sm:$0xf]
  %v101 = vld [vmem:[%s1 + $0xbc] sm:$0xf]
  %v102 = vld [vmem:[%s1 + $0xc0] sm:$0xf]
  %v103 = vld [vmem:[%s1 + $0xc4] sm:$0xf]
  %v104 = vld [vmem:[%s1 + $0xc8] sm:$0xf]
  %v105 = vld [vmem:[%s1 + $0xcc] sm:$0xf]
  %v106 = vld [vmem:[%s1 + $0xd0] sm:$0xf]
  %v107 = vld [vmem:[%s1 + $0xd4] sm:$0xf]
  %v108 = vld [vmem:[%s1 + $0xd8] sm:$0xf]
  %v109 = vld [vmem:[%s1 + $0xdc] sm:$0xf]
  %v110 = vld [vmem:[%s1 + $0xe0] sm:$0xf]
  %v111 = vld [vmem:[%s1 + $0xe4] sm:$0xf]
  %v112 = vld [vmem:[%s1 + $0xe8] sm:$0xf]
  %v113 = vld [vmem:[%s1 + $0xec] sm:$0xf]
  %v114 = vld [vmem:[%s1 + $0xf0] sm:$0xf]
  %v115 = vld [vmem:[%s1 + $0xf4] sm:$0xf]
  %v116 = vld [vmem:[%s1 + $0xf8] sm:$0xf]
  %v117 = vld [vmem:[%s1 + $0xfc] sm:$0xf]
  %v118 = vld [vmem:[%s1 + $0x100] sm:$0xf]
  %v119 = vld [vmem:[%s1 + $0x104] sm:$0xf]
  %v120 = vld [vmem:[%s1 + $0x108] sm:$0xf]
  %v121 = vld [vmem:[%s1 + $0x10c] sm:$0xf]
  %v122 = vld [vmem:[%s1 + $0x110] sm:$0xf]
  %v123 = vld [vmem:[%s1 + $0x114] sm:$0xf]
  %v124 = vld [vmem:[%s1 + $0x118] sm:$0xf]
  %v125 = vld [vmem:[%s1 + $0x11c] sm:$0xf]
  %v126 = vld [vmem:[%s1 + $0x120] sm:$0xf]
  %v127 = vld [vmem:[%s1 + $0x124] sm:$0xf]
  %v128 = vld [vmem:[%s1 + $0x128] sm:$0xf]
  %v129 = vld [vmem:[%s1 + $0x12c] sm:$0xf]
  %v130 = vld [vmem:[%s1 + $0x130] sm:$0xf]
  %v131 = vld [vmem:[%s1 + $0x134] sm:$0xf]
  %v132 = vld [vmem:[%s1 + $0x138] sm:$0xf]
  %v133 = vld [vmem:[%s1 + $0x13c] sm:$0xf]
  %v134 = vld [vmem:[%s2] sm:$0x1]
  %v136 = vlaneseq
  %v137 = vshrl.u32 %v136, 7
  %v138 = vsub.s32 0, %v137
  %v139 = vrot.slane %v134, %v138
  %v180 = vunpack.c.l.b16 %v15
  %v181 = vunpack.c.h.b16 %v15
  %v182 = vunpack.c.l.b16 %v16
  %v183 = vunpack.c.h.b16 %v16
  %v184 = vunpack.c.l.b16 %v17
  %v185 = vunpack.c.l.b16 %v18
  %v186 = vunpack.c.h.b16 %v18
  %v187 = vunpack.c.l.b16 %v19
  %v188 = vunpack.c.h.b16 %v19
  %v189 = vunpack.c.l.b16 %v20
  %v190 = vunpack.c.l.b16 %v21
  %v191 = vunpack.c.h.b16 %v21
  %v192 = vunpack.c.l.b16 %v22
  %v193 = vunpack.c.h.b16 %v22
  %v194 = vunpack.c.l.b16 %v23
  %v195 = vunpack.c.l.b16 %v24
  %v196 = vunpack.c.h.b16 %v24
  %v197 = vunpack.c.l.b16 %v25
  %v198 = vunpack.c.h.b16 %v25
  %v199 = vunpack.c.l.b16 %v26
  %v200 = vunpack.c.l.b16 %v27
  %v201 = vunpack.c.h.b16 %v27
  %v202 = vunpack.c.l.b16 %v28
  %v203 = vunpack.c.h.b16 %v28
  %v204 = vunpack.c.l.b16 %v29
  %v205 = vunpack.c.l.b16 %v30
  %v206 = vunpack.c.h.b16 %v30
  %v207 = vunpack.c.l.b16 %v31
  %v208 = vunpack.c.h.b16 %v31
  %v209 = vunpack.c.l.b16 %v32
  %v210 = vunpack.c.l.b16 %v33
  %v211 = vunpack.c.h.b16 %v33
  %v212 = vunpack.c.l.b16 %v34
  %v213 = vunpack.c.h.b16 %v34
  %v214 = vunpack.c.l.b16 %v35
  %v215 = vunpack.c.l.b16 %v36
  %v216 = vunpack.c.h.b16 %v36
  %v217 = vunpack.c.l.b16 %v37
  %v218 = vunpack.c.h.b16 %v37
  %v219 = vunpack.c.l.b16 %v38
  %v220 = vunpack.c.l.b16 %v39
  %v221 = vunpack.c.h.b16 %v39
  %v222 = vunpack.c.l.b16 %v40
  %v223 = vunpack.c.h.b16 %v40
  %v224 = vunpack.c.l.b16 %v41
  %v225 = vunpack.c.l.b16 %v42
  %v226 = vunpack.c.h.b16 %v42
  %v227 = vunpack.c.l.b16 %v43
  %v228 = vunpack.c.h.b16 %v43
  %v229 = vunpack.c.l.b16 %v44
  %v230 = vunpack.c.l.b16 %v45
  %v231 = vunpack.c.h.b16 %v45
  %v232 = vunpack.c.l.b16 %v46
  %v233 = vunpack.c.h.b16 %v46
  %v234 = vunpack.c.l.b16 %v47
  %v235 = vunpack.c.l.b16 %v48
  %v236 = vunpack.c.h.b16 %v48
  %v237 = vunpack.c.l.b16 %v49
  %v238 = vunpack.c.h.b16 %v49
  %v239 = vunpack.c.l.b16 %v50
  %v240 = vunpack.c.l.b16 %v51
  %v241 = vunpack.c.h.b16 %v51
  %v242 = vunpack.c.l.b16 %v52
  %v243 = vunpack.c.h.b16 %v52
  %v244 = vunpack.c.l.b16 %v53
  %v245 = vpack.c.b16 %v185, %v180
  %v246 = vpack.c.b16 %v186, %v181
  %v247 = vpack.c.b16 %v187, %v182
  %v248 = vpack.c.b16 %v188, %v183
  %v249 = vpack.c.b16 %v189, %v184
  %v250 = vpack.c.b16 %v195, %v190
  %v251 = vpack.c.b16 %v196, %v191
  %v252 = vpack.c.b16 %v197, %v192
  %v253 = vpack.c.b16 %v198, %v193
  %v254 = vpack.c.b16 %v199, %v194
  %v255 = vpack.c.b16 %v205, %v200
  %v256 = vpack.c.b16 %v206, %v201
  %v257 = vpack.c.b16 %v207, %v202
  %v258 = vpack.c.b16 %v208, %v203
  %v259 = vpack.c.b16 %v209, %v204
  %v260 = vpack.c.b16 %v215, %v210
  %v261 = vpack.c.b16 %v216, %v211
  %v262 = vpack.c.b16 %v217, %v212
  %v263 = vpack.c.b16 %v218, %v213
  %v264 = vpack.c.b16 %v219, %v214
  %v265 = vpack.c.b16 %v225, %v220
  %v266 = vpack.c.b16 %v226, %v221
  %v267 = vpack.c.b16 %v227, %v222
  %v268 = vpack.c.b16 %v228, %v223
  %v269 = vpack.c.b16 %v229, %v224
  %v270 = vpack.c.b16 %v235, %v230
  %v271 = vpack.c.b16 %v236, %v231
  %v272 = vpack.c.b16 %v237, %v232
  %v273 = vpack.c.b16 %v238, %v233
  %v274 = vpack.c.b16 %v239, %v234
  %v275 = vpack.c.b16 %v240, %v240
  %v276 = vpack.c.b16 %v241, %v241
  %v277 = vpack.c.b16 %v242, %v242
  %v278 = vpack.c.b16 %v243, %v243
  %v279 = vpack.c.b16 %v244, %v244
  %v395 = vunpack.c.l.b16 %v54
  %v396 = vunpack.c.l.b16 %v55
  %v397 = vunpack.c.l.b16 %v56
  %v398 = vunpack.c.l.b16 %v57
  %v399 = vunpack.c.l.b16 %v58
  %v400 = vunpack.c.l.b16 %v59
  %v401 = vunpack.c.l.b16 %v60
  %v402 = vunpack.c.l.b16 %v61
  %v403 = vunpack.c.l.b16 %v62
  %v404 = vunpack.c.l.b16 %v63
  %v405 = vunpack.c.l.b16 %v64
  %v406 = vunpack.c.l.b16 %v65
  %v407 = vunpack.c.l.b16 %v66
  %v408 = vunpack.c.l.b16 %v67
  %v409 = vunpack.c.l.b16 %v68
  %v410 = vunpack.c.l.b16 %v69
  %v411 = vunpack.c.l.b16 %v70
  %v412 = vunpack.c.l.b16 %v71
  %v413 = vunpack.c.l.b16 %v72
  %v414 = vunpack.c.l.b16 %v73
  %v415 = vunpack.c.l.b16 %v74
  %v416 = vunpack.c.l.b16 %v75
  %v417 = vunpack.c.l.b16 %v76
  %v418 = vunpack.c.l.b16 %v77
  %v419 = vunpack.c.l.b16 %v78
  %v420 = vunpack.c.l.b16 %v79
  %v421 = vunpack.c.l.b16 %v80
  %v422 = vunpack.c.l.b16 %v81
  %v423 = vunpack.c.l.b16 %v82
  %v424 = vunpack.c.l.b16 %v83
  %v425 = vunpack.c.l.b16 %v84
  %v426 = vunpack.c.l.b16 %v85
  %v427 = vunpack.c.l.b16 %v86
  %v428 = vunpack.c.l.b16 %v87
  %v429 = vunpack.c.l.b16 %v88
  %v430 = vunpack.c.l.b16 %v89
  %v431 = vunpack.c.l.b16 %v90
  %v432 = vunpack.c.l.b16 %v91
  %v433 = vunpack.c.l.b16 %v92
  %v434 = vunpack.c.l.b16 %v93
  %v435 = vunpack.c.l.b16 %v94
  %v436 = vunpack.c.l.b16 %v95
  %v437 = vunpack.c.l.b16 %v96
  %v438 = vunpack.c.l.b16 %v97
  %v439 = vunpack.c.l.b16 %v98
  %v440 = vunpack.c.l.b16 %v99
  %v441 = vunpack.c.l.b16 %v100
  %v442 = vunpack.c.l.b16 %v101
  %v443 = vunpack.c.l.b16 %v102
  %v444 = vunpack.c.l.b16 %v103
  %v445 = vunpack.c.l.b16 %v104
  %v446 = vunpack.c.l.b16 %v105
  %v447 = vunpack.c.l.b16 %v106
  %v448 = vunpack.c.l.b16 %v107
  %v449 = vunpack.c.l.b16 %v108
  %v450 = vunpack.c.l.b16 %v109
  %v451 = vunpack.c.l.b16 %v110
  %v452 = vunpack.c.l.b16 %v111
  %v453 = vunpack.c.l.b16 %v112
  %v454 = vunpack.c.l.b16 %v113
  %v455 = vunpack.c.l.b16 %v114
  %v456 = vunpack.c.l.b16 %v115
  %v457 = vunpack.c.l.b16 %v116
  %v458 = vunpack.c.l.b16 %v117
  %v459 = vunpack.c.l.b16 %v118
  %v460 = vunpack.c.l.b16 %v119
  %v461 = vunpack.c.l.b16 %v120
  %v462 = vunpack.c.l.b16 %v121
  %v463 = vunpack.c.l.b16 %v122
  %v464 = vunpack.c.l.b16 %v123
  %v465 = vunpack.c.l.b16 %v124
  %v466 = vunpack.c.l.b16 %v125
  %v467 = vunpack.c.l.b16 %v126
  %v468 = vunpack.c.l.b16 %v127
  %v469 = vunpack.c.l.b16 %v128
  %v470 = vunpack.c.l.b16 %v129
  %v471 = vunpack.c.l.b16 %v130
  %v472 = vunpack.c.l.b16 %v131
  %v473 = vunpack.c.l.b16 %v132
  %v474 = vunpack.c.l.b16 %v133
  %v475 = vpack.c.b16 %v396, %v395
  %v476 = vpack.c.b16 %v398, %v397
  %v477 = vpack.c.b16 %v400, %v399
  %v478 = vpack.c.b16 %v402, %v401
  %v479 = vpack.c.b16 %v404, %v403
  %v480 = vpack.c.b16 %v406, %v405
  %v481 = vpack.c.b16 %v408, %v407
  %v482 = vpack.c.b16 %v410, %v409
  %v483 = vpack.c.b16 %v412, %v411
  %v484 = vpack.c.b16 %v414, %v413
  %v485 = vpack.c.b16 %v416, %v415
  %v486 = vpack.c.b16 %v418, %v417
  %v487 = vpack.c.b16 %v420, %v419
  %v488 = vpack.c.b16 %v422, %v421
  %v489 = vpack.c.b16 %v424, %v423
  %v490 = vpack.c.b16 %v426, %v425
  %v491 = vpack.c.b16 %v428, %v427
  %v492 = vpack.c.b16 %v430, %v429
  %v493 = vpack.c.b16 %v432, %v431
  %v494 = vpack.c.b16 %v434, %v433
  %v495 = vpack.c.b16 %v436, %v435
  %v496 = vpack.c.b16 %v438, %v437
  %v497 = vpack.c.b16 %v440, %v439
  %v498 = vpack.c.b16 %v442, %v441
  %v499 = vpack.c.b16 %v444, %v443
  %v500 = vpack.c.b16 %v446, %v445
  %v501 = vpack.c.b16 %v448, %v447
  %v502 = vpack.c.b16 %v450, %v449
  %v503 = vpack.c.b16 %v452, %v451
  %v504 = vpack.c.b16 %v454, %v453
  %v505 = vpack.c.b16 %v456, %v455
  %v506 = vpack.c.b16 %v458, %v457
  %v507 = vpack.c.b16 %v460, %v459
  %v508 = vpack.c.b16 %v462, %v461
  %v509 = vpack.c.b16 %v464, %v463
  %v510 = vpack.c.b16 %v466, %v465
  %v511 = vpack.c.b16 %v468, %v467
  %v512 = vpack.c.b16 %v470, %v469
  %v513 = vpack.c.b16 %v472, %v471
  %v514 = vpack.c.b16 %v474, %v473
  %555 = vmatprep.subr.bf16.mxu0 0
  %556 = vmatpush1.bf16.msra.mxu0 %v475
  %557 = vmatprep.subr.bf16.mxu0 0
  %558 = vmatpush1.bf16.msra.mxu0 %v476
  %559 = vmatprep.subr.bf16.mxu0 0
  %560 = vmatpush1.bf16.msra.mxu0 %v477
  %561 = vmatprep.subr.bf16.mxu0 0
  %562 = vmatpush1.bf16.msra.mxu0 %v478
  %563 = vmatprep.subr.bf16.mxu0 0
  %564 = vmatpush1.bf16.msra.mxu0 %v479
  %565 = vmatprep.subr.bf16.mxu0 0
  %566 = vmatpush1.bf16.msra.mxu0 %v480
  %567 = vmatprep.subr.bf16.mxu0 0
  %568 = vmatpush1.bf16.msra.mxu0 %v481
  %569 = vmatprep.subr.bf16.mxu0 0
  %570 = vmatpush1.bf16.msra.mxu0 %v482
  %571 = vmatprep.subr.bf16.mxu0 0
  %572 = vmatpush1.bf16.msra.mxu0 %v483
  %573 = vmatprep.subr.bf16.mxu0 0
  %574 = vmatpush1.bf16.msra.mxu0 %v484
  %575 = vmatprep.subr.bf16.mxu0 0
  %576 = vmatpush1.bf16.msra.mxu0 %v485
  %577 = vmatprep.subr.bf16.mxu0 0
  %578 = vmatpush1.bf16.msra.mxu0 %v486
  %579 = vmatprep.subr.bf16.mxu0 0
  %580 = vmatpush1.bf16.msra.mxu0 %v487
  %581 = vmatprep.subr.bf16.mxu0 0
  %582 = vmatpush1.bf16.msra.mxu0 %v488
  %583 = vmatprep.subr.bf16.mxu0 0
  %584 = vmatpush1.bf16.msra.mxu0 %v489
  %585 = vmatprep.subr.bf16.mxu0 0
  %586 = vmatpush1.bf16.msra.mxu0 %v490
  %587 = vmatprep.mubr.bf16.mxu0 %v246
  %588 = vmatmul.mubr.bf16.gmra.mrb[0].mxu0 %v245
  %v589 = vpop.f32.mrb[0].mxu0
  %v590 = vadd.f32 %v139, %v589
  %v591 = vpop.f32.mrb[0].mxu0
  %v592 = vpop.f32.mrb[0].mxu0
  %v593 = vadd.f32 %v139, %v592
  %v594 = vpop.f32.mrb[0].mxu0
  %595 = vmatprep.mubr.bf16.mxu0 %v251
  %596 = vmatmul.mubr.bf16.gmra.mrb[0].mxu0 %v250
  %v597 = vpop.f32.mrb[0].mxu0
  %v598 = vadd.f32 %v139, %v597
  %v599 = vpop.f32.mrb[0].mxu0
  %v600 = vpop.f32.mrb[0].mxu0
  %v601 = vadd.f32 %v139, %v600
  %v602 = vpop.f32.mrb[0].mxu0
  %603 = vmatprep.mubr.bf16.mxu0 %v256
  %604 = vmatmul.mubr.bf16.gmra.mrb[0].mxu0 %v255
  %v605 = vpop.f32.mrb[0].mxu0
  %v606 = vadd.f32 %v139, %v605
  %v607 = vpop.f32.mrb[0].mxu0
  %v608 = vpop.f32.mrb[0].mxu0
  %v609 = vadd.f32 %v139, %v608
  %v610 = vpop.f32.mrb[0].mxu0
  %611 = vmatprep.mubr.bf16.mxu0 %v261
  %612 = vmatmul.mubr.bf16.gmra.mrb[0].mxu0 %v260
  %v613 = vpop.f32.mrb[0].mxu0
  %v614 = vadd.f32 %v139, %v613
  %v615 = vpop.f32.mrb[0].mxu0
  %v616 = vpop.f32.mrb[0].mxu0
  %v617 = vadd.f32 %v139, %v616
  %v618 = vpop.f32.mrb[0].mxu0
  %619 = vmatprep.mubr.bf16.mxu0 %v266
  %620 = vmatmul.mubr.bf16.gmra.mrb[0].mxu0 %v265
  %v621 = vpop.f32.mrb[0].mxu0
  %v622 = vadd.f32 %v139, %v621
  %v623 = vpop.f32.mrb[0].mxu0
  %v624 = vpop.f32.mrb[0].mxu0
  %v625 = vadd.f32 %v139, %v624
  %v626 = vpop.f32.mrb[0].mxu0
  %627 = vmatprep.mubr.bf16.mxu0 %v271
  %628 = vmatmul.mubr.bf16.gmra.mrb[0].mxu0 %v270
  %v629 = vpop.f32.mrb[0].mxu0
  %v630 = vadd.f32 %v139, %v629
  %v631 = vpop.f32.mrb[0].mxu0
  %v632 = vpop.f32.mrb[0].mxu0
  %v633 = vadd.f32 %v139, %v632
  %v634 = vpop.f32.mrb[0].mxu0
  %635 = vmatprep.mubr.bf16.mxu0 %v276
  %636 = vmatmul.mubr.bf16.gmra.mrb[0].mxu0 %v275
  %v637 = vpop.f32.mrb[0].mxu0
  %v638 = vadd.f32 %v139, %v637
  %v639 = vpop.f32.mrb[0].mxu0
  %v640 = vpop.f32.mrb[0].mxu0
  %v641 = vpop.f32.mrb[0].mxu0
  %642 = vdwg.mxu0
  %643 = vmatprep.subr.bf16.mxu0 0
  %644 = vmatpush1.bf16.msra.mxu0 %v491
  %645 = vmatprep.subr.bf16.mxu0 0
  %646 = vmatpush1.bf16.msra.mxu0 %v492
  %647 = vmatprep.subr.bf16.mxu0 0
  %648 = vmatpush1.bf16.msra.mxu0 %v493
  %649 = vmatprep.subr.bf16.mxu0 0
  %650 = vmatpush1.bf16.msra.mxu0 %v494
  %651 = vmatprep.subr.bf16.mxu0 0
  %652 = vmatpush1.bf16.msra.mxu0 %v495
  %653 = vmatprep.subr.bf16.mxu0 0
  %654 = vmatpush1.bf16.msra.mxu0 %v496
  %655 = vmatprep.subr.bf16.mxu0 0
  %656 = vmatpush1.bf16.msra.mxu0 %v497
  %657 = vmatprep.subr.bf16.mxu0 0
  %658 = vmatpush1.bf16.msra.mxu0 %v498
  %659 = vmatprep.subr.bf16.mxu0 0
  %660 = vmatpush1.bf16.msra.mxu0 %v499
  %661 = vmatprep.subr.bf16.mxu0 0
  %662 = vmatpush1.bf16.msra.mxu0 %v500
  %663 = vmatprep.subr.bf16.mxu0 0
  %664 = vmatpush1.bf16.msra.mxu0 %v501
  %665 = vmatprep.subr.bf16.mxu0 0
  %666 = vmatpush1.bf16.msra.mxu0 %v502
  %667 = vmatprep.subr.bf16.mxu0 0
  %668 = vmatpush1.bf16.msra.mxu0 %v503
  %669 = vmatprep.subr.bf16.mxu0 0
  %670 = vmatpush1.bf16.msra.mxu0 %v504
  %671 = vmatprep.subr.bf16.mxu0 0
  %672 = vmatpush1.bf16.msra.mxu0 %v505
  %673 = vmatprep.subr.bf16.mxu0 0
  %674 = vmatpush1.bf16.msra.mxu0 %v506
  %675 = vmatprep.mubr.bf16.mxu0 %v248
  %676 = vmatmul.mubr.bf16.gmra.mrb[0].mxu0 %v247
  %v677 = vpop.f32.mrb[0].mxu0
  %v678 = vadd.f32 %v590, %v677
  %v679 = vpop.f32.mrb[0].mxu0
  %v680 = vpop.f32.mrb[0].mxu0
  %v681 = vadd.f32 %v593, %v680
  %v682 = vpop.f32.mrb[0].mxu0
  %683 = vmatprep.mubr.bf16.mxu0 %v253
  %684 = vmatmul.mubr.bf16.gmra.mrb[0].mxu0 %v252
  %v685 = vpop.f32.mrb[0].mxu0
  %v686 = vadd.f32 %v598, %v685
  %v687 = vpop.f32.mrb[0].mxu0
  %v688 = vpop.f32.mrb[0].mxu0
  %v689 = vadd.f32 %v601, %v688
  %v690 = vpop.f32.mrb[0].mxu0
  %691 = vmatprep.mubr.bf16.mxu0 %v258
  %692 = vmatmul.mubr.bf16.gmra.mrb[0].mxu0 %v257
  %v693 = vpop.f32.mrb[0].mxu0
  %v694 = vadd.f32 %v606, %v693
  %v695 = vpop.f32.mrb[0].mxu0
  %v696 = vpop.f32.mrb[0].mxu0
  %v697 = vadd.f32 %v609, %v696
  %v698 = vpop.f32.mrb[0].mxu0
  %699 = vmatprep.mubr.bf16.mxu0 %v263
  %700 = vmatmul.mubr.bf16.gmra.mrb[0].mxu0 %v262
  %v701 = vpop.f32.mrb[0].mxu0
  %v702 = vadd.f32 %v614, %v701
  %v703 = vpop.f32.mrb[0].mxu0
  %v704 = vpop.f32.mrb[0].mxu0
  %v705 = vadd.f32 %v617, %v704
  %v706 = vpop.f32.mrb[0].mxu0
  %707 = vmatprep.mubr.bf16.mxu0 %v268
  %708 = vmatmul.mubr.bf16.gmra.mrb[0].mxu0 %v267
  %v709 = vpop.f32.mrb[0].mxu0
  %v710 = vadd.f32 %v622, %v709
  %v711 = vpop.f32.mrb[0].mxu0
  %v712 = vpop.f32.mrb[0].mxu0
  %v713 = vadd.f32 %v625, %v712
  %v714 = vpop.f32.mrb[0].mxu0
  %715 = vmatprep.mubr.bf16.mxu0 %v273
  %716 = vmatmul.mubr.bf16.gmra.mrb[0].mxu0 %v272
  %v717 = vpop.f32.mrb[0].mxu0
  %v718 = vadd.f32 %v630, %v717
  %v719 = vpop.f32.mrb[0].mxu0
  %v720 = vpop.f32.mrb[0].mxu0
  %v721 = vadd.f32 %v633, %v720
  %v722 = vpop.f32.mrb[0].mxu0
  %723 = vmatprep.mubr.bf16.mxu0 %v278
  %724 = vmatmul.mubr.bf16.gmra.mrb[0].mxu0 %v277
  %v725 = vpop.f32.mrb[0].mxu0
  %v726 = vadd.f32 %v638, %v725
  %v727 = vpop.f32.mrb[0].mxu0
  %v728 = vpop.f32.mrb[0].mxu0
  %v729 = vpop.f32.mrb[0].mxu0
  %730 = vdwg.mxu0
  %731 = vmatprep.subr.bf16.mxu0 0
  %732 = vmatpush1.bf16.msra.mxu0 %v507
  %733 = vmatprep.subr.bf16.mxu0 0
  %734 = vmatpush1.bf16.msra.mxu0 %v508
  %735 = vmatprep.subr.bf16.mxu0 0
  %736 = vmatpush1.bf16.msra.mxu0 %v509
  %737 = vmatprep.subr.bf16.mxu0 0
  %738 = vmatpush1.bf16.msra.mxu0 %v510
  %739 = vmatprep.subr.bf16.mxu0 0
  %740 = vmatpush1.bf16.msra.mxu0 %v511
  %741 = vmatprep.subr.bf16.mxu0 0
  %742 = vmatpush1.bf16.msra.mxu0 %v512
  %743 = vmatprep.subr.bf16.mxu0 0
  %744 = vmatpush1.bf16.msra.mxu0 %v513
  %745 = vmatprep.subr.bf16.mxu0 0
  %746 = vmatpush1.bf16.msra.mxu0 %v514
  %747 = vmatprep.subr.bf16.mxu0 0
  %748 = vmatpush1.bf16.msra.mxu0 0
  %749 = vmatprep.subr.bf16.mxu0 0
  %750 = vmatpush1.bf16.msra.mxu0 0
  %751 = vmatprep.subr.bf16.mxu0 0
  %752 = vmatpush1.bf16.msra.mxu0 0
  %753 = vmatprep.subr.bf16.mxu0 0
  %754 = vmatpush1.bf16.msra.mxu0 0
  %755 = vmatprep.subr.bf16.mxu0 0
  %756 = vmatpush1.bf16.msra.mxu0 0
  %757 = vmatprep.subr.bf16.mxu0 0
  %758 = vmatpush1.bf16.msra.mxu0 0
  %759 = vmatprep.subr.bf16.mxu0 0
  %760 = vmatpush1.bf16.msra.mxu0 0
  %761 = vmatprep.subr.bf16.mxu0 0
  %762 = vmatpush1.bf16.msra.mxu0 0
  %763 = vmatprep.mubr.bf16.mxu0 0
  %764 = vmatmul.mubr.bf16.gmra.mrb[0].mxu0 %v249
  %v765 = vpop.f32.mrb[0].mxu0
  %v766 = vadd.f32 %v678, %v765
  %v767 = vpop.f32.mrb[0].mxu0
  %v768 = vpop.f32.mrb[0].mxu0
  %v769 = vadd.f32 %v681, %v768
  %v770 = vpop.f32.mrb[0].mxu0
  %771 = vmatprep.mubr.bf16.mxu0 0
  %772 = vmatmul.mubr.bf16.gmra.mrb[0].mxu0 %v254
  %v773 = vpop.f32.mrb[0].mxu0
  %v774 = vadd.f32 %v686, %v773
  %v775 = vpop.f32.mrb[0].mxu0
  %v776 = vpop.f32.mrb[0].mxu0
  %v777 = vadd.f32 %v689, %v776
  %v778 = vpop.f32.mrb[0].mxu0
  %779 = vmatprep.mubr.bf16.mxu0 0
  %780 = vmatmul.mubr.bf16.gmra.mrb[0].mxu0 %v259
  %v781 = vpop.f32.mrb[0].mxu0
  %v782 = vadd.f32 %v694, %v781
  %v783 = vpop.f32.mrb[0].mxu0
  %v784 = vpop.f32.mrb[0].mxu0
  %v785 = vadd.f32 %v697, %v784
  %v786 = vpop.f32.mrb[0].mxu0
  %787 = vmatprep.mubr.bf16.mxu0 0
  %788 = vmatmul.mubr.bf16.gmra.mrb[0].mxu0 %v264
  %v789 = vpop.f32.mrb[0].mxu0
  %v790 = vadd.f32 %v702, %v789
  %v791 = vpop.f32.mrb[0].mxu0
  %v792 = vpop.f32.mrb[0].mxu0
  %v793 = vadd.f32 %v705, %v792
  %v794 = vpop.f32.mrb[0].mxu0
  %795 = vmatprep.mubr.bf16.mxu0 0
  %796 = vmatmul.mubr.bf16.gmra.mrb[0].mxu0 %v269
  %v797 = vpop.f32.mrb[0].mxu0
  %v798 = vadd.f32 %v710, %v797
  %v799 = vpop.f32.mrb[0].mxu0
  %v800 = vpop.f32.mrb[0].mxu0
  %v801 = vadd.f32 %v713, %v800
  %v802 = vpop.f32.mrb[0].mxu0
  %803 = vmatprep.mubr.bf16.mxu0 0
  %804 = vmatmul.mubr.bf16.gmra.mrb[0].mxu0 %v274
  %v805 = vpop.f32.mrb[0].mxu0
  %v806 = vadd.f32 %v718, %v805
  %v807 = vpop.f32.mrb[0].mxu0
  %v808 = vpop.f32.mrb[0].mxu0
  %v809 = vadd.f32 %v721, %v808
  %v810 = vpop.f32.mrb[0].mxu0
  %811 = vmatprep.mubr.bf16.mxu0 0
  %812 = vmatmul.mubr.bf16.gmra.mrb[0].mxu0 %v279
  %v813 = vpop.f32.mrb[0].mxu0
  %v814 = vadd.f32 %v726, %v813
  %v815 = vpop.f32.mrb[0].mxu0
  %v816 = vpop.f32.mrb[0].mxu0
  %v817 = vpop.f32.mrb[0].mxu0
  %818 = vdwg.mxu0
  %v819 = vmax.f32 %v766, 0.0
  %v820 = vmax.f32 %v769, 0.0
  %v821 = vmax.f32 %v774, 0.0
  %v822 = vmax.f32 %v777, 0.0
  %v823 = vmax.f32 %v782, 0.0
  %v824 = vmax.f32 %v785, 0.0
  %v825 = vmax.f32 %v790, 0.0
  %v826 = vmax.f32 %v793, 0.0
  %v827 = vmax.f32 %v798, 0.0
  %v828 = vmax.f32 %v801, 0.0
  %v829 = vmax.f32 %v806, 0.0
  %v830 = vmax.f32 %v809, 0.0
  %v831 = vmax.f32 %v814, 0.0
  %v832 = vpack.c.bf16 %v820, %v819
  %v833 = vpack.c.bf16 %v822, %v821
  %v834 = vpack.c.bf16 %v824, %v823
  %v835 = vpack.c.bf16 %v826, %v825
  %v836 = vpack.c.bf16 %v828, %v827
  %v837 = vpack.c.bf16 %v830, %v829
  %v838 = vpack.c.bf16 %v831, %v831
  %v846 = vunpack.c.l.b16 %v832
  %v847 = vunpack.c.h.b16 %v832
  %v848 = vunpack.c.l.b16 %v833
  %v849 = vunpack.c.h.b16 %v833
  %v850 = vunpack.c.l.b16 %v834
  %v851 = vunpack.c.h.b16 %v834
  %v852 = vunpack.c.l.b16 %v835
  %v853 = vunpack.c.h.b16 %v835
  %v854 = vunpack.c.l.b16 %v836
  %v855 = vunpack.c.h.b16 %v836
  %v856 = vunpack.c.l.b16 %v837
  %v857 = vunpack.c.h.b16 %v837
  %v858 = vunpack.c.l.b16 %v838
  %v859 = vpack.c.b16 %v846, %v846
  %v860 = vpack.c.b16 %v847, %v847
  %v861 = vpack.c.b16 %v848, %v848
  %v862 = vpack.c.b16 %v849, %v849
  %v863 = vpack.c.b16 %v850, %v850
  %v864 = vpack.c.b16 %v851, %v851
  %v865 = vpack.c.b16 %v852, %v852
  %v866 = vpack.c.b16 %v853, %v853
  %v867 = vpack.c.b16 %v854, %v854
  %v868 = vpack.c.b16 %v855, %v855
  %v869 = vpack.c.b16 %v856, %v856
  %v870 = vpack.c.b16 %v857, %v857
  %v871 = vpack.c.b16 %v858, %v858
  %885 = vst [vmem:[%s3] sm:$0xf] %v859
  %886 = vst [vmem:[%s3 + $0x4] sm:$0xf] %v860
  %887 = vst [vmem:[%s3 + $0x8] sm:$0xf] %v861
  %888 = vst [vmem:[%s3 + $0xc] sm:$0xf] %v862
  %889 = vst [vmem:[%s3 + $0x10] sm:$0xf] %v863
  %890 = vst [vmem:[%s3 + $0x14] sm:$0xf] %v864
  %891 = vst [vmem:[%s3 + $0x18] sm:$0xf] %v865
  %892 = vst [vmem:[%s3 + $0x1c] sm:$0xf] %v866
  %893 = vst [vmem:[%s3 + $0x20] sm:$0xf] %v867
  %894 = vst [vmem:[%s3 + $0x24] sm:$0xf] %v868
  %895 = vst [vmem:[%s3 + $0x28] sm:$0xf] %v869
  %896 = vst [vmem:[%s3 + $0x2c] sm:$0xf] %v870
  %897 = vst [vmem:[%s3 + $0x30] sm:$0xf] %v871
  // Predicated region
  $region14: #{atari_net_forward.6} parent=0 // pred_check
    _
  $region15: #{atari_net_forward.6} parent=0 // pred_check_branch
    %899 = sbr.rel (0) target = $region17
  $region16: #{atari_net_forward.6} parent=0 // pred_region
    _
  $region17: #{atari_net_forward.6} parent=0 // pred_fallthru
    _
  // Predicated region
  $region18: #{atari_net_forward.6} parent=0 // pred_check
    _
  $region19: #{atari_net_forward.6} parent=0 // pred_check_branch
    %901 = sbr.rel (0) target = $region21
  $region20: #{atari_net_forward.6} parent=0 // pred_region
    _
  $region21: #{atari_net_forward.6} parent=0 // pred_fallthru
    _

// kernel: atari_net_forward.7
$region0: #{atari_net_forward.7}
  #allocation0 [shape = 'u32[]', space=smem, size = 0x4, offset = 0x4, fixed_abs, tag = 'smem constant byte address 0x4 - core index']
  #allocation1 [shape = 'u32[144,128]{1,0:T(1,128)}', space=vmem, size = 0x12000, scoped, tag = 'internal scratch']
  #allocation2 [shape = 'f32[8,1024]{1,0:T(8,128)}', space=vmem, size = 0x8000, scoped, tag = 'scratch operand']
  %s0 = inlined_call_operand.vmem [shape: bf16[1,8,3328], index: 0, kind: input, shape index: {}]
  %s1 = inlined_call_operand.vmem [shape: bf16[2,3328,1024], index: 1, kind: input, shape index: {}]
  %s2 = inlined_call_operand.vmem [shape: f32[2,1,1024], index: 2, kind: input, shape index: {}]
  %s3 = inlined_call_operand.vmem [shape: bf16[2,1024,1024], index: 3, kind: input, shape index: {}]
  %s4 = inlined_call_operand.vmem [shape: f32[2,1,1024], index: 4, kind: input, shape index: {}]
  %s5 = inlined_call_operand.vmem [shape: bf16[2,1024,128], index: 5, kind: input, shape index: {}]
  %s6 = inlined_call_operand.vmem [shape: f32[2,1,128], index: 6, kind: input, shape index: {}]
  %s7 = inlined_call_operand.vmem [shape: f32[2,8,128], index: 7, kind: output, shape index: {}]
  %s8 = sld [smem:[#allocation0]]
  $region69: #{atari_net_forward.7} parent=0
    _
  %s10 = ssub.s32 1, %s8
  %s11 = scalar_select 0, %s10, %s8
  loop: start=0, step=1, limit=6
  $region2: #{atari_net_forward.7} parent=0 // loop_pre_header
    _
  $region3: #{atari_net_forward.7} parent=0 // loop_header
    %s13 = sphi 0, %s17
    %p14 = scmp.ge.s32.totalorder %s13, 6
    %s20 = sphi 0, %s39
    %s21 = sphi 0, %s35
    %s22 = sphi 0, %s31
    %s23 = sphi 0, %s20
    %s24 = sphi 0, %s21
    %s25 = sphi 0, %s22
    %s26 = sphi 0, %s23
    %s27 = sphi 0, %s24
    %s28 = sphi 0, %s25
    %s44 = sphi 0, %s46
    %s47 = sphi 0, %s44
    %s48 = sphi 0, %s47
    %s64 = sphi 0, %s48
    %s72 = sphi 0, %s74
    %s75 = sphi 0, %s72
    %s76 = sphi 0, %s75
    %s92 = sphi 0, %s76
    %s98 = sphi 0, %s100
    %s101 = sphi 0, %s98
    %s102 = sphi 0, %s101
    %s118 = sphi 0, %s102
    %s124 = sphi 0, %s126
    %s127 = sphi 0, %s124
    %s128 = sphi 0, %s127
    %s144 = sphi 0, %s128
    %s150 = sphi 0, %s152
    %s153 = sphi 0, %s150
    %s154 = sphi 0, %s153
    %s170 = sphi 0, %s154
    %s176 = sphi 0, %s178
    %s179 = sphi 0, %s176
    %s180 = sphi 0, %s179
    %s196 = sphi 0, %s180
    %s202 = sphi 0, %s204
    %s205 = sphi 0, %s202
    %s206 = sphi 0, %s205
    %s222 = sphi 0, %s206
    %s230 = sphi 0, %s232
    %s233 = sphi 0, %s230
    %s234 = sphi 0, %s233
    %s250 = sphi 0, %s234
  $region4: #{atari_net_forward.7} parent=0 // loop_header_branch
    %16 = sbr.rel (%p14) target = $region8
  $region5: #{atari_net_forward.7} parent=0 // loop_body
    %s18 = ssub.s32 %s13, 1
    %s19 = ssub.s32 %s13, 2
    %s29 = sadd.s32 1, %s22
    %p30 = scmp.ge.s32.totalorder %s29, 2
    %s31 = scalar_select %p30, 0, %s29
    %s32 = sadd.s32 1, %s21
    %s33 = scalar_select %p30, %s32, %s21
    %p34 = scmp.ge.s32.totalorder %s33, 1
    %s35 = scalar_select %p34, 0, %s33
    %s36 = sadd.s32 1, %s20
    %s37 = scalar_select %p34, %s36, %s20
    %p38 = scmp.ge.s32.totalorder %s37, 2
    %s39 = scalar_select %p38, 0, %s37
    %s40 = ssub.s32 %s21, %s35
    %s41 = ssub.s32 %s22, %s31
    %s42 = sor.u32 %s40, %s41
    %p43 = scmp.eq.s32.totalorder %s42, 0
    %s45 = sadd.s32 %s44, 1
    %s46 = scalar_select %p43, %s44, %s45
    %p49 = pneg %p43
    %p50 = scmp.eq.s32.totalorder %s13, 3
    %p51 = por %p49, %p50
    %p52 = scmp.ne.s32.totalorder %s44, %s47
    %p53 = scmp.eq.s32.totalorder %s13, 0
    %p54 = por %p52, %p53
    %p55 = scmp.ne.s32.totalorder %s44, %s47
    %p56 = scmp.eq.s32.totalorder %s18, 3
    %p57 = por %p55, %p56
    %p58 = scmp.ne.s32.totalorder %s47, %s48
    %p59 = scmp.eq.s32.totalorder %s18, 0
    %p60 = por %p58, %p59
    %p61 = scmp.ne.s32.totalorder %s47, %s48
    %p62 = scmp.eq.s32.totalorder %s19, 3
    %p63 = por %p61, %p62
    %p65 = scmp.ne.s32.totalorder %s48, %s64
    %p66 = scmp.eq.s32.totalorder %s19, 0
    %p67 = por %p65, %p66
    %s68 = ssub.s32 %s20, %s39
    %s69 = ssub.s32 %s22, %s31
    %s70 = sor.u32 %s68, %s69
    %p71 = scmp.eq.s32.totalorder %s70, 0
    %s73 = sadd.s32 %s72, 1
    %s74 = scalar_select %p71, %s72, %s73
    %p77 = pneg %p71
    %p78 = scmp.eq.s32.totalorder %s13, 3
    %p79 = por %p77, %p78
    %p80 = scmp.ne.s32.totalorder %s72, %s75
    %p81 = scmp.eq.s32.totalorder %s13, 0
    %p82 = por %p80, %p81
    %p83 = scmp.ne.s32.totalorder %s72, %s75
    %p84 = scmp.eq.s32.totalorder %s18, 3
    %p85 = por %p83, %p84
    %p86 = scmp.ne.s32.totalorder %s75, %s76
    %p87 = scmp.eq.s32.totalorder %s18, 0
    %p88 = por %p86, %p87
    %p89 = scmp.ne.s32.totalorder %s75, %s76
    %p90 = scmp.eq.s32.totalorder %s19, 3
    %p91 = por %p89, %p90
    %p93 = scmp.ne.s32.totalorder %s76, %s92
    %p94 = scmp.eq.s32.totalorder %s19, 0
    %p95 = por %p93, %p94
    %s96 = ssub.s32 %s20, %s39
    %p97 = scmp.eq.s32.totalorder %s96, 0
    %s99 = sadd.s32 %s98, 1
    %s100 = scalar_select %p97, %s98, %s99
    %p103 = pneg %p97
    %p104 = scmp.eq.s32.totalorder %s13, 3
    %p105 = por %p103, %p104
    %p106 = scmp.ne.s32.totalorder %s98, %s101
    %p107 = scmp.eq.s32.totalorder %s13, 0
    %p108 = por %p106, %p107
    %p109 = scmp.ne.s32.totalorder %s98, %s101
    %p110 = scmp.eq.s32.totalorder %s18, 3
    %p111 = por %p109, %p110
    %p112 = scmp.ne.s32.totalorder %s101, %s102
    %p113 = scmp.eq.s32.totalorder %s18, 0
    %p114 = por %p112, %p113
    %p115 = scmp.ne.s32.totalorder %s101, %s102
    %p116 = scmp.eq.s32.totalorder %s19, 3
    %p117 = por %p115, %p116
    %p119 = scmp.ne.s32.totalorder %s102, %s118
    %p120 = scmp.eq.s32.totalorder %s19, 0
    %p121 = por %p119, %p120
    %s122 = ssub.s32 %s20, %s39
    %p123 = scmp.eq.s32.totalorder %s122, 0
    %s125 = sadd.s32 %s124, 1
    %s126 = scalar_select %p123, %s124, %s125
    %p129 = pneg %p123
    %p130 = scmp.eq.s32.totalorder %s13, 3
    %p131 = por %p129, %p130
    %p132 = scmp.ne.s32.totalorder %s124, %s127
    %p133 = scmp.eq.s32.totalorder %s13, 0
    %p134 = por %p132, %p133
    %p135 = scmp.ne.s32.totalorder %s124, %s127
    %p136 = scmp.eq.s32.totalorder %s18, 3
    %p137 = por %p135, %p136
    %p138 = scmp.ne.s32.totalorder %s127, %s128
    %p139 = scmp.eq.s32.totalorder %s18, 0
    %p140 = por %p138, %p139
    %p141 = scmp.ne.s32.totalorder %s127, %s128
    %p142 = scmp.eq.s32.totalorder %s19, 3
    %p143 = por %p141, %p142
    %p145 = scmp.ne.s32.totalorder %s128, %s144
    %p146 = scmp.eq.s32.totalorder %s19, 0
    %p147 = por %p145, %p146
    %s148 = ssub.s32 %s20, %s39
    %p149 = scmp.eq.s32.totalorder %s148, 0
    %s151 = sadd.s32 %s150, 1
    %s152 = scalar_select %p149, %s150, %s151
    %p155 = pneg %p149
    %p156 = scmp.eq.s32.totalorder %s13, 3
    %p157 = por %p155, %p156
    %p158 = scmp.ne.s32.totalorder %s150, %s153
    %p159 = scmp.eq.s32.totalorder %s13, 0
    %p160 = por %p158, %p159
    %p161 = scmp.ne.s32.totalorder %s150, %s153
    %p162 = scmp.eq.s32.totalorder %s18, 3
    %p163 = por %p161, %p162
    %p164 = scmp.ne.s32.totalorder %s153, %s154
    %p165 = scmp.eq.s32.totalorder %s18, 0
    %p166 = por %p164, %p165
    %p167 = scmp.ne.s32.totalorder %s153, %s154
    %p168 = scmp.eq.s32.totalorder %s19, 3
    %p169 = por %p167, %p168
    %p171 = scmp.ne.s32.totalorder %s154, %s170
    %p172 = scmp.eq.s32.totalorder %s19, 0
    %p173 = por %p171, %p172
    %s174 = ssub.s32 %s20, %s39
    %p175 = scmp.eq.s32.totalorder %s174, 0
    %s177 = sadd.s32 %s176, 1
    %s178 = scalar_select %p175, %s176, %s177
    %p181 = pneg %p175
    %p182 = scmp.eq.s32.totalorder %s13, 3
    %p183 = por %p181, %p182
    %p184 = scmp.ne.s32.totalorder %s176, %s179
    %p185 = scmp.eq.s32.totalorder %s13, 0
    %p186 = por %p184, %p185
    %p187 = scmp.ne.s32.totalorder %s176, %s179
    %p188 = scmp.eq.s32.totalorder %s18, 3
    %p189 = por %p187, %p188
    %p190 = scmp.ne.s32.totalorder %s179, %s180
    %p191 = scmp.eq.s32.totalorder %s18, 0
    %p192 = por %p190, %p191
    %p193 = scmp.ne.s32.totalorder %s179, %s180
    %p194 = scmp.eq.s32.totalorder %s19, 3
    %p195 = por %p193, %p194
    %p197 = scmp.ne.s32.totalorder %s180, %s196
    %p198 = scmp.eq.s32.totalorder %s19, 0
    %p199 = por %p197, %p198
    %s200 = ssub.s32 %s20, %s39
    %p201 = scmp.eq.s32.totalorder %s200, 0
    %s203 = sadd.s32 %s202, 1
    %s204 = scalar_select %p201, %s202, %s203
    %p207 = pneg %p201
    %p208 = scmp.eq.s32.totalorder %s13, 3
    %p209 = por %p207, %p208
    %p210 = scmp.ne.s32.totalorder %s202, %s205
    %p211 = scmp.eq.s32.totalorder %s13, 0
    %p212 = por %p210, %p211
    %p213 = scmp.ne.s32.totalorder %s202, %s205
    %p214 = scmp.eq.s32.totalorder %s18, 3
    %p215 = por %p213, %p214
    %p216 = scmp.ne.s32.totalorder %s205, %s206
    %p217 = scmp.eq.s32.totalorder %s18, 0
    %p218 = por %p216, %p217
    %p219 = scmp.ne.s32.totalorder %s205, %s206
    %p220 = scmp.eq.s32.totalorder %s19, 3
    %p221 = por %p219, %p220
    %p223 = scmp.ne.s32.totalorder %s206, %s222
    %p224 = scmp.eq.s32.totalorder %s19, 0
    %p225 = por %p223, %p224
    %s226 = ssub.s32 %s20, %s39
    %s227 = ssub.s32 %s21, %s35
    %s228 = sor.u32 %s226, %s227
    %p229 = scmp.eq.s32.totalorder %s228, 0
    %s231 = sadd.s32 %s230, 1
    %s232 = scalar_select %p229, %s230, %s231
    %p235 = pneg %p229
    %p236 = scmp.eq.s32.totalorder %s13, 3
    %p237 = por %p235, %p236
    %p238 = scmp.ne.s32.totalorder %s230, %s233
    %p239 = scmp.eq.s32.totalorder %s13, 0
    %p240 = por %p238, %p239
    %p241 = scmp.ne.s32.totalorder %s230, %s233
    %p242 = scmp.eq.s32.totalorder %s18, 3
    %p243 = por %p241, %p242
    %p244 = scmp.ne.s32.totalorder %s233, %s234
    %p245 = scmp.eq.s32.totalorder %s18, 0
    %p246 = por %p244, %p245
    %p247 = scmp.ne.s32.totalorder %s233, %s234
    %p248 = scmp.eq.s32.totalorder %s19, 3
    %p249 = por %p247, %p248
    %p251 = scmp.ne.s32.totalorder %s234, %s250
    %p252 = scmp.eq.s32.totalorder %s19, 0
    %p253 = por %p251, %p252
    %p254 = scmp.le.s32.totalorder 1, %s13
    %p255 = scmp.lt.s32.totalorder %s13, 5
    %p256 = pnand %p254, %p255
    %p257 = pneg %p256
    // Predicated region
    $region9: #{atari_net_forward.7} parent=5 // pred_check
      _
    $region10: #{atari_net_forward.7} parent=5 // pred_check_branch
      %259 = sbr.rel (%p256) target = $region12
    $region11: #{atari_net_forward.7} parent=5 // pred_region
      %s260 = ssub.s32 %s13, 1
    $region12: #{atari_net_forward.7} parent=5 // pred_fallthru
      _
    %p261 = scmp.lt.s32.totalorder %s13, 4
    // Predicated region
    $region13: #{atari_net_forward.7} parent=5 // pred_check
      %p262 = pneg %p261
    $region14: #{atari_net_forward.7} parent=5 // pred_check_branch
      %264 = sbr.rel (%p262) target = $region16
    $region15: #{atari_net_forward.7} parent=5 // pred_region
      // Predicated region
      $region17: #{atari_net_forward.7} parent=15 // pred_check
        %p265 = pneg %p54
      $region18: #{atari_net_forward.7} parent=15 // pred_check_branch
        %267 = sbr.rel (%p265) target = $region20
      $region19: #{atari_net_forward.7} parent=15 // pred_region
        %s268 = smul.u32 13, %s22
        %p269 = scmp.lt.s32.totalorder %s21, 0
        %s270 = scalar_select %p269, %s21, 0
        %p271 = scmp.lt.s32.totalorder %s268, 25
        %s272 = scalar_select %p271, %s268, 25
        %s273 = smul.addr %s270, 26
        %s274 = sadd.s32 %s272, %s273
        %s275 = smul.addr %s274, 4
        %s276 = scalar_lea.vmem %s0, %s275
        %s277 = smul.u32 13, %s22
      $region20: #{atari_net_forward.7} parent=15 // pred_fallthru
        _
      // Predicated region
      $region21: #{atari_net_forward.7} parent=15 // pred_check
        %p278 = pneg %p82
      $region22: #{atari_net_forward.7} parent=15 // pred_check_branch
        %280 = sbr.rel (%p278) target = $region24
      $region23: #{atari_net_forward.7} parent=15 // pred_region
        %s281 = smul.u32 208, %s22
        %p282 = scmp.lt.s32.totalorder %s20, 1
        %s283 = scalar_select %p282, %s20, 1
        %p284 = scmp.lt.s32.totalorder %s281, 415
        %s285 = scalar_select %p284, %s281, 415
        %s286 = smul.addr %s285, 8
        %s287 = smul.addr %s283, 3328
        %s288 = sadd.s32 %s286, %s287
        %s289 = smul.addr %s288, 4
        %s290 = scalar_lea.vmem %s1, %s289
        %s291 = smul.u32 208, %s22
      $region24: #{atari_net_forward.7} parent=15 // pred_fallthru
        _
      // Predicated region
      $region25: #{atari_net_forward.7} parent=15 // pred_check
        %p292 = pneg %p108
      $region26: #{atari_net_forward.7} parent=15 // pred_check_branch
        %294 = sbr.rel (%p292) target = $region28
      $region27: #{atari_net_forward.7} parent=15 // pred_region
        %p295 = scmp.lt.s32.totalorder %s20, 1
        %s296 = scalar_select %p295, %s20, 1
        %s297 = smul.addr %s296, 8
        %s298 = scalar_lea.vmem %s2, %s297
      $region28: #{atari_net_forward.7} parent=15 // pred_fallthru
        _
      // Predicated region
      $region29: #{atari_net_forward.7} parent=15 // pred_check
        %p299 = pneg %p134
      $region30: #{atari_net_forward.7} parent=15 // pred_check_branch
        %301 = sbr.rel (%p299) target = $region32
      $region31: #{atari_net_forward.7} parent=15 // pred_region
        %p302 = scmp.lt.s32.totalorder %s20, 1
        %s303 = scalar_select %p302, %s20, 1
        %s304 = smul.addr %s303, 1024
        %s305 = smul.addr %s304, 4
        %s306 = scalar_lea.vmem %s3, %s305
      $region32: #{atari_net_forward.7} parent=15 // pred_fallthru
        _
      // Predicated region
      $region33: #{atari_net_forward.7} parent=15 // pred_check
        %p307 = pneg %p160
      $region34: #{atari_net_forward.7} parent=15 // pred_check_branch
        %309 = sbr.rel (%p307) target = $region36
      $region35: #{atari_net_forward.7} parent=15 // pred_region
        %p310 = scmp.lt.s32.totalorder %s20, 1
        %s311 = scalar_select %p310, %s20, 1
        %s312 = smul.addr %s311, 8
        %s313 = scalar_lea.vmem %s4, %s312
      $region36: #{atari_net_forward.7} parent=15 // pred_fallthru
        _
      // Predicated region
      $region37: #{atari_net_forward.7} parent=15 // pred_check
        %p314 = pneg %p186
      $region38: #{atari_net_forward.7} parent=15 // pred_check_branch
        %316 = sbr.rel (%p314) target = $region40
      $region39: #{atari_net_forward.7} parent=15 // pred_region
        %p317 = scmp.lt.s32.totalorder %s20, 1
        %s318 = scalar_select %p317, %s20, 1
        %s319 = smul.addr %s318, 128
        %s320 = smul.addr %s319, 4
        %s321 = scalar_lea.vmem %s5, %s320
      $region40: #{atari_net_forward.7} parent=15 // pred_fallthru
        _
      // Predicated region
      $region41: #{atari_net_forward.7} parent=15 // pred_check
        %p322 = pneg %p212
      $region42: #{atari_net_forward.7} parent=15 // pred_check_branch
        %324 = sbr.rel (%p322) target = $region44
      $region43: #{atari_net_forward.7} parent=15 // pred_region
        %p325 = scmp.lt.s32.totalorder %s20, 1
        %s326 = scalar_select %p325, %s20, 1
        %s327 = scalar_lea.vmem %s6, %s326
      $region44: #{atari_net_forward.7} parent=15 // pred_fallthru
        _
    $region16: #{atari_net_forward.7} parent=5 // pred_fallthru
      _
    %p328 = scmp.le.s32.totalorder 1, %s13
    %p329 = scmp.lt.s32.totalorder %s13, 5
    %p330 = pnand %p328, %p329
    %p331 = pneg %p330
    // Predicated region
    $region45: #{atari_net_forward.7} parent=5 // pred_check
      _
    $region46: #{atari_net_forward.7} parent=5 // pred_check_branch
      %333 = sbr.rel (%p330) target = $region48
    $region47: #{atari_net_forward.7} parent=5 // pred_region
      %s334 = ssub.s32 %s13, 1
      %s335 = smul.u32 13, %s25
      %p336 = scmp.lt.s32.totalorder %s24, 0
      %s337 = scalar_select %p336, %s24, 0
      %p338 = scmp.lt.s32.totalorder %s335, 25
      %s339 = scalar_select %p338, %s335, 25
      %s340 = smul.addr %s337, 26
      %s341 = sadd.s32 %s339, %s340
      %s342 = smul.addr %s341, 4
      %s343 = scalar_lea.vmem %s0, %s342
      %p344 = pneg %p60
      %p345 = pneg %p57
      %s346 = smul.u32 208, %s25
      %p347 = scmp.lt.s32.totalorder %s23, 1
      %s348 = scalar_select %p347, %s23, 1
      %p349 = scmp.lt.s32.totalorder %s346, 415
      %s350 = scalar_select %p349, %s346, 415
      %s351 = smul.addr %s350, 8
      %s352 = smul.addr %s348, 3328
      %s353 = sadd.s32 %s351, %s352
      %s354 = smul.addr %s353, 4
      %s355 = scalar_lea.vmem %s1, %s354
      %p356 = pneg %p88
      %p357 = pneg %p85
      %p358 = scmp.lt.s32.totalorder %s23, 1
      %s359 = scalar_select %p358, %s23, 1
      %s360 = smul.addr %s359, 8
      %s361 = scalar_lea.vmem %s2, %s360
      %p362 = pneg %p114
      %p363 = pneg %p111
      %p364 = scmp.lt.s32.totalorder %s23, 1
      %s365 = scalar_select %p364, %s23, 1
      %s366 = smul.addr %s365, 1024
      %s367 = smul.addr %s366, 4
      %s368 = scalar_lea.vmem %s3, %s367
      %p369 = pneg %p140
      %p370 = pneg %p137
      %p371 = scmp.lt.s32.totalorder %s23, 1
      %s372 = scalar_select %p371, %s23, 1
      %s373 = smul.addr %s372, 8
      %s374 = scalar_lea.vmem %s4, %s373
      %p375 = pneg %p166
      %p376 = pneg %p163
      %p377 = scmp.lt.s32.totalorder %s23, 1
      %s378 = scalar_select %p377, %s23, 1
      %s379 = smul.addr %s378, 128
      %s380 = smul.addr %s379, 4
      %s381 = scalar_lea.vmem %s5, %s380
      %p382 = pneg %p192
      %p383 = pneg %p189
      %p384 = scmp.lt.s32.totalorder %s23, 1
      %s385 = scalar_select %p384, %s23, 1
      %s386 = scalar_lea.vmem %s6, %s385
      %p387 = pneg %p218
      %p388 = pneg %p215
      %p389 = pneg %p246
      %p390 = pneg %p243
      %p391 = scmp.lt.s32.totalorder %s23, 1
      %s392 = scalar_select %p391, %s23, 1
      %p393 = scmp.lt.s32.totalorder %s24, 0
      %s394 = scalar_select %p393, %s24, 0
      %s395 = sadd.s32 %s394, %s392
      %s396 = smul.addr %s395, 8
      %s397 = scalar_lea.vmem %s7, %s396
      %s398 = smul.u32 13, %s25
      %p399 = scmp.lt.s32.totalorder %s24, 0
      %s400 = scalar_select %p399, %s24, 0
      %p401 = scmp.lt.s32.totalorder %s398, 25
      %s402 = scalar_select %p401, %s398, 25
      %s403 = smul.addr %s400, 26
      %s404 = sadd.s32 %s402, %s403
      %s405 = smul.addr %s404, 4
      %s406 = scalar_lea.vmem %s0, %s405
      %s407 = smul.u32 13, %s25
      %s408 = smul.u32 208, %s25
      %p409 = scmp.lt.s32.totalorder %s23, 1
      %s410 = scalar_select %p409, %s23, 1
      %p411 = scmp.lt.s32.totalorder %s408, 415
      %s412 = scalar_select %p411, %s408, 415
      %s413 = smul.addr %s412, 8
      %s414 = smul.addr %s410, 3328
      %s415 = sadd.s32 %s413, %s414
      %s416 = smul.addr %s415, 4
      %s417 = scalar_lea.vmem %s1, %s416
      %s418 = smul.u32 208, %s25
      %p419 = scmp.lt.s32.totalorder %s23, 1
      %s420 = scalar_select %p419, %s23, 1
      %s421 = smul.addr %s420, 8
      %s422 = scalar_lea.vmem %s2, %s421
      %p423 = scmp.lt.s32.totalorder %s23, 1
      %s424 = scalar_select %p423, %s23, 1
      %s425 = smul.addr %s424, 1024
      %s426 = smul.addr %s425, 4
      %s427 = scalar_lea.vmem %s3, %s426
      %p428 = scmp.lt.s32.totalorder %s23, 1
      %s429 = scalar_select %p428, %s23, 1
      %s430 = smul.addr %s429, 8
      %s431 = scalar_lea.vmem %s4, %s430
      %p432 = scmp.lt.s32.totalorder %s23, 1
      %s433 = scalar_select %p432, %s23, 1
      %s434 = smul.addr %s433, 128
      %s435 = smul.addr %s434, 4
      %s436 = scalar_lea.vmem %s5, %s435
      %p437 = scmp.lt.s32.totalorder %s23, 1
      %s438 = scalar_select %p437, %s23, 1
      %s439 = scalar_lea.vmem %s6, %s438
      %p440 = scmp.lt.s32.totalorder %s23, 1
      %s441 = scalar_select %p440, %s23, 1
      %p442 = scmp.lt.s32.totalorder %s24, 0
      %s443 = scalar_select %p442, %s24, 0
      %s444 = sadd.s32 %s443, %s441
      %s445 = smul.addr %s444, 8
      %s446 = scalar_lea.vmem %s7, %s445
      %p448 = scmp.eq.s32.totalorder %s25, 0
      // Predicated region
      $region49: #{atari_net_forward.7} parent=47 // pred_check
        %p449 = pneg %p448
      $region50: #{atari_net_forward.7} parent=47 // pred_check_branch
        %451 = sbr.rel (%p449) target = $region52
      $region51: #{atari_net_forward.7} parent=47 // pred_region
        %452 = vst [vmem:[#allocation2] sm:$0xff] 0.0
        %453 = vst [vmem:[#allocation2 + $0x8] sm:$0xff] 0.0
        %454 = vst [vmem:[#allocation2 + $0x10] sm:$0xff] 0.0
        %455 = vst [vmem:[#allocation2 + $0x18] sm:$0xff] 0.0
        %456 = vst [vmem:[#allocation2 + $0x20] sm:$0xff] 0.0
        %457 = vst [vmem:[#allocation2 + $0x28] sm:$0xff] 0.0
        %458 = vst [vmem:[#allocation2 + $0x30] sm:$0xff] 0.0
        %459 = vst [vmem:[#allocation2 + $0x38] sm:$0xff] 0.0
      $region52: #{atari_net_forward.7} parent=47 // pred_fallthru
        _
      %v460 = vld [vmem:[#allocation2] sm:$0xff]
      %v461 = vld [vmem:[#allocation2 + $0x8] sm:$0xff]
      %v462 = vld [vmem:[#allocation2 + $0x10] sm:$0xff]
      %v463 = vld [vmem:[#allocation2 + $0x18] sm:$0xff]
      %v464 = vld [vmem:[#allocation2 + $0x20] sm:$0xff]
      %v465 = vld [vmem:[#allocation2 + $0x28] sm:$0xff]
      %v466 = vld [vmem:[#allocation2 + $0x30] sm:$0xff]
      %v467 = vld [vmem:[#allocation2 + $0x38] sm:$0xff]
      %v468 = vld [vmem:[%s406] sm:$0xff]
      %v469 = vld [vmem:[%s406 + $0x8] sm:$0xff]
      %v470 = vld [vmem:[%s406 + $0x10] sm:$0xff]
      %v471 = vld [vmem:[%s406 + $0x18] sm:$0xff]
      %v472 = vld [vmem:[%s406 + $0x20] sm:$0xff]
      %v473 = vld [vmem:[%s406 + $0x28] sm:$0xff]
      %v474 = vld [vmem:[%s406 + $0x30] sm:$0xf]
      %v475 = vld [vmem:[%s417] sm:$0xff]
      %v476 = vld [vmem:[%s417 + $0x8] sm:$0xff]
      %v477 = vld [vmem:[%s417 + $0x10] sm:$0xff]
      %v478 = vld [vmem:[%s417 + $0x18] sm:$0xff]
      %v479 = vld [vmem:[%s417 + $0x20] sm:$0xff]
      %v480 = vld [vmem:[%s417 + $0x28] sm:$0xff]
      %v481 = vld [vmem:[%s417 + $0x30] sm:$0xff]
      %v482 = vld [vmem:[%s417 + $0x38] sm:$0xff]
      %v483 = vld [vmem:[%s417 + $0x40] sm:$0xff]
      %v484 = vld [vmem:[%s417 + $0x48] sm:$0xff]
      %v485 = vld [vmem:[%s417 + $0x50] sm:$0xff]
      %v486 = vld [vmem:[%s417 + $0x58] sm:$0xff]
      %v487 = vld [vmem:[%s417 + $0x60] sm:$0xff]
      %v488 = vld [vmem:[%s417 + $0x68] sm:$0xff]
      %v489 = vld [vmem:[%s417 + $0x70] sm:$0xff]
      %v490 = vld [vmem:[%s417 + $0x78] sm:$0xff]
      %v491 = vld [vmem:[%s417 + $0x80] sm:$0xff]
      %v492 = vld [vmem:[%s417 + $0x88] sm:$0xff]
      %v493 = vld [vmem:[%s417 + $0x90] sm:$0xff]
      %v494 = vld [vmem:[%s417 + $0x98] sm:$0xff]
      %v495 = vld [vmem:[%s417 + $0xa0] sm:$0xff]
      %v496 = vld [vmem:[%s417 + $0xa8] sm:$0xff]
      %v497 = vld [vmem:[%s417 + $0xb0] sm:$0xff]
      %v498 = vld [vmem:[%s417 + $0xb8] sm:$0xff]
      %v499 = vld [vmem:[%s417 + $0xc0] sm:$0xff]
      %v500 = vld [vmem:[%s417 + $0xc8] sm:$0xff]
      %v501 = vld [vmem:[%s417 + $0xd0] sm:$0xff]
      %v502 = vld [vmem:[%s417 + $0xd8] sm:$0xff]
      %v503 = vld [vmem:[%s417 + $0xe0] sm:$0xff]
      %v504 = vld [vmem:[%s417 + $0xe8] sm:$0xff]
      %v505 = vld [vmem:[%s417 + $0xf0] sm:$0xff]
      %v506 = vld [vmem:[%s417 + $0xf8] sm:$0xff]
      %v507 = vld [vmem:[%s417 + $0x100] sm:$0xff]
      %v508 = vld [vmem:[%s417 + $0x108] sm:$0xff]
      %v509 = vld [vmem:[%s417 + $0x110] sm:$0xff]
      %v510 = vld [vmem:[%s417 + $0x118] sm:$0xff]
      %v511 = vld [vmem:[%s417 + $0x120] sm:$0xff]
      %v512 = vld [vmem:[%s417 + $0x128] sm:$0xff]
      %v513 = vld [vmem:[%s417 + $0x130] sm:$0xff]
      %v514 = vld [vmem:[%s417 + $0x138] sm:$0xff]
      %v515 = vld [vmem:[%s417 + $0x140] sm:$0xff]
      %v516 = vld [vmem:[%s417 + $0x148] sm:$0xff]
      %v517 = vld [vmem:[%s417 + $0x150] sm:$0xff]
      %v518 = vld [vmem:[%s417 + $0x158] sm:$0xff]
      %v519 = vld [vmem:[%s417 + $0x160] sm:$0xff]
      %v520 = vld [vmem:[%s417 + $0x168] sm:$0xff]
      %v521 = vld [vmem:[%s417 + $0x170] sm:$0xff]
      %v522 = vld [vmem:[%s417 + $0x178] sm:$0xff]
      %v523 = vld [vmem:[%s417 + $0x180] sm:$0xff]
      %v524 = vld [vmem:[%s417 + $0x188] sm:$0xff]
      %v525 = vld [vmem:[%s417 + $0x190] sm:$0xff]
      %v526 = vld [vmem:[%s417 + $0x198] sm:$0xff]
      %v527 = vld [vmem:[%s417 + $0x1a0] sm:$0xff]
      %v528 = vld [vmem:[%s417 + $0x1a8] sm:$0xff]
      %v529 = vld [vmem:[%s417 + $0x1b0] sm:$0xff]
      %v530 = vld [vmem:[%s417 + $0x1b8] sm:$0xff]
      %v531 = vld [vmem:[%s417 + $0x1c0] sm:$0xff]
      %v532 = vld [vmem:[%s417 + $0x1c8] sm:$0xff]
      %v533 = vld [vmem:[%s417 + $0x1d0] sm:$0xff]
      %v534 = vld [vmem:[%s417 + $0x1d8] sm:$0xff]
      %v535 = vld [vmem:[%s417 + $0x1e0] sm:$0xff]
      %v536 = vld [vmem:[%s417 + $0x1e8] sm:$0xff]
      %v537 = vld [vmem:[%s417 + $0x1f0] sm:$0xff]
      %v538 = vld [vmem:[%s417 + $0x1f8] sm:$0xff]
      %v539 = vld [vmem:[%s417 + $0x200] sm:$0xff]
      %v540 = vld [vmem:[%s417 + $0x208] sm:$0xff]
      %v541 = vld [vmem:[%s417 + $0x210] sm:$0xff]
      %v542 = vld [vmem:[%s417 + $0x218] sm:$0xff]
      %v543 = vld [vmem:[%s417 + $0x220] sm:$0xff]
      %v544 = vld [vmem:[%s417 + $0x228] sm:$0xff]
      %v545 = vld [vmem:[%s417 + $0x230] sm:$0xff]
      %v546 = vld [vmem:[%s417 + $0x238] sm:$0xff]
      %v547 = vld [vmem:[%s417 + $0x240] sm:$0xff]
      %v548 = vld [vmem:[%s417 + $0x248] sm:$0xff]
      %v549 = vld [vmem:[%s417 + $0x250] sm:$0xff]
      %v550 = vld [vmem:[%s417 + $0x258] sm:$0xff]
      %v551 = vld [vmem:[%s417 + $0x260] sm:$0xff]
      %v552 = vld [vmem:[%s417 + $0x268] sm:$0xff]
      %v553 = vld [vmem:[%s417 + $0x270] sm:$0xff]
      %v554 = vld [vmem:[%s417 + $0x278] sm:$0xff]
      %v555 = vld [vmem:[%s417 + $0x280] sm:$0xff]
      %v556 = vld [vmem:[%s417 + $0x288] sm:$0xff]
      %v557 = vld [vmem:[%s417 + $0x290] sm:$0xff]
      %v558 = vld [vmem:[%s417 + $0x298] sm:$0xff]
      %v559 = vld [vmem:[%s417 + $0x2a0] sm:$0xff]
      %v560 = vld [vmem:[%s417 + $0x2a8] sm:$0xff]
      %v561 = vld [vmem:[%s417 + $0x2b0] sm:$0xff]
      %v562 = vld [vmem:[%s417 + $0x2b8] sm:$0xff]
      %v563 = vld [vmem:[%s417 + $0x2c0] sm:$0xff]
      %v564 = vld [vmem:[%s417 + $0x2c8] sm:$0xff]
      %v565 = vld [vmem:[%s417 + $0x2d0] sm:$0xff]
      %v566 = vld [vmem:[%s417 + $0x2d8] sm:$0xff]
      %v567 = vld [vmem:[%s417 + $0x2e0] sm:$0xff]
      %v568 = vld [vmem:[%s417 + $0x2e8] sm:$0xff]
      %v569 = vld [vmem:[%s417 + $0x2f0] sm:$0xff]
      %v570 = vld [vmem:[%s417 + $0x2f8] sm:$0xff]
      %v571 = vld [vmem:[%s417 + $0x300] sm:$0xff]
      %v572 = vld [vmem:[%s417 + $0x308] sm:$0xff]
      %v573 = vld [vmem:[%s417 + $0x310] sm:$0xff]
      %v574 = vld [vmem:[%s417 + $0x318] sm:$0xff]
      %v575 = vld [vmem:[%s417 + $0x320] sm:$0xff]
      %v576 = vld [vmem:[%s417 + $0x328] sm:$0xff]
      %v577 = vld [vmem:[%s417 + $0x330] sm:$0xff]
      %v578 = vld [vmem:[%s417 + $0x338] sm:$0xff]
      %v579 = vld [vmem:[%s417 + $0x340] sm:$0xff]
      %v580 = vld [vmem:[%s417 + $0x348] sm:$0xff]
      %v581 = vld [vmem:[%s417 + $0x350] sm:$0xff]
      %v582 = vld [vmem:[%s417 + $0x358] sm:$0xff]
      %v583 = vld [vmem:[%s417 + $0x360] sm:$0xff]
      %v584 = vld [vmem:[%s417 + $0x368] sm:$0xff]
      %v585 = vld [vmem:[%s417 + $0x370] sm:$0xff]
      %v586 = vld [vmem:[%s417 + $0x378] sm:$0xff]
      %v587 = vld [vmem:[%s417 + $0x380] sm:$0xff]
      %v588 = vld [vmem:[%s417 + $0x388] sm:$0xff]
      %v589 = vld [vmem:[%s417 + $0x390] sm:$0xff]
      %v590 = vld [vmem:[%s417 + $0x398] sm:$0xff]
      %v591 = vld [vmem:[%s417 + $0x3a0] sm:$0xff]
      %v592 = vld [vmem:[%s417 + $0x3a8] sm:$0xff]
      %v593 = vld [vmem:[%s417 + $0x3b0] sm:$0xff]
      %v594 = vld [vmem:[%s417 + $0x3b8] sm:$0xff]
      %v595 = vld [vmem:[%s417 + $0x3c0] sm:$0xff]
      %v596 = vld [vmem:[%s417 + $0x3c8] sm:$0xff]
      %v597 = vld [vmem:[%s417 + $0x3d0] sm:$0xff]
      %v598 = vld [vmem:[%s417 + $0x3d8] sm:$0xff]
      %v599 = vld [vmem:[%s417 + $0x3e0] sm:$0xff]
      %v600 = vld [vmem:[%s417 + $0x3e8] sm:$0xff]
      %v601 = vld [vmem:[%s417 + $0x3f0] sm:$0xff]
      %v602 = vld [vmem:[%s417 + $0x3f8] sm:$0xff]
      %v603 = vld [vmem:[%s417 + $0x400] sm:$0xff]
      %v604 = vld [vmem:[%s417 + $0x408] sm:$0xff]
      %v605 = vld [vmem:[%s417 + $0x410] sm:$0xff]
      %v606 = vld [vmem:[%s417 + $0x418] sm:$0xff]
      %v607 = vld [vmem:[%s417 + $0x420] sm:$0xff]
      %v608 = vld [vmem:[%s417 + $0x428] sm:$0xff]
      %v609 = vld [vmem:[%s417 + $0x430] sm:$0xff]
      %v610 = vld [vmem:[%s417 + $0x438] sm:$0xff]
      %v611 = vld [vmem:[%s417 + $0x440] sm:$0xff]
      %v612 = vld [vmem:[%s417 + $0x448] sm:$0xff]
      %v613 = vld [vmem:[%s417 + $0x450] sm:$0xff]
      %v614 = vld [vmem:[%s417 + $0x458] sm:$0xff]
      %v615 = vld [vmem:[%s417 + $0x460] sm:$0xff]
      %v616 = vld [vmem:[%s417 + $0x468] sm:$0xff]
      %v617 = vld [vmem:[%s417 + $0x470] sm:$0xff]
      %v618 = vld [vmem:[%s417 + $0x478] sm:$0xff]
      %v619 = vld [vmem:[%s417 + $0x480] sm:$0xff]
      %v620 = vld [vmem:[%s417 + $0x488] sm:$0xff]
      %v621 = vld [vmem:[%s417 + $0x490] sm:$0xff]
      %v622 = vld [vmem:[%s417 + $0x498] sm:$0xff]
      %v623 = vld [vmem:[%s417 + $0x4a0] sm:$0xff]
      %v624 = vld [vmem:[%s417 + $0x4a8] sm:$0xff]
      %v625 = vld [vmem:[%s417 + $0x4b0] sm:$0xff]
      %v626 = vld [vmem:[%s417 + $0x4b8] sm:$0xff]
      %v627 = vld [vmem:[%s417 + $0x4c0] sm:$0xff]
      %v628 = vld [vmem:[%s417 + $0x4c8] sm:$0xff]
      %v629 = vld [vmem:[%s417 + $0x4d0] sm:$0xff]
      %v630 = vld [vmem:[%s417 + $0x4d8] sm:$0xff]
      %v631 = vld [vmem:[%s417 + $0x4e0] sm:$0xff]
      %v632 = vld [vmem:[%s417 + $0x4e8] sm:$0xff]
      %v633 = vld [vmem:[%s417 + $0x4f0] sm:$0xff]
      %v634 = vld [vmem:[%s417 + $0x4f8] sm:$0xff]
      %v635 = vld [vmem:[%s417 + $0x500] sm:$0xff]
      %v636 = vld [vmem:[%s417 + $0x508] sm:$0xff]
      %v637 = vld [vmem:[%s417 + $0x510] sm:$0xff]
      %v638 = vld [vmem:[%s417 + $0x518] sm:$0xff]
      %v639 = vld [vmem:[%s417 + $0x520] sm:$0xff]
      %v640 = vld [vmem:[%s417 + $0x528] sm:$0xff]
      %v641 = vld [vmem:[%s417 + $0x530] sm:$0xff]
      %v642 = vld [vmem:[%s417 + $0x538] sm:$0xff]
      %v643 = vld [vmem:[%s417 + $0x540] sm:$0xff]
      %v644 = vld [vmem:[%s417 + $0x548] sm:$0xff]
      %v645 = vld [vmem:[%s417 + $0x550] sm:$0xff]
      %v646 = vld [vmem:[%s417 + $0x558] sm:$0xff]
      %v647 = vld [vmem:[%s417 + $0x560] sm:$0xff]
      %v648 = vld [vmem:[%s417 + $0x568] sm:$0xff]
      %v649 = vld [vmem:[%s417 + $0x570] sm:$0xff]
      %v650 = vld [vmem:[%s417 + $0x578] sm:$0xff]
      %v651 = vld [vmem:[%s417 + $0x580] sm:$0xff]
      %v652 = vld [vmem:[%s417 + $0x588] sm:$0xff]
      %v653 = vld [vmem:[%s417 + $0x590] sm:$0xff]
      %v654 = vld [vmem:[%s417 + $0x598] sm:$0xff]
      %v655 = vld [vmem:[%s417 + $0x5a0] sm:$0xff]
      %v656 = vld [vmem:[%s417 + $0x5a8] sm:$0xff]
      %v657 = vld [vmem:[%s417 + $0x5b0] sm:$0xff]
      %v658 = vld [vmem:[%s417 + $0x5b8] sm:$0xff]
      %v659 = vld [vmem:[%s417 + $0x5c0] sm:$0xff]
      %v660 = vld [vmem:[%s417 + $0x5c8] sm:$0xff]
      %v661 = vld [vmem:[%s417 + $0x5d0] sm:$0xff]
      %v662 = vld [vmem:[%s417 + $0x5d8] sm:$0xff]
      %v663 = vld [vmem:[%s417 + $0x5e0] sm:$0xff]
      %v664 = vld [vmem:[%s417 + $0x5e8] sm:$0xff]
      %v665 = vld [vmem:[%s417 + $0x5f0] sm:$0xff]
      %v666 = vld [vmem:[%s417 + $0x5f8] sm:$0xff]
      %v667 = vld [vmem:[%s417 + $0x600] sm:$0xff]
      %v668 = vld [vmem:[%s417 + $0x608] sm:$0xff]
      %v669 = vld [vmem:[%s417 + $0x610] sm:$0xff]
      %v670 = vld [vmem:[%s417 + $0x618] sm:$0xff]
      %v671 = vld [vmem:[%s417 + $0x620] sm:$0xff]
      %v672 = vld [vmem:[%s417 + $0x628] sm:$0xff]
      %v673 = vld [vmem:[%s417 + $0x630] sm:$0xff]
      %v674 = vld [vmem:[%s417 + $0x638] sm:$0xff]
      %v675 = vld [vmem:[%s417 + $0x640] sm:$0xff]
      %v676 = vld [vmem:[%s417 + $0x648] sm:$0xff]
      %v677 = vld [vmem:[%s417 + $0x650] sm:$0xff]
      %v678 = vld [vmem:[%s417 + $0x658] sm:$0xff]
      %v679 = vld [vmem:[%s417 + $0x660] sm:$0xff]
      %v680 = vld [vmem:[%s417 + $0x668] sm:$0xff]
      %v681 = vld [vmem:[%s417 + $0x670] sm:$0xff]
      %v682 = vld [vmem:[%s417 + $0x678] sm:$0xff]
      %v683 = vld [vmem:[%s417 + $0x680] sm:$0xff]
      %v684 = vld [vmem:[%s417 + $0x688] sm:$0xff]
      %v685 = vld [vmem:[%s417 + $0x690] sm:$0xff]
      %v686 = vld [vmem:[%s417 + $0x698] sm:$0xff]
      %v687 = vld [vmem:[%s417 + $0x6a0] sm:$0xff]
      %v688 = vld [vmem:[%s417 + $0x6a8] sm:$0xff]
      %v689 = vld [vmem:[%s417 + $0x6b0] sm:$0xff]
      %v690 = vld [vmem:[%s417 + $0x6b8] sm:$0xff]
      %v691 = vld [vmem:[%s417 + $0x6c0] sm:$0xff]
      %v692 = vld [vmem:[%s417 + $0x6c8] sm:$0xff]
      %v693 = vld [vmem:[%s417 + $0x6d0] sm:$0xff]
      %v694 = vld [vmem:[%s417 + $0x6d8] sm:$0xff]
      %v695 = vld [vmem:[%s417 + $0x6e0] sm:$0xff]
      %v696 = vld [vmem:[%s417 + $0x6e8] sm:$0xff]
      %v697 = vld [vmem:[%s417 + $0x6f0] sm:$0xff]
      %v698 = vld [vmem:[%s417 + $0x6f8] sm:$0xff]
      %v699 = vld [vmem:[%s417 + $0x700] sm:$0xff]
      %v700 = vld [vmem:[%s417 + $0x708] sm:$0xff]
      %v701 = vld [vmem:[%s417 + $0x710] sm:$0xff]
      %v702 = vld [vmem:[%s417 + $0x718] sm:$0xff]
      %v703 = vld [vmem:[%s417 + $0x720] sm:$0xff]
      %v704 = vld [vmem:[%s417 + $0x728] sm:$0xff]
      %v705 = vld [vmem:[%s417 + $0x730] sm:$0xff]
      %v706 = vld [vmem:[%s417 + $0x738] sm:$0xff]
      %v707 = vld [vmem:[%s417 + $0x740] sm:$0xff]
      %v708 = vld [vmem:[%s417 + $0x748] sm:$0xff]
      %v709 = vld [vmem:[%s417 + $0x750] sm:$0xff]
      %v710 = vld [vmem:[%s417 + $0x758] sm:$0xff]
      %v711 = vld [vmem:[%s417 + $0x760] sm:$0xff]
      %v712 = vld [vmem:[%s417 + $0x768] sm:$0xff]
      %v713 = vld [vmem:[%s417 + $0x770] sm:$0xff]
      %v714 = vld [vmem:[%s417 + $0x778] sm:$0xff]
      %v715 = vld [vmem:[%s417 + $0x780] sm:$0xff]
      %v716 = vld [vmem:[%s417 + $0x788] sm:$0xff]
      %v717 = vld [vmem:[%s417 + $0x790] sm:$0xff]
      %v718 = vld [vmem:[%s417 + $0x798] sm:$0xff]
      %v719 = vld [vmem:[%s417 + $0x7a0] sm:$0xff]
      %v720 = vld [vmem:[%s417 + $0x7a8] sm:$0xff]
      %v721 = vld [vmem:[%s417 + $0x7b0] sm:$0xff]
      %v722 = vld [vmem:[%s417 + $0x7b8] sm:$0xff]
      %v723 = vld [vmem:[%s417 + $0x7c0] sm:$0xff]
      %v724 = vld [vmem:[%s417 + $0x7c8] sm:$0xff]
      %v725 = vld [vmem:[%s417 + $0x7d0] sm:$0xff]
      %v726 = vld [vmem:[%s417 + $0x7d8] sm:$0xff]
      %v727 = vld [vmem:[%s417 + $0x7e0] sm:$0xff]
      %v728 = vld [vmem:[%s417 + $0x7e8] sm:$0xff]
      %v729 = vld [vmem:[%s417 + $0x7f0] sm:$0xff]
      %v730 = vld [vmem:[%s417 + $0x7f8] sm:$0xff]
      %v731 = vld [vmem:[%s417 + $0x800] sm:$0xff]
      %v732 = vld [vmem:[%s417 + $0x808] sm:$0xff]
      %v733 = vld [vmem:[%s417 + $0x810] sm:$0xff]
      %v734 = vld [vmem:[%s417 + $0x818] sm:$0xff]
      %v735 = vld [vmem:[%s417 + $0x820] sm:$0xff]
      %v736 = vld [vmem:[%s417 + $0x828] sm:$0xff]
      %v737 = vld [vmem:[%s417 + $0x830] sm:$0xff]
      %v738 = vld [vmem:[%s417 + $0x838] sm:$0xff]
      %v739 = vld [vmem:[%s417 + $0x840] sm:$0xff]
      %v740 = vld [vmem:[%s417 + $0x848] sm:$0xff]
      %v741 = vld [vmem:[%s417 + $0x850] sm:$0xff]
      %v742 = vld [vmem:[%s417 + $0x858] sm:$0xff]
      %v743 = vld [vmem:[%s417 + $0x860] sm:$0xff]
      %v744 = vld [vmem:[%s417 + $0x868] sm:$0xff]
      %v745 = vld [vmem:[%s417 + $0x870] sm:$0xff]
      %v746 = vld [vmem:[%s417 + $0x878] sm:$0xff]
      %v747 = vld [vmem:[%s417 + $0x880] sm:$0xff]
      %v748 = vld [vmem:[%s417 + $0x888] sm:$0xff]
      %v749 = vld [vmem:[%s417 + $0x890] sm:$0xff]
      %v750 = vld [vmem:[%s417 + $0x898] sm:$0xff]
      %v751 = vld [vmem:[%s417 + $0x8a0] sm:$0xff]
      %v752 = vld [vmem:[%s417 + $0x8a8] sm:$0xff]
      %v753 = vld [vmem:[%s417 + $0x8b0] sm:$0xff]
      %v754 = vld [vmem:[%s417 + $0x8b8] sm:$0xff]
      %v755 = vld [vmem:[%s417 + $0x8c0] sm:$0xff]
      %v756 = vld [vmem:[%s417 + $0x8c8] sm:$0xff]
      %v757 = vld [vmem:[%s417 + $0x8d0] sm:$0xff]
      %v758 = vld [vmem:[%s417 + $0x8d8] sm:$0xff]
      %v759 = vld [vmem:[%s417 + $0x8e0] sm:$0xff]
      %v760 = vld [vmem:[%s417 + $0x8e8] sm:$0xff]
      %v761 = vld [vmem:[%s417 + $0x8f0] sm:$0xff]
      %v762 = vld [vmem:[%s417 + $0x8f8] sm:$0xff]
      %v763 = vld [vmem:[%s417 + $0x900] sm:$0xff]
      %v764 = vld [vmem:[%s417 + $0x908] sm:$0xff]
      %v765 = vld [vmem:[%s417 + $0x910] sm:$0xff]
      %v766 = vld [vmem:[%s417 + $0x918] sm:$0xff]
      %v767 = vld [vmem:[%s417 + $0x920] sm:$0xff]
      %v768 = vld [vmem:[%s417 + $0x928] sm:$0xff]
      %v769 = vld [vmem:[%s417 + $0x930] sm:$0xff]
      %v770 = vld [vmem:[%s417 + $0x938] sm:$0xff]
      %v771 = vld [vmem:[%s417 + $0x940] sm:$0xff]
      %v772 = vld [vmem:[%s417 + $0x948] sm:$0xff]
      %v773 = vld [vmem:[%s417 + $0x950] sm:$0xff]
      %v774 = vld [vmem:[%s417 + $0x958] sm:$0xff]
      %v775 = vld [vmem:[%s417 + $0x960] sm:$0xff]
      %v776 = vld [vmem:[%s417 + $0x968] sm:$0xff]
      %v777 = vld [vmem:[%s417 + $0x970] sm:$0xff]
      %v778 = vld [vmem:[%s417 + $0x978] sm:$0xff]
      %v779 = vld [vmem:[%s417 + $0x980] sm:$0xff]
      %v780 = vld [vmem:[%s417 + $0x988] sm:$0xff]
      %v781 = vld [vmem:[%s417 + $0x990] sm:$0xff]
      %v782 = vld [vmem:[%s417 + $0x998] sm:$0xff]
      %v783 = vld [vmem:[%s417 + $0x9a0] sm:$0xff]
      %v784 = vld [vmem:[%s417 + $0x9a8] sm:$0xff]
      %v785 = vld [vmem:[%s417 + $0x9b0] sm:$0xff]
      %v786 = vld [vmem:[%s417 + $0x9b8] sm:$0xff]
      %v787 = vld [vmem:[%s417 + $0x9c0] sm:$0xff]
      %v788 = vld [vmem:[%s417 + $0x9c8] sm:$0xff]
      %v789 = vld [vmem:[%s417 + $0x9d0] sm:$0xff]
      %v790 = vld [vmem:[%s417 + $0x9d8] sm:$0xff]
      %v791 = vld [vmem:[%s417 + $0x9e0] sm:$0xff]
      %v792 = vld [vmem:[%s417 + $0x9e8] sm:$0xff]
      %v793 = vld [vmem:[%s417 + $0x9f0] sm:$0xff]
      %v794 = vld [vmem:[%s417 + $0x9f8] sm:$0xff]
      %v795 = vld [vmem:[%s417 + $0xa00] sm:$0xff]
      %v796 = vld [vmem:[%s417 + $0xa08] sm:$0xff]
      %v797 = vld [vmem:[%s417 + $0xa10] sm:$0xff]
      %v798 = vld [vmem:[%s417 + $0xa18] sm:$0xff]
      %v799 = vld [vmem:[%s417 + $0xa20] sm:$0xff]
      %v800 = vld [vmem:[%s417 + $0xa28] sm:$0xff]
      %v801 = vld [vmem:[%s417 + $0xa30] sm:$0xff]
      %v802 = vld [vmem:[%s417 + $0xa38] sm:$0xff]
      %v803 = vld [vmem:[%s417 + $0xa40] sm:$0xff]
      %v804 = vld [vmem:[%s417 + $0xa48] sm:$0xff]
      %v805 = vld [vmem:[%s417 + $0xa50] sm:$0xff]
      %v806 = vld [vmem:[%s417 + $0xa58] sm:$0xff]
      %v807 = vld [vmem:[%s417 + $0xa60] sm:$0xff]
      %v808 = vld [vmem:[%s417 + $0xa68] sm:$0xff]
      %v809 = vld [vmem:[%s417 + $0xa70] sm:$0xff]
      %v810 = vld [vmem:[%s417 + $0xa78] sm:$0xff]
      %v811 = vld [vmem:[%s417 + $0xa80] sm:$0xff]
      %v812 = vld [vmem:[%s417 + $0xa88] sm:$0xff]
      %v813 = vld [vmem:[%s417 + $0xa90] sm:$0xff]
      %v814 = vld [vmem:[%s417 + $0xa98] sm:$0xff]
      %v815 = vld [vmem:[%s417 + $0xaa0] sm:$0xff]
      %v816 = vld [vmem:[%s417 + $0xaa8] sm:$0xff]
      %v817 = vld [vmem:[%s417 + $0xab0] sm:$0xff]
      %v818 = vld [vmem:[%s417 + $0xab8] sm:$0xff]
      %v819 = vld [vmem:[%s417 + $0xac0] sm:$0xff]
      %v820 = vld [vmem:[%s417 + $0xac8] sm:$0xff]
      %v821 = vld [vmem:[%s417 + $0xad0] sm:$0xff]
      %v822 = vld [vmem:[%s417 + $0xad8] sm:$0xff]
      %v823 = vld [vmem:[%s417 + $0xae0] sm:$0xff]
      %v824 = vld [vmem:[%s417 + $0xae8] sm:$0xff]
      %v825 = vld [vmem:[%s417 + $0xaf0] sm:$0xff]
      %v826 = vld [vmem:[%s417 + $0xaf8] sm:$0xff]
      %v827 = vld [vmem:[%s417 + $0xb00] sm:$0xff]
      %v828 = vld [vmem:[%s417 + $0xb08] sm:$0xff]
      %v829 = vld [vmem:[%s417 + $0xb10] sm:$0xff]
      %v830 = vld [vmem:[%s417 + $0xb18] sm:$0xff]
      %v831 = vld [vmem:[%s417 + $0xb20] sm:$0xff]
      %v832 = vld [vmem:[%s417 + $0xb28] sm:$0xff]
      %v833 = vld [vmem:[%s417 + $0xb30] sm:$0xff]
      %v834 = vld [vmem:[%s417 + $0xb38] sm:$0xff]
      %v835 = vld [vmem:[%s417 + $0xb40] sm:$0xff]
      %v836 = vld [vmem:[%s417 + $0xb48] sm:$0xff]
      %v837 = vld [vmem:[%s417 + $0xb50] sm:$0xff]
      %v838 = vld [vmem:[%s417 + $0xb58] sm:$0xff]
      %v839 = vld [vmem:[%s417 + $0xb60] sm:$0xff]
      %v840 = vld [vmem:[%s417 + $0xb68] sm:$0xff]
      %v841 = vld [vmem:[%s417 + $0xb70] sm:$0xff]
      %v842 = vld [vmem:[%s417 + $0xb78] sm:$0xff]
      %v843 = vld [vmem:[%s417 + $0xb80] sm:$0xff]
      %v844 = vld [vmem:[%s417 + $0xb88] sm:$0xff]
      %v845 = vld [vmem:[%s417 + $0xb90] sm:$0xff]
      %v846 = vld [vmem:[%s417 + $0xb98] sm:$0xff]
      %v847 = vld [vmem:[%s417 + $0xba0] sm:$0xff]
      %v848 = vld [vmem:[%s417 + $0xba8] sm:$0xff]
      %v849 = vld [vmem:[%s417 + $0xbb0] sm:$0xff]
      %v850 = vld [vmem:[%s417 + $0xbb8] sm:$0xff]
      %v851 = vld [vmem:[%s417 + $0xbc0] sm:$0xff]
      %v852 = vld [vmem:[%s417 + $0xbc8] sm:$0xff]
      %v853 = vld [vmem:[%s417 + $0xbd0] sm:$0xff]
      %v854 = vld [vmem:[%s417 + $0xbd8] sm:$0xff]
      %v855 = vld [vmem:[%s417 + $0xbe0] sm:$0xff]
      %v856 = vld [vmem:[%s417 + $0xbe8] sm:$0xff]
      %v857 = vld [vmem:[%s417 + $0xbf0] sm:$0xff]
      %v858 = vld [vmem:[%s417 + $0xbf8] sm:$0xff]
      %v859 = vld [vmem:[%s417 + $0xc00] sm:$0xff]
      %v860 = vld [vmem:[%s417 + $0xc08] sm:$0xff]
      %v861 = vld [vmem:[%s417 + $0xc10] sm:$0xff]
      %v862 = vld [vmem:[%s417 + $0xc18] sm:$0xff]
      %v863 = vld [vmem:[%s417 + $0xc20] sm:$0xff]
      %v864 = vld [vmem:[%s417 + $0xc28] sm:$0xff]
      %v865 = vld [vmem:[%s417 + $0xc30] sm:$0xff]
      %v866 = vld [vmem:[%s417 + $0xc38] sm:$0xff]
      %v867 = vld [vmem:[%s417 + $0xc40] sm:$0xff]
      %v868 = vld [vmem:[%s417 + $0xc48] sm:$0xff]
      %v869 = vld [vmem:[%s417 + $0xc50] sm:$0xff]
      %v870 = vld [vmem:[%s417 + $0xc58] sm:$0xff]
      %v871 = vld [vmem:[%s417 + $0xc60] sm:$0xff]
      %v872 = vld [vmem:[%s417 + $0xc68] sm:$0xff]
      %v873 = vld [vmem:[%s417 + $0xc70] sm:$0xff]
      %v874 = vld [vmem:[%s417 + $0xc78] sm:$0xff]
      %v875 = vld [vmem:[%s417 + $0xc80] sm:$0xff]
      %v876 = vld [vmem:[%s417 + $0xc88] sm:$0xff]
      %v877 = vld [vmem:[%s417 + $0xc90] sm:$0xff]
      %v878 = vld [vmem:[%s417 + $0xc98] sm:$0xff]
      %v879 = vld [vmem:[%s417 + $0xca0] sm:$0xff]
      %v880 = vld [vmem:[%s417 + $0xca8] sm:$0xff]
      %v881 = vld [vmem:[%s417 + $0xcb0] sm:$0xff]
      %v882 = vld [vmem:[%s417 + $0xcb8] sm:$0xff]
      %v883 = vld [vmem:[%s417 + $0xcc0] sm:$0xff]
      %v884 = vld [vmem:[%s417 + $0xcc8] sm:$0xff]
      %v885 = vld [vmem:[%s417 + $0xcd0] sm:$0xff]
      %v886 = vld [vmem:[%s417 + $0xcd8] sm:$0xff]
      %v887 = vld [vmem:[%s417 + $0xce0] sm:$0xff]
      %v888 = vld [vmem:[%s417 + $0xce8] sm:$0xff]
      %v889 = vld [vmem:[%s417 + $0xcf0] sm:$0xff]
      %v890 = vld [vmem:[%s417 + $0xcf8] sm:$0xff]
      %v891 = vld [vmem:[%s417 + $0xd00] sm:$0xff]
      %v892 = vld [vmem:[%s417 + $0xd08] sm:$0xff]
      %v893 = vld [vmem:[%s417 + $0xd10] sm:$0xff]
      %v894 = vld [vmem:[%s417 + $0xd18] sm:$0xff]
      %v895 = vld [vmem:[%s417 + $0xd20] sm:$0xff]
      %v896 = vld [vmem:[%s417 + $0xd28] sm:$0xff]
      %v897 = vld [vmem:[%s417 + $0xd30] sm:$0xff]
      %v898 = vld [vmem:[%s417 + $0xd38] sm:$0xff]
      %v899 = vld [vmem:[%s417 + $0xd40] sm:$0xff]
      %v900 = vld [vmem:[%s417 + $0xd48] sm:$0xff]
      %v901 = vld [vmem:[%s417 + $0xd50] sm:$0xff]
      %v902 = vld [vmem:[%s417 + $0xd58] sm:$0xff]
      %v903 = vld [vmem:[%s417 + $0xd60] sm:$0xff]
      %v904 = vld [vmem:[%s417 + $0xd68] sm:$0xff]
      %v905 = vld [vmem:[%s417 + $0xd70] sm:$0xff]
      %v906 = vld [vmem:[%s417 + $0xd78] sm:$0xff]
      %v907 = vld [vmem:[%s417 + $0xd80] sm:$0xff]
      %v908 = vld [vmem:[%s417 + $0xd88] sm:$0xff]
      %v909 = vld [vmem:[%s417 + $0xd90] sm:$0xff]
      %v910 = vld [vmem:[%s417 + $0xd98] sm:$0xff]
      %v911 = vld [vmem:[%s417 + $0xda0] sm:$0xff]
      %v912 = vld [vmem:[%s417 + $0xda8] sm:$0xff]
      %v913 = vld [vmem:[%s417 + $0xdb0] sm:$0xff]
      %v914 = vld [vmem:[%s417 + $0xdb8] sm:$0xff]
      %v915 = vld [vmem:[%s417 + $0xdc0] sm:$0xff]
      %v916 = vld [vmem:[%s417 + $0xdc8] sm:$0xff]
      %v917 = vld [vmem:[%s417 + $0xdd0] sm:$0xff]
      %v918 = vld [vmem:[%s417 + $0xdd8] sm:$0xff]
      %v919 = vld [vmem:[%s417 + $0xde0] sm:$0xff]
      %v920 = vld [vmem:[%s417 + $0xde8] sm:$0xff]
      %v921 = vld [vmem:[%s417 + $0xdf0] sm:$0xff]
      %v922 = vld [vmem:[%s417 + $0xdf8] sm:$0xff]
      %v923 = vld [vmem:[%s417 + $0xe00] sm:$0xff]
      %v924 = vld [vmem:[%s417 + $0xe08] sm:$0xff]
      %v925 = vld [vmem:[%s417 + $0xe10] sm:$0xff]
      %v926 = vld [vmem:[%s417 + $0xe18] sm:$0xff]
      %v927 = vld [vmem:[%s417 + $0xe20] sm:$0xff]
      %v928 = vld [vmem:[%s417 + $0xe28] sm:$0xff]
      %v929 = vld [vmem:[%s417 + $0xe30] sm:$0xff]
      %v930 = vld [vmem:[%s417 + $0xe38] sm:$0xff]
      %v931 = vld [vmem:[%s417 + $0xe40] sm:$0xff]
      %v932 = vld [vmem:[%s417 + $0xe48] sm:$0xff]
      %v933 = vld [vmem:[%s417 + $0xe50] sm:$0xff]
      %v934 = vld [vmem:[%s417 + $0xe58] sm:$0xff]
      %v935 = vld [vmem:[%s417 + $0xe60] sm:$0xff]
      %v936 = vld [vmem:[%s417 + $0xe68] sm:$0xff]
      %v937 = vld [vmem:[%s417 + $0xe70] sm:$0xff]
      %v938 = vld [vmem:[%s417 + $0xe78] sm:$0xff]
      %v939 = vld [vmem:[%s417 + $0xe80] sm:$0xff]
      %v940 = vld [vmem:[%s417 + $0xe88] sm:$0xff]
      %v941 = vld [vmem:[%s417 + $0xe90] sm:$0xff]
      %v942 = vld [vmem:[%s417 + $0xe98] sm:$0xff]
      %v943 = vld [vmem:[%s417 + $0xea0] sm:$0xff]
      %v944 = vld [vmem:[%s417 + $0xea8] sm:$0xff]
      %v945 = vld [vmem:[%s417 + $0xeb0] sm:$0xff]
      %v946 = vld [vmem:[%s417 + $0xeb8] sm:$0xff]
      %v947 = vld [vmem:[%s417 + $0xec0] sm:$0xff]
      %v948 = vld [vmem:[%s417 + $0xec8] sm:$0xff]
      %v949 = vld [vmem:[%s417 + $0xed0] sm:$0xff]
      %v950 = vld [vmem:[%s417 + $0xed8] sm:$0xff]
      %v951 = vld [vmem:[%s417 + $0xee0] sm:$0xff]
      %v952 = vld [vmem:[%s417 + $0xee8] sm:$0xff]
      %v953 = vld [vmem:[%s417 + $0xef0] sm:$0xff]
      %v954 = vld [vmem:[%s417 + $0xef8] sm:$0xff]
      %v955 = vld [vmem:[%s417 + $0xf00] sm:$0xff]
      %v956 = vld [vmem:[%s417 + $0xf08] sm:$0xff]
      %v957 = vld [vmem:[%s417 + $0xf10] sm:$0xff]
      %v958 = vld [vmem:[%s417 + $0xf18] sm:$0xff]
      %v959 = vld [vmem:[%s417 + $0xf20] sm:$0xff]
      %v960 = vld [vmem:[%s417 + $0xf28] sm:$0xff]
      %v961 = vld [vmem:[%s417 + $0xf30] sm:$0xff]
      %v962 = vld [vmem:[%s417 + $0xf38] sm:$0xff]
      %v963 = vld [vmem:[%s417 + $0xf40] sm:$0xff]
      %v964 = vld [vmem:[%s417 + $0xf48] sm:$0xff]
      %v965 = vld [vmem:[%s417 + $0xf50] sm:$0xff]
      %v966 = vld [vmem:[%s417 + $0xf58] sm:$0xff]
      %v967 = vld [vmem:[%s417 + $0xf60] sm:$0xff]
      %v968 = vld [vmem:[%s417 + $0xf68] sm:$0xff]
      %v969 = vld [vmem:[%s417 + $0xf70] sm:$0xff]
      %v970 = vld [vmem:[%s417 + $0xf78] sm:$0xff]
      %v971 = vld [vmem:[%s417 + $0xf80] sm:$0xff]
      %v972 = vld [vmem:[%s417 + $0xf88] sm:$0xff]
      %v973 = vld [vmem:[%s417 + $0xf90] sm:$0xff]
      %v974 = vld [vmem:[%s417 + $0xf98] sm:$0xff]
      %v975 = vld [vmem:[%s417 + $0xfa0] sm:$0xff]
      %v976 = vld [vmem:[%s417 + $0xfa8] sm:$0xff]
      %v977 = vld [vmem:[%s417 + $0xfb0] sm:$0xff]
      %v978 = vld [vmem:[%s417 + $0xfb8] sm:$0xff]
      %v979 = vld [vmem:[%s417 + $0xfc0] sm:$0xff]
      %v980 = vld [vmem:[%s417 + $0xfc8] sm:$0xff]
      %v981 = vld [vmem:[%s417 + $0xfd0] sm:$0xff]
      %v982 = vld [vmem:[%s417 + $0xfd8] sm:$0xff]
      %v983 = vld [vmem:[%s417 + $0xfe0] sm:$0xff]
      %v984 = vld [vmem:[%s417 + $0xfe8] sm:$0xff]
      %v985 = vld [vmem:[%s417 + $0xff0] sm:$0xff]
      %v986 = vld [vmem:[%s417 + $0xff8] sm:$0xff]
      %v987 = vld [vmem:[%s417 + $0x1000] sm:$0xff]
      %v988 = vld [vmem:[%s417 + $0x1008] sm:$0xff]
      %v989 = vld [vmem:[%s417 + $0x1010] sm:$0xff]
      %v990 = vld [vmem:[%s417 + $0x1018] sm:$0xff]
      %v991 = vld [vmem:[%s417 + $0x1020] sm:$0xff]
      %v992 = vld [vmem:[%s417 + $0x1028] sm:$0xff]
      %v993 = vld [vmem:[%s417 + $0x1030] sm:$0xff]
      %v994 = vld [vmem:[%s417 + $0x1038] sm:$0xff]
      %v995 = vld [vmem:[%s417 + $0x1040] sm:$0xff]
      %v996 = vld [vmem:[%s417 + $0x1048] sm:$0xff]
      %v997 = vld [vmem:[%s417 + $0x1050] sm:$0xff]
      %v998 = vld [vmem:[%s417 + $0x1058] sm:$0xff]
      %v999 = vld [vmem:[%s417 + $0x1060] sm:$0xff]
      %v1000 = vld [vmem:[%s417 + $0x1068] sm:$0xff]
      %v1001 = vld [vmem:[%s417 + $0x1070] sm:$0xff]
      %v1002 = vld [vmem:[%s417 + $0x1078] sm:$0xff]
      %v1003 = vld [vmem:[%s417 + $0x1080] sm:$0xff]
      %v1004 = vld [vmem:[%s417 + $0x1088] sm:$0xff]
      %v1005 = vld [vmem:[%s417 + $0x1090] sm:$0xff]
      %v1006 = vld [vmem:[%s417 + $0x1098] sm:$0xff]
      %v1007 = vld [vmem:[%s417 + $0x10a0] sm:$0xff]
      %v1008 = vld [vmem:[%s417 + $0x10a8] sm:$0xff]
      %v1009 = vld [vmem:[%s417 + $0x10b0] sm:$0xff]
      %v1010 = vld [vmem:[%s417 + $0x10b8] sm:$0xff]
      %v1011 = vld [vmem:[%s417 + $0x10c0] sm:$0xff]
      %v1012 = vld [vmem:[%s417 + $0x10c8] sm:$0xff]
      %v1013 = vld [vmem:[%s417 + $0x10d0] sm:$0xff]
      %v1014 = vld [vmem:[%s417 + $0x10d8] sm:$0xff]
      %v1015 = vld [vmem:[%s417 + $0x10e0] sm:$0xff]
      %v1016 = vld [vmem:[%s417 + $0x10e8] sm:$0xff]
      %v1017 = vld [vmem:[%s417 + $0x10f0] sm:$0xff]
      %v1018 = vld [vmem:[%s417 + $0x10f8] sm:$0xff]
      %v1019 = vld [vmem:[%s417 + $0x1100] sm:$0xff]
      %v1020 = vld [vmem:[%s417 + $0x1108] sm:$0xff]
      %v1021 = vld [vmem:[%s417 + $0x1110] sm:$0xff]
      %v1022 = vld [vmem:[%s417 + $0x1118] sm:$0xff]
      %v1023 = vld [vmem:[%s417 + $0x1120] sm:$0xff]
      %v1024 = vld [vmem:[%s417 + $0x1128] sm:$0xff]
      %v1025 = vld [vmem:[%s417 + $0x1130] sm:$0xff]
      %v1026 = vld [vmem:[%s417 + $0x1138] sm:$0xff]
      %v1027 = vld [vmem:[%s417 + $0x1140] sm:$0xff]
      %v1028 = vld [vmem:[%s417 + $0x1148] sm:$0xff]
      %v1029 = vld [vmem:[%s417 + $0x1150] sm:$0xff]
      %v1030 = vld [vmem:[%s417 + $0x1158] sm:$0xff]
      %v1031 = vld [vmem:[%s417 + $0x1160] sm:$0xff]
      %v1032 = vld [vmem:[%s417 + $0x1168] sm:$0xff]
      %v1033 = vld [vmem:[%s417 + $0x1170] sm:$0xff]
      %v1034 = vld [vmem:[%s417 + $0x1178] sm:$0xff]
      %v1035 = vld [vmem:[%s417 + $0x1180] sm:$0xff]
      %v1036 = vld [vmem:[%s417 + $0x1188] sm:$0xff]
      %v1037 = vld [vmem:[%s417 + $0x1190] sm:$0xff]
      %v1038 = vld [vmem:[%s417 + $0x1198] sm:$0xff]
      %v1039 = vld [vmem:[%s417 + $0x11a0] sm:$0xff]
      %v1040 = vld [vmem:[%s417 + $0x11a8] sm:$0xff]
      %v1041 = vld [vmem:[%s417 + $0x11b0] sm:$0xff]
      %v1042 = vld [vmem:[%s417 + $0x11b8] sm:$0xff]
      %v1043 = vld [vmem:[%s417 + $0x11c0] sm:$0xff]
      %v1044 = vld [vmem:[%s417 + $0x11c8] sm:$0xff]
      %v1045 = vld [vmem:[%s417 + $0x11d0] sm:$0xff]
      %v1046 = vld [vmem:[%s417 + $0x11d8] sm:$0xff]
      %v1047 = vld [vmem:[%s417 + $0x11e0] sm:$0xff]
      %v1048 = vld [vmem:[%s417 + $0x11e8] sm:$0xff]
      %v1049 = vld [vmem:[%s417 + $0x11f0] sm:$0xff]
      %v1050 = vld [vmem:[%s417 + $0x11f8] sm:$0xff]
      %v1051 = vld [vmem:[%s417 + $0x1200] sm:$0xff]
      %v1052 = vld [vmem:[%s417 + $0x1208] sm:$0xff]
      %v1053 = vld [vmem:[%s417 + $0x1210] sm:$0xff]
      %v1054 = vld [vmem:[%s417 + $0x1218] sm:$0xff]
      %v1055 = vld [vmem:[%s417 + $0x1220] sm:$0xff]
      %v1056 = vld [vmem:[%s417 + $0x1228] sm:$0xff]
      %v1057 = vld [vmem:[%s417 + $0x1230] sm:$0xff]
      %v1058 = vld [vmem:[%s417 + $0x1238] sm:$0xff]
      %v1059 = vld [vmem:[%s417 + $0x1240] sm:$0xff]
      %v1060 = vld [vmem:[%s417 + $0x1248] sm:$0xff]
      %v1061 = vld [vmem:[%s417 + $0x1250] sm:$0xff]
      %v1062 = vld [vmem:[%s417 + $0x1258] sm:$0xff]
      %v1063 = vld [vmem:[%s417 + $0x1260] sm:$0xff]
      %v1064 = vld [vmem:[%s417 + $0x1268] sm:$0xff]
      %v1065 = vld [vmem:[%s417 + $0x1270] sm:$0xff]
      %v1066 = vld [vmem:[%s417 + $0x1278] sm:$0xff]
      %v1067 = vld [vmem:[%s417 + $0x1280] sm:$0xff]
      %v1068 = vld [vmem:[%s417 + $0x1288] sm:$0xff]
      %v1069 = vld [vmem:[%s417 + $0x1290] sm:$0xff]
      %v1070 = vld [vmem:[%s417 + $0x1298] sm:$0xff]
      %v1071 = vld [vmem:[%s417 + $0x12a0] sm:$0xff]
      %v1072 = vld [vmem:[%s417 + $0x12a8] sm:$0xff]
      %v1073 = vld [vmem:[%s417 + $0x12b0] sm:$0xff]
      %v1074 = vld [vmem:[%s417 + $0x12b8] sm:$0xff]
      %v1075 = vld [vmem:[%s417 + $0x12c0] sm:$0xff]
      %v1076 = vld [vmem:[%s417 + $0x12c8] sm:$0xff]
      %v1077 = vld [vmem:[%s417 + $0x12d0] sm:$0xff]
      %v1078 = vld [vmem:[%s417 + $0x12d8] sm:$0xff]
      %v1079 = vld [vmem:[%s417 + $0x12e0] sm:$0xff]
      %v1080 = vld [vmem:[%s417 + $0x12e8] sm:$0xff]
      %v1081 = vld [vmem:[%s417 + $0x12f0] sm:$0xff]
      %v1082 = vld [vmem:[%s417 + $0x12f8] sm:$0xff]
      %v1083 = vld [vmem:[%s417 + $0x1300] sm:$0xff]
      %v1084 = vld [vmem:[%s417 + $0x1308] sm:$0xff]
      %v1085 = vld [vmem:[%s417 + $0x1310] sm:$0xff]
      %v1086 = vld [vmem:[%s417 + $0x1318] sm:$0xff]
      %v1087 = vld [vmem:[%s417 + $0x1320] sm:$0xff]
      %v1088 = vld [vmem:[%s417 + $0x1328] sm:$0xff]
      %v1089 = vld [vmem:[%s417 + $0x1330] sm:$0xff]
      %v1090 = vld [vmem:[%s417 + $0x1338] sm:$0xff]
      %v1091 = vld [vmem:[%s417 + $0x1340] sm:$0xff]
      %v1092 = vld [vmem:[%s417 + $0x1348] sm:$0xff]
      %v1093 = vld [vmem:[%s417 + $0x1350] sm:$0xff]
      %v1094 = vld [vmem:[%s417 + $0x1358] sm:$0xff]
      %v1095 = vld [vmem:[%s417 + $0x1360] sm:$0xff]
      %v1096 = vld [vmem:[%s417 + $0x1368] sm:$0xff]
      %v1097 = vld [vmem:[%s417 + $0x1370] sm:$0xff]
      %v1098 = vld [vmem:[%s417 + $0x1378] sm:$0xff]
      %v1099 = vld [vmem:[%s417 + $0x1380] sm:$0xff]
      %v1100 = vld [vmem:[%s417 + $0x1388] sm:$0xff]
      %v1101 = vld [vmem:[%s417 + $0x1390] sm:$0xff]
      %v1102 = vld [vmem:[%s417 + $0x1398] sm:$0xff]
      %v1103 = vld [vmem:[%s417 + $0x13a0] sm:$0xff]
      %v1104 = vld [vmem:[%s417 + $0x13a8] sm:$0xff]
      %v1105 = vld [vmem:[%s417 + $0x13b0] sm:$0xff]
      %v1106 = vld [vmem:[%s417 + $0x13b8] sm:$0xff]
      %v1107 = vld [vmem:[%s417 + $0x13c0] sm:$0xff]
      %v1108 = vld [vmem:[%s417 + $0x13c8] sm:$0xff]
      %v1109 = vld [vmem:[%s417 + $0x13d0] sm:$0xff]
      %v1110 = vld [vmem:[%s417 + $0x13d8] sm:$0xff]
      %v1111 = vld [vmem:[%s417 + $0x13e0] sm:$0xff]
      %v1112 = vld [vmem:[%s417 + $0x13e8] sm:$0xff]
      %v1113 = vld [vmem:[%s417 + $0x13f0] sm:$0xff]
      %v1114 = vld [vmem:[%s417 + $0x13f8] sm:$0xff]
      %v1115 = vld [vmem:[%s417 + $0x1400] sm:$0xff]
      %v1116 = vld [vmem:[%s417 + $0x1408] sm:$0xff]
      %v1117 = vld [vmem:[%s417 + $0x1410] sm:$0xff]
      %v1118 = vld [vmem:[%s417 + $0x1418] sm:$0xff]
      %v1119 = vld [vmem:[%s417 + $0x1420] sm:$0xff]
      %v1120 = vld [vmem:[%s417 + $0x1428] sm:$0xff]
      %v1121 = vld [vmem:[%s417 + $0x1430] sm:$0xff]
      %v1122 = vld [vmem:[%s417 + $0x1438] sm:$0xff]
      %v1123 = vld [vmem:[%s417 + $0x1440] sm:$0xff]
      %v1124 = vld [vmem:[%s417 + $0x1448] sm:$0xff]
      %v1125 = vld [vmem:[%s417 + $0x1450] sm:$0xff]
      %v1126 = vld [vmem:[%s417 + $0x1458] sm:$0xff]
      %v1127 = vld [vmem:[%s417 + $0x1460] sm:$0xff]
      %v1128 = vld [vmem:[%s417 + $0x1468] sm:$0xff]
      %v1129 = vld [vmem:[%s417 + $0x1470] sm:$0xff]
      %v1130 = vld [vmem:[%s417 + $0x1478] sm:$0xff]
      %v1131 = vld [vmem:[%s417 + $0x1480] sm:$0xff]
      %v1132 = vld [vmem:[%s417 + $0x1488] sm:$0xff]
      %v1133 = vld [vmem:[%s417 + $0x1490] sm:$0xff]
      %v1134 = vld [vmem:[%s417 + $0x1498] sm:$0xff]
      %v1135 = vld [vmem:[%s417 + $0x14a0] sm:$0xff]
      %v1136 = vld [vmem:[%s417 + $0x14a8] sm:$0xff]
      %v1137 = vld [vmem:[%s417 + $0x14b0] sm:$0xff]
      %v1138 = vld [vmem:[%s417 + $0x14b8] sm:$0xff]
      %v1139 = vld [vmem:[%s417 + $0x14c0] sm:$0xff]
      %v1140 = vld [vmem:[%s417 + $0x14c8] sm:$0xff]
      %v1141 = vld [vmem:[%s417 + $0x14d0] sm:$0xff]
      %v1142 = vld [vmem:[%s417 + $0x14d8] sm:$0xff]
      %v1143 = vld [vmem:[%s417 + $0x14e0] sm:$0xff]
      %v1144 = vld [vmem:[%s417 + $0x14e8] sm:$0xff]
      %v1145 = vld [vmem:[%s417 + $0x14f0] sm:$0xff]
      %v1146 = vld [vmem:[%s417 + $0x14f8] sm:$0xff]
      %v1147 = vld [vmem:[%s417 + $0x1500] sm:$0xff]
      %v1148 = vld [vmem:[%s417 + $0x1508] sm:$0xff]
      %v1149 = vld [vmem:[%s417 + $0x1510] sm:$0xff]
      %v1150 = vld [vmem:[%s417 + $0x1518] sm:$0xff]
      %v1151 = vld [vmem:[%s417 + $0x1520] sm:$0xff]
      %v1152 = vld [vmem:[%s417 + $0x1528] sm:$0xff]
      %v1153 = vld [vmem:[%s417 + $0x1530] sm:$0xff]
      %v1154 = vld [vmem:[%s417 + $0x1538] sm:$0xff]
      %v1155 = vld [vmem:[%s417 + $0x1540] sm:$0xff]
      %v1156 = vld [vmem:[%s417 + $0x1548] sm:$0xff]
      %v1157 = vld [vmem:[%s417 + $0x1550] sm:$0xff]
      %v1158 = vld [vmem:[%s417 + $0x1558] sm:$0xff]
      %v1159 = vld [vmem:[%s417 + $0x1560] sm:$0xff]
      %v1160 = vld [vmem:[%s417 + $0x1568] sm:$0xff]
      %v1161 = vld [vmem:[%s417 + $0x1570] sm:$0xff]
      %v1162 = vld [vmem:[%s417 + $0x1578] sm:$0xff]
      %v1163 = vld [vmem:[%s417 + $0x1580] sm:$0xff]
      %v1164 = vld [vmem:[%s417 + $0x1588] sm:$0xff]
      %v1165 = vld [vmem:[%s417 + $0x1590] sm:$0xff]
      %v1166 = vld [vmem:[%s417 + $0x1598] sm:$0xff]
      %v1167 = vld [vmem:[%s417 + $0x15a0] sm:$0xff]
      %v1168 = vld [vmem:[%s417 + $0x15a8] sm:$0xff]
      %v1169 = vld [vmem:[%s417 + $0x15b0] sm:$0xff]
      %v1170 = vld [vmem:[%s417 + $0x15b8] sm:$0xff]
      %v1171 = vld [vmem:[%s417 + $0x15c0] sm:$0xff]
      %v1172 = vld [vmem:[%s417 + $0x15c8] sm:$0xff]
      %v1173 = vld [vmem:[%s417 + $0x15d0] sm:$0xff]
      %v1174 = vld [vmem:[%s417 + $0x15d8] sm:$0xff]
      %v1175 = vld [vmem:[%s417 + $0x15e0] sm:$0xff]
      %v1176 = vld [vmem:[%s417 + $0x15e8] sm:$0xff]
      %v1177 = vld [vmem:[%s417 + $0x15f0] sm:$0xff]
      %v1178 = vld [vmem:[%s417 + $0x15f8] sm:$0xff]
      %v1179 = vld [vmem:[%s417 + $0x1600] sm:$0xff]
      %v1180 = vld [vmem:[%s417 + $0x1608] sm:$0xff]
      %v1181 = vld [vmem:[%s417 + $0x1610] sm:$0xff]
      %v1182 = vld [vmem:[%s417 + $0x1618] sm:$0xff]
      %v1183 = vld [vmem:[%s417 + $0x1620] sm:$0xff]
      %v1184 = vld [vmem:[%s417 + $0x1628] sm:$0xff]
      %v1185 = vld [vmem:[%s417 + $0x1630] sm:$0xff]
      %v1186 = vld [vmem:[%s417 + $0x1638] sm:$0xff]
      %v1187 = vld [vmem:[%s417 + $0x1640] sm:$0xff]
      %v1188 = vld [vmem:[%s417 + $0x1648] sm:$0xff]
      %v1189 = vld [vmem:[%s417 + $0x1650] sm:$0xff]
      %v1190 = vld [vmem:[%s417 + $0x1658] sm:$0xff]
      %v1191 = vld [vmem:[%s417 + $0x1660] sm:$0xff]
      %v1192 = vld [vmem:[%s417 + $0x1668] sm:$0xff]
      %v1193 = vld [vmem:[%s417 + $0x1670] sm:$0xff]
      %v1194 = vld [vmem:[%s417 + $0x1678] sm:$0xff]
      %v1195 = vld [vmem:[%s417 + $0x1680] sm:$0xff]
      %v1196 = vld [vmem:[%s417 + $0x1688] sm:$0xff]
      %v1197 = vld [vmem:[%s417 + $0x1690] sm:$0xff]
      %v1198 = vld [vmem:[%s417 + $0x1698] sm:$0xff]
      %v1199 = vld [vmem:[%s417 + $0x16a0] sm:$0xff]
      %v1200 = vld [vmem:[%s417 + $0x16a8] sm:$0xff]
      %v1201 = vld [vmem:[%s417 + $0x16b0] sm:$0xff]
      %v1202 = vld [vmem:[%s417 + $0x16b8] sm:$0xff]
      %v1203 = vld [vmem:[%s417 + $0x16c0] sm:$0xff]
      %v1204 = vld [vmem:[%s417 + $0x16c8] sm:$0xff]
      %v1205 = vld [vmem:[%s417 + $0x16d0] sm:$0xff]
      %v1206 = vld [vmem:[%s417 + $0x16d8] sm:$0xff]
      %v1207 = vld [vmem:[%s417 + $0x16e0] sm:$0xff]
      %v1208 = vld [vmem:[%s417 + $0x16e8] sm:$0xff]
      %v1209 = vld [vmem:[%s417 + $0x16f0] sm:$0xff]
      %v1210 = vld [vmem:[%s417 + $0x16f8] sm:$0xff]
      %v1211 = vld [vmem:[%s417 + $0x1700] sm:$0xff]
      %v1212 = vld [vmem:[%s417 + $0x1708] sm:$0xff]
      %v1213 = vld [vmem:[%s417 + $0x1710] sm:$0xff]
      %v1214 = vld [vmem:[%s417 + $0x1718] sm:$0xff]
      %v1215 = vld [vmem:[%s417 + $0x1720] sm:$0xff]
      %v1216 = vld [vmem:[%s417 + $0x1728] sm:$0xff]
      %v1217 = vld [vmem:[%s417 + $0x1730] sm:$0xff]
      %v1218 = vld [vmem:[%s417 + $0x1738] sm:$0xff]
      %v1219 = vld [vmem:[%s417 + $0x1740] sm:$0xff]
      %v1220 = vld [vmem:[%s417 + $0x1748] sm:$0xff]
      %v1221 = vld [vmem:[%s417 + $0x1750] sm:$0xff]
      %v1222 = vld [vmem:[%s417 + $0x1758] sm:$0xff]
      %v1223 = vld [vmem:[%s417 + $0x1760] sm:$0xff]
      %v1224 = vld [vmem:[%s417 + $0x1768] sm:$0xff]
      %v1225 = vld [vmem:[%s417 + $0x1770] sm:$0xff]
      %v1226 = vld [vmem:[%s417 + $0x1778] sm:$0xff]
      %v1227 = vld [vmem:[%s417 + $0x1780] sm:$0xff]
      %v1228 = vld [vmem:[%s417 + $0x1788] sm:$0xff]
      %v1229 = vld [vmem:[%s417 + $0x1790] sm:$0xff]
      %v1230 = vld [vmem:[%s417 + $0x1798] sm:$0xff]
      %v1231 = vld [vmem:[%s417 + $0x17a0] sm:$0xff]
      %v1232 = vld [vmem:[%s417 + $0x17a8] sm:$0xff]
      %v1233 = vld [vmem:[%s417 + $0x17b0] sm:$0xff]
      %v1234 = vld [vmem:[%s417 + $0x17b8] sm:$0xff]
      %v1235 = vld [vmem:[%s417 + $0x17c0] sm:$0xff]
      %v1236 = vld [vmem:[%s417 + $0x17c8] sm:$0xff]
      %v1237 = vld [vmem:[%s417 + $0x17d0] sm:$0xff]
      %v1238 = vld [vmem:[%s417 + $0x17d8] sm:$0xff]
      %v1239 = vld [vmem:[%s417 + $0x17e0] sm:$0xff]
      %v1240 = vld [vmem:[%s417 + $0x17e8] sm:$0xff]
      %v1241 = vld [vmem:[%s417 + $0x17f0] sm:$0xff]
      %v1242 = vld [vmem:[%s417 + $0x17f8] sm:$0xff]
      %v1243 = vld [vmem:[%s417 + $0x1800] sm:$0xff]
      %v1244 = vld [vmem:[%s417 + $0x1808] sm:$0xff]
      %v1245 = vld [vmem:[%s417 + $0x1810] sm:$0xff]
      %v1246 = vld [vmem:[%s417 + $0x1818] sm:$0xff]
      %v1247 = vld [vmem:[%s417 + $0x1820] sm:$0xff]
      %v1248 = vld [vmem:[%s417 + $0x1828] sm:$0xff]
      %v1249 = vld [vmem:[%s417 + $0x1830] sm:$0xff]
      %v1250 = vld [vmem:[%s417 + $0x1838] sm:$0xff]
      %v1251 = vld [vmem:[%s417 + $0x1840] sm:$0xff]
      %v1252 = vld [vmem:[%s417 + $0x1848] sm:$0xff]
      %v1253 = vld [vmem:[%s417 + $0x1850] sm:$0xff]
      %v1254 = vld [vmem:[%s417 + $0x1858] sm:$0xff]
      %v1255 = vld [vmem:[%s417 + $0x1860] sm:$0xff]
      %v1256 = vld [vmem:[%s417 + $0x1868] sm:$0xff]
      %v1257 = vld [vmem:[%s417 + $0x1870] sm:$0xff]
      %v1258 = vld [vmem:[%s417 + $0x1878] sm:$0xff]
      %v1259 = vld [vmem:[%s417 + $0x1880] sm:$0xff]
      %v1260 = vld [vmem:[%s417 + $0x1888] sm:$0xff]
      %v1261 = vld [vmem:[%s417 + $0x1890] sm:$0xff]
      %v1262 = vld [vmem:[%s417 + $0x1898] sm:$0xff]
      %v1263 = vld [vmem:[%s417 + $0x18a0] sm:$0xff]
      %v1264 = vld [vmem:[%s417 + $0x18a8] sm:$0xff]
      %v1265 = vld [vmem:[%s417 + $0x18b0] sm:$0xff]
      %v1266 = vld [vmem:[%s417 + $0x18b8] sm:$0xff]
      %v1267 = vld [vmem:[%s417 + $0x18c0] sm:$0xff]
      %v1268 = vld [vmem:[%s417 + $0x18c8] sm:$0xff]
      %v1269 = vld [vmem:[%s417 + $0x18d0] sm:$0xff]
      %v1270 = vld [vmem:[%s417 + $0x18d8] sm:$0xff]
      %v1271 = vld [vmem:[%s417 + $0x18e0] sm:$0xff]
      %v1272 = vld [vmem:[%s417 + $0x18e8] sm:$0xff]
      %v1273 = vld [vmem:[%s417 + $0x18f0] sm:$0xff]
      %v1274 = vld [vmem:[%s417 + $0x18f8] sm:$0xff]
      %v1275 = vld [vmem:[%s417 + $0x1900] sm:$0xff]
      %v1276 = vld [vmem:[%s417 + $0x1908] sm:$0xff]
      %v1277 = vld [vmem:[%s417 + $0x1910] sm:$0xff]
      %v1278 = vld [vmem:[%s417 + $0x1918] sm:$0xff]
      %v1279 = vld [vmem:[%s417 + $0x1920] sm:$0xff]
      %v1280 = vld [vmem:[%s417 + $0x1928] sm:$0xff]
      %v1281 = vld [vmem:[%s417 + $0x1930] sm:$0xff]
      %v1282 = vld [vmem:[%s417 + $0x1938] sm:$0xff]
      %v1283 = vld [vmem:[%s417 + $0x1940] sm:$0xff]
      %v1284 = vld [vmem:[%s417 + $0x1948] sm:$0xff]
      %v1285 = vld [vmem:[%s417 + $0x1950] sm:$0xff]
      %v1286 = vld [vmem:[%s417 + $0x1958] sm:$0xff]
      %v1287 = vld [vmem:[%s417 + $0x1960] sm:$0xff]
      %v1288 = vld [vmem:[%s417 + $0x1968] sm:$0xff]
      %v1289 = vld [vmem:[%s417 + $0x1970] sm:$0xff]
      %v1290 = vld [vmem:[%s417 + $0x1978] sm:$0xff]
      %v1291 = vld [vmem:[%s417 + $0x1980] sm:$0xff]
      %v1292 = vld [vmem:[%s417 + $0x1988] sm:$0xff]
      %v1293 = vld [vmem:[%s417 + $0x1990] sm:$0xff]
      %v1294 = vld [vmem:[%s417 + $0x1998] sm:$0xff]
      %v1295 = vld [vmem:[%s417 + $0x19a0] sm:$0xff]
      %v1296 = vld [vmem:[%s417 + $0x19a8] sm:$0xff]
      %v1297 = vld [vmem:[%s417 + $0x19b0] sm:$0xff]
      %v1298 = vld [vmem:[%s417 + $0x19b8] sm:$0xff]
      %v1299 = vld [vmem:[%s417 + $0x19c0] sm:$0xff]
      %v1300 = vld [vmem:[%s417 + $0x19c8] sm:$0xff]
      %v1301 = vld [vmem:[%s417 + $0x19d0] sm:$0xff]
      %v1302 = vld [vmem:[%s417 + $0x19d8] sm:$0xff]
      %v1303 = vld [vmem:[%s417 + $0x19e0] sm:$0xff]
      %v1304 = vld [vmem:[%s417 + $0x19e8] sm:$0xff]
      %v1305 = vld [vmem:[%s417 + $0x19f0] sm:$0xff]
      %v1306 = vld [vmem:[%s417 + $0x19f8] sm:$0xff]
      %v1314 = vunpack.c.l.b16 %v468
      %v1315 = vunpack.c.h.b16 %v468
      %v1316 = vunpack.c.l.b16 %v469
      %v1317 = vunpack.c.h.b16 %v469
      %v1318 = vunpack.c.l.b16 %v470
      %v1319 = vunpack.c.h.b16 %v470
      %v1320 = vunpack.c.l.b16 %v471
      %v1321 = vunpack.c.h.b16 %v471
      %v1322 = vunpack.c.l.b16 %v472
      %v1323 = vunpack.c.h.b16 %v472
      %v1324 = vunpack.c.l.b16 %v473
      %v1325 = vunpack.c.h.b16 %v473
      %v1326 = vunpack.c.l.b16 %v474
      %v1327 = vpack.c.b16 %v1314, %v1314
      %v1328 = vpack.c.b16 %v1315, %v1315
      %v1329 = vpack.c.b16 %v1316, %v1316
      %v1330 = vpack.c.b16 %v1317, %v1317
      %v1331 = vpack.c.b16 %v1318, %v1318
      %v1332 = vpack.c.b16 %v1319, %v1319
      %v1333 = vpack.c.b16 %v1320, %v1320
      %v1334 = vpack.c.b16 %v1321, %v1321
      %v1335 = vpack.c.b16 %v1322, %v1322
      %v1336 = vpack.c.b16 %v1323, %v1323
      %v1337 = vpack.c.b16 %v1324, %v1324
      %v1338 = vpack.c.b16 %v1325, %v1325
      %v1339 = vpack.c.b16 %v1326, %v1326
      %v2185 = vunpack.c.l.b16 %v475
      %v2186 = vunpack.c.h.b16 %v475
      %v2187 = vunpack.c.l.b16 %v476
      %v2188 = vunpack.c.h.b16 %v476
      %v2189 = vunpack.c.l.b16 %v477
      %v2190 = vunpack.c.h.b16 %v477
      %v2191 = vunpack.c.l.b16 %v478
      %v2192 = vunpack.c.h.b16 %v478
      %v2193 = vunpack.c.l.b16 %v479
      %v2194 = vunpack.c.h.b16 %v479
      %v2195 = vunpack.c.l.b16 %v480
      %v2196 = vunpack.c.h.b16 %v480
      %v2197 = vunpack.c.l.b16 %v481
      %v2198 = vunpack.c.h.b16 %v481
      %v2199 = vunpack.c.l.b16 %v482
      %v2200 = vunpack.c.h.b16 %v482
      %v2201 = vunpack.c.l.b16 %v483
      %v2202 = vunpack.c.h.b16 %v483
      %v2203 = vunpack.c.l.b16 %v484
      %v2204 = vunpack.c.h.b16 %v484
      %v2205 = vunpack.c.l.b16 %v485
      %v2206 = vunpack.c.h.b16 %v485
      %v2207 = vunpack.c.l.b16 %v486
      %v2208 = vunpack.c.h.b16 %v486
      %v2209 = vunpack.c.l.b16 %v487
      %v2210 = vunpack.c.h.b16 %v487
      %v2211 = vunpack.c.l.b16 %v488
      %v2212 = vunpack.c.h.b16 %v488
      %v2213 = vunpack.c.l.b16 %v489
      %v2214 = vunpack.c.h.b16 %v489
      %v2215 = vunpack.c.l.b16 %v490
      %v2216 = vunpack.c.h.b16 %v490
      %v2217 = vunpack.c.l.b16 %v491
      %v2218 = vunpack.c.h.b16 %v491
      %v2219 = vunpack.c.l.b16 %v492
      %v2220 = vunpack.c.h.b16 %v492
      %v2221 = vunpack.c.l.b16 %v493
      %v2222 = vunpack.c.h.b16 %v493
      %v2223 = vunpack.c.l.b16 %v494
      %v2224 = vunpack.c.h.b16 %v494
      %v2225 = vunpack.c.l.b16 %v495
      %v2226 = vunpack.c.h.b16 %v495
      %v2227 = vunpack.c.l.b16 %v496
      %v2228 = vunpack.c.h.b16 %v496
      %v2229 = vunpack.c.l.b16 %v497
      %v2230 = vunpack.c.h.b16 %v497
      %v2231 = vunpack.c.l.b16 %v498
      %v2232 = vunpack.c.h.b16 %v498
      %v2233 = vunpack.c.l.b16 %v499
      %v2234 = vunpack.c.h.b16 %v499
      %v2235 = vunpack.c.l.b16 %v500
      %v2236 = vunpack.c.h.b16 %v500
      %v2237 = vunpack.c.l.b16 %v501
      %v2238 = vunpack.c.h.b16 %v501
      %v2239 = vunpack.c.l.b16 %v502
      %v2240 = vunpack.c.h.b16 %v502
      %v2241 = vunpack.c.l.b16 %v503
      %v2242 = vunpack.c.h.b16 %v503
      %v2243 = vunpack.c.l.b16 %v504
      %v2244 = vunpack.c.h.b16 %v504
      %v2245 = vunpack.c.l.b16 %v505
      %v2246 = vunpack.c.h.b16 %v505
      %v2247 = vunpack.c.l.b16 %v506
      %v2248 = vunpack.c.h.b16 %v506
      %v2249 = vunpack.c.l.b16 %v507
      %v2250 = vunpack.c.h.b16 %v507
      %v2251 = vunpack.c.l.b16 %v508
      %v2252 = vunpack.c.h.b16 %v508
      %v2253 = vunpack.c.l.b16 %v509
      %v2254 = vunpack.c.h.b16 %v509
      %v2255 = vunpack.c.l.b16 %v510
      %v2256 = vunpack.c.h.b16 %v510
      %v2257 = vunpack.c.l.b16 %v511
      %v2258 = vunpack.c.h.b16 %v511
      %v2259 = vunpack.c.l.b16 %v512
      %v2260 = vunpack.c.h.b16 %v512
      %v2261 = vunpack.c.l.b16 %v513
      %v2262 = vunpack.c.h.b16 %v513
      %v2263 = vunpack.c.l.b16 %v514
      %v2264 = vunpack.c.h.b16 %v514
      %v2265 = vunpack.c.l.b16 %v515
      %v2266 = vunpack.c.h.b16 %v515
      %v2267 = vunpack.c.l.b16 %v516
      %v2268 = vunpack.c.h.b16 %v516
      %v2269 = vunpack.c.l.b16 %v517
      %v2270 = vunpack.c.h.b16 %v517
      %v2271 = vunpack.c.l.b16 %v518
      %v2272 = vunpack.c.h.b16 %v518
      %v2273 = vunpack.c.l.b16 %v519
      %v2274 = vunpack.c.h.b16 %v519
      %v2275 = vunpack.c.l.b16 %v520
      %v2276 = vunpack.c.h.b16 %v520
      %v2277 = vunpack.c.l.b16 %v521
      %v2278 = vunpack.c.h.b16 %v521
      %v2279 = vunpack.c.l.b16 %v522
      %v2280 = vunpack.c.h.b16 %v522
      %v2281 = vunpack.c.l.b16 %v523
      %v2282 = vunpack.c.h.b16 %v523
      %v2283 = vunpack.c.l.b16 %v524
      %v2284 = vunpack.c.h.b16 %v524
      %v2285 = vunpack.c.l.b16 %v525
      %v2286 = vunpack.c.h.b16 %v525
      %v2287 = vunpack.c.l.b16 %v526
      %v2288 = vunpack.c.h.b16 %v526
      %v2289 = vunpack.c.l.b16 %v527
      %v2290 = vunpack.c.h.b16 %v527
      %v2291 = vunpack.c.l.b16 %v528
      %v2292 = vunpack.c.h.b16 %v528
      %v2293 = vunpack.c.l.b16 %v529
      %v2294 = vunpack.c.h.b16 %v529
      %v2295 = vunpack.c.l.b16 %v530
      %v2296 = vunpack.c.h.b16 %v530
      %v2297 = vunpack.c.l.b16 %v531
      %v2298 = vunpack.c.h.b16 %v531
      %v2299 = vunpack.c.l.b16 %v532
      %v2300 = vunpack.c.h.b16 %v532
      %v2301 = vunpack.c.l.b16 %v533
      %v2302 = vunpack.c.h.b16 %v533
      %v2303 = vunpack.c.l.b16 %v534
      %v2304 = vunpack.c.h.b16 %v534
      %v2305 = vunpack.c.l.b16 %v535
      %v2306 = vunpack.c.h.b16 %v535
      %v2307 = vunpack.c.l.b16 %v536
      %v2308 = vunpack.c.h.b16 %v536
      %v2309 = vunpack.c.l.b16 %v537
      %v2310 = vunpack.c.h.b16 %v537
      %v2311 = vunpack.c.l.b16 %v538
      %v2312 = vunpack.c.h.b16 %v538
      %v2313 = vunpack.c.l.b16 %v539
      %v2314 = vunpack.c.h.b16 %v539
      %v2315 = vunpack.c.l.b16 %v540
      %v2316 = vunpack.c.h.b16 %v540
      %v2317 = vunpack.c.l.b16 %v541
      %v2318 = vunpack.c.h.b16 %v541
      %v2319 = vunpack.c.l.b16 %v542
      %v2320 = vunpack.c.h.b16 %v542
      %v2321 = vunpack.c.l.b16 %v543
      %v2322 = vunpack.c.h.b16 %v543
      %v2323 = vunpack.c.l.b16 %v544
      %v2324 = vunpack.c.h.b16 %v544
      %v2325 = vunpack.c.l.b16 %v545
      %v2326 = vunpack.c.h.b16 %v545
      %v2327 = vunpack.c.l.b16 %v546
      %v2328 = vunpack.c.h.b16 %v546
      %v2329 = vunpack.c.l.b16 %v547
      %v2330 = vunpack.c.h.b16 %v547
      %v2331 = vunpack.c.l.b16 %v548
      %v2332 = vunpack.c.h.b16 %v548
      %v2333 = vunpack.c.l.b16 %v549
      %v2334 = vunpack.c.h.b16 %v549
      %v2335 = vunpack.c.l.b16 %v550
      %v2336 = vunpack.c.h.b16 %v550
      %v2337 = vunpack.c.l.b16 %v551
      %v2338 = vunpack.c.h.b16 %v551
      %v2339 = vunpack.c.l.b16 %v552
      %v2340 = vunpack.c.h.b16 %v552
      %v2341 = vunpack.c.l.b16 %v553
      %v2342 = vunpack.c.h.b16 %v553
      %v2343 = vunpack.c.l.b16 %v554
      %v2344 = vunpack.c.h.b16 %v554
      %v2345 = vunpack.c.l.b16 %v555
      %v2346 = vunpack.c.h.b16 %v555
      %v2347 = vunpack.c.l.b16 %v556
      %v2348 = vunpack.c.h.b16 %v556
      %v2349 = vunpack.c.l.b16 %v557
      %v2350 = vunpack.c.h.b16 %v557
      %v2351 = vunpack.c.l.b16 %v558
      %v2352 = vunpack.c.h.b16 %v558
      %v2353 = vunpack.c.l.b16 %v559
      %v2354 = vunpack.c.h.b16 %v559
      %v2355 = vunpack.c.l.b16 %v560
      %v2356 = vunpack.c.h.b16 %v560
      %v2357 = vunpack.c.l.b16 %v561
      %v2358 = vunpack.c.h.b16 %v561
      %v2359 = vunpack.c.l.b16 %v562
      %v2360 = vunpack.c.h.b16 %v562
      %v2361 = vunpack.c.l.b16 %v563
      %v2362 = vunpack.c.h.b16 %v563
      %v2363 = vunpack.c.l.b16 %v564
      %v2364 = vunpack.c.h.b16 %v564
      %v2365 = vunpack.c.l.b16 %v565
      %v2366 = vunpack.c.h.b16 %v565
      %v2367 = vunpack.c.l.b16 %v566
      %v2368 = vunpack.c.h.b16 %v566
      %v2369 = vunpack.c.l.b16 %v567
      %v2370 = vunpack.c.h.b16 %v567
      %v2371 = vunpack.c.l.b16 %v568
      %v2372 = vunpack.c.h.b16 %v568
      %v2373 = vunpack.c.l.b16 %v569
      %v2374 = vunpack.c.h.b16 %v569
      %v2375 = vunpack.c.l.b16 %v570
      %v2376 = vunpack.c.h.b16 %v570
      %v2377 = vunpack.c.l.b16 %v571
      %v2378 = vunpack.c.h.b16 %v571
      %v2379 = vunpack.c.l.b16 %v572
      %v2380 = vunpack.c.h.b16 %v572
      %v2381 = vunpack.c.l.b16 %v573
      %v2382 = vunpack.c.h.b16 %v573
      %v2383 = vunpack.c.l.b16 %v574
      %v2384 = vunpack.c.h.b16 %v574
      %v2385 = vunpack.c.l.b16 %v575
      %v2386 = vunpack.c.h.b16 %v575
      %v2387 = vunpack.c.l.b16 %v576
      %v2388 = vunpack.c.h.b16 %v576
      %v2389 = vunpack.c.l.b16 %v577
      %v2390 = vunpack.c.h.b16 %v577
      %v2391 = vunpack.c.l.b16 %v578
      %v2392 = vunpack.c.h.b16 %v578
      %v2393 = vunpack.c.l.b16 %v579
      %v2394 = vunpack.c.h.b16 %v579
      %v2395 = vunpack.c.l.b16 %v580
      %v2396 = vunpack.c.h.b16 %v580
      %v2397 = vunpack.c.l.b16 %v581
      %v2398 = vunpack.c.h.b16 %v581
      %v2399 = vunpack.c.l.b16 %v582
      %v2400 = vunpack.c.h.b16 %v582
      %v2401 = vunpack.c.l.b16 %v583
      %v2402 = vunpack.c.h.b16 %v583
      %v2403 = vunpack.c.l.b16 %v584
      %v2404 = vunpack.c.h.b16 %v584
      %v2405 = vunpack.c.l.b16 %v585
      %v2406 = vunpack.c.h.b16 %v585
      %v2407 = vunpack.c.l.b16 %v586
      %v2408 = vunpack.c.h.b16 %v586
      %v2409 = vunpack.c.l.b16 %v587
      %v2410 = vunpack.c.h.b16 %v587
      %v2411 = vunpack.c.l.b16 %v588
      %v2412 = vunpack.c.h.b16 %v588
      %v2413 = vunpack.c.l.b16 %v589
      %v2414 = vunpack.c.h.b16 %v589
      %v2415 = vunpack.c.l.b16 %v590
      %v2416 = vunpack.c.h.b16 %v590
      %v2417 = vunpack.c.l.b16 %v591
      %v2418 = vunpack.c.h.b16 %v591
      %v2419 = vunpack.c.l.b16 %v592
      %v2420 = vunpack.c.h.b16 %v592
      %v2421 = vunpack.c.l.b16 %v593
      %v2422 = vunpack.c.h.b16 %v593
      %v2423 = vunpack.c.l.b16 %v594
      %v2424 = vunpack.c.h.b16 %v594
      %v2425 = vunpack.c.l.b16 %v595
      %v2426 = vunpack.c.h.b16 %v595
      %v2427 = vunpack.c.l.b16 %v596
      %v2428 = vunpack.c.h.b16 %v596
      %v2429 = vunpack.c.l.b16 %v597
      %v2430 = vunpack.c.h.b16 %v597
      %v2431 = vunpack.c.l.b16 %v598
      %v2432 = vunpack.c.h.b16 %v598
      %v2433 = vunpack.c.l.b16 %v599
      %v2434 = vunpack.c.h.b16 %v599
      %v2435 = vunpack.c.l.b16 %v600
      %v2436 = vunpack.c.h.b16 %v600
      %v2437 = vunpack.c.l.b16 %v601
      %v2438 = vunpack.c.h.b16 %v601
      %v2439 = vunpack.c.l.b16 %v602
      %v2440 = vunpack.c.h.b16 %v602
      %v2441 = vunpack.c.l.b16 %v603
      %v2442 = vunpack.c.h.b16 %v603
      %v2443 = vunpack.c.l.b16 %v604
      %v2444 = vunpack.c.h.b16 %v604
      %v2445 = vunpack.c.l.b16 %v605
      %v2446 = vunpack.c.h.b16 %v605
      %v2447 = vunpack.c.l.b16 %v606
      %v2448 = vunpack.c.h.b16 %v606
      %v2449 = vunpack.c.l.b16 %v607
      %v2450 = vunpack.c.h.b16 %v607
      %v2451 = vunpack.c.l.b16 %v608
      %v2452 = vunpack.c.h.b16 %v608
      %v2453 = vunpack.c.l.b16 %v609
      %v2454 = vunpack.c.h.b16 %v609
      %v2455 = vunpack.c.l.b16 %v610
      %v2456 = vunpack.c.h.b16 %v610
      %v2457 = vunpack.c.l.b16 %v611
      %v2458 = vunpack.c.h.b16 %v611
      %v2459 = vunpack.c.l.b16 %v612
      %v2460 = vunpack.c.h.b16 %v612
      %v2461 = vunpack.c.l.b16 %v613
      %v2462 = vunpack.c.h.b16 %v613
      %v2463 = vunpack.c.l.b16 %v614
      %v2464 = vunpack.c.h.b16 %v614
      %v2465 = vunpack.c.l.b16 %v615
      %v2466 = vunpack.c.h.b16 %v615
      %v2467 = vunpack.c.l.b16 %v616
      %v2468 = vunpack.c.h.b16 %v616
      %v2469 = vunpack.c.l.b16 %v617
      %v2470 = vunpack.c.h.b16 %v617
      %v2471 = vunpack.c.l.b16 %v618
      %v2472 = vunpack.c.h.b16 %v618
      %v2473 = vunpack.c.l.b16 %v619
      %v2474 = vunpack.c.h.b16 %v619
      %v2475 = vunpack.c.l.b16 %v620
      %v2476 = vunpack.c.h.b16 %v620
      %v2477 = vunpack.c.l.b16 %v621
      %v2478 = vunpack.c.h.b16 %v621
      %v2479 = vunpack.c.l.b16 %v622
      %v2480 = vunpack.c.h.b16 %v622
      %v2481 = vunpack.c.l.b16 %v623
      %v2482 = vunpack.c.h.b16 %v623
      %v2483 = vunpack.c.l.b16 %v624
      %v2484 = vunpack.c.h.b16 %v624
      %v2485 = vunpack.c.l.b16 %v625
      %v2486 = vunpack.c.h.b16 %v625
      %v2487 = vunpack.c.l.b16 %v626
      %v2488 = vunpack.c.h.b16 %v626
      %v2489 = vunpack.c.l.b16 %v627
      %v2490 = vunpack.c.h.b16 %v627
      %v2491 = vunpack.c.l.b16 %v628
      %v2492 = vunpack.c.h.b16 %v628
      %v2493 = vunpack.c.l.b16 %v629
      %v2494 = vunpack.c.h.b16 %v629
      %v2495 = vunpack.c.l.b16 %v630
      %v2496 = vunpack.c.h.b16 %v630
      %v2497 = vunpack.c.l.b16 %v631
      %v2498 = vunpack.c.h.b16 %v631
      %v2499 = vunpack.c.l.b16 %v632
      %v2500 = vunpack.c.h.b16 %v632
      %v2501 = vunpack.c.l.b16 %v633
      %v2502 = vunpack.c.h.b16 %v633
      %v2503 = vunpack.c.l.b16 %v634
      %v2504 = vunpack.c.h.b16 %v634
      %v2505 = vunpack.c.l.b16 %v635
      %v2506 = vunpack.c.h.b16 %v635
      %v2507 = vunpack.c.l.b16 %v636
      %v2508 = vunpack.c.h.b16 %v636
      %v2509 = vunpack.c.l.b16 %v637
      %v2510 = vunpack.c.h.b16 %v637
      %v2511 = vunpack.c.l.b16 %v638
      %v2512 = vunpack.c.h.b16 %v638
      %v2513 = vunpack.c.l.b16 %v639
      %v2514 = vunpack.c.h.b16 %v639
      %v2515 = vunpack.c.l.b16 %v640
      %v2516 = vunpack.c.h.b16 %v640
      %v2517 = vunpack.c.l.b16 %v641
      %v2518 = vunpack.c.h.b16 %v641
      %v2519 = vunpack.c.l.b16 %v642
      %v2520 = vunpack.c.h.b16 %v642
      %v2521 = vunpack.c.l.b16 %v643
      %v2522 = vunpack.c.h.b16 %v643
      %v2523 = vunpack.c.l.b16 %v644
      %v2524 = vunpack.c.h.b16 %v644
      %v2525 = vunpack.c.l.b16 %v645
      %v2526 = vunpack.c.h.b16 %v645
      %v2527 = vunpack.c.l.b16 %v646
      %v2528 = vunpack.c.h.b16 %v646
      %v2529 = vunpack.c.l.b16 %v647
      %v2530 = vunpack.c.h.b16 %v647
      %v2531 = vunpack.c.l.b16 %v648
      %v2532 = vunpack.c.h.b16 %v648
      %v2533 = vunpack.c.l.b16 %v649
      %v2534 = vunpack.c.h.b16 %v649
      %v2535 = vunpack.c.l.b16 %v650
      %v2536 = vunpack.c.h.b16 %v650
      %v2537 = vunpack.c.l.b16 %v651
      %v2538 = vunpack.c.h.b16 %v651
      %v2539 = vunpack.c.l.b16 %v652
      %v2540 = vunpack.c.h.b16 %v652
      %v2541 = vunpack.c.l.b16 %v653
      %v2542 = vunpack.c.h.b16 %v653
      %v2543 = vunpack.c.l.b16 %v654
      %v2544 = vunpack.c.h.b16 %v654
      %v2545 = vunpack.c.l.b16 %v655
      %v2546 = vunpack.c.h.b16 %v655
      %v2547 = vunpack.c.l.b16 %v656
      %v2548 = vunpack.c.h.b16 %v656
      %v2549 = vunpack.c.l.b16 %v657
      %v2550 = vunpack.c.h.b16 %v657
      %v2551 = vunpack.c.l.b16 %v658
      %v2552 = vunpack.c.h.b16 %v658
      %v2553 = vunpack.c.l.b16 %v659
      %v2554 = vunpack.c.h.b16 %v659
      %v2555 = vunpack.c.l.b16 %v660
      %v2556 = vunpack.c.h.b16 %v660
      %v2557 = vunpack.c.l.b16 %v661
      %v2558 = vunpack.c.h.b16 %v661
      %v2559 = vunpack.c.l.b16 %v662
      %v2560 = vunpack.c.h.b16 %v662
      %v2561 = vunpack.c.l.b16 %v663
      %v2562 = vunpack.c.h.b16 %v663
      %v2563 = vunpack.c.l.b16 %v664
      %v2564 = vunpack.c.h.b16 %v664
      %v2565 = vunpack.c.l.b16 %v665
      %v2566 = vunpack.c.h.b16 %v665
      %v2567 = vunpack.c.l.b16 %v666
      %v2568 = vunpack.c.h.b16 %v666
      %v2569 = vunpack.c.l.b16 %v667
      %v2570 = vunpack.c.h.b16 %v667
      %v2571 = vunpack.c.l.b16 %v668
      %v2572 = vunpack.c.h.b16 %v668
      %v2573 = vunpack.c.l.b16 %v669
      %v2574 = vunpack.c.h.b16 %v669
      %v2575 = vunpack.c.l.b16 %v670
      %v2576 = vunpack.c.h.b16 %v670
      %v2577 = vunpack.c.l.b16 %v671
      %v2578 = vunpack.c.h.b16 %v671
      %v2579 = vunpack.c.l.b16 %v672
      %v2580 = vunpack.c.h.b16 %v672
      %v2581 = vunpack.c.l.b16 %v673
      %v2582 = vunpack.c.h.b16 %v673
      %v2583 = vunpack.c.l.b16 %v674
      %v2584 = vunpack.c.h.b16 %v674
      %v2585 = vunpack.c.l.b16 %v675
      %v2586 = vunpack.c.h.b16 %v675
      %v2587 = vunpack.c.l.b16 %v676
      %v2588 = vunpack.c.h.b16 %v676
      %v2589 = vunpack.c.l.b16 %v677
      %v2590 = vunpack.c.h.b16 %v677
      %v2591 = vunpack.c.l.b16 %v678
      %v2592 = vunpack.c.h.b16 %v678
      %v2593 = vunpack.c.l.b16 %v679
      %v2594 = vunpack.c.h.b16 %v679
      %v2595 = vunpack.c.l.b16 %v680
      %v2596 = vunpack.c.h.b16 %v680
      %v2597 = vunpack.c.l.b16 %v681
      %v2598 = vunpack.c.h.b16 %v681
      %v2599 = vunpack.c.l.b16 %v682
      %v2600 = vunpack.c.h.b16 %v682
      %v2601 = vunpack.c.l.b16 %v683
      %v2602 = vunpack.c.h.b16 %v683
      %v2603 = vunpack.c.l.b16 %v684
      %v2604 = vunpack.c.h.b16 %v684
      %v2605 = vunpack.c.l.b16 %v685
      %v2606 = vunpack.c.h.b16 %v685
      %v2607 = vunpack.c.l.b16 %v686
      %v2608 = vunpack.c.h.b16 %v686
      %v2609 = vunpack.c.l.b16 %v687
      %v2610 = vunpack.c.h.b16 %v687
      %v2611 = vunpack.c.l.b16 %v688
      %v2612 = vunpack.c.h.b16 %v688
      %v2613 = vunpack.c.l.b16 %v689
      %v2614 = vunpack.c.h.b16 %v689
      %v2615 = vunpack.c.l.b16 %v690
      %v2616 = vunpack.c.h.b16 %v690
      %v2617 = vunpack.c.l.b16 %v691
      %v2618 = vunpack.c.h.b16 %v691
      %v2619 = vunpack.c.l.b16 %v692
      %v2620 = vunpack.c.h.b16 %v692
      %v2621 = vunpack.c.l.b16 %v693
      %v2622 = vunpack.c.h.b16 %v693
      %v2623 = vunpack.c.l.b16 %v694
      %v2624 = vunpack.c.h.b16 %v694
      %v2625 = vunpack.c.l.b16 %v695
      %v2626 = vunpack.c.h.b16 %v695
      %v2627 = vunpack.c.l.b16 %v696
      %v2628 = vunpack.c.h.b16 %v696
      %v2629 = vunpack.c.l.b16 %v697
      %v2630 = vunpack.c.h.b16 %v697
      %v2631 = vunpack.c.l.b16 %v698
      %v2632 = vunpack.c.h.b16 %v698
      %v2633 = vunpack.c.l.b16 %v699
      %v2634 = vunpack.c.h.b16 %v699
      %v2635 = vunpack.c.l.b16 %v700
      %v2636 = vunpack.c.h.b16 %v700
      %v2637 = vunpack.c.l.b16 %v701
      %v2638 = vunpack.c.h.b16 %v701
      %v2639 = vunpack.c.l.b16 %v702
      %v2640 = vunpack.c.h.b16 %v702
      %v2641 = vunpack.c.l.b16 %v703
      %v2642 = vunpack.c.h.b16 %v703
      %v2643 = vunpack.c.l.b16 %v704
      %v2644 = vunpack.c.h.b16 %v704
      %v2645 = vunpack.c.l.b16 %v705
      %v2646 = vunpack.c.h.b16 %v705
      %v2647 = vunpack.c.l.b16 %v706
      %v2648 = vunpack.c.h.b16 %v706
      %v2649 = vunpack.c.l.b16 %v707
      %v2650 = vunpack.c.h.b16 %v707
      %v2651 = vunpack.c.l.b16 %v708
      %v2652 = vunpack.c.h.b16 %v708
      %v2653 = vunpack.c.l.b16 %v709
      %v2654 = vunpack.c.h.b16 %v709
      %v2655 = vunpack.c.l.b16 %v710
      %v2656 = vunpack.c.h.b16 %v710
      %v2657 = vunpack.c.l.b16 %v711
      %v2658 = vunpack.c.h.b16 %v711
      %v2659 = vunpack.c.l.b16 %v712
      %v2660 = vunpack.c.h.b16 %v712
      %v2661 = vunpack.c.l.b16 %v713
      %v2662 = vunpack.c.h.b16 %v713
      %v2663 = vunpack.c.l.b16 %v714
      %v2664 = vunpack.c.h.b16 %v714
      %v2665 = vunpack.c.l.b16 %v715
      %v2666 = vunpack.c.h.b16 %v715
      %v2667 = vunpack.c.l.b16 %v716
      %v2668 = vunpack.c.h.b16 %v716
      %v2669 = vunpack.c.l.b16 %v717
      %v2670 = vunpack.c.h.b16 %v717
      %v2671 = vunpack.c.l.b16 %v718
      %v2672 = vunpack.c.h.b16 %v718
      %v2673 = vunpack.c.l.b16 %v719
      %v2674 = vunpack.c.h.b16 %v719
      %v2675 = vunpack.c.l.b16 %v720
      %v2676 = vunpack.c.h.b16 %v720
      %v2677 = vunpack.c.l.b16 %v721
      %v2678 = vunpack.c.h.b16 %v721
      %v2679 = vunpack.c.l.b16 %v722
      %v2680 = vunpack.c.h.b16 %v722
      %v2681 = vunpack.c.l.b16 %v723
      %v2682 = vunpack.c.h.b16 %v723
      %v2683 = vunpack.c.l.b16 %v724
      %v2684 = vunpack.c.h.b16 %v724
      %v2685 = vunpack.c.l.b16 %v725
      %v2686 = vunpack.c.h.b16 %v725
      %v2687 = vunpack.c.l.b16 %v726
      %v2688 = vunpack.c.h.b16 %v726
      %v2689 = vunpack.c.l.b16 %v727
      %v2690 = vunpack.c.h.b16 %v727
      %v2691 = vunpack.c.l.b16 %v728
      %v2692 = vunpack.c.h.b16 %v728
      %v2693 = vunpack.c.l.b16 %v729
      %v2694 = vunpack.c.h.b16 %v729
      %v2695 = vunpack.c.l.b16 %v730
      %v2696 = vunpack.c.h.b16 %v730
      %v2697 = vunpack.c.l.b16 %v731
      %v2698 = vunpack.c.h.b16 %v731
      %v2699 = vunpack.c.l.b16 %v732
      %v2700 = vunpack.c.h.b16 %v732
      %v2701 = vunpack.c.l.b16 %v733
      %v2702 = vunpack.c.h.b16 %v733
      %v2703 = vunpack.c.l.b16 %v734
      %v2704 = vunpack.c.h.b16 %v734
      %v2705 = vunpack.c.l.b16 %v735
      %v2706 = vunpack.c.h.b16 %v735
      %v2707 = vunpack.c.l.b16 %v736
      %v2708 = vunpack.c.h.b16 %v736
      %v2709 = vunpack.c.l.b16 %v737
      %v2710 = vunpack.c.h.b16 %v737
      %v2711 = vunpack.c.l.b16 %v738
      %v2712 = vunpack.c.h.b16 %v738
      %v2713 = vunpack.c.l.b16 %v739
      %v2714 = vunpack.c.h.b16 %v739
      %v2715 = vunpack.c.l.b16 %v740
      %v2716 = vunpack.c.h.b16 %v740
      %v2717 = vunpack.c.l.b16 %v741
      %v2718 = vunpack.c.h.b16 %v741
      %v2719 = vunpack.c.l.b16 %v742
      %v2720 = vunpack.c.h.b16 %v742
      %v2721 = vunpack.c.l.b16 %v743
      %v2722 = vunpack.c.h.b16 %v743
      %v2723 = vunpack.c.l.b16 %v744
      %v2724 = vunpack.c.h.b16 %v744
      %v2725 = vunpack.c.l.b16 %v745
      %v2726 = vunpack.c.h.b16 %v745
      %v2727 = vunpack.c.l.b16 %v746
      %v2728 = vunpack.c.h.b16 %v746
      %v2729 = vunpack.c.l.b16 %v747
      %v2730 = vunpack.c.h.b16 %v747
      %v2731 = vunpack.c.l.b16 %v748
      %v2732 = vunpack.c.h.b16 %v748
      %v2733 = vunpack.c.l.b16 %v749
      %v2734 = vunpack.c.h.b16 %v749
      %v2735 = vunpack.c.l.b16 %v750
      %v2736 = vunpack.c.h.b16 %v750
      %v2737 = vunpack.c.l.b16 %v751
      %v2738 = vunpack.c.h.b16 %v751
      %v2739 = vunpack.c.l.b16 %v752
      %v2740 = vunpack.c.h.b16 %v752
      %v2741 = vunpack.c.l.b16 %v753
      %v2742 = vunpack.c.h.b16 %v753
      %v2743 = vunpack.c.l.b16 %v754
      %v2744 = vunpack.c.h.b16 %v754
      %v2745 = vunpack.c.l.b16 %v755
      %v2746 = vunpack.c.h.b16 %v755
      %v2747 = vunpack.c.l.b16 %v756
      %v2748 = vunpack.c.h.b16 %v756
      %v2749 = vunpack.c.l.b16 %v757
      %v2750 = vunpack.c.h.b16 %v757
      %v2751 = vunpack.c.l.b16 %v758
      %v2752 = vunpack.c.h.b16 %v758
      %v2753 = vunpack.c.l.b16 %v759
      %v2754 = vunpack.c.h.b16 %v759
      %v2755 = vunpack.c.l.b16 %v760
      %v2756 = vunpack.c.h.b16 %v760
      %v2757 = vunpack.c.l.b16 %v761
      %v2758 = vunpack.c.h.b16 %v761
      %v2759 = vunpack.c.l.b16 %v762
      %v2760 = vunpack.c.h.b16 %v762
      %v2761 = vunpack.c.l.b16 %v763
      %v2762 = vunpack.c.h.b16 %v763
      %v2763 = vunpack.c.l.b16 %v764
      %v2764 = vunpack.c.h.b16 %v764
      %v2765 = vunpack.c.l.b16 %v765
      %v2766 = vunpack.c.h.b16 %v765
      %v2767 = vunpack.c.l.b16 %v766
      %v2768 = vunpack.c.h.b16 %v766
      %v2769 = vunpack.c.l.b16 %v767
      %v2770 = vunpack.c.h.b16 %v767
      %v2771 = vunpack.c.l.b16 %v768
      %v2772 = vunpack.c.h.b16 %v768
      %v2773 = vunpack.c.l.b16 %v769
      %v2774 = vunpack.c.h.b16 %v769
      %v2775 = vunpack.c.l.b16 %v770
      %v2776 = vunpack.c.h.b16 %v770
      %v2777 = vunpack.c.l.b16 %v771
      %v2778 = vunpack.c.h.b16 %v771
      %v2779 = vunpack.c.l.b16 %v772
      %v2780 = vunpack.c.h.b16 %v772
      %v2781 = vunpack.c.l.b16 %v773
      %v2782 = vunpack.c.h.b16 %v773
      %v2783 = vunpack.c.l.b16 %v774
      %v2784 = vunpack.c.h.b16 %v774
      %v2785 = vunpack.c.l.b16 %v775
      %v2786 = vunpack.c.h.b16 %v775
      %v2787 = vunpack.c.l.b16 %v776
      %v2788 = vunpack.c.h.b16 %v776
      %v2789 = vunpack.c.l.b16 %v777
      %v2790 = vunpack.c.h.b16 %v777
      %v2791 = vunpack.c.l.b16 %v778
      %v2792 = vunpack.c.h.b16 %v778
      %v2793 = vunpack.c.l.b16 %v779
      %v2794 = vunpack.c.h.b16 %v779
      %v2795 = vunpack.c.l.b16 %v780
      %v2796 = vunpack.c.h.b16 %v780
      %v2797 = vunpack.c.l.b16 %v781
      %v2798 = vunpack.c.h.b16 %v781
      %v2799 = vunpack.c.l.b16 %v782
      %v2800 = vunpack.c.h.b16 %v782
      %v2801 = vunpack.c.l.b16 %v783
      %v2802 = vunpack.c.h.b16 %v783
      %v2803 = vunpack.c.l.b16 %v784
      %v2804 = vunpack.c.h.b16 %v784
      %v2805 = vunpack.c.l.b16 %v785
      %v2806 = vunpack.c.h.b16 %v785
      %v2807 = vunpack.c.l.b16 %v786
      %v2808 = vunpack.c.h.b16 %v786
      %v2809 = vunpack.c.l.b16 %v787
      %v2810 = vunpack.c.h.b16 %v787
      %v2811 = vunpack.c.l.b16 %v788
      %v2812 = vunpack.c.h.b16 %v788
      %v2813 = vunpack.c.l.b16 %v789
      %v2814 = vunpack.c.h.b16 %v789
      %v2815 = vunpack.c.l.b16 %v790
      %v2816 = vunpack.c.h.b16 %v790
      %v2817 = vunpack.c.l.b16 %v791
      %v2818 = vunpack.c.h.b16 %v791
      %v2819 = vunpack.c.l.b16 %v792
      %v2820 = vunpack.c.h.b16 %v792
      %v2821 = vunpack.c.l.b16 %v793
      %v2822 = vunpack.c.h.b16 %v793
      %v2823 = vunpack.c.l.b16 %v794
      %v2824 = vunpack.c.h.b16 %v794
      %v2825 = vunpack.c.l.b16 %v795
      %v2826 = vunpack.c.h.b16 %v795
      %v2827 = vunpack.c.l.b16 %v796
      %v2828 = vunpack.c.h.b16 %v796
      %v2829 = vunpack.c.l.b16 %v797
      %v2830 = vunpack.c.h.b16 %v797
      %v2831 = vunpack.c.l.b16 %v798
      %v2832 = vunpack.c.h.b16 %v798
      %v2833 = vunpack.c.l.b16 %v799
      %v2834 = vunpack.c.h.b16 %v799
      %v2835 = vunpack.c.l.b16 %v800
      %v2836 = vunpack.c.h.b16 %v800
      %v2837 = vunpack.c.l.b16 %v801
      %v2838 = vunpack.c.h.b16 %v801
      %v2839 = vunpack.c.l.b16 %v802
      %v2840 = vunpack.c.h.b16 %v802
      %v2841 = vunpack.c.l.b16 %v803
      %v2842 = vunpack.c.h.b16 %v803
      %v2843 = vunpack.c.l.b16 %v804
      %v2844 = vunpack.c.h.b16 %v804
      %v2845 = vunpack.c.l.b16 %v805
      %v2846 = vunpack.c.h.b16 %v805
      %v2847 = vunpack.c.l.b16 %v806
      %v2848 = vunpack.c.h.b16 %v806
      %v2849 = vunpack.c.l.b16 %v807
      %v2850 = vunpack.c.h.b16 %v807
      %v2851 = vunpack.c.l.b16 %v808
      %v2852 = vunpack.c.h.b16 %v808
      %v2853 = vunpack.c.l.b16 %v809
      %v2854 = vunpack.c.h.b16 %v809
      %v2855 = vunpack.c.l.b16 %v810
      %v2856 = vunpack.c.h.b16 %v810
      %v2857 = vunpack.c.l.b16 %v811
      %v2858 = vunpack.c.h.b16 %v811
      %v2859 = vunpack.c.l.b16 %v812
      %v2860 = vunpack.c.h.b16 %v812
      %v2861 = vunpack.c.l.b16 %v813
      %v2862 = vunpack.c.h.b16 %v813
      %v2863 = vunpack.c.l.b16 %v814
      %v2864 = vunpack.c.h.b16 %v814
      %v2865 = vunpack.c.l.b16 %v815
      %v2866 = vunpack.c.h.b16 %v815
      %v2867 = vunpack.c.l.b16 %v816
      %v2868 = vunpack.c.h.b16 %v816
      %v2869 = vunpack.c.l.b16 %v817
      %v2870 = vunpack.c.h.b16 %v817
      %v2871 = vunpack.c.l.b16 %v818
      %v2872 = vunpack.c.h.b16 %v818
      %v2873 = vunpack.c.l.b16 %v819
      %v2874 = vunpack.c.h.b16 %v819
      %v2875 = vunpack.c.l.b16 %v820
      %v2876 = vunpack.c.h.b16 %v820
      %v2877 = vunpack.c.l.b16 %v821
      %v2878 = vunpack.c.h.b16 %v821
      %v2879 = vunpack.c.l.b16 %v822
      %v2880 = vunpack.c.h.b16 %v822
      %v2881 = vunpack.c.l.b16 %v823
      %v2882 = vunpack.c.h.b16 %v823
      %v2883 = vunpack.c.l.b16 %v824
      %v2884 = vunpack.c.h.b16 %v824
      %v2885 = vunpack.c.l.b16 %v825
      %v2886 = vunpack.c.h.b16 %v825
      %v2887 = vunpack.c.l.b16 %v826
      %v2888 = vunpack.c.h.b16 %v826
      %v2889 = vunpack.c.l.b16 %v827
      %v2890 = vunpack.c.h.b16 %v827
      %v2891 = vunpack.c.l.b16 %v828
      %v2892 = vunpack.c.h.b16 %v828
      %v2893 = vunpack.c.l.b16 %v829
      %v2894 = vunpack.c.h.b16 %v829
      %v2895 = vunpack.c.l.b16 %v830
      %v2896 = vunpack.c.h.b16 %v830
      %v2897 = vunpack.c.l.b16 %v831
      %v2898 = vunpack.c.h.b16 %v831
      %v2899 = vunpack.c.l.b16 %v832
      %v2900 = vunpack.c.h.b16 %v832
      %v2901 = vunpack.c.l.b16 %v833
      %v2902 = vunpack.c.h.b16 %v833
      %v2903 = vunpack.c.l.b16 %v834
      %v2904 = vunpack.c.h.b16 %v834
      %v2905 = vunpack.c.l.b16 %v835
      %v2906 = vunpack.c.h.b16 %v835
      %v2907 = vunpack.c.l.b16 %v836
      %v2908 = vunpack.c.h.b16 %v836
      %v2909 = vunpack.c.l.b16 %v837
      %v2910 = vunpack.c.h.b16 %v837
      %v2911 = vunpack.c.l.b16 %v838
      %v2912 = vunpack.c.h.b16 %v838
      %v2913 = vunpack.c.l.b16 %v839
      %v2914 = vunpack.c.h.b16 %v839
      %v2915 = vunpack.c.l.b16 %v840
      %v2916 = vunpack.c.h.b16 %v840
      %v2917 = vunpack.c.l.b16 %v841
      %v2918 = vunpack.c.h.b16 %v841
      %v2919 = vunpack.c.l.b16 %v842
      %v2920 = vunpack.c.h.b16 %v842
      %v2921 = vunpack.c.l.b16 %v843
      %v2922 = vunpack.c.h.b16 %v843
      %v2923 = vunpack.c.l.b16 %v844
      %v2924 = vunpack.c.h.b16 %v844
      %v2925 = vunpack.c.l.b16 %v845
      %v2926 = vunpack.c.h.b16 %v845
      %v2927 = vunpack.c.l.b16 %v846
      %v2928 = vunpack.c.h.b16 %v846
      %v2929 = vunpack.c.l.b16 %v847
      %v2930 = vunpack.c.h.b16 %v847
      %v2931 = vunpack.c.l.b16 %v848
      %v2932 = vunpack.c.h.b16 %v848
      %v2933 = vunpack.c.l.b16 %v849
      %v2934 = vunpack.c.h.b16 %v849
      %v2935 = vunpack.c.l.b16 %v850
      %v2936 = vunpack.c.h.b16 %v850
      %v2937 = vunpack.c.l.b16 %v851
      %v2938 = vunpack.c.h.b16 %v851
      %v2939 = vunpack.c.l.b16 %v852
      %v2940 = vunpack.c.h.b16 %v852
      %v2941 = vunpack.c.l.b16 %v853
      %v2942 = vunpack.c.h.b16 %v853
      %v2943 = vunpack.c.l.b16 %v854
      %v2944 = vunpack.c.h.b16 %v854
      %v2945 = vunpack.c.l.b16 %v855
      %v2946 = vunpack.c.h.b16 %v855
      %v2947 = vunpack.c.l.b16 %v856
      %v2948 = vunpack.c.h.b16 %v856
      %v2949 = vunpack.c.l.b16 %v857
      %v2950 = vunpack.c.h.b16 %v857
      %v2951 = vunpack.c.l.b16 %v858
      %v2952 = vunpack.c.h.b16 %v858
      %v2953 = vunpack.c.l.b16 %v859
      %v2954 = vunpack.c.h.b16 %v859
      %v2955 = vunpack.c.l.b16 %v860
      %v2956 = vunpack.c.h.b16 %v860
      %v2957 = vunpack.c.l.b16 %v861
      %v2958 = vunpack.c.h.b16 %v861
      %v2959 = vunpack.c.l.b16 %v862
      %v2960 = vunpack.c.h.b16 %v862
      %v2961 = vunpack.c.l.b16 %v863
      %v2962 = vunpack.c.h.b16 %v863
      %v2963 = vunpack.c.l.b16 %v864
      %v2964 = vunpack.c.h.b16 %v864
      %v2965 = vunpack.c.l.b16 %v865
      %v2966 = vunpack.c.h.b16 %v865
      %v2967 = vunpack.c.l.b16 %v866
      %v2968 = vunpack.c.h.b16 %v866
      %v2969 = vunpack.c.l.b16 %v867
      %v2970 = vunpack.c.h.b16 %v867
      %v2971 = vunpack.c.l.b16 %v868
      %v2972 = vunpack.c.h.b16 %v868
      %v2973 = vunpack.c.l.b16 %v869
      %v2974 = vunpack.c.h.b16 %v869
      %v2975 = vunpack.c.l.b16 %v870
      %v2976 = vunpack.c.h.b16 %v870
      %v2977 = vunpack.c.l.b16 %v871
      %v2978 = vunpack.c.h.b16 %v871
      %v2979 = vunpack.c.l.b16 %v872
      %v2980 = vunpack.c.h.b16 %v872
      %v2981 = vunpack.c.l.b16 %v873
      %v2982 = vunpack.c.h.b16 %v873
      %v2983 = vunpack.c.l.b16 %v874
      %v2984 = vunpack.c.h.b16 %v874
      %v2985 = vunpack.c.l.b16 %v875
      %v2986 = vunpack.c.h.b16 %v875
      %v2987 = vunpack.c.l.b16 %v876
      %v2988 = vunpack.c.h.b16 %v876
      %v2989 = vunpack.c.l.b16 %v877
      %v2990 = vunpack.c.h.b16 %v877
      %v2991 = vunpack.c.l.b16 %v878
      %v2992 = vunpack.c.h.b16 %v878
      %v2993 = vunpack.c.l.b16 %v879
      %v2994 = vunpack.c.h.b16 %v879
      %v2995 = vunpack.c.l.b16 %v880
      %v2996 = vunpack.c.h.b16 %v880
      %v2997 = vunpack.c.l.b16 %v881
      %v2998 = vunpack.c.h.b16 %v881
      %v2999 = vunpack.c.l.b16 %v882
      %v3000 = vunpack.c.h.b16 %v882
      %v3001 = vunpack.c.l.b16 %v883
      %v3002 = vunpack.c.h.b16 %v883
      %v3003 = vunpack.c.l.b16 %v884
      %v3004 = vunpack.c.h.b16 %v884
      %v3005 = vunpack.c.l.b16 %v885
      %v3006 = vunpack.c.h.b16 %v885
      %v3007 = vunpack.c.l.b16 %v886
      %v3008 = vunpack.c.h.b16 %v886
      %v3009 = vunpack.c.l.b16 %v887
      %v3010 = vunpack.c.h.b16 %v887
      %v3011 = vunpack.c.l.b16 %v888
      %v3012 = vunpack.c.h.b16 %v888
      %v3013 = vunpack.c.l.b16 %v889
      %v3014 = vunpack.c.h.b16 %v889
      %v3015 = vunpack.c.l.b16 %v890
      %v3016 = vunpack.c.h.b16 %v890
      %v3017 = vunpack.c.l.b16 %v891
      %v3018 = vunpack.c.h.b16 %v891
      %v3019 = vunpack.c.l.b16 %v892
      %v3020 = vunpack.c.h.b16 %v892
      %v3021 = vunpack.c.l.b16 %v893
      %v3022 = vunpack.c.h.b16 %v893
      %v3023 = vunpack.c.l.b16 %v894
      %v3024 = vunpack.c.h.b16 %v894
      %v3025 = vunpack.c.l.b16 %v895
      %v3026 = vunpack.c.h.b16 %v895
      %v3027 = vunpack.c.l.b16 %v896
      %v3028 = vunpack.c.h.b16 %v896
      %v3029 = vunpack.c.l.b16 %v897
      %v3030 = vunpack.c.h.b16 %v897
      %v3031 = vunpack.c.l.b16 %v898
      %v3032 = vunpack.c.h.b16 %v898
      %v3033 = vunpack.c.l.b16 %v899
      %v3034 = vunpack.c.h.b16 %v899
      %v3035 = vunpack.c.l.b16 %v900
      %v3036 = vunpack.c.h.b16 %v900
      %v3037 = vunpack.c.l.b16 %v901
      %v3038 = vunpack.c.h.b16 %v901
      %v3039 = vunpack.c.l.b16 %v902
      %v3040 = vunpack.c.h.b16 %v902
      %v3041 = vunpack.c.l.b16 %v903
      %v3042 = vunpack.c.h.b16 %v903
      %v3043 = vunpack.c.l.b16 %v904
      %v3044 = vunpack.c.h.b16 %v904
      %v3045 = vunpack.c.l.b16 %v905
      %v3046 = vunpack.c.h.b16 %v905
      %v3047 = vunpack.c.l.b16 %v906
      %v3048 = vunpack.c.h.b16 %v906
      %v3049 = vunpack.c.l.b16 %v907
      %v3050 = vunpack.c.h.b16 %v907
      %v3051 = vunpack.c.l.b16 %v908
      %v3052 = vunpack.c.h.b16 %v908
      %v3053 = vunpack.c.l.b16 %v909
      %v3054 = vunpack.c.h.b16 %v909
      %v3055 = vunpack.c.l.b16 %v910
      %v3056 = vunpack.c.h.b16 %v910
      %v3057 = vunpack.c.l.b16 %v911
      %v3058 = vunpack.c.h.b16 %v911
      %v3059 = vunpack.c.l.b16 %v912
      %v3060 = vunpack.c.h.b16 %v912
      %v3061 = vunpack.c.l.b16 %v913
      %v3062 = vunpack.c.h.b16 %v913
      %v3063 = vunpack.c.l.b16 %v914
      %v3064 = vunpack.c.h.b16 %v914
      %v3065 = vunpack.c.l.b16 %v915
      %v3066 = vunpack.c.h.b16 %v915
      %v3067 = vunpack.c.l.b16 %v916
      %v3068 = vunpack.c.h.b16 %v916
      %v3069 = vunpack.c.l.b16 %v917
      %v3070 = vunpack.c.h.b16 %v917
      %v3071 = vunpack.c.l.b16 %v918
      %v3072 = vunpack.c.h.b16 %v918
      %v3073 = vunpack.c.l.b16 %v919
      %v3074 = vunpack.c.h.b16 %v919
      %v3075 = vunpack.c.l.b16 %v920
      %v3076 = vunpack.c.h.b16 %v920
      %v3077 = vunpack.c.l.b16 %v921
      %v3078 = vunpack.c.h.b16 %v921
      %v3079 = vunpack.c.l.b16 %v922
      %v3080 = vunpack.c.h.b16 %v922
      %v3081 = vunpack.c.l.b16 %v923
      %v3082 = vunpack.c.h.b16 %v923
      %v3083 = vunpack.c.l.b16 %v924
      %v3084 = vunpack.c.h.b16 %v924
      %v3085 = vunpack.c.l.b16 %v925
      %v3086 = vunpack.c.h.b16 %v925
      %v3087 = vunpack.c.l.b16 %v926
      %v3088 = vunpack.c.h.b16 %v926
      %v3089 = vunpack.c.l.b16 %v927
      %v3090 = vunpack.c.h.b16 %v927
      %v3091 = vunpack.c.l.b16 %v928
      %v3092 = vunpack.c.h.b16 %v928
      %v3093 = vunpack.c.l.b16 %v929
      %v3094 = vunpack.c.h.b16 %v929
      %v3095 = vunpack.c.l.b16 %v930
      %v3096 = vunpack.c.h.b16 %v930
      %v3097 = vunpack.c.l.b16 %v931
      %v3098 = vunpack.c.h.b16 %v931
      %v3099 = vunpack.c.l.b16 %v932
      %v3100 = vunpack.c.h.b16 %v932
      %v3101 = vunpack.c.l.b16 %v933
      %v3102 = vunpack.c.h.b16 %v933
      %v3103 = vunpack.c.l.b16 %v934
      %v3104 = vunpack.c.h.b16 %v934
      %v3105 = vunpack.c.l.b16 %v935
      %v3106 = vunpack.c.h.b16 %v935
      %v3107 = vunpack.c.l.b16 %v936
      %v3108 = vunpack.c.h.b16 %v936
      %v3109 = vunpack.c.l.b16 %v937
      %v3110 = vunpack.c.h.b16 %v937
      %v3111 = vunpack.c.l.b16 %v938
      %v3112 = vunpack.c.h.b16 %v938
      %v3113 = vunpack.c.l.b16 %v939
      %v3114 = vunpack.c.h.b16 %v939
      %v3115 = vunpack.c.l.b16 %v940
      %v3116 = vunpack.c.h.b16 %v940
      %v3117 = vunpack.c.l.b16 %v941
      %v3118 = vunpack.c.h.b16 %v941
      %v3119 = vunpack.c.l.b16 %v942
      %v3120 = vunpack.c.h.b16 %v942
      %v3121 = vunpack.c.l.b16 %v943
      %v3122 = vunpack.c.h.b16 %v943
      %v3123 = vunpack.c.l.b16 %v944
      %v3124 = vunpack.c.h.b16 %v944
      %v3125 = vunpack.c.l.b16 %v945
      %v3126 = vunpack.c.h.b16 %v945
      %v3127 = vunpack.c.l.b16 %v946
      %v3128 = vunpack.c.h.b16 %v946
      %v3129 = vunpack.c.l.b16 %v947
      %v3130 = vunpack.c.h.b16 %v947
      %v3131 = vunpack.c.l.b16 %v948
      %v3132 = vunpack.c.h.b16 %v948
      %v3133 = vunpack.c.l.b16 %v949
      %v3134 = vunpack.c.h.b16 %v949
      %v3135 = vunpack.c.l.b16 %v950
      %v3136 = vunpack.c.h.b16 %v950
      %v3137 = vunpack.c.l.b16 %v951
      %v3138 = vunpack.c.h.b16 %v951
      %v3139 = vunpack.c.l.b16 %v952
      %v3140 = vunpack.c.h.b16 %v952
      %v3141 = vunpack.c.l.b16 %v953
      %v3142 = vunpack.c.h.b16 %v953
      %v3143 = vunpack.c.l.b16 %v954
      %v3144 = vunpack.c.h.b16 %v954
      %v3145 = vunpack.c.l.b16 %v955
      %v3146 = vunpack.c.h.b16 %v955
      %v3147 = vunpack.c.l.b16 %v956
      %v3148 = vunpack.c.h.b16 %v956
      %v3149 = vunpack.c.l.b16 %v957
      %v3150 = vunpack.c.h.b16 %v957
      %v3151 = vunpack.c.l.b16 %v958
      %v3152 = vunpack.c.h.b16 %v958
      %v3153 = vunpack.c.l.b16 %v959
      %v3154 = vunpack.c.h.b16 %v959
      %v3155 = vunpack.c.l.b16 %v960
      %v3156 = vunpack.c.h.b16 %v960
      %v3157 = vunpack.c.l.b16 %v961
      %v3158 = vunpack.c.h.b16 %v961
      %v3159 = vunpack.c.l.b16 %v962
      %v3160 = vunpack.c.h.b16 %v962
      %v3161 = vunpack.c.l.b16 %v963
      %v3162 = vunpack.c.h.b16 %v963
      %v3163 = vunpack.c.l.b16 %v964
      %v3164 = vunpack.c.h.b16 %v964
      %v3165 = vunpack.c.l.b16 %v965
      %v3166 = vunpack.c.h.b16 %v965
      %v3167 = vunpack.c.l.b16 %v966
      %v3168 = vunpack.c.h.b16 %v966
      %v3169 = vunpack.c.l.b16 %v967
      %v3170 = vunpack.c.h.b16 %v967
      %v3171 = vunpack.c.l.b16 %v968
      %v3172 = vunpack.c.h.b16 %v968
      %v3173 = vunpack.c.l.b16 %v969
      %v3174 = vunpack.c.h.b16 %v969
      %v3175 = vunpack.c.l.b16 %v970
      %v3176 = vunpack.c.h.b16 %v970
      %v3177 = vunpack.c.l.b16 %v971
      %v3178 = vunpack.c.h.b16 %v971
      %v3179 = vunpack.c.l.b16 %v972
      %v3180 = vunpack.c.h.b16 %v972
      %v3181 = vunpack.c.l.b16 %v973
      %v3182 = vunpack.c.h.b16 %v973
      %v3183 = vunpack.c.l.b16 %v974
      %v3184 = vunpack.c.h.b16 %v974
      %v3185 = vunpack.c.l.b16 %v975
      %v3186 = vunpack.c.h.b16 %v975
      %v3187 = vunpack.c.l.b16 %v976
      %v3188 = vunpack.c.h.b16 %v976
      %v3189 = vunpack.c.l.b16 %v977
      %v3190 = vunpack.c.h.b16 %v977
      %v3191 = vunpack.c.l.b16 %v978
      %v3192 = vunpack.c.h.b16 %v978
      %v3193 = vunpack.c.l.b16 %v979
      %v3194 = vunpack.c.h.b16 %v979
      %v3195 = vunpack.c.l.b16 %v980
      %v3196 = vunpack.c.h.b16 %v980
      %v3197 = vunpack.c.l.b16 %v981
      %v3198 = vunpack.c.h.b16 %v981
      %v3199 = vunpack.c.l.b16 %v982
      %v3200 = vunpack.c.h.b16 %v982
      %v3201 = vunpack.c.l.b16 %v983
      %v3202 = vunpack.c.h.b16 %v983
      %v3203 = vunpack.c.l.b16 %v984
      %v3204 = vunpack.c.h.b16 %v984
      %v3205 = vunpack.c.l.b16 %v985
      %v3206 = vunpack.c.h.b16 %v985
      %v3207 = vunpack.c.l.b16 %v986
      %v3208 = vunpack.c.h.b16 %v986
      %v3209 = vunpack.c.l.b16 %v987
      %v3210 = vunpack.c.h.b16 %v987
      %v3211 = vunpack.c.l.b16 %v988
      %v3212 = vunpack.c.h.b16 %v988
      %v3213 = vunpack.c.l.b16 %v989
      %v3214 = vunpack.c.h.b16 %v989
      %v3215 = vunpack.c.l.b16 %v990
      %v3216 = vunpack.c.h.b16 %v990
      %v3217 = vunpack.c.l.b16 %v991
      %v3218 = vunpack.c.h.b16 %v991
      %v3219 = vunpack.c.l.b16 %v992
      %v3220 = vunpack.c.h.b16 %v992
      %v3221 = vunpack.c.l.b16 %v993
      %v3222 = vunpack.c.h.b16 %v993
      %v3223 = vunpack.c.l.b16 %v994
      %v3224 = vunpack.c.h.b16 %v994
      %v3225 = vunpack.c.l.b16 %v995
      %v3226 = vunpack.c.h.b16 %v995
      %v3227 = vunpack.c.l.b16 %v996
      %v3228 = vunpack.c.h.b16 %v996
      %v3229 = vunpack.c.l.b16 %v997
      %v3230 = vunpack.c.h.b16 %v997
      %v3231 = vunpack.c.l.b16 %v998
      %v3232 = vunpack.c.h.b16 %v998
      %v3233 = vunpack.c.l.b16 %v999
      %v3234 = vunpack.c.h.b16 %v999
      %v3235 = vunpack.c.l.b16 %v1000
      %v3236 = vunpack.c.h.b16 %v1000
      %v3237 = vunpack.c.l.b16 %v1001
      %v3238 = vunpack.c.h.b16 %v1001
      %v3239 = vunpack.c.l.b16 %v1002
      %v3240 = vunpack.c.h.b16 %v1002
      %v3241 = vunpack.c.l.b16 %v1003
      %v3242 = vunpack.c.h.b16 %v1003
      %v3243 = vunpack.c.l.b16 %v1004
      %v3244 = vunpack.c.h.b16 %v1004
      %v3245 = vunpack.c.l.b16 %v1005
      %v3246 = vunpack.c.h.b16 %v1005
      %v3247 = vunpack.c.l.b16 %v1006
      %v3248 = vunpack.c.h.b16 %v1006
      %v3249 = vunpack.c.l.b16 %v1007
      %v3250 = vunpack.c.h.b16 %v1007
      %v3251 = vunpack.c.l.b16 %v1008
      %v3252 = vunpack.c.h.b16 %v1008
      %v3253 = vunpack.c.l.b16 %v1009
      %v3254 = vunpack.c.h.b16 %v1009
      %v3255 = vunpack.c.l.b16 %v1010
      %v3256 = vunpack.c.h.b16 %v1010
      %v3257 = vunpack.c.l.b16 %v1011
      %v3258 = vunpack.c.h.b16 %v1011
      %v3259 = vunpack.c.l.b16 %v1012
      %v3260 = vunpack.c.h.b16 %v1012
      %v3261 = vunpack.c.l.b16 %v1013
      %v3262 = vunpack.c.h.b16 %v1013
      %v3263 = vunpack.c.l.b16 %v1014
      %v3264 = vunpack.c.h.b16 %v1014
      %v3265 = vunpack.c.l.b16 %v1015
      %v3266 = vunpack.c.h.b16 %v1015
      %v3267 = vunpack.c.l.b16 %v1016
      %v3268 = vunpack.c.h.b16 %v1016
      %v3269 = vunpack.c.l.b16 %v1017
      %v3270 = vunpack.c.h.b16 %v1017
      %v3271 = vunpack.c.l.b16 %v1018
      %v3272 = vunpack.c.h.b16 %v1018
      %v3273 = vunpack.c.l.b16 %v1019
      %v3274 = vunpack.c.h.b16 %v1019
      %v3275 = vunpack.c.l.b16 %v1020
      %v3276 = vunpack.c.h.b16 %v1020
      %v3277 = vunpack.c.l.b16 %v1021
      %v3278 = vunpack.c.h.b16 %v1021
      %v3279 = vunpack.c.l.b16 %v1022
      %v3280 = vunpack.c.h.b16 %v1022
      %v3281 = vunpack.c.l.b16 %v1023
      %v3282 = vunpack.c.h.b16 %v1023
      %v3283 = vunpack.c.l.b16 %v1024
      %v3284 = vunpack.c.h.b16 %v1024
      %v3285 = vunpack.c.l.b16 %v1025
      %v3286 = vunpack.c.h.b16 %v1025
      %v3287 = vunpack.c.l.b16 %v1026
      %v3288 = vunpack.c.h.b16 %v1026
      %v3289 = vunpack.c.l.b16 %v1027
      %v3290 = vunpack.c.h.b16 %v1027
      %v3291 = vunpack.c.l.b16 %v1028
      %v3292 = vunpack.c.h.b16 %v1028
      %v3293 = vunpack.c.l.b16 %v1029
      %v3294 = vunpack.c.h.b16 %v1029
      %v3295 = vunpack.c.l.b16 %v1030
      %v3296 = vunpack.c.h.b16 %v1030
      %v3297 = vunpack.c.l.b16 %v1031
      %v3298 = vunpack.c.h.b16 %v1031
      %v3299 = vunpack.c.l.b16 %v1032
      %v3300 = vunpack.c.h.b16 %v1032
      %v3301 = vunpack.c.l.b16 %v1033
      %v3302 = vunpack.c.h.b16 %v1033
      %v3303 = vunpack.c.l.b16 %v1034
      %v3304 = vunpack.c.h.b16 %v1034
      %v3305 = vunpack.c.l.b16 %v1035
      %v3306 = vunpack.c.h.b16 %v1035
      %v3307 = vunpack.c.l.b16 %v1036
      %v3308 = vunpack.c.h.b16 %v1036
      %v3309 = vunpack.c.l.b16 %v1037
      %v3310 = vunpack.c.h.b16 %v1037
      %v3311 = vunpack.c.l.b16 %v1038
      %v3312 = vunpack.c.h.b16 %v1038
      %v3313 = vunpack.c.l.b16 %v1039
      %v3314 = vunpack.c.h.b16 %v1039
      %v3315 = vunpack.c.l.b16 %v1040
      %v3316 = vunpack.c.h.b16 %v1040
      %v3317 = vunpack.c.l.b16 %v1041
      %v3318 = vunpack.c.h.b16 %v1041
      %v3319 = vunpack.c.l.b16 %v1042
      %v3320 = vunpack.c.h.b16 %v1042
      %v3321 = vunpack.c.l.b16 %v1043
      %v3322 = vunpack.c.h.b16 %v1043
      %v3323 = vunpack.c.l.b16 %v1044
      %v3324 = vunpack.c.h.b16 %v1044
      %v3325 = vunpack.c.l.b16 %v1045
      %v3326 = vunpack.c.h.b16 %v1045
      %v3327 = vunpack.c.l.b16 %v1046
      %v3328 = vunpack.c.h.b16 %v1046
      %v3329 = vunpack.c.l.b16 %v1047
      %v3330 = vunpack.c.h.b16 %v1047
      %v3331 = vunpack.c.l.b16 %v1048
      %v3332 = vunpack.c.h.b16 %v1048
      %v3333 = vunpack.c.l.b16 %v1049
      %v3334 = vunpack.c.h.b16 %v1049
      %v3335 = vunpack.c.l.b16 %v1050
      %v3336 = vunpack.c.h.b16 %v1050
      %v3337 = vunpack.c.l.b16 %v1051
      %v3338 = vunpack.c.h.b16 %v1051
      %v3339 = vunpack.c.l.b16 %v1052
      %v3340 = vunpack.c.h.b16 %v1052
      %v3341 = vunpack.c.l.b16 %v1053
      %v3342 = vunpack.c.h.b16 %v1053
      %v3343 = vunpack.c.l.b16 %v1054
      %v3344 = vunpack.c.h.b16 %v1054
      %v3345 = vunpack.c.l.b16 %v1055
      %v3346 = vunpack.c.h.b16 %v1055
      %v3347 = vunpack.c.l.b16 %v1056
      %v3348 = vunpack.c.h.b16 %v1056
      %v3349 = vunpack.c.l.b16 %v1057
      %v3350 = vunpack.c.h.b16 %v1057
      %v3351 = vunpack.c.l.b16 %v1058
      %v3352 = vunpack.c.h.b16 %v1058
      %v3353 = vunpack.c.l.b16 %v1059
      %v3354 = vunpack.c.h.b16 %v1059
      %v3355 = vunpack.c.l.b16 %v1060
      %v3356 = vunpack.c.h.b16 %v1060
      %v3357 = vunpack.c.l.b16 %v1061
      %v3358 = vunpack.c.h.b16 %v1061
      %v3359 = vunpack.c.l.b16 %v1062
      %v3360 = vunpack.c.h.b16 %v1062
      %v3361 = vunpack.c.l.b16 %v1063
      %v3362 = vunpack.c.h.b16 %v1063
      %v3363 = vunpack.c.l.b16 %v1064
      %v3364 = vunpack.c.h.b16 %v1064
      %v3365 = vunpack.c.l.b16 %v1065
      %v3366 = vunpack.c.h.b16 %v1065
      %v3367 = vunpack.c.l.b16 %v1066
      %v3368 = vunpack.c.h.b16 %v1066
      %v3369 = vunpack.c.l.b16 %v1067
      %v3370 = vunpack.c.h.b16 %v1067
      %v3371 = vunpack.c.l.b16 %v1068
      %v3372 = vunpack.c.h.b16 %v1068
      %v3373 = vunpack.c.l.b16 %v1069
      %v3374 = vunpack.c.h.b16 %v1069
      %v3375 = vunpack.c.l.b16 %v1070
      %v3376 = vunpack.c.h.b16 %v1070
      %v3377 = vunpack.c.l.b16 %v1071
      %v3378 = vunpack.c.h.b16 %v1071
      %v3379 = vunpack.c.l.b16 %v1072
      %v3380 = vunpack.c.h.b16 %v1072
      %v3381 = vunpack.c.l.b16 %v1073
      %v3382 = vunpack.c.h.b16 %v1073
      %v3383 = vunpack.c.l.b16 %v1074
      %v3384 = vunpack.c.h.b16 %v1074
      %v3385 = vunpack.c.l.b16 %v1075
      %v3386 = vunpack.c.h.b16 %v1075
      %v3387 = vunpack.c.l.b16 %v1076
      %v3388 = vunpack.c.h.b16 %v1076
      %v3389 = vunpack.c.l.b16 %v1077
      %v3390 = vunpack.c.h.b16 %v1077
      %v3391 = vunpack.c.l.b16 %v1078
      %v3392 = vunpack.c.h.b16 %v1078
      %v3393 = vunpack.c.l.b16 %v1079
      %v3394 = vunpack.c.h.b16 %v1079
      %v3395 = vunpack.c.l.b16 %v1080
      %v3396 = vunpack.c.h.b16 %v1080
      %v3397 = vunpack.c.l.b16 %v1081
      %v3398 = vunpack.c.h.b16 %v1081
      %v3399 = vunpack.c.l.b16 %v1082
      %v3400 = vunpack.c.h.b16 %v1082
      %v3401 = vunpack.c.l.b16 %v1083
      %v3402 = vunpack.c.h.b16 %v1083
      %v3403 = vunpack.c.l.b16 %v1084
      %v3404 = vunpack.c.h.b16 %v1084
      %v3405 = vunpack.c.l.b16 %v1085
      %v3406 = vunpack.c.h.b16 %v1085
      %v3407 = vunpack.c.l.b16 %v1086
      %v3408 = vunpack.c.h.b16 %v1086
      %v3409 = vunpack.c.l.b16 %v1087
      %v3410 = vunpack.c.h.b16 %v1087
      %v3411 = vunpack.c.l.b16 %v1088
      %v3412 = vunpack.c.h.b16 %v1088
      %v3413 = vunpack.c.l.b16 %v1089
      %v3414 = vunpack.c.h.b16 %v1089
      %v3415 = vunpack.c.l.b16 %v1090
      %v3416 = vunpack.c.h.b16 %v1090
      %v3417 = vunpack.c.l.b16 %v1091
      %v3418 = vunpack.c.h.b16 %v1091
      %v3419 = vunpack.c.l.b16 %v1092
      %v3420 = vunpack.c.h.b16 %v1092
      %v3421 = vunpack.c.l.b16 %v1093
      %v3422 = vunpack.c.h.b16 %v1093
      %v3423 = vunpack.c.l.b16 %v1094
      %v3424 = vunpack.c.h.b16 %v1094
      %v3425 = vunpack.c.l.b16 %v1095
      %v3426 = vunpack.c.h.b16 %v1095
      %v3427 = vunpack.c.l.b16 %v1096
      %v3428 = vunpack.c.h.b16 %v1096
      %v3429 = vunpack.c.l.b16 %v1097
      %v3430 = vunpack.c.h.b16 %v1097
      %v3431 = vunpack.c.l.b16 %v1098
      %v3432 = vunpack.c.h.b16 %v1098
      %v3433 = vunpack.c.l.b16 %v1099
      %v3434 = vunpack.c.h.b16 %v1099
      %v3435 = vunpack.c.l.b16 %v1100
      %v3436 = vunpack.c.h.b16 %v1100
      %v3437 = vunpack.c.l.b16 %v1101
      %v3438 = vunpack.c.h.b16 %v1101
      %v3439 = vunpack.c.l.b16 %v1102
      %v3440 = vunpack.c.h.b16 %v1102
      %v3441 = vunpack.c.l.b16 %v1103
      %v3442 = vunpack.c.h.b16 %v1103
      %v3443 = vunpack.c.l.b16 %v1104
      %v3444 = vunpack.c.h.b16 %v1104
      %v3445 = vunpack.c.l.b16 %v1105
      %v3446 = vunpack.c.h.b16 %v1105
      %v3447 = vunpack.c.l.b16 %v1106
      %v3448 = vunpack.c.h.b16 %v1106
      %v3449 = vunpack.c.l.b16 %v1107
      %v3450 = vunpack.c.h.b16 %v1107
      %v3451 = vunpack.c.l.b16 %v1108
      %v3452 = vunpack.c.h.b16 %v1108
      %v3453 = vunpack.c.l.b16 %v1109
      %v3454 = vunpack.c.h.b16 %v1109
      %v3455 = vunpack.c.l.b16 %v1110
      %v3456 = vunpack.c.h.b16 %v1110
      %v3457 = vunpack.c.l.b16 %v1111
      %v3458 = vunpack.c.h.b16 %v1111
      %v3459 = vunpack.c.l.b16 %v1112
      %v3460 = vunpack.c.h.b16 %v1112
      %v3461 = vunpack.c.l.b16 %v1113
      %v3462 = vunpack.c.h.b16 %v1113
      %v3463 = vunpack.c.l.b16 %v1114
      %v3464 = vunpack.c.h.b16 %v1114
      %v3465 = vunpack.c.l.b16 %v1115
      %v3466 = vunpack.c.h.b16 %v1115
      %v3467 = vunpack.c.l.b16 %v1116
      %v3468 = vunpack.c.h.b16 %v1116
      %v3469 = vunpack.c.l.b16 %v1117
      %v3470 = vunpack.c.h.b16 %v1117
      %v3471 = vunpack.c.l.b16 %v1118
      %v3472 = vunpack.c.h.b16 %v1118
      %v3473 = vunpack.c.l.b16 %v1119
      %v3474 = vunpack.c.h.b16 %v1119
      %v3475 = vunpack.c.l.b16 %v1120
      %v3476 = vunpack.c.h.b16 %v1120
      %v3477 = vunpack.c.l.b16 %v1121
      %v3478 = vunpack.c.h.b16 %v1121
      %v3479 = vunpack.c.l.b16 %v1122
      %v3480 = vunpack.c.h.b16 %v1122
      %v3481 = vunpack.c.l.b16 %v1123
      %v3482 = vunpack.c.h.b16 %v1123
      %v3483 = vunpack.c.l.b16 %v1124
      %v3484 = vunpack.c.h.b16 %v1124
      %v3485 = vunpack.c.l.b16 %v1125
      %v3486 = vunpack.c.h.b16 %v1125
      %v3487 = vunpack.c.l.b16 %v1126
      %v3488 = vunpack.c.h.b16 %v1126
      %v3489 = vunpack.c.l.b16 %v1127
      %v3490 = vunpack.c.h.b16 %v1127
      %v3491 = vunpack.c.l.b16 %v1128
      %v3492 = vunpack.c.h.b16 %v1128
      %v3493 = vunpack.c.l.b16 %v1129
      %v3494 = vunpack.c.h.b16 %v1129
      %v3495 = vunpack.c.l.b16 %v1130
      %v3496 = vunpack.c.h.b16 %v1130
      %v3497 = vunpack.c.l.b16 %v1131
      %v3498 = vunpack.c.h.b16 %v1131
      %v3499 = vunpack.c.l.b16 %v1132
      %v3500 = vunpack.c.h.b16 %v1132
      %v3501 = vunpack.c.l.b16 %v1133
      %v3502 = vunpack.c.h.b16 %v1133
      %v3503 = vunpack.c.l.b16 %v1134
      %v3504 = vunpack.c.h.b16 %v1134
      %v3505 = vunpack.c.l.b16 %v1135
      %v3506 = vunpack.c.h.b16 %v1135
      %v3507 = vunpack.c.l.b16 %v1136
      %v3508 = vunpack.c.h.b16 %v1136
      %v3509 = vunpack.c.l.b16 %v1137
      %v3510 = vunpack.c.h.b16 %v1137
      %v3511 = vunpack.c.l.b16 %v1138
      %v3512 = vunpack.c.h.b16 %v1138
      %v3513 = vunpack.c.l.b16 %v1139
      %v3514 = vunpack.c.h.b16 %v1139
      %v3515 = vunpack.c.l.b16 %v1140
      %v3516 = vunpack.c.h.b16 %v1140
      %v3517 = vunpack.c.l.b16 %v1141
      %v3518 = vunpack.c.h.b16 %v1141
      %v3519 = vunpack.c.l.b16 %v1142
      %v3520 = vunpack.c.h.b16 %v1142
      %v3521 = vunpack.c.l.b16 %v1143
      %v3522 = vunpack.c.h.b16 %v1143
      %v3523 = vunpack.c.l.b16 %v1144
      %v3524 = vunpack.c.h.b16 %v1144
      %v3525 = vunpack.c.l.b16 %v1145
      %v3526 = vunpack.c.h.b16 %v1145
      %v3527 = vunpack.c.l.b16 %v1146
      %v3528 = vunpack.c.h.b16 %v1146
      %v3529 = vunpack.c.l.b16 %v1147
      %v3530 = vunpack.c.h.b16 %v1147
      %v3531 = vunpack.c.l.b16 %v1148
      %v3532 = vunpack.c.h.b16 %v1148
      %v3533 = vunpack.c.l.b16 %v1149
      %v3534 = vunpack.c.h.b16 %v1149
      %v3535 = vunpack.c.l.b16 %v1150
      %v3536 = vunpack.c.h.b16 %v1150
      %v3537 = vunpack.c.l.b16 %v1151
      %v3538 = vunpack.c.h.b16 %v1151
      %v3539 = vunpack.c.l.b16 %v1152
      %v3540 = vunpack.c.h.b16 %v1152
      %v3541 = vunpack.c.l.b16 %v1153
      %v3542 = vunpack.c.h.b16 %v1153
      %v3543 = vunpack.c.l.b16 %v1154
      %v3544 = vunpack.c.h.b16 %v1154
      %v3545 = vunpack.c.l.b16 %v1155
      %v3546 = vunpack.c.h.b16 %v1155
      %v3547 = vunpack.c.l.b16 %v1156
      %v3548 = vunpack.c.h.b16 %v1156
      %v3549 = vunpack.c.l.b16 %v1157
      %v3550 = vunpack.c.h.b16 %v1157
      %v3551 = vunpack.c.l.b16 %v1158
      %v3552 = vunpack.c.h.b16 %v1158
      %v3553 = vunpack.c.l.b16 %v1159
      %v3554 = vunpack.c.h.b16 %v1159
      %v3555 = vunpack.c.l.b16 %v1160
      %v3556 = vunpack.c.h.b16 %v1160
      %v3557 = vunpack.c.l.b16 %v1161
      %v3558 = vunpack.c.h.b16 %v1161
      %v3559 = vunpack.c.l.b16 %v1162
      %v3560 = vunpack.c.h.b16 %v1162
      %v3561 = vunpack.c.l.b16 %v1163
      %v3562 = vunpack.c.h.b16 %v1163
      %v3563 = vunpack.c.l.b16 %v1164
      %v3564 = vunpack.c.h.b16 %v1164
      %v3565 = vunpack.c.l.b16 %v1165
      %v3566 = vunpack.c.h.b16 %v1165
      %v3567 = vunpack.c.l.b16 %v1166
      %v3568 = vunpack.c.h.b16 %v1166
      %v3569 = vunpack.c.l.b16 %v1167
      %v3570 = vunpack.c.h.b16 %v1167
      %v3571 = vunpack.c.l.b16 %v1168
      %v3572 = vunpack.c.h.b16 %v1168
      %v3573 = vunpack.c.l.b16 %v1169
      %v3574 = vunpack.c.h.b16 %v1169
      %v3575 = vunpack.c.l.b16 %v1170
      %v3576 = vunpack.c.h.b16 %v1170
      %v3577 = vunpack.c.l.b16 %v1171
      %v3578 = vunpack.c.h.b16 %v1171
      %v3579 = vunpack.c.l.b16 %v1172
      %v3580 = vunpack.c.h.b16 %v1172
      %v3581 = vunpack.c.l.b16 %v1173
      %v3582 = vunpack.c.h.b16 %v1173
      %v3583 = vunpack.c.l.b16 %v1174
      %v3584 = vunpack.c.h.b16 %v1174
      %v3585 = vunpack.c.l.b16 %v1175
      %v3586 = vunpack.c.h.b16 %v1175
      %v3587 = vunpack.c.l.b16 %v1176
      %v3588 = vunpack.c.h.b16 %v1176
      %v3589 = vunpack.c.l.b16 %v1177
      %v3590 = vunpack.c.h.b16 %v1177
      %v3591 = vunpack.c.l.b16 %v1178
      %v3592 = vunpack.c.h.b16 %v1178
      %v3593 = vunpack.c.l.b16 %v1179
      %v3594 = vunpack.c.h.b16 %v1179
      %v3595 = vunpack.c.l.b16 %v1180
      %v3596 = vunpack.c.h.b16 %v1180
      %v3597 = vunpack.c.l.b16 %v1181
      %v3598 = vunpack.c.h.b16 %v1181
      %v3599 = vunpack.c.l.b16 %v1182
      %v3600 = vunpack.c.h.b16 %v1182
      %v3601 = vunpack.c.l.b16 %v1183
      %v3602 = vunpack.c.h.b16 %v1183
      %v3603 = vunpack.c.l.b16 %v1184
      %v3604 = vunpack.c.h.b16 %v1184
      %v3605 = vunpack.c.l.b16 %v1185
      %v3606 = vunpack.c.h.b16 %v1185
      %v3607 = vunpack.c.l.b16 %v1186
      %v3608 = vunpack.c.h.b16 %v1186
      %v3609 = vunpack.c.l.b16 %v1187
      %v3610 = vunpack.c.h.b16 %v1187
      %v3611 = vunpack.c.l.b16 %v1188
      %v3612 = vunpack.c.h.b16 %v1188
      %v3613 = vunpack.c.l.b16 %v1189
      %v3614 = vunpack.c.h.b16 %v1189
      %v3615 = vunpack.c.l.b16 %v1190
      %v3616 = vunpack.c.h.b16 %v1190
      %v3617 = vunpack.c.l.b16 %v1191
      %v3618 = vunpack.c.h.b16 %v1191
      %v3619 = vunpack.c.l.b16 %v1192
      %v3620 = vunpack.c.h.b16 %v1192
      %v3621 = vunpack.c.l.b16 %v1193
      %v3622 = vunpack.c.h.b16 %v1193
      %v3623 = vunpack.c.l.b16 %v1194
      %v3624 = vunpack.c.h.b16 %v1194
      %v3625 = vunpack.c.l.b16 %v1195
      %v3626 = vunpack.c.h.b16 %v1195
      %v3627 = vunpack.c.l.b16 %v1196
      %v3628 = vunpack.c.h.b16 %v1196
      %v3629 = vunpack.c.l.b16 %v1197
      %v3630 = vunpack.c.h.b16 %v1197
      %v3631 = vunpack.c.l.b16 %v1198
      %v3632 = vunpack.c.h.b16 %v1198
      %v3633 = vunpack.c.l.b16 %v1199
      %v3634 = vunpack.c.h.b16 %v1199
      %v3635 = vunpack.c.l.b16 %v1200
      %v3636 = vunpack.c.h.b16 %v1200
      %v3637 = vunpack.c.l.b16 %v1201
      %v3638 = vunpack.c.h.b16 %v1201
      %v3639 = vunpack.c.l.b16 %v1202
      %v3640 = vunpack.c.h.b16 %v1202
      %v3641 = vunpack.c.l.b16 %v1203
      %v3642 = vunpack.c.h.b16 %v1203
      %v3643 = vunpack.c.l.b16 %v1204
      %v3644 = vunpack.c.h.b16 %v1204
      %v3645 = vunpack.c.l.b16 %v1205
      %v3646 = vunpack.c.h.b16 %v1205
      %v3647 = vunpack.c.l.b16 %v1206
      %v3648 = vunpack.c.h.b16 %v1206
      %v3649 = vunpack.c.l.b16 %v1207
      %v3650 = vunpack.c.h.b16 %v1207
      %v3651 = vunpack.c.l.b16 %v1208
      %v3652 = vunpack.c.h.b16 %v1208
      %v3653 = vunpack.c.l.b16 %v1209
      %v3654 = vunpack.c.h.b16 %v1209
      %v3655 = vunpack.c.l.b16 %v1210
      %v3656 = vunpack.c.h.b16 %v1210
      %v3657 = vunpack.c.l.b16 %v1211
      %v3658 = vunpack.c.h.b16 %v1211
      %v3659 = vunpack.c.l.b16 %v1212
      %v3660 = vunpack.c.h.b16 %v1212
      %v3661 = vunpack.c.l.b16 %v1213
      %v3662 = vunpack.c.h.b16 %v1213
      %v3663 = vunpack.c.l.b16 %v1214
      %v3664 = vunpack.c.h.b16 %v1214
      %v3665 = vunpack.c.l.b16 %v1215
      %v3666 = vunpack.c.h.b16 %v1215
      %v3667 = vunpack.c.l.b16 %v1216
      %v3668 = vunpack.c.h.b16 %v1216
      %v3669 = vunpack.c.l.b16 %v1217
      %v3670 = vunpack.c.h.b16 %v1217
      %v3671 = vunpack.c.l.b16 %v1218
      %v3672 = vunpack.c.h.b16 %v1218
      %v3673 = vunpack.c.l.b16 %v1219
      %v3674 = vunpack.c.h.b16 %v1219
      %v3675 = vunpack.c.l.b16 %v1220
      %v3676 = vunpack.c.h.b16 %v1220
      %v3677 = vunpack.c.l.b16 %v1221
      %v3678 = vunpack.c.h.b16 %v1221
      %v3679 = vunpack.c.l.b16 %v1222
      %v3680 = vunpack.c.h.b16 %v1222
      %v3681 = vunpack.c.l.b16 %v1223
      %v3682 = vunpack.c.h.b16 %v1223
      %v3683 = vunpack.c.l.b16 %v1224
      %v3684 = vunpack.c.h.b16 %v1224
      %v3685 = vunpack.c.l.b16 %v1225
      %v3686 = vunpack.c.h.b16 %v1225
      %v3687 = vunpack.c.l.b16 %v1226
      %v3688 = vunpack.c.h.b16 %v1226
      %v3689 = vunpack.c.l.b16 %v1227
      %v3690 = vunpack.c.h.b16 %v1227
      %v3691 = vunpack.c.l.b16 %v1228
      %v3692 = vunpack.c.h.b16 %v1228
      %v3693 = vunpack.c.l.b16 %v1229
      %v3694 = vunpack.c.h.b16 %v1229
      %v3695 = vunpack.c.l.b16 %v1230
      %v3696 = vunpack.c.h.b16 %v1230
      %v3697 = vunpack.c.l.b16 %v1231
      %v3698 = vunpack.c.h.b16 %v1231
      %v3699 = vunpack.c.l.b16 %v1232
      %v3700 = vunpack.c.h.b16 %v1232
      %v3701 = vunpack.c.l.b16 %v1233
      %v3702 = vunpack.c.h.b16 %v1233
      %v3703 = vunpack.c.l.b16 %v1234
      %v3704 = vunpack.c.h.b16 %v1234
      %v3705 = vunpack.c.l.b16 %v1235
      %v3706 = vunpack.c.h.b16 %v1235
      %v3707 = vunpack.c.l.b16 %v1236
      %v3708 = vunpack.c.h.b16 %v1236
      %v3709 = vunpack.c.l.b16 %v1237
      %v3710 = vunpack.c.h.b16 %v1237
      %v3711 = vunpack.c.l.b16 %v1238
      %v3712 = vunpack.c.h.b16 %v1238
      %v3713 = vunpack.c.l.b16 %v1239
      %v3714 = vunpack.c.h.b16 %v1239
      %v3715 = vunpack.c.l.b16 %v1240
      %v3716 = vunpack.c.h.b16 %v1240
      %v3717 = vunpack.c.l.b16 %v1241
      %v3718 = vunpack.c.h.b16 %v1241
      %v3719 = vunpack.c.l.b16 %v1242
      %v3720 = vunpack.c.h.b16 %v1242
      %v3721 = vunpack.c.l.b16 %v1243
      %v3722 = vunpack.c.h.b16 %v1243
      %v3723 = vunpack.c.l.b16 %v1244
      %v3724 = vunpack.c.h.b16 %v1244
      %v3725 = vunpack.c.l.b16 %v1245
      %v3726 = vunpack.c.h.b16 %v1245
      %v3727 = vunpack.c.l.b16 %v1246
      %v3728 = vunpack.c.h.b16 %v1246
      %v3729 = vunpack.c.l.b16 %v1247
      %v3730 = vunpack.c.h.b16 %v1247
      %v3731 = vunpack.c.l.b16 %v1248
      %v3732 = vunpack.c.h.b16 %v1248
      %v3733 = vunpack.c.l.b16 %v1249
      %v3734 = vunpack.c.h.b16 %v1249
      %v3735 = vunpack.c.l.b16 %v1250
      %v3736 = vunpack.c.h.b16 %v1250
      %v3737 = vunpack.c.l.b16 %v1251
      %v3738 = vunpack.c.h.b16 %v1251
      %v3739 = vunpack.c.l.b16 %v1252
      %v3740 = vunpack.c.h.b16 %v1252
      %v3741 = vunpack.c.l.b16 %v1253
      %v3742 = vunpack.c.h.b16 %v1253
      %v3743 = vunpack.c.l.b16 %v1254
      %v3744 = vunpack.c.h.b16 %v1254
      %v3745 = vunpack.c.l.b16 %v1255
      %v3746 = vunpack.c.h.b16 %v1255
      %v3747 = vunpack.c.l.b16 %v1256
      %v3748 = vunpack.c.h.b16 %v1256
      %v3749 = vunpack.c.l.b16 %v1257
      %v3750 = vunpack.c.h.b16 %v1257
      %v3751 = vunpack.c.l.b16 %v1258
      %v3752 = vunpack.c.h.b16 %v1258
      %v3753 = vunpack.c.l.b16 %v1259
      %v3754 = vunpack.c.h.b16 %v1259
      %v3755 = vunpack.c.l.b16 %v1260
      %v3756 = vunpack.c.h.b16 %v1260
      %v3757 = vunpack.c.l.b16 %v1261
      %v3758 = vunpack.c.h.b16 %v1261
      %v3759 = vunpack.c.l.b16 %v1262
      %v3760 = vunpack.c.h.b16 %v1262
      %v3761 = vunpack.c.l.b16 %v1263
      %v3762 = vunpack.c.h.b16 %v1263
      %v3763 = vunpack.c.l.b16 %v1264
      %v3764 = vunpack.c.h.b16 %v1264
      %v3765 = vunpack.c.l.b16 %v1265
      %v3766 = vunpack.c.h.b16 %v1265
      %v3767 = vunpack.c.l.b16 %v1266
      %v3768 = vunpack.c.h.b16 %v1266
      %v3769 = vunpack.c.l.b16 %v1267
      %v3770 = vunpack.c.h.b16 %v1267
      %v3771 = vunpack.c.l.b16 %v1268
      %v3772 = vunpack.c.h.b16 %v1268
      %v3773 = vunpack.c.l.b16 %v1269
      %v3774 = vunpack.c.h.b16 %v1269
      %v3775 = vunpack.c.l.b16 %v1270
      %v3776 = vunpack.c.h.b16 %v1270
      %v3777 = vunpack.c.l.b16 %v1271
      %v3778 = vunpack.c.h.b16 %v1271
      %v3779 = vunpack.c.l.b16 %v1272
      %v3780 = vunpack.c.h.b16 %v1272
      %v3781 = vunpack.c.l.b16 %v1273
      %v3782 = vunpack.c.h.b16 %v1273
      %v3783 = vunpack.c.l.b16 %v1274
      %v3784 = vunpack.c.h.b16 %v1274
      %v3785 = vunpack.c.l.b16 %v1275
      %v3786 = vunpack.c.h.b16 %v1275
      %v3787 = vunpack.c.l.b16 %v1276
      %v3788 = vunpack.c.h.b16 %v1276
      %v3789 = vunpack.c.l.b16 %v1277
      %v3790 = vunpack.c.h.b16 %v1277
      %v3791 = vunpack.c.l.b16 %v1278
      %v3792 = vunpack.c.h.b16 %v1278
      %v3793 = vunpack.c.l.b16 %v1279
      %v3794 = vunpack.c.h.b16 %v1279
      %v3795 = vunpack.c.l.b16 %v1280
      %v3796 = vunpack.c.h.b16 %v1280
      %v3797 = vunpack.c.l.b16 %v1281
      %v3798 = vunpack.c.h.b16 %v1281
      %v3799 = vunpack.c.l.b16 %v1282
      %v3800 = vunpack.c.h.b16 %v1282
      %v3801 = vunpack.c.l.b16 %v1283
      %v3802 = vunpack.c.h.b16 %v1283
      %v3803 = vunpack.c.l.b16 %v1284
      %v3804 = vunpack.c.h.b16 %v1284
      %v3805 = vunpack.c.l.b16 %v1285
      %v3806 = vunpack.c.h.b16 %v1285
      %v3807 = vunpack.c.l.b16 %v1286
      %v3808 = vunpack.c.h.b16 %v1286
      %v3809 = vunpack.c.l.b16 %v1287
      %v3810 = vunpack.c.h.b16 %v1287
      %v3811 = vunpack.c.l.b16 %v1288
      %v3812 = vunpack.c.h.b16 %v1288
      %v3813 = vunpack.c.l.b16 %v1289
      %v3814 = vunpack.c.h.b16 %v1289
      %v3815 = vunpack.c.l.b16 %v1290
      %v3816 = vunpack.c.h.b16 %v1290
      %v3817 = vunpack.c.l.b16 %v1291
      %v3818 = vunpack.c.h.b16 %v1291
      %v3819 = vunpack.c.l.b16 %v1292
      %v3820 = vunpack.c.h.b16 %v1292
      %v3821 = vunpack.c.l.b16 %v1293
      %v3822 = vunpack.c.h.b16 %v1293
      %v3823 = vunpack.c.l.b16 %v1294
      %v3824 = vunpack.c.h.b16 %v1294
      %v3825 = vunpack.c.l.b16 %v1295
      %v3826 = vunpack.c.h.b16 %v1295
      %v3827 = vunpack.c.l.b16 %v1296
      %v3828 = vunpack.c.h.b16 %v1296
      %v3829 = vunpack.c.l.b16 %v1297
      %v3830 = vunpack.c.h.b16 %v1297
      %v3831 = vunpack.c.l.b16 %v1298
      %v3832 = vunpack.c.h.b16 %v1298
      %v3833 = vunpack.c.l.b16 %v1299
      %v3834 = vunpack.c.h.b16 %v1299
      %v3835 = vunpack.c.l.b16 %v1300
      %v3836 = vunpack.c.h.b16 %v1300
      %v3837 = vunpack.c.l.b16 %v1301
      %v3838 = vunpack.c.h.b16 %v1301
      %v3839 = vunpack.c.l.b16 %v1302
      %v3840 = vunpack.c.h.b16 %v1302
      %v3841 = vunpack.c.l.b16 %v1303
      %v3842 = vunpack.c.h.b16 %v1303
      %v3843 = vunpack.c.l.b16 %v1304
      %v3844 = vunpack.c.h.b16 %v1304
      %v3845 = vunpack.c.l.b16 %v1305
      %v3846 = vunpack.c.h.b16 %v1305
      %v3847 = vunpack.c.l.b16 %v1306
      %v3848 = vunpack.c.h.b16 %v1306
      %v3849 = vpack.c.b16 %v2193, %v2185
      %v3850 = vpack.c.b16 %v2194, %v2186
      %v3851 = vpack.c.b16 %v2195, %v2187
      %v3852 = vpack.c.b16 %v2196, %v2188
      %v3853 = vpack.c.b16 %v2197, %v2189
      %v3854 = vpack.c.b16 %v2198, %v2190
      %v3855 = vpack.c.b16 %v2199, %v2191
      %v3856 = vpack.c.b16 %v2200, %v2192
      %v3857 = vpack.c.b16 %v2209, %v2201
      %v3858 = vpack.c.b16 %v2210, %v2202
      %v3859 = vpack.c.b16 %v2211, %v2203
      %v3860 = vpack.c.b16 %v2212, %v2204
      %v3861 = vpack.c.b16 %v2213, %v2205
      %v3862 = vpack.c.b16 %v2214, %v2206
      %v3863 = vpack.c.b16 %v2215, %v2207
      %v3864 = vpack.c.b16 %v2216, %v2208
      %v3865 = vpack.c.b16 %v2225, %v2217
      %v3866 = vpack.c.b16 %v2226, %v2218
      %v3867 = vpack.c.b16 %v2227, %v2219
      %v3868 = vpack.c.b16 %v2228, %v2220
      %v3869 = vpack.c.b16 %v2229, %v2221
      %v3870 = vpack.c.b16 %v2230, %v2222
      %v3871 = vpack.c.b16 %v2231, %v2223
      %v3872 = vpack.c.b16 %v2232, %v2224
      %v3873 = vpack.c.b16 %v2241, %v2233
      %v3874 = vpack.c.b16 %v2242, %v2234
      %v3875 = vpack.c.b16 %v2243, %v2235
      %v3876 = vpack.c.b16 %v2244, %v2236
      %v3877 = vpack.c.b16 %v2245, %v2237
      %v3878 = vpack.c.b16 %v2246, %v2238
      %v3879 = vpack.c.b16 %v2247, %v2239
      %v3880 = vpack.c.b16 %v2248, %v2240
      %v3881 = vpack.c.b16 %v2257, %v2249
      %v3882 = vpack.c.b16 %v2258, %v2250
      %v3883 = vpack.c.b16 %v2259, %v2251
      %v3884 = vpack.c.b16 %v2260, %v2252
      %v3885 = vpack.c.b16 %v2261, %v2253
      %v3886 = vpack.c.b16 %v2262, %v2254
      %v3887 = vpack.c.b16 %v2263, %v2255
      %v3888 = vpack.c.b16 %v2264, %v2256
      %v3889 = vpack.c.b16 %v2273, %v2265
      %v3890 = vpack.c.b16 %v2274, %v2266
      %v3891 = vpack.c.b16 %v2275, %v2267
      %v3892 = vpack.c.b16 %v2276, %v2268
      %v3893 = vpack.c.b16 %v2277, %v2269
      %v3894 = vpack.c.b16 %v2278, %v2270
      %v3895 = vpack.c.b16 %v2279, %v2271
      %v3896 = vpack.c.b16 %v2280, %v2272
      %v3897 = vpack.c.b16 %v2289, %v2281
      %v3898 = vpack.c.b16 %v2290, %v2282
      %v3899 = vpack.c.b16 %v2291, %v2283
      %v3900 = vpack.c.b16 %v2292, %v2284
      %v3901 = vpack.c.b16 %v2293, %v2285
      %v3902 = vpack.c.b16 %v2294, %v2286
      %v3903 = vpack.c.b16 %v2295, %v2287
      %v3904 = vpack.c.b16 %v2296, %v2288
      %v3905 = vpack.c.b16 %v2305, %v2297
      %v3906 = vpack.c.b16 %v2306, %v2298
      %v3907 = vpack.c.b16 %v2307, %v2299
      %v3908 = vpack.c.b16 %v2308, %v2300
      %v3909 = vpack.c.b16 %v2309, %v2301
      %v3910 = vpack.c.b16 %v2310, %v2302
      %v3911 = vpack.c.b16 %v2311, %v2303
      %v3912 = vpack.c.b16 %v2312, %v2304
      %v3913 = vpack.c.b16 %v2321, %v2313
      %v3914 = vpack.c.b16 %v2322, %v2314
      %v3915 = vpack.c.b16 %v2323, %v2315
      %v3916 = vpack.c.b16 %v2324, %v2316
      %v3917 = vpack.c.b16 %v2325, %v2317
      %v3918 = vpack.c.b16 %v2326, %v2318
      %v3919 = vpack.c.b16 %v2327, %v2319
      %v3920 = vpack.c.b16 %v2328, %v2320
      %v3921 = vpack.c.b16 %v2337, %v2329
      %v3922 = vpack.c.b16 %v2338, %v2330
      %v3923 = vpack.c.b16 %v2339, %v2331
      %v3924 = vpack.c.b16 %v2340, %v2332
      %v3925 = vpack.c.b16 %v2341, %v2333
      %v3926 = vpack.c.b16 %v2342, %v2334
      %v3927 = vpack.c.b16 %v2343, %v2335
      %v3928 = vpack.c.b16 %v2344, %v2336
      %v3929 = vpack.c.b16 %v2353, %v2345
      %v3930 = vpack.c.b16 %v2354, %v2346
      %v3931 = vpack.c.b16 %v2355, %v2347
      %v3932 = vpack.c.b16 %v2356, %v2348
      %v3933 = vpack.c.b16 %v2357, %v2349
      %v3934 = vpack.c.b16 %v2358, %v2350
      %v3935 = vpack.c.b16 %v2359, %v2351
      %v3936 = vpack.c.b16 %v2360, %v2352
      %v3937 = vpack.c.b16 %v2369, %v2361
      %v3938 = vpack.c.b16 %v2370, %v2362
      %v3939 = vpack.c.b16 %v2371, %v2363
      %v3940 = vpack.c.b16 %v2372, %v2364
      %v3941 = vpack.c.b16 %v2373, %v2365
      %v3942 = vpack.c.b16 %v2374, %v2366
      %v3943 = vpack.c.b16 %v2375, %v2367
      %v3944 = vpack.c.b16 %v2376, %v2368
      %v3945 = vpack.c.b16 %v2385, %v2377
      %v3946 = vpack.c.b16 %v2386, %v2378
      %v3947 = vpack.c.b16 %v2387, %v2379
      %v3948 = vpack.c.b16 %v2388, %v2380
      %v3949 = vpack.c.b16 %v2389, %v2381
      %v3950 = vpack.c.b16 %v2390, %v2382
      %v3951 = vpack.c.b16 %v2391, %v2383
      %v3952 = vpack.c.b16 %v2392, %v2384
      %v3953 = vpack.c.b16 %v2401, %v2393
      %v3954 = vpack.c.b16 %v2402, %v2394
      %v3955 = vpack.c.b16 %v2403, %v2395
      %v3956 = vpack.c.b16 %v2404, %v2396
      %v3957 = vpack.c.b16 %v2405, %v2397
      %v3958 = vpack.c.b16 %v2406, %v2398
      %v3959 = vpack.c.b16 %v2407, %v2399
      %v3960 = vpack.c.b16 %v2408, %v2400
      %v3961 = vpack.c.b16 %v2417, %v2409
      %v3962 = vpack.c.b16 %v2418, %v2410
      %v3963 = vpack.c.b16 %v2419, %v2411
      %v3964 = vpack.c.b16 %v2420, %v2412
      %v3965 = vpack.c.b16 %v2421, %v2413
      %v3966 = vpack.c.b16 %v2422, %v2414
      %v3967 = vpack.c.b16 %v2423, %v2415
      %v3968 = vpack.c.b16 %v2424, %v2416
      %v3969 = vpack.c.b16 %v2433, %v2425
      %v3970 = vpack.c.b16 %v2434, %v2426
      %v3971 = vpack.c.b16 %v2435, %v2427
      %v3972 = vpack.c.b16 %v2436, %v2428
      %v3973 = vpack.c.b16 %v2437, %v2429
      %v3974 = vpack.c.b16 %v2438, %v2430
      %v3975 = vpack.c.b16 %v2439, %v2431
      %v3976 = vpack.c.b16 %v2440, %v2432
      %v3977 = vpack.c.b16 %v2449, %v2441
      %v3978 = vpack.c.b16 %v2450, %v2442
      %v3979 = vpack.c.b16 %v2451, %v2443
      %v3980 = vpack.c.b16 %v2452, %v2444
      %v3981 = vpack.c.b16 %v2453, %v2445
      %v3982 = vpack.c.b16 %v2454, %v2446
      %v3983 = vpack.c.b16 %v2455, %v2447
      %v3984 = vpack.c.b16 %v2456, %v2448
      %v3985 = vpack.c.b16 %v2465, %v2457
      %v3986 = vpack.c.b16 %v2466, %v2458
      %v3987 = vpack.c.b16 %v2467, %v2459
      %v3988 = vpack.c.b16 %v2468, %v2460
      %v3989 = vpack.c.b16 %v2469, %v2461
      %v3990 = vpack.c.b16 %v2470, %v2462
      %v3991 = vpack.c.b16 %v2471, %v2463
      %v3992 = vpack.c.b16 %v2472, %v2464
      %v3993 = vpack.c.b16 %v2481, %v2473
      %v3994 = vpack.c.b16 %v2482, %v2474
      %v3995 = vpack.c.b16 %v2483, %v2475
      %v3996 = vpack.c.b16 %v2484, %v2476
      %v3997 = vpack.c.b16 %v2485, %v2477
      %v3998 = vpack.c.b16 %v2486, %v2478
      %v3999 = vpack.c.b16 %v2487, %v2479
      %v4000 = vpack.c.b16 %v2488, %v2480
      %v4001 = vpack.c.b16 %v2497, %v2489
      %v4002 = vpack.c.b16 %v2498, %v2490
      %v4003 = vpack.c.b16 %v2499, %v2491
      %v4004 = vpack.c.b16 %v2500, %v2492
      %v4005 = vpack.c.b16 %v2501, %v2493
      %v4006 = vpack.c.b16 %v2502, %v2494
      %v4007 = vpack.c.b16 %v2503, %v2495
      %v4008 = vpack.c.b16 %v2504, %v2496
      %v4009 = vpack.c.b16 %v2513, %v2505
      %v4010 = vpack.c.b16 %v2514, %v2506
      %v4011 = vpack.c.b16 %v2515, %v2507
      %v4012 = vpack.c.b16 %v2516, %v2508
      %v4013 = vpack.c.b16 %v2517, %v2509
      %v4014 = vpack.c.b16 %v2518, %v2510
      %v4015 = vpack.c.b16 %v2519, %v2511
      %v4016 = vpack.c.b16 %v2520, %v2512
      %v4017 = vpack.c.b16 %v2529, %v2521
      %v4018 = vpack.c.b16 %v2530, %v2522
      %v4019 = vpack.c.b16 %v2531, %v2523
      %v4020 = vpack.c.b16 %v2532, %v2524
      %v4021 = vpack.c.b16 %v2533, %v2525
      %v4022 = vpack.c.b16 %v2534, %v2526
      %v4023 = vpack.c.b16 %v2535, %v2527
      %v4024 = vpack.c.b16 %v2536, %v2528
      %v4025 = vpack.c.b16 %v2545, %v2537
      %v4026 = vpack.c.b16 %v2546, %v2538
      %v4027 = vpack.c.b16 %v2547, %v2539
      %v4028 = vpack.c.b16 %v2548, %v2540
      %v4029 = vpack.c.b16 %v2549, %v2541
      %v4030 = vpack.c.b16 %v2550, %v2542
      %v4031 = vpack.c.b16 %v2551, %v2543
      %v4032 = vpack.c.b16 %v2552, %v2544
      %v4033 = vpack.c.b16 %v2561, %v2553
      %v4034 = vpack.c.b16 %v2562, %v2554
      %v4035 = vpack.c.b16 %v2563, %v2555
      %v4036 = vpack.c.b16 %v2564, %v2556
      %v4037 = vpack.c.b16 %v2565, %v2557
      %v4038 = vpack.c.b16 %v2566, %v2558
      %v4039 = vpack.c.b16 %v2567, %v2559
      %v4040 = vpack.c.b16 %v2568, %v2560
      %v4041 = vpack.c.b16 %v2577, %v2569
      %v4042 = vpack.c.b16 %v2578, %v2570
      %v4043 = vpack.c.b16 %v2579, %v2571
      %v4044 = vpack.c.b16 %v2580, %v2572
      %v4045 = vpack.c.b16 %v2581, %v2573
      %v4046 = vpack.c.b16 %v2582, %v2574
      %v4047 = vpack.c.b16 %v2583, %v2575
      %v4048 = vpack.c.b16 %v2584, %v2576
      %v4049 = vpack.c.b16 %v2593, %v2585
      %v4050 = vpack.c.b16 %v2594, %v2586
      %v4051 = vpack.c.b16 %v2595, %v2587
      %v4052 = vpack.c.b16 %v2596, %v2588
      %v4053 = vpack.c.b16 %v2597, %v2589
      %v4054 = vpack.c.b16 %v2598, %v2590
      %v4055 = vpack.c.b16 %v2599, %v2591
      %v4056 = vpack.c.b16 %v2600, %v2592
      %v4057 = vpack.c.b16 %v2609, %v2601
      %v4058 = vpack.c.b16 %v2610, %v2602
      %v4059 = vpack.c.b16 %v2611, %v2603
      %v4060 = vpack.c.b16 %v2612, %v2604
      %v4061 = vpack.c.b16 %v2613, %v2605
      %v4062 = vpack.c.b16 %v2614, %v2606
      %v4063 = vpack.c.b16 %v2615, %v2607
      %v4064 = vpack.c.b16 %v2616, %v2608
      %v4065 = vpack.c.b16 %v2625, %v2617
      %v4066 = vpack.c.b16 %v2626, %v2618
      %v4067 = vpack.c.b16 %v2627, %v2619
      %v4068 = vpack.c.b16 %v2628, %v2620
      %v4069 = vpack.c.b16 %v2629, %v2621
      %v4070 = vpack.c.b16 %v2630, %v2622
      %v4071 = vpack.c.b16 %v2631, %v2623
      %v4072 = vpack.c.b16 %v2632, %v2624
      %v4073 = vpack.c.b16 %v2641, %v2633
      %v4074 = vpack.c.b16 %v2642, %v2634
      %v4075 = vpack.c.b16 %v2643, %v2635
      %v4076 = vpack.c.b16 %v2644, %v2636
      %v4077 = vpack.c.b16 %v2645, %v2637
      %v4078 = vpack.c.b16 %v2646, %v2638
      %v4079 = vpack.c.b16 %v2647, %v2639
      %v4080 = vpack.c.b16 %v2648, %v2640
      %v4081 = vpack.c.b16 %v2657, %v2649
      %v4082 = vpack.c.b16 %v2658, %v2650
      %v4083 = vpack.c.b16 %v2659, %v2651
      %v4084 = vpack.c.b16 %v2660, %v2652
      %v4085 = vpack.c.b16 %v2661, %v2653
      %v4086 = vpack.c.b16 %v2662, %v2654
      %v4087 = vpack.c.b16 %v2663, %v2655
      %v4088 = vpack.c.b16 %v2664, %v2656
      %v4089 = vpack.c.b16 %v2673, %v2665
      %v4090 = vpack.c.b16 %v2674, %v2666
      %v4091 = vpack.c.b16 %v2675, %v2667
      %v4092 = vpack.c.b16 %v2676, %v2668
      %v4093 = vpack.c.b16 %v2677, %v2669
      %v4094 = vpack.c.b16 %v2678, %v2670
      %v4095 = vpack.c.b16 %v2679, %v2671
      %v4096 = vpack.c.b16 %v2680, %v2672
      %v4097 = vpack.c.b16 %v2689, %v2681
      %v4098 = vpack.c.b16 %v2690, %v2682
      %v4099 = vpack.c.b16 %v2691, %v2683
      %v4100 = vpack.c.b16 %v2692, %v2684
      %v4101 = vpack.c.b16 %v2693, %v2685
      %v4102 = vpack.c.b16 %v2694, %v2686
      %v4103 = vpack.c.b16 %v2695, %v2687
      %v4104 = vpack.c.b16 %v2696, %v2688
      %v4105 = vpack.c.b16 %v2705, %v2697
      %v4106 = vpack.c.b16 %v2706, %v2698
      %v4107 = vpack.c.b16 %v2707, %v2699
      %v4108 = vpack.c.b16 %v2708, %v2700
      %v4109 = vpack.c.b16 %v2709, %v2701
      %v4110 = vpack.c.b16 %v2710, %v2702
      %v4111 = vpack.c.b16 %v2711, %v2703
      %v4112 = vpack.c.b16 %v2712, %v2704
      %v4113 = vpack.c.b16 %v2721, %v2713
      %v4114 = vpack.c.b16 %v2722, %v2714
      %v4115 = vpack.c.b16 %v2723, %v2715
      %v4116 = vpack.c.b16 %v2724, %v2716
      %v4117 = vpack.c.b16 %v2725, %v2717
      %v4118 = vpack.c.b16 %v2726, %v2718
      %v4119 = vpack.c.b16 %v2727, %v2719
      %v4120 = vpack.c.b16 %v2728, %v2720
      %v4121 = vpack.c.b16 %v2737, %v2729
      %v4122 = vpack.c.b16 %v2738, %v2730
      %v4123 = vpack.c.b16 %v2739, %v2731
      %v4124 = vpack.c.b16 %v2740, %v2732
      %v4125 = vpack.c.b16 %v2741, %v2733
      %v4126 = vpack.c.b16 %v2742, %v2734
      %v4127 = vpack.c.b16 %v2743, %v2735
      %v4128 = vpack.c.b16 %v2744, %v2736
      %v4129 = vpack.c.b16 %v2753, %v2745
      %v4130 = vpack.c.b16 %v2754, %v2746
      %v4131 = vpack.c.b16 %v2755, %v2747
      %v4132 = vpack.c.b16 %v2756, %v2748
      %v4133 = vpack.c.b16 %v2757, %v2749
      %v4134 = vpack.c.b16 %v2758, %v2750
      %v4135 = vpack.c.b16 %v2759, %v2751
      %v4136 = vpack.c.b16 %v2760, %v2752
      %v4137 = vpack.c.b16 %v2769, %v2761
      %v4138 = vpack.c.b16 %v2770, %v2762
      %v4139 = vpack.c.b16 %v2771, %v2763
      %v4140 = vpack.c.b16 %v2772, %v2764
      %v4141 = vpack.c.b16 %v2773, %v2765
      %v4142 = vpack.c.b16 %v2774, %v2766
      %v4143 = vpack.c.b16 %v2775, %v2767
      %v4144 = vpack.c.b16 %v2776, %v2768
      %v4145 = vpack.c.b16 %v2785, %v2777
      %v4146 = vpack.c.b16 %v2786, %v2778
      %v4147 = vpack.c.b16 %v2787, %v2779
      %v4148 = vpack.c.b16 %v2788, %v2780
      %v4149 = vpack.c.b16 %v2789, %v2781
      %v4150 = vpack.c.b16 %v2790, %v2782
      %v4151 = vpack.c.b16 %v2791, %v2783
      %v4152 = vpack.c.b16 %v2792, %v2784
      %v4153 = vpack.c.b16 %v2801, %v2793
      %v4154 = vpack.c.b16 %v2802, %v2794
      %v4155 = vpack.c.b16 %v2803, %v2795
      %v4156 = vpack.c.b16 %v2804, %v2796
      %v4157 = vpack.c.b16 %v2805, %v2797
      %v4158 = vpack.c.b16 %v2806, %v2798
      %v4159 = vpack.c.b16 %v2807, %v2799
      %v4160 = vpack.c.b16 %v2808, %v2800
      %v4161 = vpack.c.b16 %v2817, %v2809
      %v4162 = vpack.c.b16 %v2818, %v2810
      %v4163 = vpack.c.b16 %v2819, %v2811
      %v4164 = vpack.c.b16 %v2820, %v2812
      %v4165 = vpack.c.b16 %v2821, %v2813
      %v4166 = vpack.c.b16 %v2822, %v2814
      %v4167 = vpack.c.b16 %v2823, %v2815
      %v4168 = vpack.c.b16 %v2824, %v2816
      %v4169 = vpack.c.b16 %v2833, %v2825
      %v4170 = vpack.c.b16 %v2834, %v2826
      %v4171 = vpack.c.b16 %v2835, %v2827
      %v4172 = vpack.c.b16 %v2836, %v2828
      %v4173 = vpack.c.b16 %v2837, %v2829
      %v4174 = vpack.c.b16 %v2838, %v2830
      %v4175 = vpack.c.b16 %v2839, %v2831
      %v4176 = vpack.c.b16 %v2840, %v2832
      %v4177 = vpack.c.b16 %v2849, %v2841
      %v4178 = vpack.c.b16 %v2850, %v2842
      %v4179 = vpack.c.b16 %v2851, %v2843
      %v4180 = vpack.c.b16 %v2852, %v2844
      %v4181 = vpack.c.b16 %v2853, %v2845
      %v4182 = vpack.c.b16 %v2854, %v2846
      %v4183 = vpack.c.b16 %v2855, %v2847
      %v4184 = vpack.c.b16 %v2856, %v2848
      %v4185 = vpack.c.b16 %v2865, %v2857
      %v4186 = vpack.c.b16 %v2866, %v2858
      %v4187 = vpack.c.b16 %v2867, %v2859
      %v4188 = vpack.c.b16 %v2868, %v2860
      %v4189 = vpack.c.b16 %v2869, %v2861
      %v4190 = vpack.c.b16 %v2870, %v2862
      %v4191 = vpack.c.b16 %v2871, %v2863
      %v4192 = vpack.c.b16 %v2872, %v2864
      %v4193 = vpack.c.b16 %v2881, %v2873
      %v4194 = vpack.c.b16 %v2882, %v2874
      %v4195 = vpack.c.b16 %v2883, %v2875
      %v4196 = vpack.c.b16 %v2884, %v2876
      %v4197 = vpack.c.b16 %v2885, %v2877
      %v4198 = vpack.c.b16 %v2886, %v2878
      %v4199 = vpack.c.b16 %v2887, %v2879
      %v4200 = vpack.c.b16 %v2888, %v2880
      %v4201 = vpack.c.b16 %v2897, %v2889
      %v4202 = vpack.c.b16 %v2898, %v2890
      %v4203 = vpack.c.b16 %v2899, %v2891
      %v4204 = vpack.c.b16 %v2900, %v2892
      %v4205 = vpack.c.b16 %v2901, %v2893
      %v4206 = vpack.c.b16 %v2902, %v2894
      %v4207 = vpack.c.b16 %v2903, %v2895
      %v4208 = vpack.c.b16 %v2904, %v2896
      %v4209 = vpack.c.b16 %v2913, %v2905
      %v4210 = vpack.c.b16 %v2914, %v2906
      %v4211 = vpack.c.b16 %v2915, %v2907
      %v4212 = vpack.c.b16 %v2916, %v2908
      %v4213 = vpack.c.b16 %v2917, %v2909
      %v4214 = vpack.c.b16 %v2918, %v2910
      %v4215 = vpack.c.b16 %v2919, %v2911
      %v4216 = vpack.c.b16 %v2920, %v2912
      %v4217 = vpack.c.b16 %v2929, %v2921
      %v4218 = vpack.c.b16 %v2930, %v2922
      %v4219 = vpack.c.b16 %v2931, %v2923
      %v4220 = vpack.c.b16 %v2932, %v2924
      %v4221 = vpack.c.b16 %v2933, %v2925
      %v4222 = vpack.c.b16 %v2934, %v2926
      %v4223 = vpack.c.b16 %v2935, %v2927
      %v4224 = vpack.c.b16 %v2936, %v2928
      %v4225 = vpack.c.b16 %v2945, %v2937
      %v4226 = vpack.c.b16 %v2946, %v2938
      %v4227 = vpack.c.b16 %v2947, %v2939
      %v4228 = vpack.c.b16 %v2948, %v2940
      %v4229 = vpack.c.b16 %v2949, %v2941
      %v4230 = vpack.c.b16 %v2950, %v2942
      %v4231 = vpack.c.b16 %v2951, %v2943
      %v4232 = vpack.c.b16 %v2952, %v2944
      %v4233 = vpack.c.b16 %v2961, %v2953
      %v4234 = vpack.c.b16 %v2962, %v2954
      %v4235 = vpack.c.b16 %v2963, %v2955
      %v4236 = vpack.c.b16 %v2964, %v2956
      %v4237 = vpack.c.b16 %v2965, %v2957
      %v4238 = vpack.c.b16 %v2966, %v2958
      %v4239 = vpack.c.b16 %v2967, %v2959
      %v4240 = vpack.c.b16 %v2968, %v2960
      %v4241 = vpack.c.b16 %v2977, %v2969
      %v4242 = vpack.c.b16 %v2978, %v2970
      %v4243 = vpack.c.b16 %v2979, %v2971
      %v4244 = vpack.c.b16 %v2980, %v2972
      %v4245 = vpack.c.b16 %v2981, %v2973
      %v4246 = vpack.c.b16 %v2982, %v2974
      %v4247 = vpack.c.b16 %v2983, %v2975
      %v4248 = vpack.c.b16 %v2984, %v2976
      %v4249 = vpack.c.b16 %v2993, %v2985
      %v4250 = vpack.c.b16 %v2994, %v2986
      %v4251 = vpack.c.b16 %v2995, %v2987
      %v4252 = vpack.c.b16 %v2996, %v2988
      %v4253 = vpack.c.b16 %v2997, %v2989
      %v4254 = vpack.c.b16 %v2998, %v2990
      %v4255 = vpack.c.b16 %v2999, %v2991
      %v4256 = vpack.c.b16 %v3000, %v2992
      %v4257 = vpack.c.b16 %v3009, %v3001
      %v4258 = vpack.c.b16 %v3010, %v3002
      %v4259 = vpack.c.b16 %v3011, %v3003
      %v4260 = vpack.c.b16 %v3012, %v3004
      %v4261 = vpack.c.b16 %v3013, %v3005
      %v4262 = vpack.c.b16 %v3014, %v3006
      %v4263 = vpack.c.b16 %v3015, %v3007
      %v4264 = vpack.c.b16 %v3016, %v3008
      %v4265 = vpack.c.b16 %v3025, %v3017
      %v4266 = vpack.c.b16 %v3026, %v3018
      %v4267 = vpack.c.b16 %v3027, %v3019
      %v4268 = vpack.c.b16 %v3028, %v3020
      %v4269 = vpack.c.b16 %v3029, %v3021
      %v4270 = vpack.c.b16 %v3030, %v3022
      %v4271 = vpack.c.b16 %v3031, %v3023
      %v4272 = vpack.c.b16 %v3032, %v3024
      %v4273 = vpack.c.b16 %v3041, %v3033
      %v4274 = vpack.c.b16 %v3042, %v3034
      %v4275 = vpack.c.b16 %v3043, %v3035
      %v4276 = vpack.c.b16 %v3044, %v3036
      %v4277 = vpack.c.b16 %v3045, %v3037
      %v4278 = vpack.c.b16 %v3046, %v3038
      %v4279 = vpack.c.b16 %v3047, %v3039
      %v4280 = vpack.c.b16 %v3048, %v3040
      %v4281 = vpack.c.b16 %v3057, %v3049
      %v4282 = vpack.c.b16 %v3058, %v3050
      %v4283 = vpack.c.b16 %v3059, %v3051
      %v4284 = vpack.c.b16 %v3060, %v3052
      %v4285 = vpack.c.b16 %v3061, %v3053
      %v4286 = vpack.c.b16 %v3062, %v3054
      %v4287 = vpack.c.b16 %v3063, %v3055
      %v4288 = vpack.c.b16 %v3064, %v3056
      %v4289 = vpack.c.b16 %v3073, %v3065
      %v4290 = vpack.c.b16 %v3074, %v3066
      %v4291 = vpack.c.b16 %v3075, %v3067
      %v4292 = vpack.c.b16 %v3076, %v3068
      %v4293 = vpack.c.b16 %v3077, %v3069
      %v4294 = vpack.c.b16 %v3078, %v3070
      %v4295 = vpack.c.b16 %v3079, %v3071
      %v4296 = vpack.c.b16 %v3080, %v3072
      %v4297 = vpack.c.b16 %v3089, %v3081
      %v4298 = vpack.c.b16 %v3090, %v3082
      %v4299 = vpack.c.b16 %v3091, %v3083
      %v4300 = vpack.c.b16 %v3092, %v3084
      %v4301 = vpack.c.b16 %v3093, %v3085
      %v4302 = vpack.c.b16 %v3094, %v3086
      %v4303 = vpack.c.b16 %v3095, %v3087
      %v4304 = vpack.c.b16 %v3096, %v3088
      %v4305 = vpack.c.b16 %v3105, %v3097
      %v4306 = vpack.c.b16 %v3106, %v3098
      %v4307 = vpack.c.b16 %v3107, %v3099
      %v4308 = vpack.c.b16 %v3108, %v3100
      %v4309 = vpack.c.b16 %v3109, %v3101
      %v4310 = vpack.c.b16 %v3110, %v3102
      %v4311 = vpack.c.b16 %v3111, %v3103
      %v4312 = vpack.c.b16 %v3112, %v3104
      %v4313 = vpack.c.b16 %v3121, %v3113
      %v4314 = vpack.c.b16 %v3122, %v3114
      %v4315 = vpack.c.b16 %v3123, %v3115
      %v4316 = vpack.c.b16 %v3124, %v3116
      %v4317 = vpack.c.b16 %v3125, %v3117
      %v4318 = vpack.c.b16 %v3126, %v3118
      %v4319 = vpack.c.b16 %v3127, %v3119
      %v4320 = vpack.c.b16 %v3128, %v3120
      %v4321 = vpack.c.b16 %v3137, %v3129
      %v4322 = vpack.c.b16 %v3138, %v3130
      %v4323 = vpack.c.b16 %v3139, %v3131
      %v4324 = vpack.c.b16 %v3140, %v3132
      %v4325 = vpack.c.b16 %v3141, %v3133
      %v4326 = vpack.c.b16 %v3142, %v3134
      %v4327 = vpack.c.b16 %v3143, %v3135
      %v4328 = vpack.c.b16 %v3144, %v3136
      %v4329 = vpack.c.b16 %v3153, %v3145
      %v4330 = vpack.c.b16 %v3154, %v3146
      %v4331 = vpack.c.b16 %v3155, %v3147
      %v4332 = vpack.c.b16 %v3156, %v3148
      %v4333 = vpack.c.b16 %v3157, %v3149
      %v4334 = vpack.c.b16 %v3158, %v3150
      %v4335 = vpack.c.b16 %v3159, %v3151
      %v4336 = vpack.c.b16 %v3160, %v3152
      %v4337 = vpack.c.b16 %v3169, %v3161
      %v4338 = vpack.c.b16 %v3170, %v3162
      %v4339 = vpack.c.b16 %v3171, %v3163
      %v4340 = vpack.c.b16 %v3172, %v3164
      %v4341 = vpack.c.b16 %v3173, %v3165
      %v4342 = vpack.c.b16 %v3174, %v3166
      %v4343 = vpack.c.b16 %v3175, %v3167
      %v4344 = vpack.c.b16 %v3176, %v3168
      %v4345 = vpack.c.b16 %v3185, %v3177
      %v4346 = vpack.c.b16 %v3186, %v3178
      %v4347 = vpack.c.b16 %v3187, %v3179
      %v4348 = vpack.c.b16 %v3188, %v3180
      %v4349 = vpack.c.b16 %v3189, %v3181
      %v4350 = vpack.c.b16 %v3190, %v3182
      %v4351 = vpack.c.b16 %v3191, %v3183
      %v4352 = vpack.c.b16 %v3192, %v3184
      %v4353 = vpack.c.b16 %v3201, %v3193
      %v4354 = vpack.c.b16 %v3202, %v3194
      %v4355 = vpack.c.b16 %v3203, %v3195
      %v4356 = vpack.c.b16 %v3204, %v3196
      %v4357 = vpack.c.b16 %v3205, %v3197
      %v4358 = vpack.c.b16 %v3206, %v3198
      %v4359 = vpack.c.b16 %v3207, %v3199
      %v4360 = vpack.c.b16 %v3208, %v3200
      %v4361 = vpack.c.b16 %v3217, %v3209
      %v4362 = vpack.c.b16 %v3218, %v3210
      %v4363 = vpack.c.b16 %v3219, %v3211
      %v4364 = vpack.c.b16 %v3220, %v3212
      %v4365 = vpack.c.b16 %v3221, %v3213
      %v4366 = vpack.c.b16 %v3222, %v3214
      %v4367 = vpack.c.b16 %v3223, %v3215
      %v4368 = vpack.c.b16 %v3224, %v3216
      %v4369 = vpack.c.b16 %v3233, %v3225
      %v4370 = vpack.c.b16 %v3234, %v3226
      %v4371 = vpack.c.b16 %v3235, %v3227
      %v4372 = vpack.c.b16 %v3236, %v3228
      %v4373 = vpack.c.b16 %v3237, %v3229
      %v4374 = vpack.c.b16 %v3238, %v3230
      %v4375 = vpack.c.b16 %v3239, %v3231
      %v4376 = vpack.c.b16 %v3240, %v3232
      %v4377 = vpack.c.b16 %v3249, %v3241
      %v4378 = vpack.c.b16 %v3250, %v3242
      %v4379 = vpack.c.b16 %v3251, %v3243
      %v4380 = vpack.c.b16 %v3252, %v3244
      %v4381 = vpack.c.b16 %v3253, %v3245
      %v4382 = vpack.c.b16 %v3254, %v3246
      %v4383 = vpack.c.b16 %v3255, %v3247
      %v4384 = vpack.c.b16 %v3256, %v3248
      %v4385 = vpack.c.b16 %v3265, %v3257
      %v4386 = vpack.c.b16 %v3266, %v3258
      %v4387 = vpack.c.b16 %v3267, %v3259
      %v4388 = vpack.c.b16 %v3268, %v3260
      %v4389 = vpack.c.b16 %v3269, %v3261
      %v4390 = vpack.c.b16 %v3270, %v3262
      %v4391 = vpack.c.b16 %v3271, %v3263
      %v4392 = vpack.c.b16 %v3272, %v3264
      %v4393 = vpack.c.b16 %v3281, %v3273
      %v4394 = vpack.c.b16 %v3282, %v3274
      %v4395 = vpack.c.b16 %v3283, %v3275
      %v4396 = vpack.c.b16 %v3284, %v3276
      %v4397 = vpack.c.b16 %v3285, %v3277
      %v4398 = vpack.c.b16 %v3286, %v3278
      %v4399 = vpack.c.b16 %v3287, %v3279
      %v4400 = vpack.c.b16 %v3288, %v3280
      %v4401 = vpack.c.b16 %v3297, %v3289
      %v4402 = vpack.c.b16 %v3298, %v3290
      %v4403 = vpack.c.b16 %v3299, %v3291
      %v4404 = vpack.c.b16 %v3300, %v3292
      %v4405 = vpack.c.b16 %v3301, %v3293
      %v4406 = vpack.c.b16 %v3302, %v3294
      %v4407 = vpack.c.b16 %v3303, %v3295
      %v4408 = vpack.c.b16 %v3304, %v3296
      %v4409 = vpack.c.b16 %v3313, %v3305
      %v4410 = vpack.c.b16 %v3314, %v3306
      %v4411 = vpack.c.b16 %v3315, %v3307
      %v4412 = vpack.c.b16 %v3316, %v3308
      %v4413 = vpack.c.b16 %v3317, %v3309
      %v4414 = vpack.c.b16 %v3318, %v3310
      %v4415 = vpack.c.b16 %v3319, %v3311
      %v4416 = vpack.c.b16 %v3320, %v3312
      %v4417 = vpack.c.b16 %v3329, %v3321
      %v4418 = vpack.c.b16 %v3330, %v3322
      %v4419 = vpack.c.b16 %v3331, %v3323
      %v4420 = vpack.c.b16 %v3332, %v3324
      %v4421 = vpack.c.b16 %v3333, %v3325
      %v4422 = vpack.c.b16 %v3334, %v3326
      %v4423 = vpack.c.b16 %v3335, %v3327
      %v4424 = vpack.c.b16 %v3336, %v3328
      %v4425 = vpack.c.b16 %v3345, %v3337
      %v4426 = vpack.c.b16 %v3346, %v3338
      %v4427 = vpack.c.b16 %v3347, %v3339
      %v4428 = vpack.c.b16 %v3348, %v3340
      %v4429 = vpack.c.b16 %v3349, %v3341
      %v4430 = vpack.c.b16 %v3350, %v3342
      %v4431 = vpack.c.b16 %v3351, %v3343
      %v4432 = vpack.c.b16 %v3352, %v3344
      %v4433 = vpack.c.b16 %v3361, %v3353
      %v4434 = vpack.c.b16 %v3362, %v3354
      %v4435 = vpack.c.b16 %v3363, %v3355
      %v4436 = vpack.c.b16 %v3364, %v3356
      %v4437 = vpack.c.b16 %v3365, %v3357
      %v4438 = vpack.c.b16 %v3366, %v3358
      %v4439 = vpack.c.b16 %v3367, %v3359
      %v4440 = vpack.c.b16 %v3368, %v3360
      %v4441 = vpack.c.b16 %v3377, %v3369
      %v4442 = vpack.c.b16 %v3378, %v3370
      %v4443 = vpack.c.b16 %v3379, %v3371
      %v4444 = vpack.c.b16 %v3380, %v3372
      %v4445 = vpack.c.b16 %v3381, %v3373
      %v4446 = vpack.c.b16 %v3382, %v3374
      %v4447 = vpack.c.b16 %v3383, %v3375
      %v4448 = vpack.c.b16 %v3384, %v3376
      %v4449 = vpack.c.b16 %v3393, %v3385
      %v4450 = vpack.c.b16 %v3394, %v3386
      %v4451 = vpack.c.b16 %v3395, %v3387
      %v4452 = vpack.c.b16 %v3396, %v3388
      %v4453 = vpack.c.b16 %v3397, %v3389
      %v4454 = vpack.c.b16 %v3398, %v3390
      %v4455 = vpack.c.b16 %v3399, %v3391
      %v4456 = vpack.c.b16 %v3400, %v3392
      %v4457 = vpack.c.b16 %v3409, %v3401
      %v4458 = vpack.c.b16 %v3410, %v3402
      %v4459 = vpack.c.b16 %v3411, %v3403
      %v4460 = vpack.c.b16 %v3412, %v3404
      %v4461 = vpack.c.b16 %v3413, %v3405
      %v4462 = vpack.c.b16 %v3414, %v3406
      %v4463 = vpack.c.b16 %v3415, %v3407
      %v4464 = vpack.c.b16 %v3416, %v3408
      %v4465 = vpack.c.b16 %v3425, %v3417
      %v4466 = vpack.c.b16 %v3426, %v3418
      %v4467 = vpack.c.b16 %v3427, %v3419
      %v4468 = vpack.c.b16 %v3428, %v3420
      %v4469 = vpack.c.b16 %v3429, %v3421
      %v4470 = vpack.c.b16 %v3430, %v3422
      %v4471 = vpack.c.b16 %v3431, %v3423
      %v4472 = vpack.c.b16 %v3432, %v3424
      %v4473 = vpack.c.b16 %v3441, %v3433
      %v4474 = vpack.c.b16 %v3442, %v3434
      %v4475 = vpack.c.b16 %v3443, %v3435
      %v4476 = vpack.c.b16 %v3444, %v3436
      %v4477 = vpack.c.b16 %v3445, %v3437
      %v4478 = vpack.c.b16 %v3446, %v3438
      %v4479 = vpack.c.b16 %v3447, %v3439
      %v4480 = vpack.c.b16 %v3448, %v3440
      %v4481 = vpack.c.b16 %v3457, %v3449
      %v4482 = vpack.c.b16 %v3458, %v3450
      %v4483 = vpack.c.b16 %v3459, %v3451
      %v4484 = vpack.c.b16 %v3460, %v3452
      %v4485 = vpack.c.b16 %v3461, %v3453
      %v4486 = vpack.c.b16 %v3462, %v3454
      %v4487 = vpack.c.b16 %v3463, %v3455
      %v4488 = vpack.c.b16 %v3464, %v3456
      %v4489 = vpack.c.b16 %v3473, %v3465
      %v4490 = vpack.c.b16 %v3474, %v3466
      %v4491 = vpack.c.b16 %v3475, %v3467
      %v4492 = vpack.c.b16 %v3476, %v3468
      %v4493 = vpack.c.b16 %v3477, %v3469
      %v4494 = vpack.c.b16 %v3478, %v3470
      %v4495 = vpack.c.b16 %v3479, %v3471
      %v4496 = vpack.c.b16 %v3480, %v3472
      %v4497 = vpack.c.b16 %v3489, %v3481
      %v4498 = vpack.c.b16 %v3490, %v3482
      %v4499 = vpack.c.b16 %v3491, %v3483
      %v4500 = vpack.c.b16 %v3492, %v3484
      %v4501 = vpack.c.b16 %v3493, %v3485
      %v4502 = vpack.c.b16 %v3494, %v3486
      %v4503 = vpack.c.b16 %v3495, %v3487
      %v4504 = vpack.c.b16 %v3496, %v3488
      %v4505 = vpack.c.b16 %v3505, %v3497
      %v4506 = vpack.c.b16 %v3506, %v3498
      %v4507 = vpack.c.b16 %v3507, %v3499
      %v4508 = vpack.c.b16 %v3508, %v3500
      %v4509 = vpack.c.b16 %v3509, %v3501
      %v4510 = vpack.c.b16 %v3510, %v3502
      %v4511 = vpack.c.b16 %v3511, %v3503
      %v4512 = vpack.c.b16 %v3512, %v3504
      %v4513 = vpack.c.b16 %v3521, %v3513
      %v4514 = vpack.c.b16 %v3522, %v3514
      %v4515 = vpack.c.b16 %v3523, %v3515
      %v4516 = vpack.c.b16 %v3524, %v3516
      %v4517 = vpack.c.b16 %v3525, %v3517
      %v4518 = vpack.c.b16 %v3526, %v3518
      %v4519 = vpack.c.b16 %v3527, %v3519
      %v4520 = vpack.c.b16 %v3528, %v3520
      %v4521 = vpack.c.b16 %v3537, %v3529
      %v4522 = vpack.c.b16 %v3538, %v3530
      %v4523 = vpack.c.b16 %v3539, %v3531
      %v4524 = vpack.c.b16 %v3540, %v3532
      %v4525 = vpack.c.b16 %v3541, %v3533
      %v4526 = vpack.c.b16 %v3542, %v3534
      %v4527 = vpack.c.b16 %v3543, %v3535
      %v4528 = vpack.c.b16 %v3544, %v3536
      %v4529 = vpack.c.b16 %v3553, %v3545
      %v4530 = vpack.c.b16 %v3554, %v3546
      %v4531 = vpack.c.b16 %v3555, %v3547
      %v4532 = vpack.c.b16 %v3556, %v3548
      %v4533 = vpack.c.b16 %v3557, %v3549
      %v4534 = vpack.c.b16 %v3558, %v3550
      %v4535 = vpack.c.b16 %v3559, %v3551
      %v4536 = vpack.c.b16 %v3560, %v3552
      %v4537 = vpack.c.b16 %v3569, %v3561
      %v4538 = vpack.c.b16 %v3570, %v3562
      %v4539 = vpack.c.b16 %v3571, %v3563
      %v4540 = vpack.c.b16 %v3572, %v3564
      %v4541 = vpack.c.b16 %v3573, %v3565
      %v4542 = vpack.c.b16 %v3574, %v3566
      %v4543 = vpack.c.b16 %v3575, %v3567
      %v4544 = vpack.c.b16 %v3576, %v3568
      %v4545 = vpack.c.b16 %v3585, %v3577
      %v4546 = vpack.c.b16 %v3586, %v3578
      %v4547 = vpack.c.b16 %v3587, %v3579
      %v4548 = vpack.c.b16 %v3588, %v3580
      %v4549 = vpack.c.b16 %v3589, %v3581
      %v4550 = vpack.c.b16 %v3590, %v3582
      %v4551 = vpack.c.b16 %v3591, %v3583
      %v4552 = vpack.c.b16 %v3592, %v3584
      %v4553 = vpack.c.b16 %v3601, %v3593
      %v4554 = vpack.c.b16 %v3602, %v3594
      %v4555 = vpack.c.b16 %v3603, %v3595
      %v4556 = vpack.c.b16 %v3604, %v3596
      %v4557 = vpack.c.b16 %v3605, %v3597
      %v4558 = vpack.c.b16 %v3606, %v3598
      %v4559 = vpack.c.b16 %v3607, %v3599
      %v4560 = vpack.c.b16 %v3608, %v3600
      %v4561 = vpack.c.b16 %v3617, %v3609
      %v4562 = vpack.c.b16 %v3618, %v3610
      %v4563 = vpack.c.b16 %v3619, %v3611
      %v4564 = vpack.c.b16 %v3620, %v3612
      %v4565 = vpack.c.b16 %v3621, %v3613
      %v4566 = vpack.c.b16 %v3622, %v3614
      %v4567 = vpack.c.b16 %v3623, %v3615
      %v4568 = vpack.c.b16 %v3624, %v3616
      %v4569 = vpack.c.b16 %v3633, %v3625
      %v4570 = vpack.c.b16 %v3634, %v3626
      %v4571 = vpack.c.b16 %v3635, %v3627
      %v4572 = vpack.c.b16 %v3636, %v3628
      %v4573 = vpack.c.b16 %v3637, %v3629
      %v4574 = vpack.c.b16 %v3638, %v3630
      %v4575 = vpack.c.b16 %v3639, %v3631
      %v4576 = vpack.c.b16 %v3640, %v3632
      %v4577 = vpack.c.b16 %v3649, %v3641
      %v4578 = vpack.c.b16 %v3650, %v3642
      %v4579 = vpack.c.b16 %v3651, %v3643
      %v4580 = vpack.c.b16 %v3652, %v3644
      %v4581 = vpack.c.b16 %v3653, %v3645
      %v4582 = vpack.c.b16 %v3654, %v3646
      %v4583 = vpack.c.b16 %v3655, %v3647
      %v4584 = vpack.c.b16 %v3656, %v3648
      %v4585 = vpack.c.b16 %v3665, %v3657
      %v4586 = vpack.c.b16 %v3666, %v3658
      %v4587 = vpack.c.b16 %v3667, %v3659
      %v4588 = vpack.c.b16 %v3668, %v3660
      %v4589 = vpack.c.b16 %v3669, %v3661
      %v4590 = vpack.c.b16 %v3670, %v3662
      %v4591 = vpack.c.b16 %v3671, %v3663
      %v4592 = vpack.c.b16 %v3672, %v3664
      %v4593 = vpack.c.b16 %v3681, %v3673
      %v4594 = vpack.c.b16 %v3682, %v3674
      %v4595 = vpack.c.b16 %v3683, %v3675
      %v4596 = vpack.c.b16 %v3684, %v3676
      %v4597 = vpack.c.b16 %v3685, %v3677
      %v4598 = vpack.c.b16 %v3686, %v3678
      %v4599 = vpack.c.b16 %v3687, %v3679
      %v4600 = vpack.c.b16 %v3688, %v3680
      %v4601 = vpack.c.b16 %v3697, %v3689
      %v4602 = vpack.c.b16 %v3698, %v3690
      %v4603 = vpack.c.b16 %v3699, %v3691
      %v4604 = vpack.c.b16 %v3700, %v3692
      %v4605 = vpack.c.b16 %v3701, %v3693
      %v4606 = vpack.c.b16 %v3702, %v3694
      %v4607 = vpack.c.b16 %v3703, %v3695
      %v4608 = vpack.c.b16 %v3704, %v3696
      %v4609 = vpack.c.b16 %v3713, %v3705
      %v4610 = vpack.c.b16 %v3714, %v3706
      %v4611 = vpack.c.b16 %v3715, %v3707
      %v4612 = vpack.c.b16 %v3716, %v3708
      %v4613 = vpack.c.b16 %v3717, %v3709
      %v4614 = vpack.c.b16 %v3718, %v3710
      %v4615 = vpack.c.b16 %v3719, %v3711
      %v4616 = vpack.c.b16 %v3720, %v3712
      %v4617 = vpack.c.b16 %v3729, %v3721
      %v4618 = vpack.c.b16 %v3730, %v3722
      %v4619 = vpack.c.b16 %v3731, %v3723
      %v4620 = vpack.c.b16 %v3732, %v3724
      %v4621 = vpack.c.b16 %v3733, %v3725
      %v4622 = vpack.c.b16 %v3734, %v3726
      %v4623 = vpack.c.b16 %v3735, %v3727
      %v4624 = vpack.c.b16 %v3736, %v3728
      %v4625 = vpack.c.b16 %v3745, %v3737
      %v4626 = vpack.c.b16 %v3746, %v3738
      %v4627 = vpack.c.b16 %v3747, %v3739
      %v4628 = vpack.c.b16 %v3748, %v3740
      %v4629 = vpack.c.b16 %v3749, %v3741
      %v4630 = vpack.c.b16 %v3750, %v3742
      %v4631 = vpack.c.b16 %v3751, %v3743
      %v4632 = vpack.c.b16 %v3752, %v3744
      %v4633 = vpack.c.b16 %v3761, %v3753
      %v4634 = vpack.c.b16 %v3762, %v3754
      %v4635 = vpack.c.b16 %v3763, %v3755
      %v4636 = vpack.c.b16 %v3764, %v3756
      %v4637 = vpack.c.b16 %v3765, %v3757
      %v4638 = vpack.c.b16 %v3766, %v3758
      %v4639 = vpack.c.b16 %v3767, %v3759
      %v4640 = vpack.c.b16 %v3768, %v3760
      %v4641 = vpack.c.b16 %v3777, %v3769
      %v4642 = vpack.c.b16 %v3778, %v3770
      %v4643 = vpack.c.b16 %v3779, %v3771
      %v4644 = vpack.c.b16 %v3780, %v3772
      %v4645 = vpack.c.b16 %v3781, %v3773
      %v4646 = vpack.c.b16 %v3782, %v3774
      %v4647 = vpack.c.b16 %v3783, %v3775
      %v4648 = vpack.c.b16 %v3784, %v3776
      %v4649 = vpack.c.b16 %v3793, %v3785
      %v4650 = vpack.c.b16 %v3794, %v3786
      %v4651 = vpack.c.b16 %v3795, %v3787
      %v4652 = vpack.c.b16 %v3796, %v3788
      %v4653 = vpack.c.b16 %v3797, %v3789
      %v4654 = vpack.c.b16 %v3798, %v3790
      %v4655 = vpack.c.b16 %v3799, %v3791
      %v4656 = vpack.c.b16 %v3800, %v3792
      %v4657 = vpack.c.b16 %v3809, %v3801
      %v4658 = vpack.c.b16 %v3810, %v3802
      %v4659 = vpack.c.b16 %v3811, %v3803
      %v4660 = vpack.c.b16 %v3812, %v3804
      %v4661 = vpack.c.b16 %v3813, %v3805
      %v4662 = vpack.c.b16 %v3814, %v3806
      %v4663 = vpack.c.b16 %v3815, %v3807
      %v4664 = vpack.c.b16 %v3816, %v3808
      %v4665 = vpack.c.b16 %v3825, %v3817
      %v4666 = vpack.c.b16 %v3826, %v3818
      %v4667 = vpack.c.b16 %v3827, %v3819
      %v4668 = vpack.c.b16 %v3828, %v3820
      %v4669 = vpack.c.b16 %v3829, %v3821
      %v4670 = vpack.c.b16 %v3830, %v3822
      %v4671 = vpack.c.b16 %v3831, %v3823
      %v4672 = vpack.c.b16 %v3832, %v3824
      %v4673 = vpack.c.b16 %v3841, %v3833
      %v4674 = vpack.c.b16 %v3842, %v3834
      %v4675 = vpack.c.b16 %v3843, %v3835
      %v4676 = vpack.c.b16 %v3844, %v3836
      %v4677 = vpack.c.b16 %v3845, %v3837
      %v4678 = vpack.c.b16 %v3846, %v3838
      %v4679 = vpack.c.b16 %v3847, %v3839
      %v4680 = vpack.c.b16 %v3848, %v3840
      %5513 = vmatprep.subr.bf16.mxu0 %v3850
      %5514 = vmatpush1.bf16.msra.mxu0 %v3849
      %5515 = vmatprep.subr.bf16.mxu0 %v3858
      %5516 = vmatpush1.bf16.msra.mxu0 %v3857
      %5517 = vmatprep.subr.bf16.mxu0 %v3866
      %5518 = vmatpush1.bf16.msra.mxu0 %v3865
      %5519 = vmatprep.subr.bf16.mxu0 %v3874
      %5520 = vmatpush1.bf16.msra.mxu0 %v3873
      %5521 = vmatprep.subr.bf16.mxu0 %v3882
      %5522 = vmatpush1.bf16.msra.mxu0 %v3881
      %5523 = vmatprep.subr.bf16.mxu0 %v3890
      %5524 = vmatpush1.bf16.msra.mxu0 %v3889
      %5525 = vmatprep.subr.bf16.mxu0 %v3898
      %5526 = vmatpush1.bf16.msra.mxu0 %v3897
      %5527 = vmatprep.subr.bf16.mxu0 %v3906
      %5528 = vmatpush1.bf16.msra.mxu0 %v3905
      %5529 = vmatprep.subr.bf16.mxu0 %v3914
      %5530 = vmatpush1.bf16.msra.mxu0 %v3913
      %5531 = vmatprep.subr.bf16.mxu0 %v3922
      %5532 = vmatpush1.bf16.msra.mxu0 %v3921
      %5533 = vmatprep.subr.bf16.mxu0 %v3930
      %5534 = vmatpush1.bf16.msra.mxu0 %v3929
      %5535 = vmatprep.subr.bf16.mxu0 %v3938
      %5536 = vmatpush1.bf16.msra.mxu0 %v3937
      %5537 = vmatprep.subr.bf16.mxu0 %v3946
      %5538 = vmatpush1.bf16.msra.mxu0 %v3945
      %5539 = vmatprep.subr.bf16.mxu0 %v3954
      %5540 = vmatpush1.bf16.msra.mxu0 %v3953
      %5541 = vmatprep.subr.bf16.mxu0 %v3962
      %5542 = vmatpush1.bf16.msra.mxu0 %v3961
      %5543 = vmatprep.subr.bf16.mxu0 %v3970
      %5544 = vmatpush1.bf16.msra.mxu0 %v3969
      %5545 = vmatprep.mubr.bf16.mxu0 %v1328
      %5546 = vmatmul.mubr.bf16.gmra.mrb[0].mxu0 %v1327
      %v5547 = vpop.f32.mrb[0].mxu0
      %v5548 = vadd.f32 0.0, %v5547
      %v5549 = vpop.f32.mrb[0].mxu0
      %v5550 = vadd.f32 0.0, %v5549
      %v5551 = vpop.f32.mrb[0].mxu0
      %v5552 = vpop.f32.mrb[0].mxu0
      %5553 = vdwg.mxu0
      %5554 = vmatprep.subr.bf16.mxu0 %v3978
      %5555 = vmatpush1.bf16.msra.mxu0 %v3977
      %5556 = vmatprep.subr.bf16.mxu0 %v3986
      %5557 = vmatpush1.bf16.msra.mxu0 %v3985
      %5558 = vmatprep.subr.bf16.mxu0 %v3994
      %5559 = vmatpush1.bf16.msra.mxu0 %v3993
      %5560 = vmatprep.subr.bf16.mxu0 %v4002
      %5561 = vmatpush1.bf16.msra.mxu0 %v4001
      %5562 = vmatprep.subr.bf16.mxu0 %v4010
      %5563 = vmatpush1.bf16.msra.mxu0 %v4009
      %5564 = vmatprep.subr.bf16.mxu0 %v4018
      %5565 = vmatpush1.bf16.msra.mxu0 %v4017
      %5566 = vmatprep.subr.bf16.mxu0 %v4026
      %5567 = vmatpush1.bf16.msra.mxu0 %v4025
      %5568 = vmatprep.subr.bf16.mxu0 %v4034
      %5569 = vmatpush1.bf16.msra.mxu0 %v4033
      %5570 = vmatprep.subr.bf16.mxu0 %v4042
      %5571 = vmatpush1.bf16.msra.mxu0 %v4041
      %5572 = vmatprep.subr.bf16.mxu0 %v4050
      %5573 = vmatpush1.bf16.msra.mxu0 %v4049
      %5574 = vmatprep.subr.bf16.mxu0 %v4058
      %5575 = vmatpush1.bf16.msra.mxu0 %v4057
      %5576 = vmatprep.subr.bf16.mxu0 %v4066
      %5577 = vmatpush1.bf16.msra.mxu0 %v4065
      %5578 = vmatprep.subr.bf16.mxu0 %v4074
      %5579 = vmatpush1.bf16.msra.mxu0 %v4073
      %5580 = vmatprep.subr.bf16.mxu0 %v4082
      %5581 = vmatpush1.bf16.msra.mxu0 %v4081
      %5582 = vmatprep.subr.bf16.mxu0 %v4090
      %5583 = vmatpush1.bf16.msra.mxu0 %v4089
      %5584 = vmatprep.subr.bf16.mxu0 %v4098
      %5585 = vmatpush1.bf16.msra.mxu0 %v4097
      %5586 = vmatprep.mubr.bf16.mxu0 %v1330
      %5587 = vmatmul.mubr.bf16.gmra.mrb[0].mxu0 %v1329
      %v5588 = vpop.f32.mrb[0].mxu0
      %v5589 = vadd.f32 %v5548, %v5588
      %v5590 = vpop.f32.mrb[0].mxu0
      %v5591 = vadd.f32 %v5550, %v5590
      %v5592 = vpop.f32.mrb[0].mxu0
      %v5593 = vpop.f32.mrb[0].mxu0
      %5594 = vdwg.mxu0
      %5595 = vmatprep.subr.bf16.mxu0 %v4106
      %5596 = vmatpush1.bf16.msra.mxu0 %v4105
      %5597 = vmatprep.subr.bf16.mxu0 %v4114
      %5598 = vmatpush1.bf16.msra.mxu0 %v4113
      %5599 = vmatprep.subr.bf16.mxu0 %v4122
      %5600 = vmatpush1.bf16.msra.mxu0 %v4121
      %5601 = vmatprep.subr.bf16.mxu0 %v4130
      %5602 = vmatpush1.bf16.msra.mxu0 %v4129
      %5603 = vmatprep.subr.bf16.mxu0 %v4138
      %5604 = vmatpush1.bf16.msra.mxu0 %v4137
      %5605 = vmatprep.subr.bf16.mxu0 %v4146
      %5606 = vmatpush1.bf16.msra.mxu0 %v4145
      %5607 = vmatprep.subr.bf16.mxu0 %v4154
      %5608 = vmatpush1.bf16.msra.mxu0 %v4153
      %5609 = vmatprep.subr.bf16.mxu0 %v4162
      %5610 = vmatpush1.bf16.msra.mxu0 %v4161
      %5611 = vmatprep.subr.bf16.mxu0 %v4170
      %5612 = vmatpush1.bf16.msra.mxu0 %v4169
      %5613 = vmatprep.subr.bf16.mxu0 %v4178
      %5614 = vmatpush1.bf16.msra.mxu0 %v4177
      %5615 = vmatprep.subr.bf16.mxu0 %v4186
      %5616 = vmatpush1.bf16.msra.mxu0 %v4185
      %5617 = vmatprep.subr.bf16.mxu0 %v4194
      %5618 = vmatpush1.bf16.msra.mxu0 %v4193
      %5619 = vmatprep.subr.bf16.mxu0 %v4202
      %5620 = vmatpush1.bf16.msra.mxu0 %v4201
      %5621 = vmatprep.subr.bf16.mxu0 %v4210
      %5622 = vmatpush1.bf16.msra.mxu0 %v4209
      %5623 = vmatprep.subr.bf16.mxu0 %v4218
      %5624 = vmatpush1.bf16.msra.mxu0 %v4217
      %5625 = vmatprep.subr.bf16.mxu0 %v4226
      %5626 = vmatpush1.bf16.msra.mxu0 %v4225
      %5627 = vmatprep.mubr.bf16.mxu0 %v1332
      %5628 = vmatmul.mubr.bf16.gmra.mrb[0].mxu0 %v1331
      %v5629 = vpop.f32.mrb[0].mxu0
      %v5630 = vadd.f32 %v5589, %v5629
      %v5631 = vpop.f32.mrb[0].mxu0
      %v5632 = vadd.f32 %v5591, %v5631
      %v5633 = vpop.f32.mrb[0].mxu0
      %v5634 = vpop.f32.mrb[0].mxu0
      %5635 = vdwg.mxu0
      %5636 = vmatprep.subr.bf16.mxu0 %v4234
      %5637 = vmatpush1.bf16.msra.mxu0 %v4233
      %5638 = vmatprep.subr.bf16.mxu0 %v4242
      %5639 = vmatpush1.bf16.msra.mxu0 %v4241
      %5640 = vmatprep.subr.bf16.mxu0 %v4250
      %5641 = vmatpush1.bf16.msra.mxu0 %v4249
      %5642 = vmatprep.subr.bf16.mxu0 %v4258
      %5643 = vmatpush1.bf16.msra.mxu0 %v4257
      %5644 = vmatprep.subr.bf16.mxu0 %v4266
      %5645 = vmatpush1.bf16.msra.mxu0 %v4265
      %5646 = vmatprep.subr.bf16.mxu0 %v4274
      %5647 = vmatpush1.bf16.msra.mxu0 %v4273
      %5648 = vmatprep.subr.bf16.mxu0 %v4282
      %5649 = vmatpush1.bf16.msra.mxu0 %v4281
      %5650 = vmatprep.subr.bf16.mxu0 %v4290
      %5651 = vmatpush1.bf16.msra.mxu0 %v4289
      %5652 = vmatprep.subr.bf16.mxu0 %v4298
      %5653 = vmatpush1.bf16.msra.mxu0 %v4297
      %5654 = vmatprep.subr.bf16.mxu0 %v4306
      %5655 = vmatpush1.bf16.msra.mxu0 %v4305
      %5656 = vmatprep.subr.bf16.mxu0 %v4314
      %5657 = vmatpush1.bf16.msra.mxu0 %v4313
      %5658 = vmatprep.subr.bf16.mxu0 %v4322
      %5659 = vmatpush1.bf16.msra.mxu0 %v4321
      %5660 = vmatprep.subr.bf16.mxu0 %v4330
      %5661 = vmatpush1.bf16.msra.mxu0 %v4329
      %5662 = vmatprep.subr.bf16.mxu0 %v4338
      %5663 = vmatpush1.bf16.msra.mxu0 %v4337
      %5664 = vmatprep.subr.bf16.mxu0 %v4346
      %5665 = vmatpush1.bf16.msra.mxu0 %v4345
      %5666 = vmatprep.subr.bf16.mxu0 %v4354
      %5667 = vmatpush1.bf16.msra.mxu0 %v4353
      %5668 = vmatprep.mubr.bf16.mxu0 %v1334
      %5669 = vmatmul.mubr.bf16.gmra.mrb[0].mxu0 %v1333
      %v5670 = vpop.f32.mrb[0].mxu0
      %v5671 = vadd.f32 %v5630, %v5670
      %v5672 = vpop.f32.mrb[0].mxu0
      %v5673 = vadd.f32 %v5632, %v5672
      %v5674 = vpop.f32.mrb[0].mxu0
      %v5675 = vpop.f32.mrb[0].mxu0
      %5676 = vdwg.mxu0
      %5677 = vmatprep.subr.bf16.mxu0 %v4362
      %5678 = vmatpush1.bf16.msra.mxu0 %v4361
      %5679 = vmatprep.subr.bf16.mxu0 %v4370
      %5680 = vmatpush1.bf16.msra.mxu0 %v4369
      %5681 = vmatprep.subr.bf16.mxu0 %v4378
      %5682 = vmatpush1.bf16.msra.mxu0 %v4377
      %5683 = vmatprep.subr.bf16.mxu0 %v4386
      %5684 = vmatpush1.bf16.msra.mxu0 %v4385
      %5685 = vmatprep.subr.bf16.mxu0 %v4394
      %5686 = vmatpush1.bf16.msra.mxu0 %v4393
      %5687 = vmatprep.subr.bf16.mxu0 %v4402
      %5688 = vmatpush1.bf16.msra.mxu0 %v4401
      %5689 = vmatprep.subr.bf16.mxu0 %v4410
      %5690 = vmatpush1.bf16.msra.mxu0 %v4409
      %5691 = vmatprep.subr.bf16.mxu0 %v4418
      %5692 = vmatpush1.bf16.msra.mxu0 %v4417
      %5693 = vmatprep.subr.bf16.mxu0 %v4426
      %5694 = vmatpush1.bf16.msra.mxu0 %v4425
      %5695 = vmatprep.subr.bf16.mxu0 %v4434
      %5696 = vmatpush1.bf16.msra.mxu0 %v4433
      %5697 = vmatprep.subr.bf16.mxu0 %v4442
      %5698 = vmatpush1.bf16.msra.mxu0 %v4441
      %5699 = vmatprep.subr.bf16.mxu0 %v4450
      %5700 = vmatpush1.bf16.msra.mxu0 %v4449
      %5701 = vmatprep.subr.bf16.mxu0 %v4458
      %5702 = vmatpush1.bf16.msra.mxu0 %v4457
      %5703 = vmatprep.subr.bf16.mxu0 %v4466
      %5704 = vmatpush1.bf16.msra.mxu0 %v4465
      %5705 = vmatprep.subr.bf16.mxu0 %v4474
      %5706 = vmatpush1.bf16.msra.mxu0 %v4473
      %5707 = vmatprep.subr.bf16.mxu0 %v4482
      %5708 = vmatpush1.bf16.msra.mxu0 %v4481
      %5709 = vmatprep.mubr.bf16.mxu0 %v1336
      %5710 = vmatmul.mubr.bf16.gmra.mrb[0].mxu0 %v1335
      %v5711 = vpop.f32.mrb[0].mxu0
      %v5712 = vadd.f32 %v5671, %v5711
      %v5713 = vpop.f32.mrb[0].mxu0
      %v5714 = vadd.f32 %v5673, %v5713
      %v5715 = vpop.f32.mrb[0].mxu0
      %v5716 = vpop.f32.mrb[0].mxu0
      %5717 = vdwg.mxu0
      %5718 = vmatprep.subr.bf16.mxu0 %v4490
      %5719 = vmatpush1.bf16.msra.mxu0 %v4489
      %5720 = vmatprep.subr.bf16.mxu0 %v4498
      %5721 = vmatpush1.bf16.msra.mxu0 %v4497
      %5722 = vmatprep.subr.bf16.mxu0 %v4506
      %5723 = vmatpush1.bf16.msra.mxu0 %v4505
      %5724 = vmatprep.subr.bf16.mxu0 %v4514
      %5725 = vmatpush1.bf16.msra.mxu0 %v4513
      %5726 = vmatprep.subr.bf16.mxu0 %v4522
      %5727 = vmatpush1.bf16.msra.mxu0 %v4521
      %5728 = vmatprep.subr.bf16.mxu0 %v4530
      %5729 = vmatpush1.bf16.msra.mxu0 %v4529
      %5730 = vmatprep.subr.bf16.mxu0 %v4538
      %5731 = vmatpush1.bf16.msra.mxu0 %v4537
      %5732 = vmatprep.subr.bf16.mxu0 %v4546
      %5733 = vmatpush1.bf16.msra.mxu0 %v4545
      %5734 = vmatprep.subr.bf16.mxu0 %v4554
      %5735 = vmatpush1.bf16.msra.mxu0 %v4553
      %5736 = vmatprep.subr.bf16.mxu0 %v4562
      %5737 = vmatpush1.bf16.msra.mxu0 %v4561
      %5738 = vmatprep.subr.bf16.mxu0 %v4570
      %5739 = vmatpush1.bf16.msra.mxu0 %v4569
      %5740 = vmatprep.subr.bf16.mxu0 %v4578
      %5741 = vmatpush1.bf16.msra.mxu0 %v4577
      %5742 = vmatprep.subr.bf16.mxu0 %v4586
      %5743 = vmatpush1.bf16.msra.mxu0 %v4585
      %5744 = vmatprep.subr.bf16.mxu0 %v4594
      %5745 = vmatpush1.bf16.msra.mxu0 %v4593
      %5746 = vmatprep.subr.bf16.mxu0 %v4602
      %5747 = vmatpush1.bf16.msra.mxu0 %v4601
      %5748 = vmatprep.subr.bf16.mxu0 %v4610
      %5749 = vmatpush1.bf16.msra.mxu0 %v4609
      %5750 = vmatprep.mubr.bf16.mxu0 %v1338
      %5751 = vmatmul.mubr.bf16.gmra.mrb[0].mxu0 %v1337
      %v5752 = vpop.f32.mrb[0].mxu0
      %v5753 = vadd.f32 %v5712, %v5752
      %v5754 = vpop.f32.mrb[0].mxu0
      %v5755 = vadd.f32 %v5714, %v5754
      %v5756 = vpop.f32.mrb[0].mxu0
      %v5757 = vpop.f32.mrb[0].mxu0
      %5758 = vdwg.mxu0
      %5759 = vmatprep.subr.bf16.mxu0 %v4618
      %5760 = vmatpush1.bf16.msra.mxu0 %v4617
      %5761 = vmatprep.subr.bf16.mxu0 %v4626
      %5762 = vmatpush1.bf16.msra.mxu0 %v4625
      %5763 = vmatprep.subr.bf16.mxu0 %v4634
      %5764 = vmatpush1.bf16.msra.mxu0 %v4633
      %5765 = vmatprep.subr.bf16.mxu0 %v4642
      %5766 = vmatpush1.bf16.msra.mxu0 %v4641
      %5767 = vmatprep.subr.bf16.mxu0 %v4650
      %5768 = vmatpush1.bf16.msra.mxu0 %v4649
      %5769 = vmatprep.subr.bf16.mxu0 %v4658
      %5770 = vmatpush1.bf16.msra.mxu0 %v4657
      %5771 = vmatprep.subr.bf16.mxu0 %v4666
      %5772 = vmatpush1.bf16.msra.mxu0 %v4665
      %5773 = vmatprep.subr.bf16.mxu0 %v4674
      %5774 = vmatpush1.bf16.msra.mxu0 %v4673
      %5775 = vmatprep.subr.bf16.mxu0 0
      %5776 = vmatpush1.bf16.msra.mxu0 0
      %5777 = vmatprep.subr.bf16.mxu0 0
      %5778 = vmatpush1.bf16.msra.mxu0 0
      %5779 = vmatprep.subr.bf16.mxu0 0
      %5780 = vmatpush1.bf16.msra.mxu0 0
      %5781 = vmatprep.subr.bf16.mxu0 0
      %5782 = vmatpush1.bf16.msra.mxu0 0
      %5783 = vmatprep.subr.bf16.mxu0 0
      %5784 = vmatpush1.bf16.msra.mxu0 0
      %5785 = vmatprep.subr.bf16.mxu0 0
      %5786 = vmatpush1.bf16.msra.mxu0 0
      %5787 = vmatprep.subr.bf16.mxu0 0
      %5788 = vmatpush1.bf16.msra.mxu0 0
      %5789 = vmatprep.subr.bf16.mxu0 0
      %5790 = vmatpush1.bf16.msra.mxu0 0
      %5791 = vmatprep.mubr.bf16.mxu0 0
      %5792 = vmatmul.mubr.bf16.gmra.mrb[0].mxu0 %v1339
      %v5793 = vpop.f32.mrb[0].mxu0
      %v5794 = vadd.f32 %v5753, %v5793
      %v5795 = vpop.f32.mrb[0].mxu0
      %v5796 = vadd.f32 %v5755, %v5795
      %v5797 = vpop.f32.mrb[0].mxu0
      %v5798 = vpop.f32.mrb[0].mxu0
      %5799 = vdwg.mxu0
      %5800 = vmatprep.subr.bf16.mxu0 %v3852
      %5801 = vmatpush1.bf16.msra.mxu0 %v3851
      %5802 = vmatprep.subr.bf16.mxu0 %v3860
      %5803 = vmatpush1.bf16.msra.mxu0 %v3859
      %5804 = vmatprep.subr.bf16.mxu0 %v3868
      %5805 = vmatpush1.bf16.msra.mxu0 %v3867
      %5806 = vmatprep.subr.bf16.mxu0 %v3876
      %5807 = vmatpush1.bf16.msra.mxu0 %v3875
      %5808 = vmatprep.subr.bf16.mxu0 %v3884
      %5809 = vmatpush1.bf16.msra.mxu0 %v3883
      %5810 = vmatprep.subr.bf16.mxu0 %v3892
      %5811 = vmatpush1.bf16.msra.mxu0 %v3891
      %5812 = vmatprep.subr.bf16.mxu0 %v3900
      %5813 = vmatpush1.bf16.msra.mxu0 %v3899
      %5814 = vmatprep.subr.bf16.mxu0 %v3908
      %5815 = vmatpush1.bf16.msra.mxu0 %v3907
      %5816 = vmatprep.subr.bf16.mxu0 %v3916
      %5817 = vmatpush1.bf16.msra.mxu0 %v3915
      %5818 = vmatprep.subr.bf16.mxu0 %v3924
      %5819 = vmatpush1.bf16.msra.mxu0 %v3923
      %5820 = vmatprep.subr.bf16.mxu0 %v3932
      %5821 = vmatpush1.bf16.msra.mxu0 %v3931
      %5822 = vmatprep.subr.bf16.mxu0 %v3940
      %5823 = vmatpush1.bf16.msra.mxu0 %v3939
      %5824 = vmatprep.subr.bf16.mxu0 %v3948
      %5825 = vmatpush1.bf16.msra.mxu0 %v3947
      %5826 = vmatprep.subr.bf16.mxu0 %v3956
      %5827 = vmatpush1.bf16.msra.mxu0 %v3955
      %5828 = vmatprep.subr.bf16.mxu0 %v3964
      %5829 = vmatpush1.bf16.msra.mxu0 %v3963
      %5830 = vmatprep.subr.bf16.mxu0 %v3972
      %5831 = vmatpush1.bf16.msra.mxu0 %v3971
      %5832 = vmatprep.mubr.bf16.mxu0 %v1328
      %5833 = vmatmul.mubr.bf16.gmra.mrb[0].mxu0 %v1327
      %v5834 = vpop.f32.mrb[0].mxu0
      %v5835 = vadd.f32 0.0, %v5834
      %v5836 = vpop.f32.mrb[0].mxu0
      %v5837 = vadd.f32 0.0, %v5836
      %v5838 = vpop.f32.mrb[0].mxu0
      %v5839 = vpop.f32.mrb[0].mxu0
      %5840 = vdwg.mxu0
      %5841 = vmatprep.subr.bf16.mxu0 %v3980
      %5842 = vmatpush1.bf16.msra.mxu0 %v3979
      %5843 = vmatprep.subr.bf16.mxu0 %v3988
      %5844 = vmatpush1.bf16.msra.mxu0 %v3987
      %5845 = vmatprep.subr.bf16.mxu0 %v3996
      %5846 = vmatpush1.bf16.msra.mxu0 %v3995
      %5847 = vmatprep.subr.bf16.mxu0 %v4004
      %5848 = vmatpush1.bf16.msra.mxu0 %v4003
      %5849 = vmatprep.subr.bf16.mxu0 %v4012
      %5850 = vmatpush1.bf16.msra.mxu0 %v4011
      %5851 = vmatprep.subr.bf16.mxu0 %v4020
      %5852 = vmatpush1.bf16.msra.mxu0 %v4019
      %5853 = vmatprep.subr.bf16.mxu0 %v4028
      %5854 = vmatpush1.bf16.msra.mxu0 %v4027
      %5855 = vmatprep.subr.bf16.mxu0 %v4036
      %5856 = vmatpush1.bf16.msra.mxu0 %v4035
      %5857 = vmatprep.subr.bf16.mxu0 %v4044
      %5858 = vmatpush1.bf16.msra.mxu0 %v4043
      %5859 = vmatprep.subr.bf16.mxu0 %v4052
      %5860 = vmatpush1.bf16.msra.mxu0 %v4051
      %5861 = vmatprep.subr.bf16.mxu0 %v4060
      %5862 = vmatpush1.bf16.msra.mxu0 %v4059
      %5863 = vmatprep.subr.bf16.mxu0 %v4068
      %5864 = vmatpush1.bf16.msra.mxu0 %v4067
      %5865 = vmatprep.subr.bf16.mxu0 %v4076
      %5866 = vmatpush1.bf16.msra.mxu0 %v4075
      %5867 = vmatprep.subr.bf16.mxu0 %v4084
      %5868 = vmatpush1.bf16.msra.mxu0 %v4083
      %5869 = vmatprep.subr.bf16.mxu0 %v4092
      %5870 = vmatpush1.bf16.msra.mxu0 %v4091
      %5871 = vmatprep.subr.bf16.mxu0 %v4100
      %5872 = vmatpush1.bf16.msra.mxu0 %v4099
      %5873 = vmatprep.mubr.bf16.mxu0 %v1330
      %5874 = vmatmul.mubr.bf16.gmra.mrb[0].mxu0 %v1329
      %v5875 = vpop.f32.mrb[0].mxu0
      %v5876 = vadd.f32 %v5835, %v5875
      %v5877 = vpop.f32.mrb[0].mxu0
      %v5878 = vadd.f32 %v5837, %v5877
      %v5879 = vpop.f32.mrb[0].mxu0
      %v5880 = vpop.f32.mrb[0].mxu0
      %5881 = vdwg.mxu0
      %5882 = vmatprep.subr.bf16.mxu0 %v4108
      %5883 = vmatpush1.bf16.msra.mxu0 %v4107
      %5884 = vmatprep.subr.bf16.mxu0 %v4116
      %5885 = vmatpush1.bf16.msra.mxu0 %v4115
      %5886 = vmatprep.subr.bf16.mxu0 %v4124
      %5887 = vmatpush1.bf16.msra.mxu0 %v4123
      %5888 = vmatprep.subr.bf16.mxu0 %v4132
      %5889 = vmatpush1.bf16.msra.mxu0 %v4131
      %5890 = vmatprep.subr.bf16.mxu0 %v4140
      %5891 = vmatpush1.bf16.msra.mxu0 %v4139
      %5892 = vmatprep.subr.bf16.mxu0 %v4148
      %5893 = vmatpush1.bf16.msra.mxu0 %v4147
      %5894 = vmatprep.subr.bf16.mxu0 %v4156
      %5895 = vmatpush1.bf16.msra.mxu0 %v4155
      %5896 = vmatprep.subr.bf16.mxu0 %v4164
      %5897 = vmatpush1.bf16.msra.mxu0 %v4163
      %5898 = vmatprep.subr.bf16.mxu0 %v4172
      %5899 = vmatpush1.bf16.msra.mxu0 %v4171
      %5900 = vmatprep.subr.bf16.mxu0 %v4180
      %5901 = vmatpush1.bf16.msra.mxu0 %v4179
      %5902 = vmatprep.subr.bf16.mxu0 %v4188
      %5903 = vmatpush1.bf16.msra.mxu0 %v4187
      %5904 = vmatprep.subr.bf16.mxu0 %v4196
      %5905 = vmatpush1.bf16.msra.mxu0 %v4195
      %5906 = vmatprep.subr.bf16.mxu0 %v4204
      %5907 = vmatpush1.bf16.msra.mxu0 %v4203
      %5908 = vmatprep.subr.bf16.mxu0 %v4212
      %5909 = vmatpush1.bf16.msra.mxu0 %v4211
      %5910 = vmatprep.subr.bf16.mxu0 %v4220
      %5911 = vmatpush1.bf16.msra.mxu0 %v4219
      %5912 = vmatprep.subr.bf16.mxu0 %v4228
      %5913 = vmatpush1.bf16.msra.mxu0 %v4227
      %5914 = vmatprep.mubr.bf16.mxu0 %v1332
      %5915 = vmatmul.mubr.bf16.gmra.mrb[0].mxu0 %v1331
      %v5916 = vpop.f32.mrb[0].mxu0
      %v5917 = vadd.f32 %v5876, %v5916
      %v5918 = vpop.f32.mrb[0].mxu0
      %v5919 = vadd.f32 %v5878, %v5918
      %v5920 = vpop.f32.mrb[0].mxu0
      %v5921 = vpop.f32.mrb[0].mxu0
      %5922 = vdwg.mxu0
      %5923 = vmatprep.subr.bf16.mxu0 %v4236
      %5924 = vmatpush1.bf16.msra.mxu0 %v4235
      %5925 = vmatprep.subr.bf16.mxu0 %v4244
      %5926 = vmatpush1.bf16.msra.mxu0 %v4243
      %5927 = vmatprep.subr.bf16.mxu0 %v4252
      %5928 = vmatpush1.bf16.msra.mxu0 %v4251
      %5929 = vmatprep.subr.bf16.mxu0 %v4260
      %5930 = vmatpush1.bf16.msra.mxu0 %v4259
      %5931 = vmatprep.subr.bf16.mxu0 %v4268
      %5932 = vmatpush1.bf16.msra.mxu0 %v4267
      %5933 = vmatprep.subr.bf16.mxu0 %v4276
      %5934 = vmatpush1.bf16.msra.mxu0 %v4275
      %5935 = vmatprep.subr.bf16.mxu0 %v4284
      %5936 = vmatpush1.bf16.msra.mxu0 %v4283
      %5937 = vmatprep.subr.bf16.mxu0 %v4292
      %5938 = vmatpush1.bf16.msra.mxu0 %v4291
      %5939 = vmatprep.subr.bf16.mxu0 %v4300
      %5940 = vmatpush1.bf16.msra.mxu0 %v4299
      %5941 = vmatprep.subr.bf16.mxu0 %v4308
      %5942 = vmatpush1.bf16.msra.mxu0 %v4307
      %5943 = vmatprep.subr.bf16.mxu0 %v4316
      %5944 = vmatpush1.bf16.msra.mxu0 %v4315
      %5945 = vmatprep.subr.bf16.mxu0 %v4324
      %5946 = vmatpush1.bf16.msra.mxu0 %v4323
      %5947 = vmatprep.subr.bf16.mxu0 %v4332
      %5948 = vmatpush1.bf16.msra.mxu0 %v4331
      %5949 = vmatprep.subr.bf16.mxu0 %v4340
      %5950 = vmatpush1.bf16.msra.mxu0 %v4339
      %5951 = vmatprep.subr.bf16.mxu0 %v4348
      %5952 = vmatpush1.bf16.msra.mxu0 %v4347
      %5953 = vmatprep.subr.bf16.mxu0 %v4356
      %5954 = vmatpush1.bf16.msra.mxu0 %v4355
      %5955 = vmatprep.mubr.bf16.mxu0 %v1334
      %5956 = vmatmul.mubr.bf16.gmra.mrb[0].mxu0 %v1333
      %v5957 = vpop.f32.mrb[0].mxu0
      %v5958 = vadd.f32 %v5917, %v5957
      %v5959 = vpop.f32.mrb[0].mxu0
      %v5960 = vadd.f32 %v5919, %v5959
      %v5961 = vpop.f32.mrb[0].mxu0
      %v5962 = vpop.f32.mrb[0].mxu0
      %5963 = vdwg.mxu0
      %5964 = vmatprep.subr.bf16.mxu0 %v4364
      %5965 = vmatpush1.bf16.msra.mxu0 %v4363
      %5966 = vmatprep.subr.bf16.mxu0 %v4372
      %5967 = vmatpush1.bf16.msra.mxu0 %v4371
      %5968 = vmatprep.subr.bf16.mxu0 %v4380
      %5969 = vmatpush1.bf16.msra.mxu0 %v4379
      %5970 = vmatprep.subr.bf16.mxu0 %v4388
      %5971 = vmatpush1.bf16.msra.mxu0 %v4387
      %5972 = vmatprep.subr.bf16.mxu0 %v4396
      %5973 = vmatpush1.bf16.msra.mxu0 %v4395
      %5974 = vmatprep.subr.bf16.mxu0 %v4404
      %5975 = vmatpush1.bf16.msra.mxu0 %v4403
      %5976 = vmatprep.subr.bf16.mxu0 %v4412
      %5977 = vmatpush1.bf16.msra.mxu0 %v4411
      %5978 = vmatprep.subr.bf16.mxu0 %v4420
      %5979 = vmatpush1.bf16.msra.mxu0 %v4419
      %5980 = vmatprep.subr.bf16.mxu0 %v4428
      %5981 = vmatpush1.bf16.msra.mxu0 %v4427
      %5982 = vmatprep.subr.bf16.mxu0 %v4436
      %5983 = vmatpush1.bf16.msra.mxu0 %v4435
      %5984 = vmatprep.subr.bf16.mxu0 %v4444
      %5985 = vmatpush1.bf16.msra.mxu0 %v4443
      %5986 = vmatprep.subr.bf16.mxu0 %v4452
      %5987 = vmatpush1.bf16.msra.mxu0 %v4451
      %5988 = vmatprep.subr.bf16.mxu0 %v4460
      %5989 = vmatpush1.bf16.msra.mxu0 %v4459
      %5990 = vmatprep.subr.bf16.mxu0 %v4468
      %5991 = vmatpush1.bf16.msra.mxu0 %v4467
      %5992 = vmatprep.subr.bf16.mxu0 %v4476
      %5993 = vmatpush1.bf16.msra.mxu0 %v4475
      %5994 = vmatprep.subr.bf16.mxu0 %v4484
      %5995 = vmatpush1.bf16.msra.mxu0 %v4483
      %5996 = vmatprep.mubr.bf16.mxu0 %v1336
      %5997 = vmatmul.mubr.bf16.gmra.mrb[0].mxu0 %v1335
      %v5998 = vpop.f32.mrb[0].mxu0
      %v5999 = vadd.f32 %v5958, %v5998
      %v6000 = vpop.f32.mrb[0].mxu0
      %v6001 = vadd.f32 %v5960, %v6000
      %v6002 = vpop.f32.mrb[0].mxu0
      %v6003 = vpop.f32.mrb[0].mxu0
      %6004 = vdwg.mxu0
      %6005 = vmatprep.subr.bf16.mxu0 %v4492
      %6006 = vmatpush1.bf16.msra.mxu0 %v4491
      %6007 = vmatprep.subr.bf16.mxu0 %v4500
      %6008 = vmatpush1.bf16.msra.mxu0 %v4499
      %6009 = vmatprep.subr.bf16.mxu0 %v4508
      %6010 = vmatpush1.bf16.msra.mxu0 %v4507
      %6011 = vmatprep.subr.bf16.mxu0 %v4516
      %6012 = vmatpush1.bf16.msra.mxu0 %v4515
      %6013 = vmatprep.subr.bf16.mxu0 %v4524
      %6014 = vmatpush1.bf16.msra.mxu0 %v4523
      %6015 = vmatprep.subr.bf16.mxu0 %v4532
      %6016 = vmatpush1.bf16.msra.mxu0 %v4531
      %6017 = vmatprep.subr.bf16.mxu0 %v4540
      %6018 = vmatpush1.bf16.msra.mxu0 %v4539
      %6019 = vmatprep.subr.bf16.mxu0 %v4548
      %6020 = vmatpush1.bf16.msra.mxu0 %v4547
      %6021 = vmatprep.subr.bf16.mxu0 %v4556
      %6022 = vmatpush1.bf16.msra.mxu0 %v4555
      %6023 = vmatprep.subr.bf16.mxu0 %v4564
      %6024 = vmatpush1.bf16.msra.mxu0 %v4563
      %6025 = vmatprep.subr.bf16.mxu0 %v4572
      %6026 = vmatpush1.bf16.msra.mxu0 %v4571
      %6027 = vmatprep.subr.bf16.mxu0 %v4580
      %6028 = vmatpush1.bf16.msra.mxu0 %v4579
      %6029 = vmatprep.subr.bf16.mxu0 %v4588
      %6030 = vmatpush1.bf16.msra.mxu0 %v4587
      %6031 = vmatprep.subr.bf16.mxu0 %v4596
      %6032 = vmatpush1.bf16.msra.mxu0 %v4595
      %6033 = vmatprep.subr.bf16.mxu0 %v4604
      %6034 = vmatpush1.bf16.msra.mxu0 %v4603
      %6035 = vmatprep.subr.bf16.mxu0 %v4612
      %6036 = vmatpush1.bf16.msra.mxu0 %v4611
      %6037 = vmatprep.mubr.bf16.mxu0 %v1338
      %6038 = vmatmul.mubr.bf16.gmra.mrb[0].mxu0 %v1337
      %v6039 = vpop.f32.mrb[0].mxu0
      %v6040 = vadd.f32 %v5999, %v6039
      %v6041 = vpop.f32.mrb[0].mxu0
      %v6042 = vadd.f32 %v6001, %v6041
      %v6043 = vpop.f32.mrb[0].mxu0
      %v6044 = vpop.f32.mrb[0].mxu0
      %6045 = vdwg.mxu0
      %6046 = vmatprep.subr.bf16.mxu0 %v4620
      %6047 = vmatpush1.bf16.msra.mxu0 %v4619
      %6048 = vmatprep.subr.bf16.mxu0 %v4628
      %6049 = vmatpush1.bf16.msra.mxu0 %v4627
      %6050 = vmatprep.subr.bf16.mxu0 %v4636
      %6051 = vmatpush1.bf16.msra.mxu0 %v4635
      %6052 = vmatprep.subr.bf16.mxu0 %v4644
      %6053 = vmatpush1.bf16.msra.mxu0 %v4643
      %6054 = vmatprep.subr.bf16.mxu0 %v4652
      %6055 = vmatpush1.bf16.msra.mxu0 %v4651
      %6056 = vmatprep.subr.bf16.mxu0 %v4660
      %6057 = vmatpush1.bf16.msra.mxu0 %v4659
      %6058 = vmatprep.subr.bf16.mxu0 %v4668
      %6059 = vmatpush1.bf16.msra.mxu0 %v4667
      %6060 = vmatprep.subr.bf16.mxu0 %v4676
      %6061 = vmatpush1.bf16.msra.mxu0 %v4675
      %6062 = vmatprep.subr.bf16.mxu0 0
      %6063 = vmatpush1.bf16.msra.mxu0 0
      %6064 = vmatprep.subr.bf16.mxu0 0
      %6065 = vmatpush1.bf16.msra.mxu0 0
      %6066 = vmatprep.subr.bf16.mxu0 0
      %6067 = vmatpush1.bf16.msra.mxu0 0
      %6068 = vmatprep.subr.bf16.mxu0 0
      %6069 = vmatpush1.bf16.msra.mxu0 0
      %6070 = vmatprep.subr.bf16.mxu0 0
      %6071 = vmatpush1.bf16.msra.mxu0 0
      %6072 = vmatprep.subr.bf16.mxu0 0
      %6073 = vmatpush1.bf16.msra.mxu0 0
      %6074 = vmatprep.subr.bf16.mxu0 0
      %6075 = vmatpush1.bf16.msra.mxu0 0
      %6076 = vmatprep.subr.bf16.mxu0 0
      %6077 = vmatpush1.bf16.msra.mxu0 0
      %6078 = vmatprep.mubr.bf16.mxu0 0
      %6079 = vmatmul.mubr.bf16.gmra.mrb[0].mxu0 %v1339
      %v6080 = vpop.f32.mrb[0].mxu0
      %v6081 = vadd.f32 %v6040, %v6080
      %v6082 = vpop.f32.mrb[0].mxu0
      %v6083 = vadd.f32 %v6042, %v6082
      %v6084 = vpop.f32.mrb[0].mxu0
      %v6085 = vpop.f32.mrb[0].mxu0
      %6086 = vdwg.mxu0
      %6087 = vmatprep.subr.bf16.mxu0 %v3854
      %6088 = vmatpush1.bf16.msra.mxu0 %v3853
      %6089 = vmatprep.subr.bf16.mxu0 %v3862
      %6090 = vmatpush1.bf16.msra.mxu0 %v3861
      %6091 = vmatprep.subr.bf16.mxu0 %v3870
      %6092 = vmatpush1.bf16.msra.mxu0 %v3869
      %6093 = vmatprep.subr.bf16.mxu0 %v3878
      %6094 = vmatpush1.bf16.msra.mxu0 %v3877
      %6095 = vmatprep.subr.bf16.mxu0 %v3886
      %6096 = vmatpush1.bf16.msra.mxu0 %v3885
      %6097 = vmatprep.subr.bf16.mxu0 %v3894
      %6098 = vmatpush1.bf16.msra.mxu0 %v3893
      %6099 = vmatprep.subr.bf16.mxu0 %v3902
      %6100 = vmatpush1.bf16.msra.mxu0 %v3901
      %6101 = vmatprep.subr.bf16.mxu0 %v3910
      %6102 = vmatpush1.bf16.msra.mxu0 %v3909
      %6103 = vmatprep.subr.bf16.mxu0 %v3918
      %6104 = vmatpush1.bf16.msra.mxu0 %v3917
      %6105 = vmatprep.subr.bf16.mxu0 %v3926
      %6106 = vmatpush1.bf16.msra.mxu0 %v3925
      %6107 = vmatprep.subr.bf16.mxu0 %v3934
      %6108 = vmatpush1.bf16.msra.mxu0 %v3933
      %6109 = vmatprep.subr.bf16.mxu0 %v3942
      %6110 = vmatpush1.bf16.msra.mxu0 %v3941
      %6111 = vmatprep.subr.bf16.mxu0 %v3950
      %6112 = vmatpush1.bf16.msra.mxu0 %v3949
      %6113 = vmatprep.subr.bf16.mxu0 %v3958
      %6114 = vmatpush1.bf16.msra.mxu0 %v3957
      %6115 = vmatprep.subr.bf16.mxu0 %v3966
      %6116 = vmatpush1.bf16.msra.mxu0 %v3965
      %6117 = vmatprep.subr.bf16.mxu0 %v3974
      %6118 = vmatpush1.bf16.msra.mxu0 %v3973
      %6119 = vmatprep.mubr.bf16.mxu0 %v1328
      %6120 = vmatmul.mubr.bf16.gmra.mrb[0].mxu0 %v1327
      %v6121 = vpop.f32.mrb[0].mxu0
      %v6122 = vadd.f32 0.0, %v6121
      %v6123 = vpop.f32.mrb[0].mxu0
      %v6124 = vadd.f32 0.0, %v6123
      %v6125 = vpop.f32.mrb[0].mxu0
      %v6126 = vpop.f32.mrb[0].mxu0
      %6127 = vdwg.mxu0
      %6128 = vmatprep.subr.bf16.mxu0 %v3982
      %6129 = vmatpush1.bf16.msra.mxu0 %v3981
      %6130 = vmatprep.subr.bf16.mxu0 %v3990
      %6131 = vmatpush1.bf16.msra.mxu0 %v3989
      %6132 = vmatprep.subr.bf16.mxu0 %v3998
      %6133 = vmatpush1.bf16.msra.mxu0 %v3997
      %6134 = vmatprep.subr.bf16.mxu0 %v4006
      %6135 = vmatpush1.bf16.msra.mxu0 %v4005
      %6136 = vmatprep.subr.bf16.mxu0 %v4014
      %6137 = vmatpush1.bf16.msra.mxu0 %v4013
      %6138 = vmatprep.subr.bf16.mxu0 %v4022
      %6139 = vmatpush1.bf16.msra.mxu0 %v4021
      %6140 = vmatprep.subr.bf16.mxu0 %v4030
      %6141 = vmatpush1.bf16.msra.mxu0 %v4029
      %6142 = vmatprep.subr.bf16.mxu0 %v4038
      %6143 = vmatpush1.bf16.msra.mxu0 %v4037
      %6144 = vmatprep.subr.bf16.mxu0 %v4046
      %6145 = vmatpush1.bf16.msra.mxu0 %v4045
      %6146 = vmatprep.subr.bf16.mxu0 %v4054
      %6147 = vmatpush1.bf16.msra.mxu0 %v4053
      %6148 = vmatprep.subr.bf16.mxu0 %v4062
      %6149 = vmatpush1.bf16.msra.mxu0 %v4061
      %6150 = vmatprep.subr.bf16.mxu0 %v4070
      %6151 = vmatpush1.bf16.msra.mxu0 %v4069
      %6152 = vmatprep.subr.bf16.mxu0 %v4078
      %6153 = vmatpush1.bf16.msra.mxu0 %v4077
      %6154 = vmatprep.subr.bf16.mxu0 %v4086
      %6155 = vmatpush1.bf16.msra.mxu0 %v4085
      %6156 = vmatprep.subr.bf16.mxu0 %v4094
      %6157 = vmatpush1.bf16.msra.mxu0 %v4093
      %6158 = vmatprep.subr.bf16.mxu0 %v4102
      %6159 = vmatpush1.bf16.msra.mxu0 %v4101
      %6160 = vmatprep.mubr.bf16.mxu0 %v1330
      %6161 = vmatmul.mubr.bf16.gmra.mrb[0].mxu0 %v1329
      %v6162 = vpop.f32.mrb[0].mxu0
      %v6163 = vadd.f32 %v6122, %v6162
      %v6164 = vpop.f32.mrb[0].mxu0
      %v6165 = vadd.f32 %v6124, %v6164
      %v6166 = vpop.f32.mrb[0].mxu0
      %v6167 = vpop.f32.mrb[0].mxu0
      %6168 = vdwg.mxu0
      %6169 = vmatprep.subr.bf16.mxu0 %v4110
      %6170 = vmatpush1.bf16.msra.mxu0 %v4109
      %6171 = vmatprep.subr.bf16.mxu0 %v4118
      %6172 = vmatpush1.bf16.msra.mxu0 %v4117
      %6173 = vmatprep.subr.bf16.mxu0 %v4126
      %6174 = vmatpush1.bf16.msra.mxu0 %v4125
      %6175 = vmatprep.subr.bf16.mxu0 %v4134
      %6176 = vmatpush1.bf16.msra.mxu0 %v4133
      %6177 = vmatprep.subr.bf16.mxu0 %v4142
      %6178 = vmatpush1.bf16.msra.mxu0 %v4141
      %6179 = vmatprep.subr.bf16.mxu0 %v4150
      %6180 = vmatpush1.bf16.msra.mxu0 %v4149
      %6181 = vmatprep.subr.bf16.mxu0 %v4158
      %6182 = vmatpush1.bf16.msra.mxu0 %v4157
      %6183 = vmatprep.subr.bf16.mxu0 %v4166
      %6184 = vmatpush1.bf16.msra.mxu0 %v4165
      %6185 = vmatprep.subr.bf16.mxu0 %v4174
      %6186 = vmatpush1.bf16.msra.mxu0 %v4173
      %6187 = vmatprep.subr.bf16.mxu0 %v4182
      %6188 = vmatpush1.bf16.msra.mxu0 %v4181
      %6189 = vmatprep.subr.bf16.mxu0 %v4190
      %6190 = vmatpush1.bf16.msra.mxu0 %v4189
      %6191 = vmatprep.subr.bf16.mxu0 %v4198
      %6192 = vmatpush1.bf16.msra.mxu0 %v4197
      %6193 = vmatprep.subr.bf16.mxu0 %v4206
      %6194 = vmatpush1.bf16.msra.mxu0 %v4205
      %6195 = vmatprep.subr.bf16.mxu0 %v4214
      %6196 = vmatpush1.bf16.msra.mxu0 %v4213
      %6197 = vmatprep.subr.bf16.mxu0 %v4222
      %6198 = vmatpush1.bf16.msra.mxu0 %v4221
      %6199 = vmatprep.subr.bf16.mxu0 %v4230
      %6200 = vmatpush1.bf16.msra.mxu0 %v4229
      %6201 = vmatprep.mubr.bf16.mxu0 %v1332
      %6202 = vmatmul.mubr.bf16.gmra.mrb[0].mxu0 %v1331
      %v6203 = vpop.f32.mrb[0].mxu0
      %v6204 = vadd.f32 %v6163, %v6203
      %v6205 = vpop.f32.mrb[0].mxu0
      %v6206 = vadd.f32 %v6165, %v6205
      %v6207 = vpop.f32.mrb[0].mxu0
      %v6208 = vpop.f32.mrb[0].mxu0
      %6209 = vdwg.mxu0
      %6210 = vmatprep.subr.bf16.mxu0 %v4238
      %6211 = vmatpush1.bf16.msra.mxu0 %v4237
      %6212 = vmatprep.subr.bf16.mxu0 %v4246
      %6213 = vmatpush1.bf16.msra.mxu0 %v4245
      %6214 = vmatprep.subr.bf16.mxu0 %v4254
      %6215 = vmatpush1.bf16.msra.mxu0 %v4253
      %6216 = vmatprep.subr.bf16.mxu0 %v4262
      %6217 = vmatpush1.bf16.msra.mxu0 %v4261
      %6218 = vmatprep.subr.bf16.mxu0 %v4270
      %6219 = vmatpush1.bf16.msra.mxu0 %v4269
      %6220 = vmatprep.subr.bf16.mxu0 %v4278
      %6221 = vmatpush1.bf16.msra.mxu0 %v4277
      %6222 = vmatprep.subr.bf16.mxu0 %v4286
      %6223 = vmatpush1.bf16.msra.mxu0 %v4285
      %6224 = vmatprep.subr.bf16.mxu0 %v4294
      %6225 = vmatpush1.bf16.msra.mxu0 %v4293
      %6226 = vmatprep.subr.bf16.mxu0 %v4302
      %6227 = vmatpush1.bf16.msra.mxu0 %v4301
      %6228 = vmatprep.subr.bf16.mxu0 %v4310
      %6229 = vmatpush1.bf16.msra.mxu0 %v4309
      %6230 = vmatprep.subr.bf16.mxu0 %v4318
      %6231 = vmatpush1.bf16.msra.mxu0 %v4317
      %6232 = vmatprep.subr.bf16.mxu0 %v4326
      %6233 = vmatpush1.bf16.msra.mxu0 %v4325
      %6234 = vmatprep.subr.bf16.mxu0 %v4334
      %6235 = vmatpush1.bf16.msra.mxu0 %v4333
      %6236 = vmatprep.subr.bf16.mxu0 %v4342
      %6237 = vmatpush1.bf16.msra.mxu0 %v4341
      %6238 = vmatprep.subr.bf16.mxu0 %v4350
      %6239 = vmatpush1.bf16.msra.mxu0 %v4349
      %6240 = vmatprep.subr.bf16.mxu0 %v4358
      %6241 = vmatpush1.bf16.msra.mxu0 %v4357
      %6242 = vmatprep.mubr.bf16.mxu0 %v1334
      %6243 = vmatmul.mubr.bf16.gmra.mrb[0].mxu0 %v1333
      %v6244 = vpop.f32.mrb[0].mxu0
      %v6245 = vadd.f32 %v6204, %v6244
      %v6246 = vpop.f32.mrb[0].mxu0
      %v6247 = vadd.f32 %v6206, %v6246
      %v6248 = vpop.f32.mrb[0].mxu0
      %v6249 = vpop.f32.mrb[0].mxu0
      %6250 = vdwg.mxu0
      %6251 = vmatprep.subr.bf16.mxu0 %v4366
      %6252 = vmatpush1.bf16.msra.mxu0 %v4365
      %6253 = vmatprep.subr.bf16.mxu0 %v4374
      %6254 = vmatpush1.bf16.msra.mxu0 %v4373
      %6255 = vmatprep.subr.bf16.mxu0 %v4382
      %6256 = vmatpush1.bf16.msra.mxu0 %v4381
      %6257 = vmatprep.subr.bf16.mxu0 %v4390
      %6258 = vmatpush1.bf16.msra.mxu0 %v4389
      %6259 = vmatprep.subr.bf16.mxu0 %v4398
      %6260 = vmatpush1.bf16.msra.mxu0 %v4397
      %6261 = vmatprep.subr.bf16.mxu0 %v4406
      %6262 = vmatpush1.bf16.msra.mxu0 %v4405
      %6263 = vmatprep.subr.bf16.mxu0 %v4414
      %6264 = vmatpush1.bf16.msra.mxu0 %v4413
      %6265 = vmatprep.subr.bf16.mxu0 %v4422
      %6266 = vmatpush1.bf16.msra.mxu0 %v4421
      %6267 = vmatprep.subr.bf16.mxu0 %v4430
      %6268 = vmatpush1.bf16.msra.mxu0 %v4429
      %6269 = vmatprep.subr.bf16.mxu0 %v4438
      %6270 = vmatpush1.bf16.msra.mxu0 %v4437
      %6271 = vmatprep.subr.bf16.mxu0 %v4446
      %6272 = vmatpush1.bf16.msra.mxu0 %v4445
      %6273 = vmatprep.subr.bf16.mxu0 %v4454
      %6274 = vmatpush1.bf16.msra.mxu0 %v4453
      %6275 = vmatprep.subr.bf16.mxu0 %v4462
      %6276 = vmatpush1.bf16.msra.mxu0 %v4461
      %6277 = vmatprep.subr.bf16.mxu0 %v4470
      %6278 = vmatpush1.bf16.msra.mxu0 %v4469
      %6279 = vmatprep.subr.bf16.mxu0 %v4478
      %6280 = vmatpush1.bf16.msra.mxu0 %v4477
      %6281 = vmatprep.subr.bf16.mxu0 %v4486
      %6282 = vmatpush1.bf16.msra.mxu0 %v4485
      %6283 = vmatprep.mubr.bf16.mxu0 %v1336
      %6284 = vmatmul.mubr.bf16.gmra.mrb[0].mxu0 %v1335
      %v6285 = vpop.f32.mrb[0].mxu0
      %v6286 = vadd.f32 %v6245, %v6285
      %v6287 = vpop.f32.mrb[0].mxu0
      %v6288 = vadd.f32 %v6247, %v6287
      %v6289 = vpop.f32.mrb[0].mxu0
      %v6290 = vpop.f32.mrb[0].mxu0
      %6291 = vdwg.mxu0
      %6292 = vmatprep.subr.bf16.mxu0 %v4494
      %6293 = vmatpush1.bf16.msra.mxu0 %v4493
      %6294 = vmatprep.subr.bf16.mxu0 %v4502
      %6295 = vmatpush1.bf16.msra.mxu0 %v4501
      %6296 = vmatprep.subr.bf16.mxu0 %v4510
      %6297 = vmatpush1.bf16.msra.mxu0 %v4509
      %6298 = vmatprep.subr.bf16.mxu0 %v4518
      %6299 = vmatpush1.bf16.msra.mxu0 %v4517
      %6300 = vmatprep.subr.bf16.mxu0 %v4526
      %6301 = vmatpush1.bf16.msra.mxu0 %v4525
      %6302 = vmatprep.subr.bf16.mxu0 %v4534
      %6303 = vmatpush1.bf16.msra.mxu0 %v4533
      %6304 = vmatprep.subr.bf16.mxu0 %v4542
      %6305 = vmatpush1.bf16.msra.mxu0 %v4541
      %6306 = vmatprep.subr.bf16.mxu0 %v4550
      %6307 = vmatpush1.bf16.msra.mxu0 %v4549
      %6308 = vmatprep.subr.bf16.mxu0 %v4558
      %6309 = vmatpush1.bf16.msra.mxu0 %v4557
      %6310 = vmatprep.subr.bf16.mxu0 %v4566
      %6311 = vmatpush1.bf16.msra.mxu0 %v4565
      %6312 = vmatprep.subr.bf16.mxu0 %v4574
      %6313 = vmatpush1.bf16.msra.mxu0 %v4573
      %6314 = vmatprep.subr.bf16.mxu0 %v4582
      %6315 = vmatpush1.bf16.msra.mxu0 %v4581
      %6316 = vmatprep.subr.bf16.mxu0 %v4590
      %6317 = vmatpush1.bf16.msra.mxu0 %v4589
      %6318 = vmatprep.subr.bf16.mxu0 %v4598
      %6319 = vmatpush1.bf16.msra.mxu0 %v4597
      %6320 = vmatprep.subr.bf16.mxu0 %v4606
      %6321 = vmatpush1.bf16.msra.mxu0 %v4605
      %6322 = vmatprep.subr.bf16.mxu0 %v4614
      %6323 = vmatpush1.bf16.msra.mxu0 %v4613
      %6324 = vmatprep.mubr.bf16.mxu0 %v1338
      %6325 = vmatmul.mubr.bf16.gmra.mrb[0].mxu0 %v1337
      %v6326 = vpop.f32.mrb[0].mxu0
      %v6327 = vadd.f32 %v6286, %v6326
      %v6328 = vpop.f32.mrb[0].mxu0
      %v6329 = vadd.f32 %v6288, %v6328
      %v6330 = vpop.f32.mrb[0].mxu0
      %v6331 = vpop.f32.mrb[0].mxu0
      %6332 = vdwg.mxu0
      %6333 = vmatprep.subr.bf16.mxu0 %v4622
      %6334 = vmatpush1.bf16.msra.mxu0 %v4621
      %6335 = vmatprep.subr.bf16.mxu0 %v4630
      %6336 = vmatpush1.bf16.msra.mxu0 %v4629
      %6337 = vmatprep.subr.bf16.mxu0 %v4638
      %6338 = vmatpush1.bf16.msra.mxu0 %v4637
      %6339 = vmatprep.subr.bf16.mxu0 %v4646
      %6340 = vmatpush1.bf16.msra.mxu0 %v4645
      %6341 = vmatprep.subr.bf16.mxu0 %v4654
      %6342 = vmatpush1.bf16.msra.mxu0 %v4653
      %6343 = vmatprep.subr.bf16.mxu0 %v4662
      %6344 = vmatpush1.bf16.msra.mxu0 %v4661
      %6345 = vmatprep.subr.bf16.mxu0 %v4670
      %6346 = vmatpush1.bf16.msra.mxu0 %v4669
      %6347 = vmatprep.subr.bf16.mxu0 %v4678
      %6348 = vmatpush1.bf16.msra.mxu0 %v4677
      %6349 = vmatprep.subr.bf16.mxu0 0
      %6350 = vmatpush1.bf16.msra.mxu0 0
      %6351 = vmatprep.subr.bf16.mxu0 0
      %6352 = vmatpush1.bf16.msra.mxu0 0
      %6353 = vmatprep.subr.bf16.mxu0 0
      %6354 = vmatpush1.bf16.msra.mxu0 0
      %6355 = vmatprep.subr.bf16.mxu0 0
      %6356 = vmatpush1.bf16.msra.mxu0 0
      %6357 = vmatprep.subr.bf16.mxu0 0
      %6358 = vmatpush1.bf16.msra.mxu0 0
      %6359 = vmatprep.subr.bf16.mxu0 0
      %6360 = vmatpush1.bf16.msra.mxu0 0
      %6361 = vmatprep.subr.bf16.mxu0 0
      %6362 = vmatpush1.bf16.msra.mxu0 0
      %6363 = vmatprep.subr.bf16.mxu0 0
      %6364 = vmatpush1.bf16.msra.mxu0 0
      %6365 = vmatprep.mubr.bf16.mxu0 0
      %6366 = vmatmul.mubr.bf16.gmra.mrb[0].mxu0 %v1339
      %v6367 = vpop.f32.mrb[0].mxu0
      %v6368 = vadd.f32 %v6327, %v6367
      %v6369 = vpop.f32.mrb[0].mxu0
      %v6370 = vadd.f32 %v6329, %v6369
      %v6371 = vpop.f32.mrb[0].mxu0
      %v6372 = vpop.f32.mrb[0].mxu0
      %6373 = vdwg.mxu0
      %6374 = vmatprep.subr.bf16.mxu0 %v3856
      %6375 = vmatpush1.bf16.msra.mxu0 %v3855
      %6376 = vmatprep.subr.bf16.mxu0 %v3864
      %6377 = vmatpush1.bf16.msra.mxu0 %v3863
      %6378 = vmatprep.subr.bf16.mxu0 %v3872
      %6379 = vmatpush1.bf16.msra.mxu0 %v3871
      %6380 = vmatprep.subr.bf16.mxu0 %v3880
      %6381 = vmatpush1.bf16.msra.mxu0 %v3879
      %6382 = vmatprep.subr.bf16.mxu0 %v3888
      %6383 = vmatpush1.bf16.msra.mxu0 %v3887
      %6384 = vmatprep.subr.bf16.mxu0 %v3896
      %6385 = vmatpush1.bf16.msra.mxu0 %v3895
      %6386 = vmatprep.subr.bf16.mxu0 %v3904
      %6387 = vmatpush1.bf16.msra.mxu0 %v3903
      %6388 = vmatprep.subr.bf16.mxu0 %v3912
      %6389 = vmatpush1.bf16.msra.mxu0 %v3911
      %6390 = vmatprep.subr.bf16.mxu0 %v3920
      %6391 = vmatpush1.bf16.msra.mxu0 %v3919
      %6392 = vmatprep.subr.bf16.mxu0 %v3928
      %6393 = vmatpush1.bf16.msra.mxu0 %v3927
      %6394 = vmatprep.subr.bf16.mxu0 %v3936
      %6395 = vmatpush1.bf16.msra.mxu0 %v3935
      %6396 = vmatprep.subr.bf16.mxu0 %v3944
      %6397 = vmatpush1.bf16.msra.mxu0 %v3943
      %6398 = vmatprep.subr.bf16.mxu0 %v3952
      %6399 = vmatpush1.bf16.msra.mxu0 %v3951
      %6400 = vmatprep.subr.bf16.mxu0 %v3960
      %6401 = vmatpush1.bf16.msra.mxu0 %v3959
      %6402 = vmatprep.subr.bf16.mxu0 %v3968
      %6403 = vmatpush1.bf16.msra.mxu0 %v3967
      %6404 = vmatprep.subr.bf16.mxu0 %v3976
      %6405 = vmatpush1.bf16.msra.mxu0 %v3975
      %6406 = vmatprep.mubr.bf16.mxu0 %v1328
      %6407 = vmatmul.mubr.bf16.gmra.mrb[0].mxu0 %v1327
      %v6408 = vpop.f32.mrb[0].mxu0
      %v6409 = vadd.f32 0.0, %v6408
      %v6410 = vpop.f32.mrb[0].mxu0
      %v6411 = vadd.f32 0.0, %v6410
      %v6412 = vpop.f32.mrb[0].mxu0
      %v6413 = vpop.f32.mrb[0].mxu0
      %6414 = vdwg.mxu0
      %6415 = vmatprep.subr.bf16.mxu0 %v3984
      %6416 = vmatpush1.bf16.msra.mxu0 %v3983
      %6417 = vmatprep.subr.bf16.mxu0 %v3992
      %6418 = vmatpush1.bf16.msra.mxu0 %v3991
      %6419 = vmatprep.subr.bf16.mxu0 %v4000
      %6420 = vmatpush1.bf16.msra.mxu0 %v3999
      %6421 = vmatprep.subr.bf16.mxu0 %v4008
      %6422 = vmatpush1.bf16.msra.mxu0 %v4007
      %6423 = vmatprep.subr.bf16.mxu0 %v4016
      %6424 = vmatpush1.bf16.msra.mxu0 %v4015
      %6425 = vmatprep.subr.bf16.mxu0 %v4024
      %6426 = vmatpush1.bf16.msra.mxu0 %v4023
      %6427 = vmatprep.subr.bf16.mxu0 %v4032
      %6428 = vmatpush1.bf16.msra.mxu0 %v4031
      %6429 = vmatprep.subr.bf16.mxu0 %v4040
      %6430 = vmatpush1.bf16.msra.mxu0 %v4039
      %6431 = vmatprep.subr.bf16.mxu0 %v4048
      %6432 = vmatpush1.bf16.msra.mxu0 %v4047
      %6433 = vmatprep.subr.bf16.mxu0 %v4056
      %6434 = vmatpush1.bf16.msra.mxu0 %v4055
      %6435 = vmatprep.subr.bf16.mxu0 %v4064
      %6436 = vmatpush1.bf16.msra.mxu0 %v4063
      %6437 = vmatprep.subr.bf16.mxu0 %v4072
      %6438 = vmatpush1.bf16.msra.mxu0 %v4071
      %6439 = vmatprep.subr.bf16.mxu0 %v4080
      %6440 = vmatpush1.bf16.msra.mxu0 %v4079
      %6441 = vmatprep.subr.bf16.mxu0 %v4088
      %6442 = vmatpush1.bf16.msra.mxu0 %v4087
      %6443 = vmatprep.subr.bf16.mxu0 %v4096
      %6444 = vmatpush1.bf16.msra.mxu0 %v4095
      %6445 = vmatprep.subr.bf16.mxu0 %v4104
      %6446 = vmatpush1.bf16.msra.mxu0 %v4103
      %6447 = vmatprep.mubr.bf16.mxu0 %v1330
      %6448 = vmatmul.mubr.bf16.gmra.mrb[0].mxu0 %v1329
      %v6449 = vpop.f32.mrb[0].mxu0
      %v6450 = vadd.f32 %v6409, %v6449
      %v6451 = vpop.f32.mrb[0].mxu0
      %v6452 = vadd.f32 %v6411, %v6451
      %v6453 = vpop.f32.mrb[0].mxu0
      %v6454 = vpop.f32.mrb[0].mxu0
      %6455 = vdwg.mxu0
      %6456 = vmatprep.subr.bf16.mxu0 %v4112
      %6457 = vmatpush1.bf16.msra.mxu0 %v4111
      %6458 = vmatprep.subr.bf16.mxu0 %v4120
      %6459 = vmatpush1.bf16.msra.mxu0 %v4119
      %6460 = vmatprep.subr.bf16.mxu0 %v4128
      %6461 = vmatpush1.bf16.msra.mxu0 %v4127
      %6462 = vmatprep.subr.bf16.mxu0 %v4136
      %6463 = vmatpush1.bf16.msra.mxu0 %v4135
      %6464 = vmatprep.subr.bf16.mxu0 %v4144
      %6465 = vmatpush1.bf16.msra.mxu0 %v4143
      %6466 = vmatprep.subr.bf16.mxu0 %v4152
      %6467 = vmatpush1.bf16.msra.mxu0 %v4151
      %6468 = vmatprep.subr.bf16.mxu0 %v4160
      %6469 = vmatpush1.bf16.msra.mxu0 %v4159
      %6470 = vmatprep.subr.bf16.mxu0 %v4168
      %6471 = vmatpush1.bf16.msra.mxu0 %v4167
      %6472 = vmatprep.subr.bf16.mxu0 %v4176
      %6473 = vmatpush1.bf16.msra.mxu0 %v4175
      %6474 = vmatprep.subr.bf16.mxu0 %v4184
      %6475 = vmatpush1.bf16.msra.mxu0 %v4183
      %6476 = vmatprep.subr.bf16.mxu0 %v4192
      %6477 = vmatpush1.bf16.msra.mxu0 %v4191
      %6478 = vmatprep.subr.bf16.mxu0 %v4200
      %6479 = vmatpush1.bf16.msra.mxu0 %v4199
      %6480 = vmatprep.subr.bf16.mxu0 %v4208
      %6481 = vmatpush1.bf16.msra.mxu0 %v4207
      %6482 = vmatprep.subr.bf16.mxu0 %v4216
      %6483 = vmatpush1.bf16.msra.mxu0 %v4215
      %6484 = vmatprep.subr.bf16.mxu0 %v4224
      %6485 = vmatpush1.bf16.msra.mxu0 %v4223
      %6486 = vmatprep.subr.bf16.mxu0 %v4232
      %6487 = vmatpush1.bf16.msra.mxu0 %v4231
      %6488 = vmatprep.mubr.bf16.mxu0 %v1332
      %6489 = vmatmul.mubr.bf16.gmra.mrb[0].mxu0 %v1331
      %v6490 = vpop.f32.mrb[0].mxu0
      %v6491 = vadd.f32 %v6450, %v6490
      %v6492 = vpop.f32.mrb[0].mxu0
      %v6493 = vadd.f32 %v6452, %v6492
      %v6494 = vpop.f32.mrb[0].mxu0
      %v6495 = vpop.f32.mrb[0].mxu0
      %6496 = vdwg.mxu0
      %6497 = vmatprep.subr.bf16.mxu0 %v4240
      %6498 = vmatpush1.bf16.msra.mxu0 %v4239
      %6499 = vmatprep.subr.bf16.mxu0 %v4248
      %6500 = vmatpush1.bf16.msra.mxu0 %v4247
      %6501 = vmatprep.subr.bf16.mxu0 %v4256
      %6502 = vmatpush1.bf16.msra.mxu0 %v4255
      %6503 = vmatprep.subr.bf16.mxu0 %v4264
      %6504 = vmatpush1.bf16.msra.mxu0 %v4263
      %6505 = vmatprep.subr.bf16.mxu0 %v4272
      %6506 = vmatpush1.bf16.msra.mxu0 %v4271
      %6507 = vmatprep.subr.bf16.mxu0 %v4280
      %6508 = vmatpush1.bf16.msra.mxu0 %v4279
      %6509 = vmatprep.subr.bf16.mxu0 %v4288
      %6510 = vmatpush1.bf16.msra.mxu0 %v4287
      %6511 = vmatprep.subr.bf16.mxu0 %v4296
      %6512 = vmatpush1.bf16.msra.mxu0 %v4295
      %6513 = vmatprep.subr.bf16.mxu0 %v4304
      %6514 = vmatpush1.bf16.msra.mxu0 %v4303
      %6515 = vmatprep.subr.bf16.mxu0 %v4312
      %6516 = vmatpush1.bf16.msra.mxu0 %v4311
      %6517 = vmatprep.subr.bf16.mxu0 %v4320
      %6518 = vmatpush1.bf16.msra.mxu0 %v4319
      %6519 = vmatprep.subr.bf16.mxu0 %v4328
      %6520 = vmatpush1.bf16.msra.mxu0 %v4327
      %6521 = vmatprep.subr.bf16.mxu0 %v4336
      %6522 = vmatpush1.bf16.msra.mxu0 %v4335
      %6523 = vmatprep.subr.bf16.mxu0 %v4344
      %6524 = vmatpush1.bf16.msra.mxu0 %v4343
      %6525 = vmatprep.subr.bf16.mxu0 %v4352
      %6526 = vmatpush1.bf16.msra.mxu0 %v4351
      %6527 = vmatprep.subr.bf16.mxu0 %v4360
      %6528 = vmatpush1.bf16.msra.mxu0 %v4359
      %6529 = vmatprep.mubr.bf16.mxu0 %v1334
      %6530 = vmatmul.mubr.bf16.gmra.mrb[0].mxu0 %v1333
      %v6531 = vpop.f32.mrb[0].mxu0
      %v6532 = vadd.f32 %v6491, %v6531
      %v6533 = vpop.f32.mrb[0].mxu0
      %v6534 = vadd.f32 %v6493, %v6533
      %v6535 = vpop.f32.mrb[0].mxu0
      %v6536 = vpop.f32.mrb[0].mxu0
      %6537 = vdwg.mxu0
      %6538 = vmatprep.subr.bf16.mxu0 %v4368
      %6539 = vmatpush1.bf16.msra.mxu0 %v4367
      %6540 = vmatprep.subr.bf16.mxu0 %v4376
      %6541 = vmatpush1.bf16.msra.mxu0 %v4375
      %6542 = vmatprep.subr.bf16.mxu0 %v4384
      %6543 = vmatpush1.bf16.msra.mxu0 %v4383
      %6544 = vmatprep.subr.bf16.mxu0 %v4392
      %6545 = vmatpush1.bf16.msra.mxu0 %v4391
      %6546 = vmatprep.subr.bf16.mxu0 %v4400
      %6547 = vmatpush1.bf16.msra.mxu0 %v4399
      %6548 = vmatprep.subr.bf16.mxu0 %v4408
      %6549 = vmatpush1.bf16.msra.mxu0 %v4407
      %6550 = vmatprep.subr.bf16.mxu0 %v4416
      %6551 = vmatpush1.bf16.msra.mxu0 %v4415
      %6552 = vmatprep.subr.bf16.mxu0 %v4424
      %6553 = vmatpush1.bf16.msra.mxu0 %v4423
      %6554 = vmatprep.subr.bf16.mxu0 %v4432
      %6555 = vmatpush1.bf16.msra.mxu0 %v4431
      %6556 = vmatprep.subr.bf16.mxu0 %v4440
      %6557 = vmatpush1.bf16.msra.mxu0 %v4439
      %6558 = vmatprep.subr.bf16.mxu0 %v4448
      %6559 = vmatpush1.bf16.msra.mxu0 %v4447
      %6560 = vmatprep.subr.bf16.mxu0 %v4456
      %6561 = vmatpush1.bf16.msra.mxu0 %v4455
      %6562 = vmatprep.subr.bf16.mxu0 %v4464
      %6563 = vmatpush1.bf16.msra.mxu0 %v4463
      %6564 = vmatprep.subr.bf16.mxu0 %v4472
      %6565 = vmatpush1.bf16.msra.mxu0 %v4471
      %6566 = vmatprep.subr.bf16.mxu0 %v4480
      %6567 = vmatpush1.bf16.msra.mxu0 %v4479
      %6568 = vmatprep.subr.bf16.mxu0 %v4488
      %6569 = vmatpush1.bf16.msra.mxu0 %v4487
      %6570 = vmatprep.mubr.bf16.mxu0 %v1336
      %6571 = vmatmul.mubr.bf16.gmra.mrb[0].mxu0 %v1335
      %v6572 = vpop.f32.mrb[0].mxu0
      %v6573 = vadd.f32 %v6532, %v6572
      %v6574 = vpop.f32.mrb[0].mxu0
      %v6575 = vadd.f32 %v6534, %v6574
      %v6576 = vpop.f32.mrb[0].mxu0
      %v6577 = vpop.f32.mrb[0].mxu0
      %6578 = vdwg.mxu0
      %6579 = vmatprep.subr.bf16.mxu0 %v4496
      %6580 = vmatpush1.bf16.msra.mxu0 %v4495
      %6581 = vmatprep.subr.bf16.mxu0 %v4504
      %6582 = vmatpush1.bf16.msra.mxu0 %v4503
      %6583 = vmatprep.subr.bf16.mxu0 %v4512
      %6584 = vmatpush1.bf16.msra.mxu0 %v4511
      %6585 = vmatprep.subr.bf16.mxu0 %v4520
      %6586 = vmatpush1.bf16.msra.mxu0 %v4519
      %6587 = vmatprep.subr.bf16.mxu0 %v4528
      %6588 = vmatpush1.bf16.msra.mxu0 %v4527
      %6589 = vmatprep.subr.bf16.mxu0 %v4536
      %6590 = vmatpush1.bf16.msra.mxu0 %v4535
      %6591 = vmatprep.subr.bf16.mxu0 %v4544
      %6592 = vmatpush1.bf16.msra.mxu0 %v4543
      %6593 = vmatprep.subr.bf16.mxu0 %v4552
      %6594 = vmatpush1.bf16.msra.mxu0 %v4551
      %6595 = vmatprep.subr.bf16.mxu0 %v4560
      %6596 = vmatpush1.bf16.msra.mxu0 %v4559
      %6597 = vmatprep.subr.bf16.mxu0 %v4568
      %6598 = vmatpush1.bf16.msra.mxu0 %v4567
      %6599 = vmatprep.subr.bf16.mxu0 %v4576
      %6600 = vmatpush1.bf16.msra.mxu0 %v4575
      %6601 = vmatprep.subr.bf16.mxu0 %v4584
      %6602 = vmatpush1.bf16.msra.mxu0 %v4583
      %6603 = vmatprep.subr.bf16.mxu0 %v4592
      %6604 = vmatpush1.bf16.msra.mxu0 %v4591
      %6605 = vmatprep.subr.bf16.mxu0 %v4600
      %6606 = vmatpush1.bf16.msra.mxu0 %v4599
      %6607 = vmatprep.subr.bf16.mxu0 %v4608
      %6608 = vmatpush1.bf16.msra.mxu0 %v4607
      %6609 = vmatprep.subr.bf16.mxu0 %v4616
      %6610 = vmatpush1.bf16.msra.mxu0 %v4615
      %6611 = vmatprep.mubr.bf16.mxu0 %v1338
      %6612 = vmatmul.mubr.bf16.gmra.mrb[0].mxu0 %v1337
      %v6613 = vpop.f32.mrb[0].mxu0
      %v6614 = vadd.f32 %v6573, %v6613
      %v6615 = vpop.f32.mrb[0].mxu0
      %v6616 = vadd.f32 %v6575, %v6615
      %v6617 = vpop.f32.mrb[0].mxu0
      %v6618 = vpop.f32.mrb[0].mxu0
      %6619 = vdwg.mxu0
      %6620 = vmatprep.subr.bf16.mxu0 %v4624
      %6621 = vmatpush1.bf16.msra.mxu0 %v4623
      %6622 = vmatprep.subr.bf16.mxu0 %v4632
      %6623 = vmatpush1.bf16.msra.mxu0 %v4631
      %6624 = vmatprep.subr.bf16.mxu0 %v4640
      %6625 = vmatpush1.bf16.msra.mxu0 %v4639
      %6626 = vmatprep.subr.bf16.mxu0 %v4648
      %6627 = vmatpush1.bf16.msra.mxu0 %v4647
      %6628 = vmatprep.subr.bf16.mxu0 %v4656
      %6629 = vmatpush1.bf16.msra.mxu0 %v4655
      %6630 = vmatprep.subr.bf16.mxu0 %v4664
      %6631 = vmatpush1.bf16.msra.mxu0 %v4663
      %6632 = vmatprep.subr.bf16.mxu0 %v4672
      %6633 = vmatpush1.bf16.msra.mxu0 %v4671
      %6634 = vmatprep.subr.bf16.mxu0 %v4680
      %6635 = vmatpush1.bf16.msra.mxu0 %v4679
      %6636 = vmatprep.subr.bf16.mxu0 0
      %6637 = vmatpush1.bf16.msra.mxu0 0
      %6638 = vmatprep.subr.bf16.mxu0 0
      %6639 = vmatpush1.bf16.msra.mxu0 0
      %6640 = vmatprep.subr.bf16.mxu0 0
      %6641 = vmatpush1.bf16.msra.mxu0 0
      %6642 = vmatprep.subr.bf16.mxu0 0
      %6643 = vmatpush1.bf16.msra.mxu0 0
      %6644 = vmatprep.subr.bf16.mxu0 0
      %6645 = vmatpush1.bf16.msra.mxu0 0
      %6646 = vmatprep.subr.bf16.mxu0 0
      %6647 = vmatpush1.bf16.msra.mxu0 0
      %6648 = vmatprep.subr.bf16.mxu0 0
      %6649 = vmatpush1.bf16.msra.mxu0 0
      %6650 = vmatprep.subr.bf16.mxu0 0
      %6651 = vmatpush1.bf16.msra.mxu0 0
      %6652 = vmatprep.mubr.bf16.mxu0 0
      %6653 = vmatmul.mubr.bf16.gmra.mrb[0].mxu0 %v1339
      %v6654 = vpop.f32.mrb[0].mxu0
      %v6655 = vadd.f32 %v6614, %v6654
      %v6656 = vpop.f32.mrb[0].mxu0
      %v6657 = vadd.f32 %v6616, %v6656
      %v6658 = vpop.f32.mrb[0].mxu0
      %v6659 = vpop.f32.mrb[0].mxu0
      %6660 = vdwg.mxu0
      %v6661 = vadd.f32 %v460, %v5794
      %v6662 = vadd.f32 %v461, %v5796
      %v6663 = vadd.f32 %v462, %v6081
      %v6664 = vadd.f32 %v463, %v6083
      %v6665 = vadd.f32 %v464, %v6368
      %v6666 = vadd.f32 %v465, %v6370
      %v6667 = vadd.f32 %v466, %v6655
      %v6668 = vadd.f32 %v467, %v6657
      %6669 = vst [vmem:[#allocation2] sm:$0xff] %v6661
      %6670 = vst [vmem:[#allocation2 + $0x8] sm:$0xff] %v6662
      %6671 = vst [vmem:[#allocation2 + $0x10] sm:$0xff] %v6663
      %6672 = vst [vmem:[#allocation2 + $0x18] sm:$0xff] %v6664
      %6673 = vst [vmem:[#allocation2 + $0x20] sm:$0xff] %v6665
      %6674 = vst [vmem:[#allocation2 + $0x28] sm:$0xff] %v6666
      %6675 = vst [vmem:[#allocation2 + $0x30] sm:$0xff] %v6667
      %6676 = vst [vmem:[#allocation2 + $0x38] sm:$0xff] %v6668
      %p6677 = scmp.eq.s32.totalorder %s25, 1
      // Predicated region
      $region53: #{atari_net_forward.7} parent=47 // pred_check
        %p6678 = pneg %p6677
      $region54: #{atari_net_forward.7} parent=47 // pred_check_branch
        %6680 = sbr.rel (%p6678) target = $region56
      $region55: #{atari_net_forward.7} parent=47 // pred_region
        %v6681 = vld [vmem:[#allocation2] sm:$0xff]
        %v6682 = vld [vmem:[#allocation2 + $0x8] sm:$0xff]
        %v6683 = vld [vmem:[#allocation2 + $0x10] sm:$0xff]
        %v6684 = vld [vmem:[#allocation2 + $0x18] sm:$0xff]
        %v6685 = vld [vmem:[#allocation2 + $0x20] sm:$0xff]
        %v6686 = vld [vmem:[#allocation2 + $0x28] sm:$0xff]
        %v6687 = vld [vmem:[#allocation2 + $0x30] sm:$0xff]
        %v6688 = vld [vmem:[#allocation2 + $0x38] sm:$0xff]
        %v6689 = vld [vmem:[%s422] sm:$0xff]
        %v6691 = vlaneseq
        %v6692 = vshrl.u32 %v6691, 7
        %v6693 = vsub.s32 0, %v6692
        %v6694 = vrot.slane %v6689, %v6693
        %v6695 = vlaneseq
        %v6696 = vshrl.u32 %v6695, 7
        %v6697 = vsub.s32 1, %v6696
        %v6698 = vrot.slane %v6689, %v6697
        %v6699 = vlaneseq
        %v6700 = vshrl.u32 %v6699, 7
        %v6701 = vsub.s32 2, %v6700
        %v6702 = vrot.slane %v6689, %v6701
        %v6703 = vlaneseq
        %v6704 = vshrl.u32 %v6703, 7
        %v6705 = vsub.s32 3, %v6704
        %v6706 = vrot.slane %v6689, %v6705
        %v6707 = vlaneseq
        %v6708 = vshrl.u32 %v6707, 7
        %v6709 = vsub.s32 4, %v6708
        %v6710 = vrot.slane %v6689, %v6709
        %v6711 = vlaneseq
        %v6712 = vshrl.u32 %v6711, 7
        %v6713 = vsub.s32 5, %v6712
        %v6714 = vrot.slane %v6689, %v6713
        %v6715 = vlaneseq
        %v6716 = vshrl.u32 %v6715, 7
        %v6717 = vsub.s32 6, %v6716
        %v6718 = vrot.slane %v6689, %v6717
        %v6719 = vlaneseq
        %v6720 = vshrl.u32 %v6719, 7
        %v6721 = vsub.s32 7, %v6720
        %v6722 = vrot.slane %v6689, %v6721
        %v6731 = vadd.f32 %v6681, %v6694
        %v6732 = vadd.f32 %v6682, %v6698
        %v6733 = vadd.f32 %v6683, %v6702
        %v6734 = vadd.f32 %v6684, %v6706
        %v6735 = vadd.f32 %v6685, %v6710
        %v6736 = vadd.f32 %v6686, %v6714
        %v6737 = vadd.f32 %v6687, %v6718
        %v6738 = vadd.f32 %v6688, %v6722
        %v6739 = vmax.f32 %v6731, 0.0
        %v6740 = vmax.f32 %v6732, 0.0
        %v6741 = vmax.f32 %v6733, 0.0
        %v6742 = vmax.f32 %v6734, 0.0
        %v6743 = vmax.f32 %v6735, 0.0
        %v6744 = vmax.f32 %v6736, 0.0
        %v6745 = vmax.f32 %v6737, 0.0
        %v6746 = vmax.f32 %v6738, 0.0
        %v6747 = vpack.c.bf16 %v6739, %v6739
        %v6748 = vpack.c.bf16 %v6740, %v6740
        %v6749 = vpack.c.bf16 %v6741, %v6741
        %v6750 = vpack.c.bf16 %v6742, %v6742
        %v6751 = vpack.c.bf16 %v6743, %v6743
        %v6752 = vpack.c.bf16 %v6744, %v6744
        %v6753 = vpack.c.bf16 %v6745, %v6745
        %v6754 = vpack.c.bf16 %v6746, %v6746
        %v6755 = vld [vmem:[%s427] sm:$0xff]
        %v6756 = vld [vmem:[%s427 + $0x8] sm:$0xff]
        %v6757 = vld [vmem:[%s427 + $0x10] sm:$0xff]
        %v6758 = vld [vmem:[%s427 + $0x18] sm:$0xff]
        %v6759 = vld [vmem:[%s427 + $0x20] sm:$0xff]
        %v6760 = vld [vmem:[%s427 + $0x28] sm:$0xff]
        %v6761 = vld [vmem:[%s427 + $0x30] sm:$0xff]
        %v6762 = vld [vmem:[%s427 + $0x38] sm:$0xff]
        %v6763 = vld [vmem:[%s427 + $0x40] sm:$0xff]
        %v6764 = vld [vmem:[%s427 + $0x48] sm:$0xff]
        %v6765 = vld [vmem:[%s427 + $0x50] sm:$0xff]
        %v6766 = vld [vmem:[%s427 + $0x58] sm:$0xff]
        %v6767 = vld [vmem:[%s427 + $0x60] sm:$0xff]
        %v6768 = vld [vmem:[%s427 + $0x68] sm:$0xff]
        %v6769 = vld [vmem:[%s427 + $0x70] sm:$0xff]
        %v6770 = vld [vmem:[%s427 + $0x78] sm:$0xff]
        %v6771 = vld [vmem:[%s427 + $0x80] sm:$0xff]
        %v6772 = vld [vmem:[%s427 + $0x88] sm:$0xff]
        %v6773 = vld [vmem:[%s427 + $0x90] sm:$0xff]
        %v6774 = vld [vmem:[%s427 + $0x98] sm:$0xff]
        %v6775 = vld [vmem:[%s427 + $0xa0] sm:$0xff]
        %v6776 = vld [vmem:[%s427 + $0xa8] sm:$0xff]
        %v6777 = vld [vmem:[%s427 + $0xb0] sm:$0xff]
        %v6778 = vld [vmem:[%s427 + $0xb8] sm:$0xff]
        %v6779 = vld [vmem:[%s427 + $0xc0] sm:$0xff]
        %v6780 = vld [vmem:[%s427 + $0xc8] sm:$0xff]
        %v6781 = vld [vmem:[%s427 + $0xd0] sm:$0xff]
        %v6782 = vld [vmem:[%s427 + $0xd8] sm:$0xff]
        %v6783 = vld [vmem:[%s427 + $0xe0] sm:$0xff]
        %v6784 = vld [vmem:[%s427 + $0xe8] sm:$0xff]
        %v6785 = vld [vmem:[%s427 + $0xf0] sm:$0xff]
        %v6786 = vld [vmem:[%s427 + $0xf8] sm:$0xff]
        %v6787 = vld [vmem:[%s427 + $0x100] sm:$0xff]
        %v6788 = vld [vmem:[%s427 + $0x108] sm:$0xff]
        %v6789 = vld [vmem:[%s427 + $0x110] sm:$0xff]
        %v6790 = vld [vmem:[%s427 + $0x118] sm:$0xff]
        %v6791 = vld [vmem:[%s427 + $0x120] sm:$0xff]
        %v6792 = vld [vmem:[%s427 + $0x128] sm:$0xff]
        %v6793 = vld [vmem:[%s427 + $0x130] sm:$0xff]
        %v6794 = vld [vmem:[%s427 + $0x138] sm:$0xff]
        %v6795 = vld [vmem:[%s427 + $0x140] sm:$0xff]
        %v6796 = vld [vmem:[%s427 + $0x148] sm:$0xff]
        %v6797 = vld [vmem:[%s427 + $0x150] sm:$0xff]
        %v6798 = vld [vmem:[%s427 + $0x158] sm:$0xff]
        %v6799 = vld [vmem:[%s427 + $0x160] sm:$0xff]
        %v6800 = vld [vmem:[%s427 + $0x168] sm:$0xff]
        %v6801 = vld [vmem:[%s427 + $0x170] sm:$0xff]
        %v6802 = vld [vmem:[%s427 + $0x178] sm:$0xff]
        %v6803 = vld [vmem:[%s427 + $0x180] sm:$0xff]
        %v6804 = vld [vmem:[%s427 + $0x188] sm:$0xff]
        %v6805 = vld [vmem:[%s427 + $0x190] sm:$0xff]
        %v6806 = vld [vmem:[%s427 + $0x198] sm:$0xff]
        %v6807 = vld [vmem:[%s427 + $0x1a0] sm:$0xff]
        %v6808 = vld [vmem:[%s427 + $0x1a8] sm:$0xff]
        %v6809 = vld [vmem:[%s427 + $0x1b0] sm:$0xff]
        %v6810 = vld [vmem:[%s427 + $0x1b8] sm:$0xff]
        %v6811 = vld [vmem:[%s427 + $0x1c0] sm:$0xff]
        %v6812 = vld [vmem:[%s427 + $0x1c8] sm:$0xff]
        %v6813 = vld [vmem:[%s427 + $0x1d0] sm:$0xff]
        %v6814 = vld [vmem:[%s427 + $0x1d8] sm:$0xff]
        %v6815 = vld [vmem:[%s427 + $0x1e0] sm:$0xff]
        %v6816 = vld [vmem:[%s427 + $0x1e8] sm:$0xff]
        %v6817 = vld [vmem:[%s427 + $0x1f0] sm:$0xff]
        %v6818 = vld [vmem:[%s427 + $0x1f8] sm:$0xff]
        %v6819 = vld [vmem:[%s427 + $0x200] sm:$0xff]
        %v6820 = vld [vmem:[%s427 + $0x208] sm:$0xff]
        %v6821 = vld [vmem:[%s427 + $0x210] sm:$0xff]
        %v6822 = vld [vmem:[%s427 + $0x218] sm:$0xff]
        %v6823 = vld [vmem:[%s427 + $0x220] sm:$0xff]
        %v6824 = vld [vmem:[%s427 + $0x228] sm:$0xff]
        %v6825 = vld [vmem:[%s427 + $0x230] sm:$0xff]
        %v6826 = vld [vmem:[%s427 + $0x238] sm:$0xff]
        %v6827 = vld [vmem:[%s427 + $0x240] sm:$0xff]
        %v6828 = vld [vmem:[%s427 + $0x248] sm:$0xff]
        %v6829 = vld [vmem:[%s427 + $0x250] sm:$0xff]
        %v6830 = vld [vmem:[%s427 + $0x258] sm:$0xff]
        %v6831 = vld [vmem:[%s427 + $0x260] sm:$0xff]
        %v6832 = vld [vmem:[%s427 + $0x268] sm:$0xff]
        %v6833 = vld [vmem:[%s427 + $0x270] sm:$0xff]
        %v6834 = vld [vmem:[%s427 + $0x278] sm:$0xff]
        %v6835 = vld [vmem:[%s427 + $0x280] sm:$0xff]
        %v6836 = vld [vmem:[%s427 + $0x288] sm:$0xff]
        %v6837 = vld [vmem:[%s427 + $0x290] sm:$0xff]
        %v6838 = vld [vmem:[%s427 + $0x298] sm:$0xff]
        %v6839 = vld [vmem:[%s427 + $0x2a0] sm:$0xff]
        %v6840 = vld [vmem:[%s427 + $0x2a8] sm:$0xff]
        %v6841 = vld [vmem:[%s427 + $0x2b0] sm:$0xff]
        %v6842 = vld [vmem:[%s427 + $0x2b8] sm:$0xff]
        %v6843 = vld [vmem:[%s427 + $0x2c0] sm:$0xff]
        %v6844 = vld [vmem:[%s427 + $0x2c8] sm:$0xff]
        %v6845 = vld [vmem:[%s427 + $0x2d0] sm:$0xff]
        %v6846 = vld [vmem:[%s427 + $0x2d8] sm:$0xff]
        %v6847 = vld [vmem:[%s427 + $0x2e0] sm:$0xff]
        %v6848 = vld [vmem:[%s427 + $0x2e8] sm:$0xff]
        %v6849 = vld [vmem:[%s427 + $0x2f0] sm:$0xff]
        %v6850 = vld [vmem:[%s427 + $0x2f8] sm:$0xff]
        %v6851 = vld [vmem:[%s427 + $0x300] sm:$0xff]
        %v6852 = vld [vmem:[%s427 + $0x308] sm:$0xff]
        %v6853 = vld [vmem:[%s427 + $0x310] sm:$0xff]
        %v6854 = vld [vmem:[%s427 + $0x318] sm:$0xff]
        %v6855 = vld [vmem:[%s427 + $0x320] sm:$0xff]
        %v6856 = vld [vmem:[%s427 + $0x328] sm:$0xff]
        %v6857 = vld [vmem:[%s427 + $0x330] sm:$0xff]
        %v6858 = vld [vmem:[%s427 + $0x338] sm:$0xff]
        %v6859 = vld [vmem:[%s427 + $0x340] sm:$0xff]
        %v6860 = vld [vmem:[%s427 + $0x348] sm:$0xff]
        %v6861 = vld [vmem:[%s427 + $0x350] sm:$0xff]
        %v6862 = vld [vmem:[%s427 + $0x358] sm:$0xff]
        %v6863 = vld [vmem:[%s427 + $0x360] sm:$0xff]
        %v6864 = vld [vmem:[%s427 + $0x368] sm:$0xff]
        %v6865 = vld [vmem:[%s427 + $0x370] sm:$0xff]
        %v6866 = vld [vmem:[%s427 + $0x378] sm:$0xff]
        %v6867 = vld [vmem:[%s427 + $0x380] sm:$0xff]
        %v6868 = vld [vmem:[%s427 + $0x388] sm:$0xff]
        %v6869 = vld [vmem:[%s427 + $0x390] sm:$0xff]
        %v6870 = vld [vmem:[%s427 + $0x398] sm:$0xff]
        %v6871 = vld [vmem:[%s427 + $0x3a0] sm:$0xff]
        %v6872 = vld [vmem:[%s427 + $0x3a8] sm:$0xff]
        %v6873 = vld [vmem:[%s427 + $0x3b0] sm:$0xff]
        %v6874 = vld [vmem:[%s427 + $0x3b8] sm:$0xff]
        %v6875 = vld [vmem:[%s427 + $0x3c0] sm:$0xff]
        %v6876 = vld [vmem:[%s427 + $0x3c8] sm:$0xff]
        %v6877 = vld [vmem:[%s427 + $0x3d0] sm:$0xff]
        %v6878 = vld [vmem:[%s427 + $0x3d8] sm:$0xff]
        %v6879 = vld [vmem:[%s427 + $0x3e0] sm:$0xff]
        %v6880 = vld [vmem:[%s427 + $0x3e8] sm:$0xff]
        %v6881 = vld [vmem:[%s427 + $0x3f0] sm:$0xff]
        %v6882 = vld [vmem:[%s427 + $0x3f8] sm:$0xff]
        %v6883 = vld [vmem:[%s427 + $0x400] sm:$0xff]
        %v6884 = vld [vmem:[%s427 + $0x408] sm:$0xff]
        %v6885 = vld [vmem:[%s427 + $0x410] sm:$0xff]
        %v6886 = vld [vmem:[%s427 + $0x418] sm:$0xff]
        %v6887 = vld [vmem:[%s427 + $0x420] sm:$0xff]
        %v6888 = vld [vmem:[%s427 + $0x428] sm:$0xff]
        %v6889 = vld [vmem:[%s427 + $0x430] sm:$0xff]
        %v6890 = vld [vmem:[%s427 + $0x438] sm:$0xff]
        %v6891 = vld [vmem:[%s427 + $0x440] sm:$0xff]
        %v6892 = vld [vmem:[%s427 + $0x448] sm:$0xff]
        %v6893 = vld [vmem:[%s427 + $0x450] sm:$0xff]
        %v6894 = vld [vmem:[%s427 + $0x458] sm:$0xff]
        %v6895 = vld [vmem:[%s427 + $0x460] sm:$0xff]
        %v6896 = vld [vmem:[%s427 + $0x468] sm:$0xff]
        %v6897 = vld [vmem:[%s427 + $0x470] sm:$0xff]
        %v6898 = vld [vmem:[%s427 + $0x478] sm:$0xff]
        %v6899 = vld [vmem:[%s427 + $0x480] sm:$0xff]
        %v6900 = vld [vmem:[%s427 + $0x488] sm:$0xff]
        %v6901 = vld [vmem:[%s427 + $0x490] sm:$0xff]
        %v6902 = vld [vmem:[%s427 + $0x498] sm:$0xff]
        %v6903 = vld [vmem:[%s427 + $0x4a0] sm:$0xff]
        %v6904 = vld [vmem:[%s427 + $0x4a8] sm:$0xff]
        %v6905 = vld [vmem:[%s427 + $0x4b0] sm:$0xff]
        %v6906 = vld [vmem:[%s427 + $0x4b8] sm:$0xff]
        %v6907 = vld [vmem:[%s427 + $0x4c0] sm:$0xff]
        %v6908 = vld [vmem:[%s427 + $0x4c8] sm:$0xff]
        %v6909 = vld [vmem:[%s427 + $0x4d0] sm:$0xff]
        %v6910 = vld [vmem:[%s427 + $0x4d8] sm:$0xff]
        %v6911 = vld [vmem:[%s427 + $0x4e0] sm:$0xff]
        %v6912 = vld [vmem:[%s427 + $0x4e8] sm:$0xff]
        %v6913 = vld [vmem:[%s427 + $0x4f0] sm:$0xff]
        %v6914 = vld [vmem:[%s427 + $0x4f8] sm:$0xff]
        %v6915 = vld [vmem:[%s427 + $0x500] sm:$0xff]
        %v6916 = vld [vmem:[%s427 + $0x508] sm:$0xff]
        %v6917 = vld [vmem:[%s427 + $0x510] sm:$0xff]
        %v6918 = vld [vmem:[%s427 + $0x518] sm:$0xff]
        %v6919 = vld [vmem:[%s427 + $0x520] sm:$0xff]
        %v6920 = vld [vmem:[%s427 + $0x528] sm:$0xff]
        %v6921 = vld [vmem:[%s427 + $0x530] sm:$0xff]
        %v6922 = vld [vmem:[%s427 + $0x538] sm:$0xff]
        %v6923 = vld [vmem:[%s427 + $0x540] sm:$0xff]
        %v6924 = vld [vmem:[%s427 + $0x548] sm:$0xff]
        %v6925 = vld [vmem:[%s427 + $0x550] sm:$0xff]
        %v6926 = vld [vmem:[%s427 + $0x558] sm:$0xff]
        %v6927 = vld [vmem:[%s427 + $0x560] sm:$0xff]
        %v6928 = vld [vmem:[%s427 + $0x568] sm:$0xff]
        %v6929 = vld [vmem:[%s427 + $0x570] sm:$0xff]
        %v6930 = vld [vmem:[%s427 + $0x578] sm:$0xff]
        %v6931 = vld [vmem:[%s427 + $0x580] sm:$0xff]
        %v6932 = vld [vmem:[%s427 + $0x588] sm:$0xff]
        %v6933 = vld [vmem:[%s427 + $0x590] sm:$0xff]
        %v6934 = vld [vmem:[%s427 + $0x598] sm:$0xff]
        %v6935 = vld [vmem:[%s427 + $0x5a0] sm:$0xff]
        %v6936 = vld [vmem:[%s427 + $0x5a8] sm:$0xff]
        %v6937 = vld [vmem:[%s427 + $0x5b0] sm:$0xff]
        %v6938 = vld [vmem:[%s427 + $0x5b8] sm:$0xff]
        %v6939 = vld [vmem:[%s427 + $0x5c0] sm:$0xff]
        %v6940 = vld [vmem:[%s427 + $0x5c8] sm:$0xff]
        %v6941 = vld [vmem:[%s427 + $0x5d0] sm:$0xff]
        %v6942 = vld [vmem:[%s427 + $0x5d8] sm:$0xff]
        %v6943 = vld [vmem:[%s427 + $0x5e0] sm:$0xff]
        %v6944 = vld [vmem:[%s427 + $0x5e8] sm:$0xff]
        %v6945 = vld [vmem:[%s427 + $0x5f0] sm:$0xff]
        %v6946 = vld [vmem:[%s427 + $0x5f8] sm:$0xff]
        %v6947 = vld [vmem:[%s427 + $0x600] sm:$0xff]
        %v6948 = vld [vmem:[%s427 + $0x608] sm:$0xff]
        %v6949 = vld [vmem:[%s427 + $0x610] sm:$0xff]
        %v6950 = vld [vmem:[%s427 + $0x618] sm:$0xff]
        %v6951 = vld [vmem:[%s427 + $0x620] sm:$0xff]
        %v6952 = vld [vmem:[%s427 + $0x628] sm:$0xff]
        %v6953 = vld [vmem:[%s427 + $0x630] sm:$0xff]
        %v6954 = vld [vmem:[%s427 + $0x638] sm:$0xff]
        %v6955 = vld [vmem:[%s427 + $0x640] sm:$0xff]
        %v6956 = vld [vmem:[%s427 + $0x648] sm:$0xff]
        %v6957 = vld [vmem:[%s427 + $0x650] sm:$0xff]
        %v6958 = vld [vmem:[%s427 + $0x658] sm:$0xff]
        %v6959 = vld [vmem:[%s427 + $0x660] sm:$0xff]
        %v6960 = vld [vmem:[%s427 + $0x668] sm:$0xff]
        %v6961 = vld [vmem:[%s427 + $0x670] sm:$0xff]
        %v6962 = vld [vmem:[%s427 + $0x678] sm:$0xff]
        %v6963 = vld [vmem:[%s427 + $0x680] sm:$0xff]
        %v6964 = vld [vmem:[%s427 + $0x688] sm:$0xff]
        %v6965 = vld [vmem:[%s427 + $0x690] sm:$0xff]
        %v6966 = vld [vmem:[%s427 + $0x698] sm:$0xff]
        %v6967 = vld [vmem:[%s427 + $0x6a0] sm:$0xff]
        %v6968 = vld [vmem:[%s427 + $0x6a8] sm:$0xff]
        %v6969 = vld [vmem:[%s427 + $0x6b0] sm:$0xff]
        %v6970 = vld [vmem:[%s427 + $0x6b8] sm:$0xff]
        %v6971 = vld [vmem:[%s427 + $0x6c0] sm:$0xff]
        %v6972 = vld [vmem:[%s427 + $0x6c8] sm:$0xff]
        %v6973 = vld [vmem:[%s427 + $0x6d0] sm:$0xff]
        %v6974 = vld [vmem:[%s427 + $0x6d8] sm:$0xff]
        %v6975 = vld [vmem:[%s427 + $0x6e0] sm:$0xff]
        %v6976 = vld [vmem:[%s427 + $0x6e8] sm:$0xff]
        %v6977 = vld [vmem:[%s427 + $0x6f0] sm:$0xff]
        %v6978 = vld [vmem:[%s427 + $0x6f8] sm:$0xff]
        %v6979 = vld [vmem:[%s427 + $0x700] sm:$0xff]
        %v6980 = vld [vmem:[%s427 + $0x708] sm:$0xff]
        %v6981 = vld [vmem:[%s427 + $0x710] sm:$0xff]
        %v6982 = vld [vmem:[%s427 + $0x718] sm:$0xff]
        %v6983 = vld [vmem:[%s427 + $0x720] sm:$0xff]
        %v6984 = vld [vmem:[%s427 + $0x728] sm:$0xff]
        %v6985 = vld [vmem:[%s427 + $0x730] sm:$0xff]
        %v6986 = vld [vmem:[%s427 + $0x738] sm:$0xff]
        %v6987 = vld [vmem:[%s427 + $0x740] sm:$0xff]
        %v6988 = vld [vmem:[%s427 + $0x748] sm:$0xff]
        %v6989 = vld [vmem:[%s427 + $0x750] sm:$0xff]
        %v6990 = vld [vmem:[%s427 + $0x758] sm:$0xff]
        %v6991 = vld [vmem:[%s427 + $0x760] sm:$0xff]
        %v6992 = vld [vmem:[%s427 + $0x768] sm:$0xff]
        %v6993 = vld [vmem:[%s427 + $0x770] sm:$0xff]
        %v6994 = vld [vmem:[%s427 + $0x778] sm:$0xff]
        %v6995 = vld [vmem:[%s427 + $0x780] sm:$0xff]
        %v6996 = vld [vmem:[%s427 + $0x788] sm:$0xff]
        %v6997 = vld [vmem:[%s427 + $0x790] sm:$0xff]
        %v6998 = vld [vmem:[%s427 + $0x798] sm:$0xff]
        %v6999 = vld [vmem:[%s427 + $0x7a0] sm:$0xff]
        %v7000 = vld [vmem:[%s427 + $0x7a8] sm:$0xff]
        %v7001 = vld [vmem:[%s427 + $0x7b0] sm:$0xff]
        %v7002 = vld [vmem:[%s427 + $0x7b8] sm:$0xff]
        %v7003 = vld [vmem:[%s427 + $0x7c0] sm:$0xff]
        %v7004 = vld [vmem:[%s427 + $0x7c8] sm:$0xff]
        %v7005 = vld [vmem:[%s427 + $0x7d0] sm:$0xff]
        %v7006 = vld [vmem:[%s427 + $0x7d8] sm:$0xff]
        %v7007 = vld [vmem:[%s427 + $0x7e0] sm:$0xff]
        %v7008 = vld [vmem:[%s427 + $0x7e8] sm:$0xff]
        %v7009 = vld [vmem:[%s427 + $0x7f0] sm:$0xff]
        %v7010 = vld [vmem:[%s427 + $0x7f8] sm:$0xff]
        %v7011 = vld [vmem:[%s427 + $0x800] sm:$0xff]
        %v7012 = vld [vmem:[%s427 + $0x808] sm:$0xff]
        %v7013 = vld [vmem:[%s427 + $0x810] sm:$0xff]
        %v7014 = vld [vmem:[%s427 + $0x818] sm:$0xff]
        %v7015 = vld [vmem:[%s427 + $0x820] sm:$0xff]
        %v7016 = vld [vmem:[%s427 + $0x828] sm:$0xff]
        %v7017 = vld [vmem:[%s427 + $0x830] sm:$0xff]
        %v7018 = vld [vmem:[%s427 + $0x838] sm:$0xff]
        %v7019 = vld [vmem:[%s427 + $0x840] sm:$0xff]
        %v7020 = vld [vmem:[%s427 + $0x848] sm:$0xff]
        %v7021 = vld [vmem:[%s427 + $0x850] sm:$0xff]
        %v7022 = vld [vmem:[%s427 + $0x858] sm:$0xff]
        %v7023 = vld [vmem:[%s427 + $0x860] sm:$0xff]
        %v7024 = vld [vmem:[%s427 + $0x868] sm:$0xff]
        %v7025 = vld [vmem:[%s427 + $0x870] sm:$0xff]
        %v7026 = vld [vmem:[%s427 + $0x878] sm:$0xff]
        %v7027 = vld [vmem:[%s427 + $0x880] sm:$0xff]
        %v7028 = vld [vmem:[%s427 + $0x888] sm:$0xff]
        %v7029 = vld [vmem:[%s427 + $0x890] sm:$0xff]
        %v7030 = vld [vmem:[%s427 + $0x898] sm:$0xff]
        %v7031 = vld [vmem:[%s427 + $0x8a0] sm:$0xff]
        %v7032 = vld [vmem:[%s427 + $0x8a8] sm:$0xff]
        %v7033 = vld [vmem:[%s427 + $0x8b0] sm:$0xff]
        %v7034 = vld [vmem:[%s427 + $0x8b8] sm:$0xff]
        %v7035 = vld [vmem:[%s427 + $0x8c0] sm:$0xff]
        %v7036 = vld [vmem:[%s427 + $0x8c8] sm:$0xff]
        %v7037 = vld [vmem:[%s427 + $0x8d0] sm:$0xff]
        %v7038 = vld [vmem:[%s427 + $0x8d8] sm:$0xff]
        %v7039 = vld [vmem:[%s427 + $0x8e0] sm:$0xff]
        %v7040 = vld [vmem:[%s427 + $0x8e8] sm:$0xff]
        %v7041 = vld [vmem:[%s427 + $0x8f0] sm:$0xff]
        %v7042 = vld [vmem:[%s427 + $0x8f8] sm:$0xff]
        %v7043 = vld [vmem:[%s427 + $0x900] sm:$0xff]
        %v7044 = vld [vmem:[%s427 + $0x908] sm:$0xff]
        %v7045 = vld [vmem:[%s427 + $0x910] sm:$0xff]
        %v7046 = vld [vmem:[%s427 + $0x918] sm:$0xff]
        %v7047 = vld [vmem:[%s427 + $0x920] sm:$0xff]
        %v7048 = vld [vmem:[%s427 + $0x928] sm:$0xff]
        %v7049 = vld [vmem:[%s427 + $0x930] sm:$0xff]
        %v7050 = vld [vmem:[%s427 + $0x938] sm:$0xff]
        %v7051 = vld [vmem:[%s427 + $0x940] sm:$0xff]
        %v7052 = vld [vmem:[%s427 + $0x948] sm:$0xff]
        %v7053 = vld [vmem:[%s427 + $0x950] sm:$0xff]
        %v7054 = vld [vmem:[%s427 + $0x958] sm:$0xff]
        %v7055 = vld [vmem:[%s427 + $0x960] sm:$0xff]
        %v7056 = vld [vmem:[%s427 + $0x968] sm:$0xff]
        %v7057 = vld [vmem:[%s427 + $0x970] sm:$0xff]
        %v7058 = vld [vmem:[%s427 + $0x978] sm:$0xff]
        %v7059 = vld [vmem:[%s427 + $0x980] sm:$0xff]
        %v7060 = vld [vmem:[%s427 + $0x988] sm:$0xff]
        %v7061 = vld [vmem:[%s427 + $0x990] sm:$0xff]
        %v7062 = vld [vmem:[%s427 + $0x998] sm:$0xff]
        %v7063 = vld [vmem:[%s427 + $0x9a0] sm:$0xff]
        %v7064 = vld [vmem:[%s427 + $0x9a8] sm:$0xff]
        %v7065 = vld [vmem:[%s427 + $0x9b0] sm:$0xff]
        %v7066 = vld [vmem:[%s427 + $0x9b8] sm:$0xff]
        %v7067 = vld [vmem:[%s427 + $0x9c0] sm:$0xff]
        %v7068 = vld [vmem:[%s427 + $0x9c8] sm:$0xff]
        %v7069 = vld [vmem:[%s427 + $0x9d0] sm:$0xff]
        %v7070 = vld [vmem:[%s427 + $0x9d8] sm:$0xff]
        %v7071 = vld [vmem:[%s427 + $0x9e0] sm:$0xff]
        %v7072 = vld [vmem:[%s427 + $0x9e8] sm:$0xff]
        %v7073 = vld [vmem:[%s427 + $0x9f0] sm:$0xff]
        %v7074 = vld [vmem:[%s427 + $0x9f8] sm:$0xff]
        %v7075 = vld [vmem:[%s427 + $0xa00] sm:$0xff]
        %v7076 = vld [vmem:[%s427 + $0xa08] sm:$0xff]
        %v7077 = vld [vmem:[%s427 + $0xa10] sm:$0xff]
        %v7078 = vld [vmem:[%s427 + $0xa18] sm:$0xff]
        %v7079 = vld [vmem:[%s427 + $0xa20] sm:$0xff]
        %v7080 = vld [vmem:[%s427 + $0xa28] sm:$0xff]
        %v7081 = vld [vmem:[%s427 + $0xa30] sm:$0xff]
        %v7082 = vld [vmem:[%s427 + $0xa38] sm:$0xff]
        %v7083 = vld [vmem:[%s427 + $0xa40] sm:$0xff]
        %v7084 = vld [vmem:[%s427 + $0xa48] sm:$0xff]
        %v7085 = vld [vmem:[%s427 + $0xa50] sm:$0xff]
        %v7086 = vld [vmem:[%s427 + $0xa58] sm:$0xff]
        %v7087 = vld [vmem:[%s427 + $0xa60] sm:$0xff]
        %v7088 = vld [vmem:[%s427 + $0xa68] sm:$0xff]
        %v7089 = vld [vmem:[%s427 + $0xa70] sm:$0xff]
        %v7090 = vld [vmem:[%s427 + $0xa78] sm:$0xff]
        %v7091 = vld [vmem:[%s427 + $0xa80] sm:$0xff]
        %v7092 = vld [vmem:[%s427 + $0xa88] sm:$0xff]
        %v7093 = vld [vmem:[%s427 + $0xa90] sm:$0xff]
        %v7094 = vld [vmem:[%s427 + $0xa98] sm:$0xff]
        %v7095 = vld [vmem:[%s427 + $0xaa0] sm:$0xff]
        %v7096 = vld [vmem:[%s427 + $0xaa8] sm:$0xff]
        %v7097 = vld [vmem:[%s427 + $0xab0] sm:$0xff]
        %v7098 = vld [vmem:[%s427 + $0xab8] sm:$0xff]
        %v7099 = vld [vmem:[%s427 + $0xac0] sm:$0xff]
        %v7100 = vld [vmem:[%s427 + $0xac8] sm:$0xff]
        %v7101 = vld [vmem:[%s427 + $0xad0] sm:$0xff]
        %v7102 = vld [vmem:[%s427 + $0xad8] sm:$0xff]
        %v7103 = vld [vmem:[%s427 + $0xae0] sm:$0xff]
        %v7104 = vld [vmem:[%s427 + $0xae8] sm:$0xff]
        %v7105 = vld [vmem:[%s427 + $0xaf0] sm:$0xff]
        %v7106 = vld [vmem:[%s427 + $0xaf8] sm:$0xff]
        %v7107 = vld [vmem:[%s427 + $0xb00] sm:$0xff]
        %v7108 = vld [vmem:[%s427 + $0xb08] sm:$0xff]
        %v7109 = vld [vmem:[%s427 + $0xb10] sm:$0xff]
        %v7110 = vld [vmem:[%s427 + $0xb18] sm:$0xff]
        %v7111 = vld [vmem:[%s427 + $0xb20] sm:$0xff]
        %v7112 = vld [vmem:[%s427 + $0xb28] sm:$0xff]
        %v7113 = vld [vmem:[%s427 + $0xb30] sm:$0xff]
        %v7114 = vld [vmem:[%s427 + $0xb38] sm:$0xff]
        %v7115 = vld [vmem:[%s427 + $0xb40] sm:$0xff]
        %v7116 = vld [vmem:[%s427 + $0xb48] sm:$0xff]
        %v7117 = vld [vmem:[%s427 + $0xb50] sm:$0xff]
        %v7118 = vld [vmem:[%s427 + $0xb58] sm:$0xff]
        %v7119 = vld [vmem:[%s427 + $0xb60] sm:$0xff]
        %v7120 = vld [vmem:[%s427 + $0xb68] sm:$0xff]
        %v7121 = vld [vmem:[%s427 + $0xb70] sm:$0xff]
        %v7122 = vld [vmem:[%s427 + $0xb78] sm:$0xff]
        %v7123 = vld [vmem:[%s427 + $0xb80] sm:$0xff]
        %v7124 = vld [vmem:[%s427 + $0xb88] sm:$0xff]
        %v7125 = vld [vmem:[%s427 + $0xb90] sm:$0xff]
        %v7126 = vld [vmem:[%s427 + $0xb98] sm:$0xff]
        %v7127 = vld [vmem:[%s427 + $0xba0] sm:$0xff]
        %v7128 = vld [vmem:[%s427 + $0xba8] sm:$0xff]
        %v7129 = vld [vmem:[%s427 + $0xbb0] sm:$0xff]
        %v7130 = vld [vmem:[%s427 + $0xbb8] sm:$0xff]
        %v7131 = vld [vmem:[%s427 + $0xbc0] sm:$0xff]
        %v7132 = vld [vmem:[%s427 + $0xbc8] sm:$0xff]
        %v7133 = vld [vmem:[%s427 + $0xbd0] sm:$0xff]
        %v7134 = vld [vmem:[%s427 + $0xbd8] sm:$0xff]
        %v7135 = vld [vmem:[%s427 + $0xbe0] sm:$0xff]
        %v7136 = vld [vmem:[%s427 + $0xbe8] sm:$0xff]
        %v7137 = vld [vmem:[%s427 + $0xbf0] sm:$0xff]
        %v7138 = vld [vmem:[%s427 + $0xbf8] sm:$0xff]
        %v7139 = vld [vmem:[%s427 + $0xc00] sm:$0xff]
        %v7140 = vld [vmem:[%s427 + $0xc08] sm:$0xff]
        %v7141 = vld [vmem:[%s427 + $0xc10] sm:$0xff]
        %v7142 = vld [vmem:[%s427 + $0xc18] sm:$0xff]
        %v7143 = vld [vmem:[%s427 + $0xc20] sm:$0xff]
        %v7144 = vld [vmem:[%s427 + $0xc28] sm:$0xff]
        %v7145 = vld [vmem:[%s427 + $0xc30] sm:$0xff]
        %v7146 = vld [vmem:[%s427 + $0xc38] sm:$0xff]
        %v7147 = vld [vmem:[%s427 + $0xc40] sm:$0xff]
        %v7148 = vld [vmem:[%s427 + $0xc48] sm:$0xff]
        %v7149 = vld [vmem:[%s427 + $0xc50] sm:$0xff]
        %v7150 = vld [vmem:[%s427 + $0xc58] sm:$0xff]
        %v7151 = vld [vmem:[%s427 + $0xc60] sm:$0xff]
        %v7152 = vld [vmem:[%s427 + $0xc68] sm:$0xff]
        %v7153 = vld [vmem:[%s427 + $0xc70] sm:$0xff]
        %v7154 = vld [vmem:[%s427 + $0xc78] sm:$0xff]
        %v7155 = vld [vmem:[%s427 + $0xc80] sm:$0xff]
        %v7156 = vld [vmem:[%s427 + $0xc88] sm:$0xff]
        %v7157 = vld [vmem:[%s427 + $0xc90] sm:$0xff]
        %v7158 = vld [vmem:[%s427 + $0xc98] sm:$0xff]
        %v7159 = vld [vmem:[%s427 + $0xca0] sm:$0xff]
        %v7160 = vld [vmem:[%s427 + $0xca8] sm:$0xff]
        %v7161 = vld [vmem:[%s427 + $0xcb0] sm:$0xff]
        %v7162 = vld [vmem:[%s427 + $0xcb8] sm:$0xff]
        %v7163 = vld [vmem:[%s427 + $0xcc0] sm:$0xff]
        %v7164 = vld [vmem:[%s427 + $0xcc8] sm:$0xff]
        %v7165 = vld [vmem:[%s427 + $0xcd0] sm:$0xff]
        %v7166 = vld [vmem:[%s427 + $0xcd8] sm:$0xff]
        %v7167 = vld [vmem:[%s427 + $0xce0] sm:$0xff]
        %v7168 = vld [vmem:[%s427 + $0xce8] sm:$0xff]
        %v7169 = vld [vmem:[%s427 + $0xcf0] sm:$0xff]
        %v7170 = vld [vmem:[%s427 + $0xcf8] sm:$0xff]
        %v7171 = vld [vmem:[%s427 + $0xd00] sm:$0xff]
        %v7172 = vld [vmem:[%s427 + $0xd08] sm:$0xff]
        %v7173 = vld [vmem:[%s427 + $0xd10] sm:$0xff]
        %v7174 = vld [vmem:[%s427 + $0xd18] sm:$0xff]
        %v7175 = vld [vmem:[%s427 + $0xd20] sm:$0xff]
        %v7176 = vld [vmem:[%s427 + $0xd28] sm:$0xff]
        %v7177 = vld [vmem:[%s427 + $0xd30] sm:$0xff]
        %v7178 = vld [vmem:[%s427 + $0xd38] sm:$0xff]
        %v7179 = vld [vmem:[%s427 + $0xd40] sm:$0xff]
        %v7180 = vld [vmem:[%s427 + $0xd48] sm:$0xff]
        %v7181 = vld [vmem:[%s427 + $0xd50] sm:$0xff]
        %v7182 = vld [vmem:[%s427 + $0xd58] sm:$0xff]
        %v7183 = vld [vmem:[%s427 + $0xd60] sm:$0xff]
        %v7184 = vld [vmem:[%s427 + $0xd68] sm:$0xff]
        %v7185 = vld [vmem:[%s427 + $0xd70] sm:$0xff]
        %v7186 = vld [vmem:[%s427 + $0xd78] sm:$0xff]
        %v7187 = vld [vmem:[%s427 + $0xd80] sm:$0xff]
        %v7188 = vld [vmem:[%s427 + $0xd88] sm:$0xff]
        %v7189 = vld [vmem:[%s427 + $0xd90] sm:$0xff]
        %v7190 = vld [vmem:[%s427 + $0xd98] sm:$0xff]
        %v7191 = vld [vmem:[%s427 + $0xda0] sm:$0xff]
        %v7192 = vld [vmem:[%s427 + $0xda8] sm:$0xff]
        %v7193 = vld [vmem:[%s427 + $0xdb0] sm:$0xff]
        %v7194 = vld [vmem:[%s427 + $0xdb8] sm:$0xff]
        %v7195 = vld [vmem:[%s427 + $0xdc0] sm:$0xff]
        %v7196 = vld [vmem:[%s427 + $0xdc8] sm:$0xff]
        %v7197 = vld [vmem:[%s427 + $0xdd0] sm:$0xff]
        %v7198 = vld [vmem:[%s427 + $0xdd8] sm:$0xff]
        %v7199 = vld [vmem:[%s427 + $0xde0] sm:$0xff]
        %v7200 = vld [vmem:[%s427 + $0xde8] sm:$0xff]
        %v7201 = vld [vmem:[%s427 + $0xdf0] sm:$0xff]
        %v7202 = vld [vmem:[%s427 + $0xdf8] sm:$0xff]
        %v7203 = vld [vmem:[%s427 + $0xe00] sm:$0xff]
        %v7204 = vld [vmem:[%s427 + $0xe08] sm:$0xff]
        %v7205 = vld [vmem:[%s427 + $0xe10] sm:$0xff]
        %v7206 = vld [vmem:[%s427 + $0xe18] sm:$0xff]
        %v7207 = vld [vmem:[%s427 + $0xe20] sm:$0xff]
        %v7208 = vld [vmem:[%s427 + $0xe28] sm:$0xff]
        %v7209 = vld [vmem:[%s427 + $0xe30] sm:$0xff]
        %v7210 = vld [vmem:[%s427 + $0xe38] sm:$0xff]
        %v7211 = vld [vmem:[%s427 + $0xe40] sm:$0xff]
        %v7212 = vld [vmem:[%s427 + $0xe48] sm:$0xff]
        %v7213 = vld [vmem:[%s427 + $0xe50] sm:$0xff]
        %v7214 = vld [vmem:[%s427 + $0xe58] sm:$0xff]
        %v7215 = vld [vmem:[%s427 + $0xe60] sm:$0xff]
        %v7216 = vld [vmem:[%s427 + $0xe68] sm:$0xff]
        %v7217 = vld [vmem:[%s427 + $0xe70] sm:$0xff]
        %v7218 = vld [vmem:[%s427 + $0xe78] sm:$0xff]
        %v7219 = vld [vmem:[%s427 + $0xe80] sm:$0xff]
        %v7220 = vld [vmem:[%s427 + $0xe88] sm:$0xff]
        %v7221 = vld [vmem:[%s427 + $0xe90] sm:$0xff]
        %v7222 = vld [vmem:[%s427 + $0xe98] sm:$0xff]
        %v7223 = vld [vmem:[%s427 + $0xea0] sm:$0xff]
        %v7224 = vld [vmem:[%s427 + $0xea8] sm:$0xff]
        %v7225 = vld [vmem:[%s427 + $0xeb0] sm:$0xff]
        %v7226 = vld [vmem:[%s427 + $0xeb8] sm:$0xff]
        %v7227 = vld [vmem:[%s427 + $0xec0] sm:$0xff]
        %v7228 = vld [vmem:[%s427 + $0xec8] sm:$0xff]
        %v7229 = vld [vmem:[%s427 + $0xed0] sm:$0xff]
        %v7230 = vld [vmem:[%s427 + $0xed8] sm:$0xff]
        %v7231 = vld [vmem:[%s427 + $0xee0] sm:$0xff]
        %v7232 = vld [vmem:[%s427 + $0xee8] sm:$0xff]
        %v7233 = vld [vmem:[%s427 + $0xef0] sm:$0xff]
        %v7234 = vld [vmem:[%s427 + $0xef8] sm:$0xff]
        %v7235 = vld [vmem:[%s427 + $0xf00] sm:$0xff]
        %v7236 = vld [vmem:[%s427 + $0xf08] sm:$0xff]
        %v7237 = vld [vmem:[%s427 + $0xf10] sm:$0xff]
        %v7238 = vld [vmem:[%s427 + $0xf18] sm:$0xff]
        %v7239 = vld [vmem:[%s427 + $0xf20] sm:$0xff]
        %v7240 = vld [vmem:[%s427 + $0xf28] sm:$0xff]
        %v7241 = vld [vmem:[%s427 + $0xf30] sm:$0xff]
        %v7242 = vld [vmem:[%s427 + $0xf38] sm:$0xff]
        %v7243 = vld [vmem:[%s427 + $0xf40] sm:$0xff]
        %v7244 = vld [vmem:[%s427 + $0xf48] sm:$0xff]
        %v7245 = vld [vmem:[%s427 + $0xf50] sm:$0xff]
        %v7246 = vld [vmem:[%s427 + $0xf58] sm:$0xff]
        %v7247 = vld [vmem:[%s427 + $0xf60] sm:$0xff]
        %v7248 = vld [vmem:[%s427 + $0xf68] sm:$0xff]
        %v7249 = vld [vmem:[%s427 + $0xf70] sm:$0xff]
        %v7250 = vld [vmem:[%s427 + $0xf78] sm:$0xff]
        %v7251 = vld [vmem:[%s427 + $0xf80] sm:$0xff]
        %v7252 = vld [vmem:[%s427 + $0xf88] sm:$0xff]
        %v7253 = vld [vmem:[%s427 + $0xf90] sm:$0xff]
        %v7254 = vld [vmem:[%s427 + $0xf98] sm:$0xff]
        %v7255 = vld [vmem:[%s427 + $0xfa0] sm:$0xff]
        %v7256 = vld [vmem:[%s427 + $0xfa8] sm:$0xff]
        %v7257 = vld [vmem:[%s427 + $0xfb0] sm:$0xff]
        %v7258 = vld [vmem:[%s427 + $0xfb8] sm:$0xff]
        %v7259 = vld [vmem:[%s427 + $0xfc0] sm:$0xff]
        %v7260 = vld [vmem:[%s427 + $0xfc8] sm:$0xff]
        %v7261 = vld [vmem:[%s427 + $0xfd0] sm:$0xff]
        %v7262 = vld [vmem:[%s427 + $0xfd8] sm:$0xff]
        %v7263 = vld [vmem:[%s427 + $0xfe0] sm:$0xff]
        %v7264 = vld [vmem:[%s427 + $0xfe8] sm:$0xff]
        %v7265 = vld [vmem:[%s427 + $0xff0] sm:$0xff]
        %v7266 = vld [vmem:[%s427 + $0xff8] sm:$0xff]
        %v7267 = vld [vmem:[%s431] sm:$0xff]
        %v7269 = vlaneseq
        %v7270 = vshrl.u32 %v7269, 7
        %v7271 = vsub.s32 0, %v7270
        %v7272 = vrot.slane %v7267, %v7271
        %v7273 = vlaneseq
        %v7274 = vshrl.u32 %v7273, 7
        %v7275 = vsub.s32 1, %v7274
        %v7276 = vrot.slane %v7267, %v7275
        %v7277 = vlaneseq
        %v7278 = vshrl.u32 %v7277, 7
        %v7279 = vsub.s32 2, %v7278
        %v7280 = vrot.slane %v7267, %v7279
        %v7281 = vlaneseq
        %v7282 = vshrl.u32 %v7281, 7
        %v7283 = vsub.s32 3, %v7282
        %v7284 = vrot.slane %v7267, %v7283
        %v7285 = vlaneseq
        %v7286 = vshrl.u32 %v7285, 7
        %v7287 = vsub.s32 4, %v7286
        %v7288 = vrot.slane %v7267, %v7287
        %v7289 = vlaneseq
        %v7290 = vshrl.u32 %v7289, 7
        %v7291 = vsub.s32 5, %v7290
        %v7292 = vrot.slane %v7267, %v7291
        %v7293 = vlaneseq
        %v7294 = vshrl.u32 %v7293, 7
        %v7295 = vsub.s32 6, %v7294
        %v7296 = vrot.slane %v7267, %v7295
        %v7297 = vlaneseq
        %v7298 = vshrl.u32 %v7297, 7
        %v7299 = vsub.s32 7, %v7298
        %v7300 = vrot.slane %v7267, %v7299
        %v7821 = vunpack.c.l.b16 %v6755
        %v7822 = vunpack.c.h.b16 %v6755
        %v7823 = vunpack.c.l.b16 %v6756
        %v7824 = vunpack.c.h.b16 %v6756
        %v7825 = vunpack.c.l.b16 %v6757
        %v7826 = vunpack.c.h.b16 %v6757
        %v7827 = vunpack.c.l.b16 %v6758
        %v7828 = vunpack.c.h.b16 %v6758
        %v7829 = vunpack.c.l.b16 %v6759
        %v7830 = vunpack.c.h.b16 %v6759
        %v7831 = vunpack.c.l.b16 %v6760
        %v7832 = vunpack.c.h.b16 %v6760
        %v7833 = vunpack.c.l.b16 %v6761
        %v7834 = vunpack.c.h.b16 %v6761
        %v7835 = vunpack.c.l.b16 %v6762
        %v7836 = vunpack.c.h.b16 %v6762
        %v7837 = vunpack.c.l.b16 %v6763
        %v7838 = vunpack.c.h.b16 %v6763
        %v7839 = vunpack.c.l.b16 %v6764
        %v7840 = vunpack.c.h.b16 %v6764
        %v7841 = vunpack.c.l.b16 %v6765
        %v7842 = vunpack.c.h.b16 %v6765
        %v7843 = vunpack.c.l.b16 %v6766
        %v7844 = vunpack.c.h.b16 %v6766
        %v7845 = vunpack.c.l.b16 %v6767
        %v7846 = vunpack.c.h.b16 %v6767
        %v7847 = vunpack.c.l.b16 %v6768
        %v7848 = vunpack.c.h.b16 %v6768
        %v7849 = vunpack.c.l.b16 %v6769
        %v7850 = vunpack.c.h.b16 %v6769
        %v7851 = vunpack.c.l.b16 %v6770
        %v7852 = vunpack.c.h.b16 %v6770
        %v7853 = vunpack.c.l.b16 %v6771
        %v7854 = vunpack.c.h.b16 %v6771
        %v7855 = vunpack.c.l.b16 %v6772
        %v7856 = vunpack.c.h.b16 %v6772
        %v7857 = vunpack.c.l.b16 %v6773
        %v7858 = vunpack.c.h.b16 %v6773
        %v7859 = vunpack.c.l.b16 %v6774
        %v7860 = vunpack.c.h.b16 %v6774
        %v7861 = vunpack.c.l.b16 %v6775
        %v7862 = vunpack.c.h.b16 %v6775
        %v7863 = vunpack.c.l.b16 %v6776
        %v7864 = vunpack.c.h.b16 %v6776
        %v7865 = vunpack.c.l.b16 %v6777
        %v7866 = vunpack.c.h.b16 %v6777
        %v7867 = vunpack.c.l.b16 %v6778
        %v7868 = vunpack.c.h.b16 %v6778
        %v7869 = vunpack.c.l.b16 %v6779
        %v7870 = vunpack.c.h.b16 %v6779
        %v7871 = vunpack.c.l.b16 %v6780
        %v7872 = vunpack.c.h.b16 %v6780
        %v7873 = vunpack.c.l.b16 %v6781
        %v7874 = vunpack.c.h.b16 %v6781
        %v7875 = vunpack.c.l.b16 %v6782
        %v7876 = vunpack.c.h.b16 %v6782
        %v7877 = vunpack.c.l.b16 %v6783
        %v7878 = vunpack.c.h.b16 %v6783
        %v7879 = vunpack.c.l.b16 %v6784
        %v7880 = vunpack.c.h.b16 %v6784
        %v7881 = vunpack.c.l.b16 %v6785
        %v7882 = vunpack.c.h.b16 %v6785
        %v7883 = vunpack.c.l.b16 %v6786
        %v7884 = vunpack.c.h.b16 %v6786
        %v7885 = vunpack.c.l.b16 %v6787
        %v7886 = vunpack.c.h.b16 %v6787
        %v7887 = vunpack.c.l.b16 %v6788
        %v7888 = vunpack.c.h.b16 %v6788
        %v7889 = vunpack.c.l.b16 %v6789
        %v7890 = vunpack.c.h.b16 %v6789
        %v7891 = vunpack.c.l.b16 %v6790
        %v7892 = vunpack.c.h.b16 %v6790
        %v7893 = vunpack.c.l.b16 %v6791
        %v7894 = vunpack.c.h.b16 %v6791
        %v7895 = vunpack.c.l.b16 %v6792
        %v7896 = vunpack.c.h.b16 %v6792
        %v7897 = vunpack.c.l.b16 %v6793
        %v7898 = vunpack.c.h.b16 %v6793
        %v7899 = vunpack.c.l.b16 %v6794
        %v7900 = vunpack.c.h.b16 %v6794
        %v7901 = vunpack.c.l.b16 %v6795
        %v7902 = vunpack.c.h.b16 %v6795
        %v7903 = vunpack.c.l.b16 %v6796
        %v7904 = vunpack.c.h.b16 %v6796
        %v7905 = vunpack.c.l.b16 %v6797
        %v7906 = vunpack.c.h.b16 %v6797
        %v7907 = vunpack.c.l.b16 %v6798
        %v7908 = vunpack.c.h.b16 %v6798
        %v7909 = vunpack.c.l.b16 %v6799
        %v7910 = vunpack.c.h.b16 %v6799
        %v7911 = vunpack.c.l.b16 %v6800
        %v7912 = vunpack.c.h.b16 %v6800
        %v7913 = vunpack.c.l.b16 %v6801
        %v7914 = vunpack.c.h.b16 %v6801
        %v7915 = vunpack.c.l.b16 %v6802
        %v7916 = vunpack.c.h.b16 %v6802
        %v7917 = vunpack.c.l.b16 %v6803
        %v7918 = vunpack.c.h.b16 %v6803
        %v7919 = vunpack.c.l.b16 %v6804
        %v7920 = vunpack.c.h.b16 %v6804
        %v7921 = vunpack.c.l.b16 %v6805
        %v7922 = vunpack.c.h.b16 %v6805
        %v7923 = vunpack.c.l.b16 %v6806
        %v7924 = vunpack.c.h.b16 %v6806
        %v7925 = vunpack.c.l.b16 %v6807
        %v7926 = vunpack.c.h.b16 %v6807
        %v7927 = vunpack.c.l.b16 %v6808
        %v7928 = vunpack.c.h.b16 %v6808
        %v7929 = vunpack.c.l.b16 %v6809
        %v7930 = vunpack.c.h.b16 %v6809
        %v7931 = vunpack.c.l.b16 %v6810
        %v7932 = vunpack.c.h.b16 %v6810
        %v7933 = vunpack.c.l.b16 %v6811
        %v7934 = vunpack.c.h.b16 %v6811
        %v7935 = vunpack.c.l.b16 %v6812
        %v7936 = vunpack.c.h.b16 %v6812
        %v7937 = vunpack.c.l.b16 %v6813
        %v7938 = vunpack.c.h.b16 %v6813
        %v7939 = vunpack.c.l.b16 %v6814
        %v7940 = vunpack.c.h.b16 %v6814
        %v7941 = vunpack.c.l.b16 %v6815
        %v7942 = vunpack.c.h.b16 %v6815
        %v7943 = vunpack.c.l.b16 %v6816
        %v7944 = vunpack.c.h.b16 %v6816
        %v7945 = vunpack.c.l.b16 %v6817
        %v7946 = vunpack.c.h.b16 %v6817
        %v7947 = vunpack.c.l.b16 %v6818
        %v7948 = vunpack.c.h.b16 %v6818
        %v7949 = vunpack.c.l.b16 %v6819
        %v7950 = vunpack.c.h.b16 %v6819
        %v7951 = vunpack.c.l.b16 %v6820
        %v7952 = vunpack.c.h.b16 %v6820
        %v7953 = vunpack.c.l.b16 %v6821
        %v7954 = vunpack.c.h.b16 %v6821
        %v7955 = vunpack.c.l.b16 %v6822
        %v7956 = vunpack.c.h.b16 %v6822
        %v7957 = vunpack.c.l.b16 %v6823
        %v7958 = vunpack.c.h.b16 %v6823
        %v7959 = vunpack.c.l.b16 %v6824
        %v7960 = vunpack.c.h.b16 %v6824
        %v7961 = vunpack.c.l.b16 %v6825
        %v7962 = vunpack.c.h.b16 %v6825
        %v7963 = vunpack.c.l.b16 %v6826
        %v7964 = vunpack.c.h.b16 %v6826
        %v7965 = vunpack.c.l.b16 %v6827
        %v7966 = vunpack.c.h.b16 %v6827
        %v7967 = vunpack.c.l.b16 %v6828
        %v7968 = vunpack.c.h.b16 %v6828
        %v7969 = vunpack.c.l.b16 %v6829
        %v7970 = vunpack.c.h.b16 %v6829
        %v7971 = vunpack.c.l.b16 %v6830
        %v7972 = vunpack.c.h.b16 %v6830
        %v7973 = vunpack.c.l.b16 %v6831
        %v7974 = vunpack.c.h.b16 %v6831
        %v7975 = vunpack.c.l.b16 %v6832
        %v7976 = vunpack.c.h.b16 %v6832
        %v7977 = vunpack.c.l.b16 %v6833
        %v7978 = vunpack.c.h.b16 %v6833
        %v7979 = vunpack.c.l.b16 %v6834
        %v7980 = vunpack.c.h.b16 %v6834
        %v7981 = vunpack.c.l.b16 %v6835
        %v7982 = vunpack.c.h.b16 %v6835
        %v7983 = vunpack.c.l.b16 %v6836
        %v7984 = vunpack.c.h.b16 %v6836
        %v7985 = vunpack.c.l.b16 %v6837
        %v7986 = vunpack.c.h.b16 %v6837
        %v7987 = vunpack.c.l.b16 %v6838
        %v7988 = vunpack.c.h.b16 %v6838
        %v7989 = vunpack.c.l.b16 %v6839
        %v7990 = vunpack.c.h.b16 %v6839
        %v7991 = vunpack.c.l.b16 %v6840
        %v7992 = vunpack.c.h.b16 %v6840
        %v7993 = vunpack.c.l.b16 %v6841
        %v7994 = vunpack.c.h.b16 %v6841
        %v7995 = vunpack.c.l.b16 %v6842
        %v7996 = vunpack.c.h.b16 %v6842
        %v7997 = vunpack.c.l.b16 %v6843
        %v7998 = vunpack.c.h.b16 %v6843
        %v7999 = vunpack.c.l.b16 %v6844
        %v8000 = vunpack.c.h.b16 %v6844
        %v8001 = vunpack.c.l.b16 %v6845
        %v8002 = vunpack.c.h.b16 %v6845
        %v8003 = vunpack.c.l.b16 %v6846
        %v8004 = vunpack.c.h.b16 %v6846
        %v8005 = vunpack.c.l.b16 %v6847
        %v8006 = vunpack.c.h.b16 %v6847
        %v8007 = vunpack.c.l.b16 %v6848
        %v8008 = vunpack.c.h.b16 %v6848
        %v8009 = vunpack.c.l.b16 %v6849
        %v8010 = vunpack.c.h.b16 %v6849
        %v8011 = vunpack.c.l.b16 %v6850
        %v8012 = vunpack.c.h.b16 %v6850
        %v8013 = vunpack.c.l.b16 %v6851
        %v8014 = vunpack.c.h.b16 %v6851
        %v8015 = vunpack.c.l.b16 %v6852
        %v8016 = vunpack.c.h.b16 %v6852
        %v8017 = vunpack.c.l.b16 %v6853
        %v8018 = vunpack.c.h.b16 %v6853
        %v8019 = vunpack.c.l.b16 %v6854
        %v8020 = vunpack.c.h.b16 %v6854
        %v8021 = vunpack.c.l.b16 %v6855
        %v8022 = vunpack.c.h.b16 %v6855
        %v8023 = vunpack.c.l.b16 %v6856
        %v8024 = vunpack.c.h.b16 %v6856
        %v8025 = vunpack.c.l.b16 %v6857
        %v8026 = vunpack.c.h.b16 %v6857
        %v8027 = vunpack.c.l.b16 %v6858
        %v8028 = vunpack.c.h.b16 %v6858
        %v8029 = vunpack.c.l.b16 %v6859
        %v8030 = vunpack.c.h.b16 %v6859
        %v8031 = vunpack.c.l.b16 %v6860
        %v8032 = vunpack.c.h.b16 %v6860
        %v8033 = vunpack.c.l.b16 %v6861
        %v8034 = vunpack.c.h.b16 %v6861
        %v8035 = vunpack.c.l.b16 %v6862
        %v8036 = vunpack.c.h.b16 %v6862
        %v8037 = vunpack.c.l.b16 %v6863
        %v8038 = vunpack.c.h.b16 %v6863
        %v8039 = vunpack.c.l.b16 %v6864
        %v8040 = vunpack.c.h.b16 %v6864
        %v8041 = vunpack.c.l.b16 %v6865
        %v8042 = vunpack.c.h.b16 %v6865
        %v8043 = vunpack.c.l.b16 %v6866
        %v8044 = vunpack.c.h.b16 %v6866
        %v8045 = vunpack.c.l.b16 %v6867
        %v8046 = vunpack.c.h.b16 %v6867
        %v8047 = vunpack.c.l.b16 %v6868
        %v8048 = vunpack.c.h.b16 %v6868
        %v8049 = vunpack.c.l.b16 %v6869
        %v8050 = vunpack.c.h.b16 %v6869
        %v8051 = vunpack.c.l.b16 %v6870
        %v8052 = vunpack.c.h.b16 %v6870
        %v8053 = vunpack.c.l.b16 %v6871
        %v8054 = vunpack.c.h.b16 %v6871
        %v8055 = vunpack.c.l.b16 %v6872
        %v8056 = vunpack.c.h.b16 %v6872
        %v8057 = vunpack.c.l.b16 %v6873
        %v8058 = vunpack.c.h.b16 %v6873
        %v8059 = vunpack.c.l.b16 %v6874
        %v8060 = vunpack.c.h.b16 %v6874
        %v8061 = vunpack.c.l.b16 %v6875
        %v8062 = vunpack.c.h.b16 %v6875
        %v8063 = vunpack.c.l.b16 %v6876
        %v8064 = vunpack.c.h.b16 %v6876
        %v8065 = vunpack.c.l.b16 %v6877
        %v8066 = vunpack.c.h.b16 %v6877
        %v8067 = vunpack.c.l.b16 %v6878
        %v8068 = vunpack.c.h.b16 %v6878
        %v8069 = vunpack.c.l.b16 %v6879
        %v8070 = vunpack.c.h.b16 %v6879
        %v8071 = vunpack.c.l.b16 %v6880
        %v8072 = vunpack.c.h.b16 %v6880
        %v8073 = vunpack.c.l.b16 %v6881
        %v8074 = vunpack.c.h.b16 %v6881
        %v8075 = vunpack.c.l.b16 %v6882
        %v8076 = vunpack.c.h.b16 %v6882
        %v8077 = vunpack.c.l.b16 %v6883
        %v8078 = vunpack.c.h.b16 %v6883
        %v8079 = vunpack.c.l.b16 %v6884
        %v8080 = vunpack.c.h.b16 %v6884
        %v8081 = vunpack.c.l.b16 %v6885
        %v8082 = vunpack.c.h.b16 %v6885
        %v8083 = vunpack.c.l.b16 %v6886
        %v8084 = vunpack.c.h.b16 %v6886
        %v8085 = vunpack.c.l.b16 %v6887
        %v8086 = vunpack.c.h.b16 %v6887
        %v8087 = vunpack.c.l.b16 %v6888
        %v8088 = vunpack.c.h.b16 %v6888
        %v8089 = vunpack.c.l.b16 %v6889
        %v8090 = vunpack.c.h.b16 %v6889
        %v8091 = vunpack.c.l.b16 %v6890
        %v8092 = vunpack.c.h.b16 %v6890
        %v8093 = vunpack.c.l.b16 %v6891
        %v8094 = vunpack.c.h.b16 %v6891
        %v8095 = vunpack.c.l.b16 %v6892
        %v8096 = vunpack.c.h.b16 %v6892
        %v8097 = vunpack.c.l.b16 %v6893
        %v8098 = vunpack.c.h.b16 %v6893
        %v8099 = vunpack.c.l.b16 %v6894
        %v8100 = vunpack.c.h.b16 %v6894
        %v8101 = vunpack.c.l.b16 %v6895
        %v8102 = vunpack.c.h.b16 %v6895
        %v8103 = vunpack.c.l.b16 %v6896
        %v8104 = vunpack.c.h.b16 %v6896
        %v8105 = vunpack.c.l.b16 %v6897
        %v8106 = vunpack.c.h.b16 %v6897
        %v8107 = vunpack.c.l.b16 %v6898
        %v8108 = vunpack.c.h.b16 %v6898
        %v8109 = vunpack.c.l.b16 %v6899
        %v8110 = vunpack.c.h.b16 %v6899
        %v8111 = vunpack.c.l.b16 %v6900
        %v8112 = vunpack.c.h.b16 %v6900
        %v8113 = vunpack.c.l.b16 %v6901
        %v8114 = vunpack.c.h.b16 %v6901
        %v8115 = vunpack.c.l.b16 %v6902
        %v8116 = vunpack.c.h.b16 %v6902
        %v8117 = vunpack.c.l.b16 %v6903
        %v8118 = vunpack.c.h.b16 %v6903
        %v8119 = vunpack.c.l.b16 %v6904
        %v8120 = vunpack.c.h.b16 %v6904
        %v8121 = vunpack.c.l.b16 %v6905
        %v8122 = vunpack.c.h.b16 %v6905
        %v8123 = vunpack.c.l.b16 %v6906
        %v8124 = vunpack.c.h.b16 %v6906
        %v8125 = vunpack.c.l.b16 %v6907
        %v8126 = vunpack.c.h.b16 %v6907
        %v8127 = vunpack.c.l.b16 %v6908
        %v8128 = vunpack.c.h.b16 %v6908
        %v8129 = vunpack.c.l.b16 %v6909
        %v8130 = vunpack.c.h.b16 %v6909
        %v8131 = vunpack.c.l.b16 %v6910
        %v8132 = vunpack.c.h.b16 %v6910
        %v8133 = vunpack.c.l.b16 %v6911
        %v8134 = vunpack.c.h.b16 %v6911
        %v8135 = vunpack.c.l.b16 %v6912
        %v8136 = vunpack.c.h.b16 %v6912
        %v8137 = vunpack.c.l.b16 %v6913
        %v8138 = vunpack.c.h.b16 %v6913
        %v8139 = vunpack.c.l.b16 %v6914
        %v8140 = vunpack.c.h.b16 %v6914
        %v8141 = vunpack.c.l.b16 %v6915
        %v8142 = vunpack.c.h.b16 %v6915
        %v8143 = vunpack.c.l.b16 %v6916
        %v8144 = vunpack.c.h.b16 %v6916
        %v8145 = vunpack.c.l.b16 %v6917
        %v8146 = vunpack.c.h.b16 %v6917
        %v8147 = vunpack.c.l.b16 %v6918
        %v8148 = vunpack.c.h.b16 %v6918
        %v8149 = vunpack.c.l.b16 %v6919
        %v8150 = vunpack.c.h.b16 %v6919
        %v8151 = vunpack.c.l.b16 %v6920
        %v8152 = vunpack.c.h.b16 %v6920
        %v8153 = vunpack.c.l.b16 %v6921
        %v8154 = vunpack.c.h.b16 %v6921
        %v8155 = vunpack.c.l.b16 %v6922
        %v8156 = vunpack.c.h.b16 %v6922
        %v8157 = vunpack.c.l.b16 %v6923
        %v8158 = vunpack.c.h.b16 %v6923
        %v8159 = vunpack.c.l.b16 %v6924
        %v8160 = vunpack.c.h.b16 %v6924
        %v8161 = vunpack.c.l.b16 %v6925
        %v8162 = vunpack.c.h.b16 %v6925
        %v8163 = vunpack.c.l.b16 %v6926
        %v8164 = vunpack.c.h.b16 %v6926
        %v8165 = vunpack.c.l.b16 %v6927
        %v8166 = vunpack.c.h.b16 %v6927
        %v8167 = vunpack.c.l.b16 %v6928
        %v8168 = vunpack.c.h.b16 %v6928
        %v8169 = vunpack.c.l.b16 %v6929
        %v8170 = vunpack.c.h.b16 %v6929
        %v8171 = vunpack.c.l.b16 %v6930
        %v8172 = vunpack.c.h.b16 %v6930
        %v8173 = vunpack.c.l.b16 %v6931
        %v8174 = vunpack.c.h.b16 %v6931
        %v8175 = vunpack.c.l.b16 %v6932
        %v8176 = vunpack.c.h.b16 %v6932
        %v8177 = vunpack.c.l.b16 %v6933
        %v8178 = vunpack.c.h.b16 %v6933
        %v8179 = vunpack.c.l.b16 %v6934
        %v8180 = vunpack.c.h.b16 %v6934
        %v8181 = vunpack.c.l.b16 %v6935
        %v8182 = vunpack.c.h.b16 %v6935
        %v8183 = vunpack.c.l.b16 %v6936
        %v8184 = vunpack.c.h.b16 %v6936
        %v8185 = vunpack.c.l.b16 %v6937
        %v8186 = vunpack.c.h.b16 %v6937
        %v8187 = vunpack.c.l.b16 %v6938
        %v8188 = vunpack.c.h.b16 %v6938
        %v8189 = vunpack.c.l.b16 %v6939
        %v8190 = vunpack.c.h.b16 %v6939
        %v8191 = vunpack.c.l.b16 %v6940
        %v8192 = vunpack.c.h.b16 %v6940
        %v8193 = vunpack.c.l.b16 %v6941
        %v8194 = vunpack.c.h.b16 %v6941
        %v8195 = vunpack.c.l.b16 %v6942
        %v8196 = vunpack.c.h.b16 %v6942
        %v8197 = vunpack.c.l.b16 %v6943
        %v8198 = vunpack.c.h.b16 %v6943
        %v8199 = vunpack.c.l.b16 %v6944
        %v8200 = vunpack.c.h.b16 %v6944
        %v8201 = vunpack.c.l.b16 %v6945
        %v8202 = vunpack.c.h.b16 %v6945
        %v8203 = vunpack.c.l.b16 %v6946
        %v8204 = vunpack.c.h.b16 %v6946
        %v8205 = vunpack.c.l.b16 %v6947
        %v8206 = vunpack.c.h.b16 %v6947
        %v8207 = vunpack.c.l.b16 %v6948
        %v8208 = vunpack.c.h.b16 %v6948
        %v8209 = vunpack.c.l.b16 %v6949
        %v8210 = vunpack.c.h.b16 %v6949
        %v8211 = vunpack.c.l.b16 %v6950
        %v8212 = vunpack.c.h.b16 %v6950
        %v8213 = vunpack.c.l.b16 %v6951
        %v8214 = vunpack.c.h.b16 %v6951
        %v8215 = vunpack.c.l.b16 %v6952
        %v8216 = vunpack.c.h.b16 %v6952
        %v8217 = vunpack.c.l.b16 %v6953
        %v8218 = vunpack.c.h.b16 %v6953
        %v8219 = vunpack.c.l.b16 %v6954
        %v8220 = vunpack.c.h.b16 %v6954
        %v8221 = vunpack.c.l.b16 %v6955
        %v8222 = vunpack.c.h.b16 %v6955
        %v8223 = vunpack.c.l.b16 %v6956
        %v8224 = vunpack.c.h.b16 %v6956
        %v8225 = vunpack.c.l.b16 %v6957
        %v8226 = vunpack.c.h.b16 %v6957
        %v8227 = vunpack.c.l.b16 %v6958
        %v8228 = vunpack.c.h.b16 %v6958
        %v8229 = vunpack.c.l.b16 %v6959
        %v8230 = vunpack.c.h.b16 %v6959
        %v8231 = vunpack.c.l.b16 %v6960
        %v8232 = vunpack.c.h.b16 %v6960
        %v8233 = vunpack.c.l.b16 %v6961
        %v8234 = vunpack.c.h.b16 %v6961
        %v8235 = vunpack.c.l.b16 %v6962
        %v8236 = vunpack.c.h.b16 %v6962
        %v8237 = vunpack.c.l.b16 %v6963
        %v8238 = vunpack.c.h.b16 %v6963
        %v8239 = vunpack.c.l.b16 %v6964
        %v8240 = vunpack.c.h.b16 %v6964
        %v8241 = vunpack.c.l.b16 %v6965
        %v8242 = vunpack.c.h.b16 %v6965
        %v8243 = vunpack.c.l.b16 %v6966
        %v8244 = vunpack.c.h.b16 %v6966
        %v8245 = vunpack.c.l.b16 %v6967
        %v8246 = vunpack.c.h.b16 %v6967
        %v8247 = vunpack.c.l.b16 %v6968
        %v8248 = vunpack.c.h.b16 %v6968
        %v8249 = vunpack.c.l.b16 %v6969
        %v8250 = vunpack.c.h.b16 %v6969
        %v8251 = vunpack.c.l.b16 %v6970
        %v8252 = vunpack.c.h.b16 %v6970
        %v8253 = vunpack.c.l.b16 %v6971
        %v8254 = vunpack.c.h.b16 %v6971
        %v8255 = vunpack.c.l.b16 %v6972
        %v8256 = vunpack.c.h.b16 %v6972
        %v8257 = vunpack.c.l.b16 %v6973
        %v8258 = vunpack.c.h.b16 %v6973
        %v8259 = vunpack.c.l.b16 %v6974
        %v8260 = vunpack.c.h.b16 %v6974
        %v8261 = vunpack.c.l.b16 %v6975
        %v8262 = vunpack.c.h.b16 %v6975
        %v8263 = vunpack.c.l.b16 %v6976
        %v8264 = vunpack.c.h.b16 %v6976
        %v8265 = vunpack.c.l.b16 %v6977
        %v8266 = vunpack.c.h.b16 %v6977
        %v8267 = vunpack.c.l.b16 %v6978
        %v8268 = vunpack.c.h.b16 %v6978
        %v8269 = vunpack.c.l.b16 %v6979
        %v8270 = vunpack.c.h.b16 %v6979
        %v8271 = vunpack.c.l.b16 %v6980
        %v8272 = vunpack.c.h.b16 %v6980
        %v8273 = vunpack.c.l.b16 %v6981
        %v8274 = vunpack.c.h.b16 %v6981
        %v8275 = vunpack.c.l.b16 %v6982
        %v8276 = vunpack.c.h.b16 %v6982
        %v8277 = vunpack.c.l.b16 %v6983
        %v8278 = vunpack.c.h.b16 %v6983
        %v8279 = vunpack.c.l.b16 %v6984
        %v8280 = vunpack.c.h.b16 %v6984
        %v8281 = vunpack.c.l.b16 %v6985
        %v8282 = vunpack.c.h.b16 %v6985
        %v8283 = vunpack.c.l.b16 %v6986
        %v8284 = vunpack.c.h.b16 %v6986
        %v8285 = vunpack.c.l.b16 %v6987
        %v8286 = vunpack.c.h.b16 %v6987
        %v8287 = vunpack.c.l.b16 %v6988
        %v8288 = vunpack.c.h.b16 %v6988
        %v8289 = vunpack.c.l.b16 %v6989
        %v8290 = vunpack.c.h.b16 %v6989
        %v8291 = vunpack.c.l.b16 %v6990
        %v8292 = vunpack.c.h.b16 %v6990
        %v8293 = vunpack.c.l.b16 %v6991
        %v8294 = vunpack.c.h.b16 %v6991
        %v8295 = vunpack.c.l.b16 %v6992
        %v8296 = vunpack.c.h.b16 %v6992
        %v8297 = vunpack.c.l.b16 %v6993
        %v8298 = vunpack.c.h.b16 %v6993
        %v8299 = vunpack.c.l.b16 %v6994
        %v8300 = vunpack.c.h.b16 %v6994
        %v8301 = vunpack.c.l.b16 %v6995
        %v8302 = vunpack.c.h.b16 %v6995
        %v8303 = vunpack.c.l.b16 %v6996
        %v8304 = vunpack.c.h.b16 %v6996
        %v8305 = vunpack.c.l.b16 %v6997
        %v8306 = vunpack.c.h.b16 %v6997
        %v8307 = vunpack.c.l.b16 %v6998
        %v8308 = vunpack.c.h.b16 %v6998
        %v8309 = vunpack.c.l.b16 %v6999
        %v8310 = vunpack.c.h.b16 %v6999
        %v8311 = vunpack.c.l.b16 %v7000
        %v8312 = vunpack.c.h.b16 %v7000
        %v8313 = vunpack.c.l.b16 %v7001
        %v8314 = vunpack.c.h.b16 %v7001
        %v8315 = vunpack.c.l.b16 %v7002
        %v8316 = vunpack.c.h.b16 %v7002
        %v8317 = vunpack.c.l.b16 %v7003
        %v8318 = vunpack.c.h.b16 %v7003
        %v8319 = vunpack.c.l.b16 %v7004
        %v8320 = vunpack.c.h.b16 %v7004
        %v8321 = vunpack.c.l.b16 %v7005
        %v8322 = vunpack.c.h.b16 %v7005
        %v8323 = vunpack.c.l.b16 %v7006
        %v8324 = vunpack.c.h.b16 %v7006
        %v8325 = vunpack.c.l.b16 %v7007
        %v8326 = vunpack.c.h.b16 %v7007
        %v8327 = vunpack.c.l.b16 %v7008
        %v8328 = vunpack.c.h.b16 %v7008
        %v8329 = vunpack.c.l.b16 %v7009
        %v8330 = vunpack.c.h.b16 %v7009
        %v8331 = vunpack.c.l.b16 %v7010
        %v8332 = vunpack.c.h.b16 %v7010
        %v8333 = vunpack.c.l.b16 %v7011
        %v8334 = vunpack.c.h.b16 %v7011
        %v8335 = vunpack.c.l.b16 %v7012
        %v8336 = vunpack.c.h.b16 %v7012
        %v8337 = vunpack.c.l.b16 %v7013
        %v8338 = vunpack.c.h.b16 %v7013
        %v8339 = vunpack.c.l.b16 %v7014
        %v8340 = vunpack.c.h.b16 %v7014
        %v8341 = vunpack.c.l.b16 %v7015
        %v8342 = vunpack.c.h.b16 %v7015
        %v8343 = vunpack.c.l.b16 %v7016
        %v8344 = vunpack.c.h.b16 %v7016
        %v8345 = vunpack.c.l.b16 %v7017
        %v8346 = vunpack.c.h.b16 %v7017
        %v8347 = vunpack.c.l.b16 %v7018
        %v8348 = vunpack.c.h.b16 %v7018
        %v8349 = vunpack.c.l.b16 %v7019
        %v8350 = vunpack.c.h.b16 %v7019
        %v8351 = vunpack.c.l.b16 %v7020
        %v8352 = vunpack.c.h.b16 %v7020
        %v8353 = vunpack.c.l.b16 %v7021
        %v8354 = vunpack.c.h.b16 %v7021
        %v8355 = vunpack.c.l.b16 %v7022
        %v8356 = vunpack.c.h.b16 %v7022
        %v8357 = vunpack.c.l.b16 %v7023
        %v8358 = vunpack.c.h.b16 %v7023
        %v8359 = vunpack.c.l.b16 %v7024
        %v8360 = vunpack.c.h.b16 %v7024
        %v8361 = vunpack.c.l.b16 %v7025
        %v8362 = vunpack.c.h.b16 %v7025
        %v8363 = vunpack.c.l.b16 %v7026
        %v8364 = vunpack.c.h.b16 %v7026
        %v8365 = vunpack.c.l.b16 %v7027
        %v8366 = vunpack.c.h.b16 %v7027
        %v8367 = vunpack.c.l.b16 %v7028
        %v8368 = vunpack.c.h.b16 %v7028
        %v8369 = vunpack.c.l.b16 %v7029
        %v8370 = vunpack.c.h.b16 %v7029
        %v8371 = vunpack.c.l.b16 %v7030
        %v8372 = vunpack.c.h.b16 %v7030
        %v8373 = vunpack.c.l.b16 %v7031
        %v8374 = vunpack.c.h.b16 %v7031
        %v8375 = vunpack.c.l.b16 %v7032
        %v8376 = vunpack.c.h.b16 %v7032
        %v8377 = vunpack.c.l.b16 %v7033
        %v8378 = vunpack.c.h.b16 %v7033
        %v8379 = vunpack.c.l.b16 %v7034
        %v8380 = vunpack.c.h.b16 %v7034
        %v8381 = vunpack.c.l.b16 %v7035
        %v8382 = vunpack.c.h.b16 %v7035
        %v8383 = vunpack.c.l.b16 %v7036
        %v8384 = vunpack.c.h.b16 %v7036
        %v8385 = vunpack.c.l.b16 %v7037
        %v8386 = vunpack.c.h.b16 %v7037
        %v8387 = vunpack.c.l.b16 %v7038
        %v8388 = vunpack.c.h.b16 %v7038
        %v8389 = vunpack.c.l.b16 %v7039
        %v8390 = vunpack.c.h.b16 %v7039
        %v8391 = vunpack.c.l.b16 %v7040
        %v8392 = vunpack.c.h.b16 %v7040
        %v8393 = vunpack.c.l.b16 %v7041
        %v8394 = vunpack.c.h.b16 %v7041
        %v8395 = vunpack.c.l.b16 %v7042
        %v8396 = vunpack.c.h.b16 %v7042
        %v8397 = vunpack.c.l.b16 %v7043
        %v8398 = vunpack.c.h.b16 %v7043
        %v8399 = vunpack.c.l.b16 %v7044
        %v8400 = vunpack.c.h.b16 %v7044
        %v8401 = vunpack.c.l.b16 %v7045
        %v8402 = vunpack.c.h.b16 %v7045
        %v8403 = vunpack.c.l.b16 %v7046
        %v8404 = vunpack.c.h.b16 %v7046
        %v8405 = vunpack.c.l.b16 %v7047
        %v8406 = vunpack.c.h.b16 %v7047
        %v8407 = vunpack.c.l.b16 %v7048
        %v8408 = vunpack.c.h.b16 %v7048
        %v8409 = vunpack.c.l.b16 %v7049
        %v8410 = vunpack.c.h.b16 %v7049
        %v8411 = vunpack.c.l.b16 %v7050
        %v8412 = vunpack.c.h.b16 %v7050
        %v8413 = vunpack.c.l.b16 %v7051
        %v8414 = vunpack.c.h.b16 %v7051
        %v8415 = vunpack.c.l.b16 %v7052
        %v8416 = vunpack.c.h.b16 %v7052
        %v8417 = vunpack.c.l.b16 %v7053
        %v8418 = vunpack.c.h.b16 %v7053
        %v8419 = vunpack.c.l.b16 %v7054
        %v8420 = vunpack.c.h.b16 %v7054
        %v8421 = vunpack.c.l.b16 %v7055
        %v8422 = vunpack.c.h.b16 %v7055
        %v8423 = vunpack.c.l.b16 %v7056
        %v8424 = vunpack.c.h.b16 %v7056
        %v8425 = vunpack.c.l.b16 %v7057
        %v8426 = vunpack.c.h.b16 %v7057
        %v8427 = vunpack.c.l.b16 %v7058
        %v8428 = vunpack.c.h.b16 %v7058
        %v8429 = vunpack.c.l.b16 %v7059
        %v8430 = vunpack.c.h.b16 %v7059
        %v8431 = vunpack.c.l.b16 %v7060
        %v8432 = vunpack.c.h.b16 %v7060
        %v8433 = vunpack.c.l.b16 %v7061
        %v8434 = vunpack.c.h.b16 %v7061
        %v8435 = vunpack.c.l.b16 %v7062
        %v8436 = vunpack.c.h.b16 %v7062
        %v8437 = vunpack.c.l.b16 %v7063
        %v8438 = vunpack.c.h.b16 %v7063
        %v8439 = vunpack.c.l.b16 %v7064
        %v8440 = vunpack.c.h.b16 %v7064
        %v8441 = vunpack.c.l.b16 %v7065
        %v8442 = vunpack.c.h.b16 %v7065
        %v8443 = vunpack.c.l.b16 %v7066
        %v8444 = vunpack.c.h.b16 %v7066
        %v8445 = vunpack.c.l.b16 %v7067
        %v8446 = vunpack.c.h.b16 %v7067
        %v8447 = vunpack.c.l.b16 %v7068
        %v8448 = vunpack.c.h.b16 %v7068
        %v8449 = vunpack.c.l.b16 %v7069
        %v8450 = vunpack.c.h.b16 %v7069
        %v8451 = vunpack.c.l.b16 %v7070
        %v8452 = vunpack.c.h.b16 %v7070
        %v8453 = vunpack.c.l.b16 %v7071
        %v8454 = vunpack.c.h.b16 %v7071
        %v8455 = vunpack.c.l.b16 %v7072
        %v8456 = vunpack.c.h.b16 %v7072
        %v8457 = vunpack.c.l.b16 %v7073
        %v8458 = vunpack.c.h.b16 %v7073
        %v8459 = vunpack.c.l.b16 %v7074
        %v8460 = vunpack.c.h.b16 %v7074
        %v8461 = vunpack.c.l.b16 %v7075
        %v8462 = vunpack.c.h.b16 %v7075
        %v8463 = vunpack.c.l.b16 %v7076
        %v8464 = vunpack.c.h.b16 %v7076
        %v8465 = vunpack.c.l.b16 %v7077
        %v8466 = vunpack.c.h.b16 %v7077
        %v8467 = vunpack.c.l.b16 %v7078
        %v8468 = vunpack.c.h.b16 %v7078
        %v8469 = vunpack.c.l.b16 %v7079
        %v8470 = vunpack.c.h.b16 %v7079
        %v8471 = vunpack.c.l.b16 %v7080
        %v8472 = vunpack.c.h.b16 %v7080
        %v8473 = vunpack.c.l.b16 %v7081
        %v8474 = vunpack.c.h.b16 %v7081
        %v8475 = vunpack.c.l.b16 %v7082
        %v8476 = vunpack.c.h.b16 %v7082
        %v8477 = vunpack.c.l.b16 %v7083
        %v8478 = vunpack.c.h.b16 %v7083
        %v8479 = vunpack.c.l.b16 %v7084
        %v8480 = vunpack.c.h.b16 %v7084
        %v8481 = vunpack.c.l.b16 %v7085
        %v8482 = vunpack.c.h.b16 %v7085
        %v8483 = vunpack.c.l.b16 %v7086
        %v8484 = vunpack.c.h.b16 %v7086
        %v8485 = vunpack.c.l.b16 %v7087
        %v8486 = vunpack.c.h.b16 %v7087
        %v8487 = vunpack.c.l.b16 %v7088
        %v8488 = vunpack.c.h.b16 %v7088
        %v8489 = vunpack.c.l.b16 %v7089
        %v8490 = vunpack.c.h.b16 %v7089
        %v8491 = vunpack.c.l.b16 %v7090
        %v8492 = vunpack.c.h.b16 %v7090
        %v8493 = vunpack.c.l.b16 %v7091
        %v8494 = vunpack.c.h.b16 %v7091
        %v8495 = vunpack.c.l.b16 %v7092
        %v8496 = vunpack.c.h.b16 %v7092
        %v8497 = vunpack.c.l.b16 %v7093
        %v8498 = vunpack.c.h.b16 %v7093
        %v8499 = vunpack.c.l.b16 %v7094
        %v8500 = vunpack.c.h.b16 %v7094
        %v8501 = vunpack.c.l.b16 %v7095
        %v8502 = vunpack.c.h.b16 %v7095
        %v8503 = vunpack.c.l.b16 %v7096
        %v8504 = vunpack.c.h.b16 %v7096
        %v8505 = vunpack.c.l.b16 %v7097
        %v8506 = vunpack.c.h.b16 %v7097
        %v8507 = vunpack.c.l.b16 %v7098
        %v8508 = vunpack.c.h.b16 %v7098
        %v8509 = vunpack.c.l.b16 %v7099
        %v8510 = vunpack.c.h.b16 %v7099
        %v8511 = vunpack.c.l.b16 %v7100
        %v8512 = vunpack.c.h.b16 %v7100
        %v8513 = vunpack.c.l.b16 %v7101
        %v8514 = vunpack.c.h.b16 %v7101
        %v8515 = vunpack.c.l.b16 %v7102
        %v8516 = vunpack.c.h.b16 %v7102
        %v8517 = vunpack.c.l.b16 %v7103
        %v8518 = vunpack.c.h.b16 %v7103
        %v8519 = vunpack.c.l.b16 %v7104
        %v8520 = vunpack.c.h.b16 %v7104
        %v8521 = vunpack.c.l.b16 %v7105
        %v8522 = vunpack.c.h.b16 %v7105
        %v8523 = vunpack.c.l.b16 %v7106
        %v8524 = vunpack.c.h.b16 %v7106
        %v8525 = vunpack.c.l.b16 %v7107
        %v8526 = vunpack.c.h.b16 %v7107
        %v8527 = vunpack.c.l.b16 %v7108
        %v8528 = vunpack.c.h.b16 %v7108
        %v8529 = vunpack.c.l.b16 %v7109
        %v8530 = vunpack.c.h.b16 %v7109
        %v8531 = vunpack.c.l.b16 %v7110
        %v8532 = vunpack.c.h.b16 %v7110
        %v8533 = vunpack.c.l.b16 %v7111
        %v8534 = vunpack.c.h.b16 %v7111
        %v8535 = vunpack.c.l.b16 %v7112
        %v8536 = vunpack.c.h.b16 %v7112
        %v8537 = vunpack.c.l.b16 %v7113
        %v8538 = vunpack.c.h.b16 %v7113
        %v8539 = vunpack.c.l.b16 %v7114
        %v8540 = vunpack.c.h.b16 %v7114
        %v8541 = vunpack.c.l.b16 %v7115
        %v8542 = vunpack.c.h.b16 %v7115
        %v8543 = vunpack.c.l.b16 %v7116
        %v8544 = vunpack.c.h.b16 %v7116
        %v8545 = vunpack.c.l.b16 %v7117
        %v8546 = vunpack.c.h.b16 %v7117
        %v8547 = vunpack.c.l.b16 %v7118
        %v8548 = vunpack.c.h.b16 %v7118
        %v8549 = vunpack.c.l.b16 %v7119
        %v8550 = vunpack.c.h.b16 %v7119
        %v8551 = vunpack.c.l.b16 %v7120
        %v8552 = vunpack.c.h.b16 %v7120
        %v8553 = vunpack.c.l.b16 %v7121
        %v8554 = vunpack.c.h.b16 %v7121
        %v8555 = vunpack.c.l.b16 %v7122
        %v8556 = vunpack.c.h.b16 %v7122
        %v8557 = vunpack.c.l.b16 %v7123
        %v8558 = vunpack.c.h.b16 %v7123
        %v8559 = vunpack.c.l.b16 %v7124
        %v8560 = vunpack.c.h.b16 %v7124
        %v8561 = vunpack.c.l.b16 %v7125
        %v8562 = vunpack.c.h.b16 %v7125
        %v8563 = vunpack.c.l.b16 %v7126
        %v8564 = vunpack.c.h.b16 %v7126
        %v8565 = vunpack.c.l.b16 %v7127
        %v8566 = vunpack.c.h.b16 %v7127
        %v8567 = vunpack.c.l.b16 %v7128
        %v8568 = vunpack.c.h.b16 %v7128
        %v8569 = vunpack.c.l.b16 %v7129
        %v8570 = vunpack.c.h.b16 %v7129
        %v8571 = vunpack.c.l.b16 %v7130
        %v8572 = vunpack.c.h.b16 %v7130
        %v8573 = vunpack.c.l.b16 %v7131
        %v8574 = vunpack.c.h.b16 %v7131
        %v8575 = vunpack.c.l.b16 %v7132
        %v8576 = vunpack.c.h.b16 %v7132
        %v8577 = vunpack.c.l.b16 %v7133
        %v8578 = vunpack.c.h.b16 %v7133
        %v8579 = vunpack.c.l.b16 %v7134
        %v8580 = vunpack.c.h.b16 %v7134
        %v8581 = vunpack.c.l.b16 %v7135
        %v8582 = vunpack.c.h.b16 %v7135
        %v8583 = vunpack.c.l.b16 %v7136
        %v8584 = vunpack.c.h.b16 %v7136
        %v8585 = vunpack.c.l.b16 %v7137
        %v8586 = vunpack.c.h.b16 %v7137
        %v8587 = vunpack.c.l.b16 %v7138
        %v8588 = vunpack.c.h.b16 %v7138
        %v8589 = vunpack.c.l.b16 %v7139
        %v8590 = vunpack.c.h.b16 %v7139
        %v8591 = vunpack.c.l.b16 %v7140
        %v8592 = vunpack.c.h.b16 %v7140
        %v8593 = vunpack.c.l.b16 %v7141
        %v8594 = vunpack.c.h.b16 %v7141
        %v8595 = vunpack.c.l.b16 %v7142
        %v8596 = vunpack.c.h.b16 %v7142
        %v8597 = vunpack.c.l.b16 %v7143
        %v8598 = vunpack.c.h.b16 %v7143
        %v8599 = vunpack.c.l.b16 %v7144
        %v8600 = vunpack.c.h.b16 %v7144
        %v8601 = vunpack.c.l.b16 %v7145
        %v8602 = vunpack.c.h.b16 %v7145
        %v8603 = vunpack.c.l.b16 %v7146
        %v8604 = vunpack.c.h.b16 %v7146
        %v8605 = vunpack.c.l.b16 %v7147
        %v8606 = vunpack.c.h.b16 %v7147
        %v8607 = vunpack.c.l.b16 %v7148
        %v8608 = vunpack.c.h.b16 %v7148
        %v8609 = vunpack.c.l.b16 %v7149
        %v8610 = vunpack.c.h.b16 %v7149
        %v8611 = vunpack.c.l.b16 %v7150
        %v8612 = vunpack.c.h.b16 %v7150
        %v8613 = vunpack.c.l.b16 %v7151
        %v8614 = vunpack.c.h.b16 %v7151
        %v8615 = vunpack.c.l.b16 %v7152
        %v8616 = vunpack.c.h.b16 %v7152
        %v8617 = vunpack.c.l.b16 %v7153
        %v8618 = vunpack.c.h.b16 %v7153
        %v8619 = vunpack.c.l.b16 %v7154
        %v8620 = vunpack.c.h.b16 %v7154
        %v8621 = vunpack.c.l.b16 %v7155
        %v8622 = vunpack.c.h.b16 %v7155
        %v8623 = vunpack.c.l.b16 %v7156
        %v8624 = vunpack.c.h.b16 %v7156
        %v8625 = vunpack.c.l.b16 %v7157
        %v8626 = vunpack.c.h.b16 %v7157
        %v8627 = vunpack.c.l.b16 %v7158
        %v8628 = vunpack.c.h.b16 %v7158
        %v8629 = vunpack.c.l.b16 %v7159
        %v8630 = vunpack.c.h.b16 %v7159
        %v8631 = vunpack.c.l.b16 %v7160
        %v8632 = vunpack.c.h.b16 %v7160
        %v8633 = vunpack.c.l.b16 %v7161
        %v8634 = vunpack.c.h.b16 %v7161
        %v8635 = vunpack.c.l.b16 %v7162
        %v8636 = vunpack.c.h.b16 %v7162
        %v8637 = vunpack.c.l.b16 %v7163
        %v8638 = vunpack.c.h.b16 %v7163
        %v8639 = vunpack.c.l.b16 %v7164
        %v8640 = vunpack.c.h.b16 %v7164
        %v8641 = vunpack.c.l.b16 %v7165
        %v8642 = vunpack.c.h.b16 %v7165
        %v8643 = vunpack.c.l.b16 %v7166
        %v8644 = vunpack.c.h.b16 %v7166
        %v8645 = vunpack.c.l.b16 %v7167
        %v8646 = vunpack.c.h.b16 %v7167
        %v8647 = vunpack.c.l.b16 %v7168
        %v8648 = vunpack.c.h.b16 %v7168
        %v8649 = vunpack.c.l.b16 %v7169
        %v8650 = vunpack.c.h.b16 %v7169
        %v8651 = vunpack.c.l.b16 %v7170
        %v8652 = vunpack.c.h.b16 %v7170
        %v8653 = vunpack.c.l.b16 %v7171
        %v8654 = vunpack.c.h.b16 %v7171
        %v8655 = vunpack.c.l.b16 %v7172
        %v8656 = vunpack.c.h.b16 %v7172
        %v8657 = vunpack.c.l.b16 %v7173
        %v8658 = vunpack.c.h.b16 %v7173
        %v8659 = vunpack.c.l.b16 %v7174
        %v8660 = vunpack.c.h.b16 %v7174
        %v8661 = vunpack.c.l.b16 %v7175
        %v8662 = vunpack.c.h.b16 %v7175
        %v8663 = vunpack.c.l.b16 %v7176
        %v8664 = vunpack.c.h.b16 %v7176
        %v8665 = vunpack.c.l.b16 %v7177
        %v8666 = vunpack.c.h.b16 %v7177
        %v8667 = vunpack.c.l.b16 %v7178
        %v8668 = vunpack.c.h.b16 %v7178
        %v8669 = vunpack.c.l.b16 %v7179
        %v8670 = vunpack.c.h.b16 %v7179
        %v8671 = vunpack.c.l.b16 %v7180
        %v8672 = vunpack.c.h.b16 %v7180
        %v8673 = vunpack.c.l.b16 %v7181
        %v8674 = vunpack.c.h.b16 %v7181
        %v8675 = vunpack.c.l.b16 %v7182
        %v8676 = vunpack.c.h.b16 %v7182
        %v8677 = vunpack.c.l.b16 %v7183
        %v8678 = vunpack.c.h.b16 %v7183
        %v8679 = vunpack.c.l.b16 %v7184
        %v8680 = vunpack.c.h.b16 %v7184
        %v8681 = vunpack.c.l.b16 %v7185
        %v8682 = vunpack.c.h.b16 %v7185
        %v8683 = vunpack.c.l.b16 %v7186
        %v8684 = vunpack.c.h.b16 %v7186
        %v8685 = vunpack.c.l.b16 %v7187
        %v8686 = vunpack.c.h.b16 %v7187
        %v8687 = vunpack.c.l.b16 %v7188
        %v8688 = vunpack.c.h.b16 %v7188
        %v8689 = vunpack.c.l.b16 %v7189
        %v8690 = vunpack.c.h.b16 %v7189
        %v8691 = vunpack.c.l.b16 %v7190
        %v8692 = vunpack.c.h.b16 %v7190
        %v8693 = vunpack.c.l.b16 %v7191
        %v8694 = vunpack.c.h.b16 %v7191
        %v8695 = vunpack.c.l.b16 %v7192
        %v8696 = vunpack.c.h.b16 %v7192
        %v8697 = vunpack.c.l.b16 %v7193
        %v8698 = vunpack.c.h.b16 %v7193
        %v8699 = vunpack.c.l.b16 %v7194
        %v8700 = vunpack.c.h.b16 %v7194
        %v8701 = vunpack.c.l.b16 %v7195
        %v8702 = vunpack.c.h.b16 %v7195
        %v8703 = vunpack.c.l.b16 %v7196
        %v8704 = vunpack.c.h.b16 %v7196
        %v8705 = vunpack.c.l.b16 %v7197
        %v8706 = vunpack.c.h.b16 %v7197
        %v8707 = vunpack.c.l.b16 %v7198
        %v8708 = vunpack.c.h.b16 %v7198
        %v8709 = vunpack.c.l.b16 %v7199
        %v8710 = vunpack.c.h.b16 %v7199
        %v8711 = vunpack.c.l.b16 %v7200
        %v8712 = vunpack.c.h.b16 %v7200
        %v8713 = vunpack.c.l.b16 %v7201
        %v8714 = vunpack.c.h.b16 %v7201
        %v8715 = vunpack.c.l.b16 %v7202
        %v8716 = vunpack.c.h.b16 %v7202
        %v8717 = vunpack.c.l.b16 %v7203
        %v8718 = vunpack.c.h.b16 %v7203
        %v8719 = vunpack.c.l.b16 %v7204
        %v8720 = vunpack.c.h.b16 %v7204
        %v8721 = vunpack.c.l.b16 %v7205
        %v8722 = vunpack.c.h.b16 %v7205
        %v8723 = vunpack.c.l.b16 %v7206
        %v8724 = vunpack.c.h.b16 %v7206
        %v8725 = vunpack.c.l.b16 %v7207
        %v8726 = vunpack.c.h.b16 %v7207
        %v8727 = vunpack.c.l.b16 %v7208
        %v8728 = vunpack.c.h.b16 %v7208
        %v8729 = vunpack.c.l.b16 %v7209
        %v8730 = vunpack.c.h.b16 %v7209
        %v8731 = vunpack.c.l.b16 %v7210
        %v8732 = vunpack.c.h.b16 %v7210
        %v8733 = vunpack.c.l.b16 %v7211
        %v8734 = vunpack.c.h.b16 %v7211
        %v8735 = vunpack.c.l.b16 %v7212
        %v8736 = vunpack.c.h.b16 %v7212
        %v8737 = vunpack.c.l.b16 %v7213
        %v8738 = vunpack.c.h.b16 %v7213
        %v8739 = vunpack.c.l.b16 %v7214
        %v8740 = vunpack.c.h.b16 %v7214
        %v8741 = vunpack.c.l.b16 %v7215
        %v8742 = vunpack.c.h.b16 %v7215
        %v8743 = vunpack.c.l.b16 %v7216
        %v8744 = vunpack.c.h.b16 %v7216
        %v8745 = vunpack.c.l.b16 %v7217
        %v8746 = vunpack.c.h.b16 %v7217
        %v8747 = vunpack.c.l.b16 %v7218
        %v8748 = vunpack.c.h.b16 %v7218
        %v8749 = vunpack.c.l.b16 %v7219
        %v8750 = vunpack.c.h.b16 %v7219
        %v8751 = vunpack.c.l.b16 %v7220
        %v8752 = vunpack.c.h.b16 %v7220
        %v8753 = vunpack.c.l.b16 %v7221
        %v8754 = vunpack.c.h.b16 %v7221
        %v8755 = vunpack.c.l.b16 %v7222
        %v8756 = vunpack.c.h.b16 %v7222
        %v8757 = vunpack.c.l.b16 %v7223
        %v8758 = vunpack.c.h.b16 %v7223
        %v8759 = vunpack.c.l.b16 %v7224
        %v8760 = vunpack.c.h.b16 %v7224
        %v8761 = vunpack.c.l.b16 %v7225
        %v8762 = vunpack.c.h.b16 %v7225
        %v8763 = vunpack.c.l.b16 %v7226
        %v8764 = vunpack.c.h.b16 %v7226
        %v8765 = vunpack.c.l.b16 %v7227
        %v8766 = vunpack.c.h.b16 %v7227
        %v8767 = vunpack.c.l.b16 %v7228
        %v8768 = vunpack.c.h.b16 %v7228
        %v8769 = vunpack.c.l.b16 %v7229
        %v8770 = vunpack.c.h.b16 %v7229
        %v8771 = vunpack.c.l.b16 %v7230
        %v8772 = vunpack.c.h.b16 %v7230
        %v8773 = vunpack.c.l.b16 %v7231
        %v8774 = vunpack.c.h.b16 %v7231
        %v8775 = vunpack.c.l.b16 %v7232
        %v8776 = vunpack.c.h.b16 %v7232
        %v8777 = vunpack.c.l.b16 %v7233
        %v8778 = vunpack.c.h.b16 %v7233
        %v8779 = vunpack.c.l.b16 %v7234
        %v8780 = vunpack.c.h.b16 %v7234
        %v8781 = vunpack.c.l.b16 %v7235
        %v8782 = vunpack.c.h.b16 %v7235
        %v8783 = vunpack.c.l.b16 %v7236
        %v8784 = vunpack.c.h.b16 %v7236
        %v8785 = vunpack.c.l.b16 %v7237
        %v8786 = vunpack.c.h.b16 %v7237
        %v8787 = vunpack.c.l.b16 %v7238
        %v8788 = vunpack.c.h.b16 %v7238
        %v8789 = vunpack.c.l.b16 %v7239
        %v8790 = vunpack.c.h.b16 %v7239
        %v8791 = vunpack.c.l.b16 %v7240
        %v8792 = vunpack.c.h.b16 %v7240
        %v8793 = vunpack.c.l.b16 %v7241
        %v8794 = vunpack.c.h.b16 %v7241
        %v8795 = vunpack.c.l.b16 %v7242
        %v8796 = vunpack.c.h.b16 %v7242
        %v8797 = vunpack.c.l.b16 %v7243
        %v8798 = vunpack.c.h.b16 %v7243
        %v8799 = vunpack.c.l.b16 %v7244
        %v8800 = vunpack.c.h.b16 %v7244
        %v8801 = vunpack.c.l.b16 %v7245
        %v8802 = vunpack.c.h.b16 %v7245
        %v8803 = vunpack.c.l.b16 %v7246
        %v8804 = vunpack.c.h.b16 %v7246
        %v8805 = vunpack.c.l.b16 %v7247
        %v8806 = vunpack.c.h.b16 %v7247
        %v8807 = vunpack.c.l.b16 %v7248
        %v8808 = vunpack.c.h.b16 %v7248
        %v8809 = vunpack.c.l.b16 %v7249
        %v8810 = vunpack.c.h.b16 %v7249
        %v8811 = vunpack.c.l.b16 %v7250
        %v8812 = vunpack.c.h.b16 %v7250
        %v8813 = vunpack.c.l.b16 %v7251
        %v8814 = vunpack.c.h.b16 %v7251
        %v8815 = vunpack.c.l.b16 %v7252
        %v8816 = vunpack.c.h.b16 %v7252
        %v8817 = vunpack.c.l.b16 %v7253
        %v8818 = vunpack.c.h.b16 %v7253
        %v8819 = vunpack.c.l.b16 %v7254
        %v8820 = vunpack.c.h.b16 %v7254
        %v8821 = vunpack.c.l.b16 %v7255
        %v8822 = vunpack.c.h.b16 %v7255
        %v8823 = vunpack.c.l.b16 %v7256
        %v8824 = vunpack.c.h.b16 %v7256
        %v8825 = vunpack.c.l.b16 %v7257
        %v8826 = vunpack.c.h.b16 %v7257
        %v8827 = vunpack.c.l.b16 %v7258
        %v8828 = vunpack.c.h.b16 %v7258
        %v8829 = vunpack.c.l.b16 %v7259
        %v8830 = vunpack.c.h.b16 %v7259
        %v8831 = vunpack.c.l.b16 %v7260
        %v8832 = vunpack.c.h.b16 %v7260
        %v8833 = vunpack.c.l.b16 %v7261
        %v8834 = vunpack.c.h.b16 %v7261
        %v8835 = vunpack.c.l.b16 %v7262
        %v8836 = vunpack.c.h.b16 %v7262
        %v8837 = vunpack.c.l.b16 %v7263
        %v8838 = vunpack.c.h.b16 %v7263
        %v8839 = vunpack.c.l.b16 %v7264
        %v8840 = vunpack.c.h.b16 %v7264
        %v8841 = vunpack.c.l.b16 %v7265
        %v8842 = vunpack.c.h.b16 %v7265
        %v8843 = vunpack.c.l.b16 %v7266
        %v8844 = vunpack.c.h.b16 %v7266
        %v8845 = vpack.c.b16 %v7829, %v7821
        %v8846 = vpack.c.b16 %v7830, %v7822
        %v8847 = vpack.c.b16 %v7831, %v7823
        %v8848 = vpack.c.b16 %v7832, %v7824
        %v8849 = vpack.c.b16 %v7833, %v7825
        %v8850 = vpack.c.b16 %v7834, %v7826
        %v8851 = vpack.c.b16 %v7835, %v7827
        %v8852 = vpack.c.b16 %v7836, %v7828
        %v8853 = vpack.c.b16 %v7845, %v7837
        %v8854 = vpack.c.b16 %v7846, %v7838
        %v8855 = vpack.c.b16 %v7847, %v7839
        %v8856 = vpack.c.b16 %v7848, %v7840
        %v8857 = vpack.c.b16 %v7849, %v7841
        %v8858 = vpack.c.b16 %v7850, %v7842
        %v8859 = vpack.c.b16 %v7851, %v7843
        %v8860 = vpack.c.b16 %v7852, %v7844
        %v8861 = vpack.c.b16 %v7861, %v7853
        %v8862 = vpack.c.b16 %v7862, %v7854
        %v8863 = vpack.c.b16 %v7863, %v7855
        %v8864 = vpack.c.b16 %v7864, %v7856
        %v8865 = vpack.c.b16 %v7865, %v7857
        %v8866 = vpack.c.b16 %v7866, %v7858
        %v8867 = vpack.c.b16 %v7867, %v7859
        %v8868 = vpack.c.b16 %v7868, %v7860
        %v8869 = vpack.c.b16 %v7877, %v7869
        %v8870 = vpack.c.b16 %v7878, %v7870
        %v8871 = vpack.c.b16 %v7879, %v7871
        %v8872 = vpack.c.b16 %v7880, %v7872
        %v8873 = vpack.c.b16 %v7881, %v7873
        %v8874 = vpack.c.b16 %v7882, %v7874
        %v8875 = vpack.c.b16 %v7883, %v7875
        %v8876 = vpack.c.b16 %v7884, %v7876
        %v8877 = vpack.c.b16 %v7893, %v7885
        %v8878 = vpack.c.b16 %v7894, %v7886
        %v8879 = vpack.c.b16 %v7895, %v7887
        %v8880 = vpack.c.b16 %v7896, %v7888
        %v8881 = vpack.c.b16 %v7897, %v7889
        %v8882 = vpack.c.b16 %v7898, %v7890
        %v8883 = vpack.c.b16 %v7899, %v7891
        %v8884 = vpack.c.b16 %v7900, %v7892
        %v8885 = vpack.c.b16 %v7909, %v7901
        %v8886 = vpack.c.b16 %v7910, %v7902
        %v8887 = vpack.c.b16 %v7911, %v7903
        %v8888 = vpack.c.b16 %v7912, %v7904
        %v8889 = vpack.c.b16 %v7913, %v7905
        %v8890 = vpack.c.b16 %v7914, %v7906
        %v8891 = vpack.c.b16 %v7915, %v7907
        %v8892 = vpack.c.b16 %v7916, %v7908
        %v8893 = vpack.c.b16 %v7925, %v7917
        %v8894 = vpack.c.b16 %v7926, %v7918
        %v8895 = vpack.c.b16 %v7927, %v7919
        %v8896 = vpack.c.b16 %v7928, %v7920
        %v8897 = vpack.c.b16 %v7929, %v7921
        %v8898 = vpack.c.b16 %v7930, %v7922
        %v8899 = vpack.c.b16 %v7931, %v7923
        %v8900 = vpack.c.b16 %v7932, %v7924
        %v8901 = vpack.c.b16 %v7941, %v7933
        %v8902 = vpack.c.b16 %v7942, %v7934
        %v8903 = vpack.c.b16 %v7943, %v7935
        %v8904 = vpack.c.b16 %v7944, %v7936
        %v8905 = vpack.c.b16 %v7945, %v7937
        %v8906 = vpack.c.b16 %v7946, %v7938
        %v8907 = vpack.c.b16 %v7947, %v7939
        %v8908 = vpack.c.b16 %v7948, %v7940
        %v8909 = vpack.c.b16 %v7957, %v7949
        %v8910 = vpack.c.b16 %v7958, %v7950
        %v8911 = vpack.c.b16 %v7959, %v7951
        %v8912 = vpack.c.b16 %v7960, %v7952
        %v8913 = vpack.c.b16 %v7961, %v7953
        %v8914 = vpack.c.b16 %v7962, %v7954
        %v8915 = vpack.c.b16 %v7963, %v7955
        %v8916 = vpack.c.b16 %v7964, %v7956
        %v8917 = vpack.c.b16 %v7973, %v7965
        %v8918 = vpack.c.b16 %v7974, %v7966
        %v8919 = vpack.c.b16 %v7975, %v7967
        %v8920 = vpack.c.b16 %v7976, %v7968
        %v8921 = vpack.c.b16 %v7977, %v7969
        %v8922 = vpack.c.b16 %v7978, %v7970
        %v8923 = vpack.c.b16 %v7979, %v7971
        %v8924 = vpack.c.b16 %v7980, %v7972
        %v8925 = vpack.c.b16 %v7989, %v7981
        %v8926 = vpack.c.b16 %v7990, %v7982
        %v8927 = vpack.c.b16 %v7991, %v7983
        %v8928 = vpack.c.b16 %v7992, %v7984
        %v8929 = vpack.c.b16 %v7993, %v7985
        %v8930 = vpack.c.b16 %v7994, %v7986
        %v8931 = vpack.c.b16 %v7995, %v7987
        %v8932 = vpack.c.b16 %v7996, %v7988
        %v8933 = vpack.c.b16 %v8005, %v7997
        %v8934 = vpack.c.b16 %v8006, %v7998
        %v8935 = vpack.c.b16 %v8007, %v7999
        %v8936 = vpack.c.b16 %v8008, %v8000
        %v8937 = vpack.c.b16 %v8009, %v8001
        %v8938 = vpack.c.b16 %v8010, %v8002
        %v8939 = vpack.c.b16 %v8011, %v8003
        %v8940 = vpack.c.b16 %v8012, %v8004
        %v8941 = vpack.c.b16 %v8021, %v8013
        %v8942 = vpack.c.b16 %v8022, %v8014
        %v8943 = vpack.c.b16 %v8023, %v8015
        %v8944 = vpack.c.b16 %v8024, %v8016
        %v8945 = vpack.c.b16 %v8025, %v8017
        %v8946 = vpack.c.b16 %v8026, %v8018
        %v8947 = vpack.c.b16 %v8027, %v8019
        %v8948 = vpack.c.b16 %v8028, %v8020
        %v8949 = vpack.c.b16 %v8037, %v8029
        %v8950 = vpack.c.b16 %v8038, %v8030
        %v8951 = vpack.c.b16 %v8039, %v8031
        %v8952 = vpack.c.b16 %v8040, %v8032
        %v8953 = vpack.c.b16 %v8041, %v8033
        %v8954 = vpack.c.b16 %v8042, %v8034
        %v8955 = vpack.c.b16 %v8043, %v8035
        %v8956 = vpack.c.b16 %v8044, %v8036
        %v8957 = vpack.c.b16 %v8053, %v8045
        %v8958 = vpack.c.b16 %v8054, %v8046
        %v8959 = vpack.c.b16 %v8055, %v8047
        %v8960 = vpack.c.b16 %v8056, %v8048
        %v8961 = vpack.c.b16 %v8057, %v8049
        %v8962 = vpack.c.b16 %v8058, %v8050
        %v8963 = vpack.c.b16 %v8059, %v8051
        %v8964 = vpack.c.b16 %v8060, %v8052
        %v8965 = vpack.c.b16 %v8069, %v8061
        %v8966 = vpack.c.b16 %v8070, %v8062
        %v8967 = vpack.c.b16 %v8071, %v8063
        %v8968 = vpack.c.b16 %v8072, %v8064
        %v8969 = vpack.c.b16 %v8073, %v8065
        %v8970 = vpack.c.b16 %v8074, %v8066
        %v8971 = vpack.c.b16 %v8075, %v8067
        %v8972 = vpack.c.b16 %v8076, %v8068
        %v8973 = vpack.c.b16 %v8085, %v8077
        %v8974 = vpack.c.b16 %v8086, %v8078
        %v8975 = vpack.c.b16 %v8087, %v8079
        %v8976 = vpack.c.b16 %v8088, %v8080
        %v8977 = vpack.c.b16 %v8089, %v8081
        %v8978 = vpack.c.b16 %v8090, %v8082
        %v8979 = vpack.c.b16 %v8091, %v8083
        %v8980 = vpack.c.b16 %v8092, %v8084
        %v8981 = vpack.c.b16 %v8101, %v8093
        %v8982 = vpack.c.b16 %v8102, %v8094
        %v8983 = vpack.c.b16 %v8103, %v8095
        %v8984 = vpack.c.b16 %v8104, %v8096
        %v8985 = vpack.c.b16 %v8105, %v8097
        %v8986 = vpack.c.b16 %v8106, %v8098
        %v8987 = vpack.c.b16 %v8107, %v8099
        %v8988 = vpack.c.b16 %v8108, %v8100
        %v8989 = vpack.c.b16 %v8117, %v8109
        %v8990 = vpack.c.b16 %v8118, %v8110
        %v8991 = vpack.c.b16 %v8119, %v8111
        %v8992 = vpack.c.b16 %v8120, %v8112
        %v8993 = vpack.c.b16 %v8121, %v8113
        %v8994 = vpack.c.b16 %v8122, %v8114
        %v8995 = vpack.c.b16 %v8123, %v8115
        %v8996 = vpack.c.b16 %v8124, %v8116
        %v8997 = vpack.c.b16 %v8133, %v8125
        %v8998 = vpack.c.b16 %v8134, %v8126
        %v8999 = vpack.c.b16 %v8135, %v8127
        %v9000 = vpack.c.b16 %v8136, %v8128
        %v9001 = vpack.c.b16 %v8137, %v8129
        %v9002 = vpack.c.b16 %v8138, %v8130
        %v9003 = vpack.c.b16 %v8139, %v8131
        %v9004 = vpack.c.b16 %v8140, %v8132
        %v9005 = vpack.c.b16 %v8149, %v8141
        %v9006 = vpack.c.b16 %v8150, %v8142
        %v9007 = vpack.c.b16 %v8151, %v8143
        %v9008 = vpack.c.b16 %v8152, %v8144
        %v9009 = vpack.c.b16 %v8153, %v8145
        %v9010 = vpack.c.b16 %v8154, %v8146
        %v9011 = vpack.c.b16 %v8155, %v8147
        %v9012 = vpack.c.b16 %v8156, %v8148
        %v9013 = vpack.c.b16 %v8165, %v8157
        %v9014 = vpack.c.b16 %v8166, %v8158
        %v9015 = vpack.c.b16 %v8167, %v8159
        %v9016 = vpack.c.b16 %v8168, %v8160
        %v9017 = vpack.c.b16 %v8169, %v8161
        %v9018 = vpack.c.b16 %v8170, %v8162
        %v9019 = vpack.c.b16 %v8171, %v8163
        %v9020 = vpack.c.b16 %v8172, %v8164
        %v9021 = vpack.c.b16 %v8181, %v8173
        %v9022 = vpack.c.b16 %v8182, %v8174
        %v9023 = vpack.c.b16 %v8183, %v8175
        %v9024 = vpack.c.b16 %v8184, %v8176
        %v9025 = vpack.c.b16 %v8185, %v8177
        %v9026 = vpack.c.b16 %v8186, %v8178
        %v9027 = vpack.c.b16 %v8187, %v8179
        %v9028 = vpack.c.b16 %v8188, %v8180
        %v9029 = vpack.c.b16 %v8197, %v8189
        %v9030 = vpack.c.b16 %v8198, %v8190
        %v9031 = vpack.c.b16 %v8199, %v8191
        %v9032 = vpack.c.b16 %v8200, %v8192
        %v9033 = vpack.c.b16 %v8201, %v8193
        %v9034 = vpack.c.b16 %v8202, %v8194
        %v9035 = vpack.c.b16 %v8203, %v8195
        %v9036 = vpack.c.b16 %v8204, %v8196
        %v9037 = vpack.c.b16 %v8213, %v8205
        %v9038 = vpack.c.b16 %v8214, %v8206
        %v9039 = vpack.c.b16 %v8215, %v8207
        %v9040 = vpack.c.b16 %v8216, %v8208
        %v9041 = vpack.c.b16 %v8217, %v8209
        %v9042 = vpack.c.b16 %v8218, %v8210
        %v9043 = vpack.c.b16 %v8219, %v8211
        %v9044 = vpack.c.b16 %v8220, %v8212
        %v9045 = vpack.c.b16 %v8229, %v8221
        %v9046 = vpack.c.b16 %v8230, %v8222
        %v9047 = vpack.c.b16 %v8231, %v8223
        %v9048 = vpack.c.b16 %v8232, %v8224
        %v9049 = vpack.c.b16 %v8233, %v8225
        %v9050 = vpack.c.b16 %v8234, %v8226
        %v9051 = vpack.c.b16 %v8235, %v8227
        %v9052 = vpack.c.b16 %v8236, %v8228
        %v9053 = vpack.c.b16 %v8245, %v8237
        %v9054 = vpack.c.b16 %v8246, %v8238
        %v9055 = vpack.c.b16 %v8247, %v8239
        %v9056 = vpack.c.b16 %v8248, %v8240
        %v9057 = vpack.c.b16 %v8249, %v8241
        %v9058 = vpack.c.b16 %v8250, %v8242
        %v9059 = vpack.c.b16 %v8251, %v8243
        %v9060 = vpack.c.b16 %v8252, %v8244
        %v9061 = vpack.c.b16 %v8261, %v8253
        %v9062 = vpack.c.b16 %v8262, %v8254
        %v9063 = vpack.c.b16 %v8263, %v8255
        %v9064 = vpack.c.b16 %v8264, %v8256
        %v9065 = vpack.c.b16 %v8265, %v8257
        %v9066 = vpack.c.b16 %v8266, %v8258
        %v9067 = vpack.c.b16 %v8267, %v8259
        %v9068 = vpack.c.b16 %v8268, %v8260
        %v9069 = vpack.c.b16 %v8277, %v8269
        %v9070 = vpack.c.b16 %v8278, %v8270
        %v9071 = vpack.c.b16 %v8279, %v8271
        %v9072 = vpack.c.b16 %v8280, %v8272
        %v9073 = vpack.c.b16 %v8281, %v8273
        %v9074 = vpack.c.b16 %v8282, %v8274
        %v9075 = vpack.c.b16 %v8283, %v8275
        %v9076 = vpack.c.b16 %v8284, %v8276
        %v9077 = vpack.c.b16 %v8293, %v8285
        %v9078 = vpack.c.b16 %v8294, %v8286
        %v9079 = vpack.c.b16 %v8295, %v8287
        %v9080 = vpack.c.b16 %v8296, %v8288
        %v9081 = vpack.c.b16 %v8297, %v8289
        %v9082 = vpack.c.b16 %v8298, %v8290
        %v9083 = vpack.c.b16 %v8299, %v8291
        %v9084 = vpack.c.b16 %v8300, %v8292
        %v9085 = vpack.c.b16 %v8309, %v8301
        %v9086 = vpack.c.b16 %v8310, %v8302
        %v9087 = vpack.c.b16 %v8311, %v8303
        %v9088 = vpack.c.b16 %v8312, %v8304
        %v9089 = vpack.c.b16 %v8313, %v8305
        %v9090 = vpack.c.b16 %v8314, %v8306
        %v9091 = vpack.c.b16 %v8315, %v8307
        %v9092 = vpack.c.b16 %v8316, %v8308
        %v9093 = vpack.c.b16 %v8325, %v8317
        %v9094 = vpack.c.b16 %v8326, %v8318
        %v9095 = vpack.c.b16 %v8327, %v8319
        %v9096 = vpack.c.b16 %v8328, %v8320
        %v9097 = vpack.c.b16 %v8329, %v8321
        %v9098 = vpack.c.b16 %v8330, %v8322
        %v9099 = vpack.c.b16 %v8331, %v8323
        %v9100 = vpack.c.b16 %v8332, %v8324
        %v9101 = vpack.c.b16 %v8341, %v8333
        %v9102 = vpack.c.b16 %v8342, %v8334
        %v9103 = vpack.c.b16 %v8343, %v8335
        %v9104 = vpack.c.b16 %v8344, %v8336
        %v9105 = vpack.c.b16 %v8345, %v8337
        %v9106 = vpack.c.b16 %v8346, %v8338
        %v9107 = vpack.c.b16 %v8347, %v8339
        %v9108 = vpack.c.b16 %v8348, %v8340
        %v9109 = vpack.c.b16 %v8357, %v8349
        %v9110 = vpack.c.b16 %v8358, %v8350
        %v9111 = vpack.c.b16 %v8359, %v8351
        %v9112 = vpack.c.b16 %v8360, %v8352
        %v9113 = vpack.c.b16 %v8361, %v8353
        %v9114 = vpack.c.b16 %v8362, %v8354
        %v9115 = vpack.c.b16 %v8363, %v8355
        %v9116 = vpack.c.b16 %v8364, %v8356
        %v9117 = vpack.c.b16 %v8373, %v8365
        %v9118 = vpack.c.b16 %v8374, %v8366
        %v9119 = vpack.c.b16 %v8375, %v8367
        %v9120 = vpack.c.b16 %v8376, %v8368
        %v9121 = vpack.c.b16 %v8377, %v8369
        %v9122 = vpack.c.b16 %v8378, %v8370
        %v9123 = vpack.c.b16 %v8379, %v8371
        %v9124 = vpack.c.b16 %v8380, %v8372
        %v9125 = vpack.c.b16 %v8389, %v8381
        %v9126 = vpack.c.b16 %v8390, %v8382
        %v9127 = vpack.c.b16 %v8391, %v8383
        %v9128 = vpack.c.b16 %v8392, %v8384
        %v9129 = vpack.c.b16 %v8393, %v8385
        %v9130 = vpack.c.b16 %v8394, %v8386
        %v9131 = vpack.c.b16 %v8395, %v8387
        %v9132 = vpack.c.b16 %v8396, %v8388
        %v9133 = vpack.c.b16 %v8405, %v8397
        %v9134 = vpack.c.b16 %v8406, %v8398
        %v9135 = vpack.c.b16 %v8407, %v8399
        %v9136 = vpack.c.b16 %v8408, %v8400
        %v9137 = vpack.c.b16 %v8409, %v8401
        %v9138 = vpack.c.b16 %v8410, %v8402
        %v9139 = vpack.c.b16 %v8411, %v8403
        %v9140 = vpack.c.b16 %v8412, %v8404
        %v9141 = vpack.c.b16 %v8421, %v8413
        %v9142 = vpack.c.b16 %v8422, %v8414
        %v9143 = vpack.c.b16 %v8423, %v8415
        %v9144 = vpack.c.b16 %v8424, %v8416
        %v9145 = vpack.c.b16 %v8425, %v8417
        %v9146 = vpack.c.b16 %v8426, %v8418
        %v9147 = vpack.c.b16 %v8427, %v8419
        %v9148 = vpack.c.b16 %v8428, %v8420
        %v9149 = vpack.c.b16 %v8437, %v8429
        %v9150 = vpack.c.b16 %v8438, %v8430
        %v9151 = vpack.c.b16 %v8439, %v8431
        %v9152 = vpack.c.b16 %v8440, %v8432
        %v9153 = vpack.c.b16 %v8441, %v8433
        %v9154 = vpack.c.b16 %v8442, %v8434
        %v9155 = vpack.c.b16 %v8443, %v8435
        %v9156 = vpack.c.b16 %v8444, %v8436
        %v9157 = vpack.c.b16 %v8453, %v8445
        %v9158 = vpack.c.b16 %v8454, %v8446
        %v9159 = vpack.c.b16 %v8455, %v8447
        %v9160 = vpack.c.b16 %v8456, %v8448
        %v9161 = vpack.c.b16 %v8457, %v8449
        %v9162 = vpack.c.b16 %v8458, %v8450
        %v9163 = vpack.c.b16 %v8459, %v8451
        %v9164 = vpack.c.b16 %v8460, %v8452
        %v9165 = vpack.c.b16 %v8469, %v8461
        %v9166 = vpack.c.b16 %v8470, %v8462
        %v9167 = vpack.c.b16 %v8471, %v8463
        %v9168 = vpack.c.b16 %v8472, %v8464
        %v9169 = vpack.c.b16 %v8473, %v8465
        %v9170 = vpack.c.b16 %v8474, %v8466
        %v9171 = vpack.c.b16 %v8475, %v8467
        %v9172 = vpack.c.b16 %v8476, %v8468
        %v9173 = vpack.c.b16 %v8485, %v8477
        %v9174 = vpack.c.b16 %v8486, %v8478
        %v9175 = vpack.c.b16 %v8487, %v8479
        %v9176 = vpack.c.b16 %v8488, %v8480
        %v9177 = vpack.c.b16 %v8489, %v8481
        %v9178 = vpack.c.b16 %v8490, %v8482
        %v9179 = vpack.c.b16 %v8491, %v8483
        %v9180 = vpack.c.b16 %v8492, %v8484
        %v9181 = vpack.c.b16 %v8501, %v8493
        %v9182 = vpack.c.b16 %v8502, %v8494
        %v9183 = vpack.c.b16 %v8503, %v8495
        %v9184 = vpack.c.b16 %v8504, %v8496
        %v9185 = vpack.c.b16 %v8505, %v8497
        %v9186 = vpack.c.b16 %v8506, %v8498
        %v9187 = vpack.c.b16 %v8507, %v8499
        %v9188 = vpack.c.b16 %v8508, %v8500
        %v9189 = vpack.c.b16 %v8517, %v8509
        %v9190 = vpack.c.b16 %v8518, %v8510
        %v9191 = vpack.c.b16 %v8519, %v8511
        %v9192 = vpack.c.b16 %v8520, %v8512
        %v9193 = vpack.c.b16 %v8521, %v8513
        %v9194 = vpack.c.b16 %v8522, %v8514
        %v9195 = vpack.c.b16 %v8523, %v8515
        %v9196 = vpack.c.b16 %v8524, %v8516
        %v9197 = vpack.c.b16 %v8533, %v8525
        %v9198 = vpack.c.b16 %v8534, %v8526
        %v9199 = vpack.c.b16 %v8535, %v8527
        %v9200 = vpack.c.b16 %v8536, %v8528
        %v9201 = vpack.c.b16 %v8537, %v8529
        %v9202 = vpack.c.b16 %v8538, %v8530
        %v9203 = vpack.c.b16 %v8539, %v8531
        %v9204 = vpack.c.b16 %v8540, %v8532
        %v9205 = vpack.c.b16 %v8549, %v8541
        %v9206 = vpack.c.b16 %v8550, %v8542
        %v9207 = vpack.c.b16 %v8551, %v8543
        %v9208 = vpack.c.b16 %v8552, %v8544
        %v9209 = vpack.c.b16 %v8553, %v8545
        %v9210 = vpack.c.b16 %v8554, %v8546
        %v9211 = vpack.c.b16 %v8555, %v8547
        %v9212 = vpack.c.b16 %v8556, %v8548
        %v9213 = vpack.c.b16 %v8565, %v8557
        %v9214 = vpack.c.b16 %v8566, %v8558
        %v9215 = vpack.c.b16 %v8567, %v8559
        %v9216 = vpack.c.b16 %v8568, %v8560
        %v9217 = vpack.c.b16 %v8569, %v8561
        %v9218 = vpack.c.b16 %v8570, %v8562
        %v9219 = vpack.c.b16 %v8571, %v8563
        %v9220 = vpack.c.b16 %v8572, %v8564
        %v9221 = vpack.c.b16 %v8581, %v8573
        %v9222 = vpack.c.b16 %v8582, %v8574
        %v9223 = vpack.c.b16 %v8583, %v8575
        %v9224 = vpack.c.b16 %v8584, %v8576
        %v9225 = vpack.c.b16 %v8585, %v8577
        %v9226 = vpack.c.b16 %v8586, %v8578
        %v9227 = vpack.c.b16 %v8587, %v8579
        %v9228 = vpack.c.b16 %v8588, %v8580
        %v9229 = vpack.c.b16 %v8597, %v8589
        %v9230 = vpack.c.b16 %v8598, %v8590
        %v9231 = vpack.c.b16 %v8599, %v8591
        %v9232 = vpack.c.b16 %v8600, %v8592
        %v9233 = vpack.c.b16 %v8601, %v8593
        %v9234 = vpack.c.b16 %v8602, %v8594
        %v9235 = vpack.c.b16 %v8603, %v8595
        %v9236 = vpack.c.b16 %v8604, %v8596
        %v9237 = vpack.c.b16 %v8613, %v8605
        %v9238 = vpack.c.b16 %v8614, %v8606
        %v9239 = vpack.c.b16 %v8615, %v8607
        %v9240 = vpack.c.b16 %v8616, %v8608
        %v9241 = vpack.c.b16 %v8617, %v8609
        %v9242 = vpack.c.b16 %v8618, %v8610
        %v9243 = vpack.c.b16 %v8619, %v8611
        %v9244 = vpack.c.b16 %v8620, %v8612
        %v9245 = vpack.c.b16 %v8629, %v8621
        %v9246 = vpack.c.b16 %v8630, %v8622
        %v9247 = vpack.c.b16 %v8631, %v8623
        %v9248 = vpack.c.b16 %v8632, %v8624
        %v9249 = vpack.c.b16 %v8633, %v8625
        %v9250 = vpack.c.b16 %v8634, %v8626
        %v9251 = vpack.c.b16 %v8635, %v8627
        %v9252 = vpack.c.b16 %v8636, %v8628
        %v9253 = vpack.c.b16 %v8645, %v8637
        %v9254 = vpack.c.b16 %v8646, %v8638
        %v9255 = vpack.c.b16 %v8647, %v8639
        %v9256 = vpack.c.b16 %v8648, %v8640
        %v9257 = vpack.c.b16 %v8649, %v8641
        %v9258 = vpack.c.b16 %v8650, %v8642
        %v9259 = vpack.c.b16 %v8651, %v8643
        %v9260 = vpack.c.b16 %v8652, %v8644
        %v9261 = vpack.c.b16 %v8661, %v8653
        %v9262 = vpack.c.b16 %v8662, %v8654
        %v9263 = vpack.c.b16 %v8663, %v8655
        %v9264 = vpack.c.b16 %v8664, %v8656
        %v9265 = vpack.c.b16 %v8665, %v8657
        %v9266 = vpack.c.b16 %v8666, %v8658
        %v9267 = vpack.c.b16 %v8667, %v8659
        %v9268 = vpack.c.b16 %v8668, %v8660
        %v9269 = vpack.c.b16 %v8677, %v8669
        %v9270 = vpack.c.b16 %v8678, %v8670
        %v9271 = vpack.c.b16 %v8679, %v8671
        %v9272 = vpack.c.b16 %v8680, %v8672
        %v9273 = vpack.c.b16 %v8681, %v8673
        %v9274 = vpack.c.b16 %v8682, %v8674
        %v9275 = vpack.c.b16 %v8683, %v8675
        %v9276 = vpack.c.b16 %v8684, %v8676
        %v9277 = vpack.c.b16 %v8693, %v8685
        %v9278 = vpack.c.b16 %v8694, %v8686
        %v9279 = vpack.c.b16 %v8695, %v8687
        %v9280 = vpack.c.b16 %v8696, %v8688
        %v9281 = vpack.c.b16 %v8697, %v8689
        %v9282 = vpack.c.b16 %v8698, %v8690
        %v9283 = vpack.c.b16 %v8699, %v8691
        %v9284 = vpack.c.b16 %v8700, %v8692
        %v9285 = vpack.c.b16 %v8709, %v8701
        %v9286 = vpack.c.b16 %v8710, %v8702
        %v9287 = vpack.c.b16 %v8711, %v8703
        %v9288 = vpack.c.b16 %v8712, %v8704
        %v9289 = vpack.c.b16 %v8713, %v8705
        %v9290 = vpack.c.b16 %v8714, %v8706
        %v9291 = vpack.c.b16 %v8715, %v8707
        %v9292 = vpack.c.b16 %v8716, %v8708
        %v9293 = vpack.c.b16 %v8725, %v8717
        %v9294 = vpack.c.b16 %v8726, %v8718
        %v9295 = vpack.c.b16 %v8727, %v8719
        %v9296 = vpack.c.b16 %v8728, %v8720
        %v9297 = vpack.c.b16 %v8729, %v8721
        %v9298 = vpack.c.b16 %v8730, %v8722
        %v9299 = vpack.c.b16 %v8731, %v8723
        %v9300 = vpack.c.b16 %v8732, %v8724
        %v9301 = vpack.c.b16 %v8741, %v8733
        %v9302 = vpack.c.b16 %v8742, %v8734
        %v9303 = vpack.c.b16 %v8743, %v8735
        %v9304 = vpack.c.b16 %v8744, %v8736
        %v9305 = vpack.c.b16 %v8745, %v8737
        %v9306 = vpack.c.b16 %v8746, %v8738
        %v9307 = vpack.c.b16 %v8747, %v8739
        %v9308 = vpack.c.b16 %v8748, %v8740
        %v9309 = vpack.c.b16 %v8757, %v8749
        %v9310 = vpack.c.b16 %v8758, %v8750
        %v9311 = vpack.c.b16 %v8759, %v8751
        %v9312 = vpack.c.b16 %v8760, %v8752
        %v9313 = vpack.c.b16 %v8761, %v8753
        %v9314 = vpack.c.b16 %v8762, %v8754
        %v9315 = vpack.c.b16 %v8763, %v8755
        %v9316 = vpack.c.b16 %v8764, %v8756
        %v9317 = vpack.c.b16 %v8773, %v8765
        %v9318 = vpack.c.b16 %v8774, %v8766
        %v9319 = vpack.c.b16 %v8775, %v8767
        %v9320 = vpack.c.b16 %v8776, %v8768
        %v9321 = vpack.c.b16 %v8777, %v8769
        %v9322 = vpack.c.b16 %v8778, %v8770
        %v9323 = vpack.c.b16 %v8779, %v8771
        %v9324 = vpack.c.b16 %v8780, %v8772
        %v9325 = vpack.c.b16 %v8789, %v8781
        %v9326 = vpack.c.b16 %v8790, %v8782
        %v9327 = vpack.c.b16 %v8791, %v8783
        %v9328 = vpack.c.b16 %v8792, %v8784
        %v9329 = vpack.c.b16 %v8793, %v8785
        %v9330 = vpack.c.b16 %v8794, %v8786
        %v9331 = vpack.c.b16 %v8795, %v8787
        %v9332 = vpack.c.b16 %v8796, %v8788
        %v9333 = vpack.c.b16 %v8805, %v8797
        %v9334 = vpack.c.b16 %v8806, %v8798
        %v9335 = vpack.c.b16 %v8807, %v8799
        %v9336 = vpack.c.b16 %v8808, %v8800
        %v9337 = vpack.c.b16 %v8809, %v8801
        %v9338 = vpack.c.b16 %v8810, %v8802
        %v9339 = vpack.c.b16 %v8811, %v8803
        %v9340 = vpack.c.b16 %v8812, %v8804
        %v9341 = vpack.c.b16 %v8821, %v8813
        %v9342 = vpack.c.b16 %v8822, %v8814
        %v9343 = vpack.c.b16 %v8823, %v8815
        %v9344 = vpack.c.b16 %v8824, %v8816
        %v9345 = vpack.c.b16 %v8825, %v8817
        %v9346 = vpack.c.b16 %v8826, %v8818
        %v9347 = vpack.c.b16 %v8827, %v8819
        %v9348 = vpack.c.b16 %v8828, %v8820
        %v9349 = vpack.c.b16 %v8837, %v8829
        %v9350 = vpack.c.b16 %v8838, %v8830
        %v9351 = vpack.c.b16 %v8839, %v8831
        %v9352 = vpack.c.b16 %v8840, %v8832
        %v9353 = vpack.c.b16 %v8841, %v8833
        %v9354 = vpack.c.b16 %v8842, %v8834
        %v9355 = vpack.c.b16 %v8843, %v8835
        %v9356 = vpack.c.b16 %v8844, %v8836
        %9869 = vmatprep.subr.bf16.mxu0 %v8846
        %9870 = vmatpush1.bf16.msra.mxu0 %v8845
        %9871 = vmatprep.subr.bf16.mxu0 %v8854
        %9872 = vmatpush1.bf16.msra.mxu0 %v8853
        %9873 = vmatprep.subr.bf16.mxu0 %v8862
        %9874 = vmatpush1.bf16.msra.mxu0 %v8861
        %9875 = vmatprep.subr.bf16.mxu0 %v8870
        %9876 = vmatpush1.bf16.msra.mxu0 %v8869
        %9877 = vmatprep.subr.bf16.mxu0 %v8878
        %9878 = vmatpush1.bf16.msra.mxu0 %v8877
        %9879 = vmatprep.subr.bf16.mxu0 %v8886
        %9880 = vmatpush1.bf16.msra.mxu0 %v8885
        %9881 = vmatprep.subr.bf16.mxu0 %v8894
        %9882 = vmatpush1.bf16.msra.mxu0 %v8893
        %9883 = vmatprep.subr.bf16.mxu0 %v8902
        %9884 = vmatpush1.bf16.msra.mxu0 %v8901
        %9885 = vmatprep.subr.bf16.mxu0 %v8910
        %9886 = vmatpush1.bf16.msra.mxu0 %v8909
        %9887 = vmatprep.subr.bf16.mxu0 %v8918
        %9888 = vmatpush1.bf16.msra.mxu0 %v8917
        %9889 = vmatprep.subr.bf16.mxu0 %v8926
        %9890 = vmatpush1.bf16.msra.mxu0 %v8925
        %9891 = vmatprep.subr.bf16.mxu0 %v8934
        %9892 = vmatpush1.bf16.msra.mxu0 %v8933
        %9893 = vmatprep.subr.bf16.mxu0 %v8942
        %9894 = vmatpush1.bf16.msra.mxu0 %v8941
        %9895 = vmatprep.subr.bf16.mxu0 %v8950
        %9896 = vmatpush1.bf16.msra.mxu0 %v8949
        %9897 = vmatprep.subr.bf16.mxu0 %v8958
        %9898 = vmatpush1.bf16.msra.mxu0 %v8957
        %9899 = vmatprep.subr.bf16.mxu0 %v8966
        %9900 = vmatpush1.bf16.msra.mxu0 %v8965
        %9901 = vmatprep.mubr.bf16.mxu0 %v6748
        %9902 = vmatmul.mubr.bf16.gmra.mrb[0].mxu0 %v6747
        %v9903 = vpop.f32.mrb[0].mxu0
        %v9904 = vadd.f32 %v7272, %v9903
        %v9905 = vpop.f32.mrb[0].mxu0
        %v9906 = vadd.f32 %v7276, %v9905
        %v9907 = vpop.f32.mrb[0].mxu0
        %v9908 = vpop.f32.mrb[0].mxu0
        %9909 = vdwg.mxu0
        %9910 = vmatprep.subr.bf16.mxu0 %v8974
        %9911 = vmatpush1.bf16.msra.mxu0 %v8973
        %9912 = vmatprep.subr.bf16.mxu0 %v8982
        %9913 = vmatpush1.bf16.msra.mxu0 %v8981
        %9914 = vmatprep.subr.bf16.mxu0 %v8990
        %9915 = vmatpush1.bf16.msra.mxu0 %v8989
        %9916 = vmatprep.subr.bf16.mxu0 %v8998
        %9917 = vmatpush1.bf16.msra.mxu0 %v8997
        %9918 = vmatprep.subr.bf16.mxu0 %v9006
        %9919 = vmatpush1.bf16.msra.mxu0 %v9005
        %9920 = vmatprep.subr.bf16.mxu0 %v9014
        %9921 = vmatpush1.bf16.msra.mxu0 %v9013
        %9922 = vmatprep.subr.bf16.mxu0 %v9022
        %9923 = vmatpush1.bf16.msra.mxu0 %v9021
        %9924 = vmatprep.subr.bf16.mxu0 %v9030
        %9925 = vmatpush1.bf16.msra.mxu0 %v9029
        %9926 = vmatprep.subr.bf16.mxu0 %v9038
        %9927 = vmatpush1.bf16.msra.mxu0 %v9037
        %9928 = vmatprep.subr.bf16.mxu0 %v9046
        %9929 = vmatpush1.bf16.msra.mxu0 %v9045
        %9930 = vmatprep.subr.bf16.mxu0 %v9054
        %9931 = vmatpush1.bf16.msra.mxu0 %v9053
        %9932 = vmatprep.subr.bf16.mxu0 %v9062
        %9933 = vmatpush1.bf16.msra.mxu0 %v9061
        %9934 = vmatprep.subr.bf16.mxu0 %v9070
        %9935 = vmatpush1.bf16.msra.mxu0 %v9069
        %9936 = vmatprep.subr.bf16.mxu0 %v9078
        %9937 = vmatpush1.bf16.msra.mxu0 %v9077
        %9938 = vmatprep.subr.bf16.mxu0 %v9086
        %9939 = vmatpush1.bf16.msra.mxu0 %v9085
        %9940 = vmatprep.subr.bf16.mxu0 %v9094
        %9941 = vmatpush1.bf16.msra.mxu0 %v9093
        %9942 = vmatprep.mubr.bf16.mxu0 %v6750
        %9943 = vmatmul.mubr.bf16.gmra.mrb[0].mxu0 %v6749
        %v9944 = vpop.f32.mrb[0].mxu0
        %v9945 = vadd.f32 %v9904, %v9944
        %v9946 = vpop.f32.mrb[0].mxu0
        %v9947 = vadd.f32 %v9906, %v9946
        %v9948 = vpop.f32.mrb[0].mxu0
        %v9949 = vpop.f32.mrb[0].mxu0
        %9950 = vdwg.mxu0
        %9951 = vmatprep.subr.bf16.mxu0 %v9102
        %9952 = vmatpush1.bf16.msra.mxu0 %v9101
        %9953 = vmatprep.subr.bf16.mxu0 %v9110
        %9954 = vmatpush1.bf16.msra.mxu0 %v9109
        %9955 = vmatprep.subr.bf16.mxu0 %v9118
        %9956 = vmatpush1.bf16.msra.mxu0 %v9117
        %9957 = vmatprep.subr.bf16.mxu0 %v9126
        %9958 = vmatpush1.bf16.msra.mxu0 %v9125
        %9959 = vmatprep.subr.bf16.mxu0 %v9134
        %9960 = vmatpush1.bf16.msra.mxu0 %v9133
        %9961 = vmatprep.subr.bf16.mxu0 %v9142
        %9962 = vmatpush1.bf16.msra.mxu0 %v9141
        %9963 = vmatprep.subr.bf16.mxu0 %v9150
        %9964 = vmatpush1.bf16.msra.mxu0 %v9149
        %9965 = vmatprep.subr.bf16.mxu0 %v9158
        %9966 = vmatpush1.bf16.msra.mxu0 %v9157
        %9967 = vmatprep.subr.bf16.mxu0 %v9166
        %9968 = vmatpush1.bf16.msra.mxu0 %v9165
        %9969 = vmatprep.subr.bf16.mxu0 %v9174
        %9970 = vmatpush1.bf16.msra.mxu0 %v9173
        %9971 = vmatprep.subr.bf16.mxu0 %v9182
        %9972 = vmatpush1.bf16.msra.mxu0 %v9181
        %9973 = vmatprep.subr.bf16.mxu0 %v9190
        %9974 = vmatpush1.bf16.msra.mxu0 %v9189
        %9975 = vmatprep.subr.bf16.mxu0 %v9198
        %9976 = vmatpush1.bf16.msra.mxu0 %v9197
        %9977 = vmatprep.subr.bf16.mxu0 %v9206
        %9978 = vmatpush1.bf16.msra.mxu0 %v9205
        %9979 = vmatprep.subr.bf16.mxu0 %v9214
        %9980 = vmatpush1.bf16.msra.mxu0 %v9213
        %9981 = vmatprep.subr.bf16.mxu0 %v9222
        %9982 = vmatpush1.bf16.msra.mxu0 %v9221
        %9983 = vmatprep.mubr.bf16.mxu0 %v6752
        %9984 = vmatmul.mubr.bf16.gmra.mrb[0].mxu0 %v6751
        %v9985 = vpop.f32.mrb[0].mxu0
        %v9986 = vadd.f32 %v9945, %v9985
        %v9987 = vpop.f32.mrb[0].mxu0
        %v9988 = vadd.f32 %v9947, %v9987
        %v9989 = vpop.f32.mrb[0].mxu0
        %v9990 = vpop.f32.mrb[0].mxu0
        %9991 = vdwg.mxu0
        %9992 = vmatprep.subr.bf16.mxu0 %v9230
        %9993 = vmatpush1.bf16.msra.mxu0 %v9229
        %9994 = vmatprep.subr.bf16.mxu0 %v9238
        %9995 = vmatpush1.bf16.msra.mxu0 %v9237
        %9996 = vmatprep.subr.bf16.mxu0 %v9246
        %9997 = vmatpush1.bf16.msra.mxu0 %v9245
        %9998 = vmatprep.subr.bf16.mxu0 %v9254
        %9999 = vmatpush1.bf16.msra.mxu0 %v9253
        %10000 = vmatprep.subr.bf16.mxu0 %v9262
        %10001 = vmatpush1.bf16.msra.mxu0 %v9261
        %10002 = vmatprep.subr.bf16.mxu0 %v9270
        %10003 = vmatpush1.bf16.msra.mxu0 %v9269
        %10004 = vmatprep.subr.bf16.mxu0 %v9278
        %10005 = vmatpush1.bf16.msra.mxu0 %v9277
        %10006 = vmatprep.subr.bf16.mxu0 %v9286
        %10007 = vmatpush1.bf16.msra.mxu0 %v9285
        %10008 = vmatprep.subr.bf16.mxu0 %v9294
        %10009 = vmatpush1.bf16.msra.mxu0 %v9293
        %10010 = vmatprep.subr.bf16.mxu0 %v9302
        %10011 = vmatpush1.bf16.msra.mxu0 %v9301
        %10012 = vmatprep.subr.bf16.mxu0 %v9310
        %10013 = vmatpush1.bf16.msra.mxu0 %v9309
        %10014 = vmatprep.subr.bf16.mxu0 %v9318
        %10015 = vmatpush1.bf16.msra.mxu0 %v9317
        %10016 = vmatprep.subr.bf16.mxu0 %v9326
        %10017 = vmatpush1.bf16.msra.mxu0 %v9325
        %10018 = vmatprep.subr.bf16.mxu0 %v9334
        %10019 = vmatpush1.bf16.msra.mxu0 %v9333
        %10020 = vmatprep.subr.bf16.mxu0 %v9342
        %10021 = vmatpush1.bf16.msra.mxu0 %v9341
        %10022 = vmatprep.subr.bf16.mxu0 %v9350
        %10023 = vmatpush1.bf16.msra.mxu0 %v9349
        %10024 = vmatprep.mubr.bf16.mxu0 %v6754
        %10025 = vmatmul.mubr.bf16.gmra.mrb[0].mxu0 %v6753
        %v10026 = vpop.f32.mrb[0].mxu0
        %v10027 = vadd.f32 %v9986, %v10026
        %v10028 = vpop.f32.mrb[0].mxu0
        %v10029 = vadd.f32 %v9988, %v10028
        %v10030 = vpop.f32.mrb[0].mxu0
        %v10031 = vpop.f32.mrb[0].mxu0
        %10032 = vdwg.mxu0
        %10033 = vmatprep.subr.bf16.mxu0 %v8848
        %10034 = vmatpush1.bf16.msra.mxu0 %v8847
        %10035 = vmatprep.subr.bf16.mxu0 %v8856
        %10036 = vmatpush1.bf16.msra.mxu0 %v8855
        %10037 = vmatprep.subr.bf16.mxu0 %v8864
        %10038 = vmatpush1.bf16.msra.mxu0 %v8863
        %10039 = vmatprep.subr.bf16.mxu0 %v8872
        %10040 = vmatpush1.bf16.msra.mxu0 %v8871
        %10041 = vmatprep.subr.bf16.mxu0 %v8880
        %10042 = vmatpush1.bf16.msra.mxu0 %v8879
        %10043 = vmatprep.subr.bf16.mxu0 %v8888
        %10044 = vmatpush1.bf16.msra.mxu0 %v8887
        %10045 = vmatprep.subr.bf16.mxu0 %v8896
        %10046 = vmatpush1.bf16.msra.mxu0 %v8895
        %10047 = vmatprep.subr.bf16.mxu0 %v8904
        %10048 = vmatpush1.bf16.msra.mxu0 %v8903
        %10049 = vmatprep.subr.bf16.mxu0 %v8912
        %10050 = vmatpush1.bf16.msra.mxu0 %v8911
        %10051 = vmatprep.subr.bf16.mxu0 %v8920
        %10052 = vmatpush1.bf16.msra.mxu0 %v8919
        %10053 = vmatprep.subr.bf16.mxu0 %v8928
        %10054 = vmatpush1.bf16.msra.mxu0 %v8927
        %10055 = vmatprep.subr.bf16.mxu0 %v8936
        %10056 = vmatpush1.bf16.msra.mxu0 %v8935
        %10057 = vmatprep.subr.bf16.mxu0 %v8944
        %10058 = vmatpush1.bf16.msra.mxu0 %v8943
        %10059 = vmatprep.subr.bf16.mxu0 %v8952
        %10060 = vmatpush1.bf16.msra.mxu0 %v8951
        %10061 = vmatprep.subr.bf16.mxu0 %v8960
        %10062 = vmatpush1.bf16.msra.mxu0 %v8959
        %10063 = vmatprep.subr.bf16.mxu0 %v8968
        %10064 = vmatpush1.bf16.msra.mxu0 %v8967
        %10065 = vmatprep.mubr.bf16.mxu0 %v6748
        %10066 = vmatmul.mubr.bf16.gmra.mrb[0].mxu0 %v6747
        %v10067 = vpop.f32.mrb[0].mxu0
        %v10068 = vadd.f32 %v7280, %v10067
        %v10069 = vpop.f32.mrb[0].mxu0
        %v10070 = vadd.f32 %v7284, %v10069
        %v10071 = vpop.f32.mrb[0].mxu0
        %v10072 = vpop.f32.mrb[0].mxu0
        %10073 = vdwg.mxu0
        %10074 = vmatprep.subr.bf16.mxu0 %v8976
        %10075 = vmatpush1.bf16.msra.mxu0 %v8975
        %10076 = vmatprep.subr.bf16.mxu0 %v8984
        %10077 = vmatpush1.bf16.msra.mxu0 %v8983
        %10078 = vmatprep.subr.bf16.mxu0 %v8992
        %10079 = vmatpush1.bf16.msra.mxu0 %v8991
        %10080 = vmatprep.subr.bf16.mxu0 %v9000
        %10081 = vmatpush1.bf16.msra.mxu0 %v8999
        %10082 = vmatprep.subr.bf16.mxu0 %v9008
        %10083 = vmatpush1.bf16.msra.mxu0 %v9007
        %10084 = vmatprep.subr.bf16.mxu0 %v9016
        %10085 = vmatpush1.bf16.msra.mxu0 %v9015
        %10086 = vmatprep.subr.bf16.mxu0 %v9024
        %10087 = vmatpush1.bf16.msra.mxu0 %v9023
        %10088 = vmatprep.subr.bf16.mxu0 %v9032
        %10089 = vmatpush1.bf16.msra.mxu0 %v9031
        %10090 = vmatprep.subr.bf16.mxu0 %v9040
        %10091 = vmatpush1.bf16.msra.mxu0 %v9039
        %10092 = vmatprep.subr.bf16.mxu0 %v9048
        %10093 = vmatpush1.bf16.msra.mxu0 %v9047
        %10094 = vmatprep.subr.bf16.mxu0 %v9056
        %10095 = vmatpush1.bf16.msra.mxu0 %v9055
        %10096 = vmatprep.subr.bf16.mxu0 %v9064
        %10097 = vmatpush1.bf16.msra.mxu0 %v9063
        %10098 = vmatprep.subr.bf16.mxu0 %v9072
        %10099 = vmatpush1.bf16.msra.mxu0 %v9071
        %10100 = vmatprep.subr.bf16.mxu0 %v9080
        %10101 = vmatpush1.bf16.msra.mxu0 %v9079
        %10102 = vmatprep.subr.bf16.mxu0 %v9088
        %10103 = vmatpush1.bf16.msra.mxu0 %v9087
        %10104 = vmatprep.subr.bf16.mxu0 %v9096
        %10105 = vmatpush1.bf16.msra.mxu0 %v9095
        %10106 = vmatprep.mubr.bf16.mxu0 %v6750
        %10107 = vmatmul.mubr.bf16.gmra.mrb[0].mxu0 %v6749
        %v10108 = vpop.f32.mrb[0].mxu0
        %v10109 = vadd.f32 %v10068, %v10108
        %v10110 = vpop.f32.mrb[0].mxu0
        %v10111 = vadd.f32 %v10070, %v10110
        %v10112 = vpop.f32.mrb[0].mxu0
        %v10113 = vpop.f32.mrb[0].mxu0
        %10114 = vdwg.mxu0
        %10115 = vmatprep.subr.bf16.mxu0 %v9104
        %10116 = vmatpush1.bf16.msra.mxu0 %v9103
        %10117 = vmatprep.subr.bf16.mxu0 %v9112
        %10118 = vmatpush1.bf16.msra.mxu0 %v9111
        %10119 = vmatprep.subr.bf16.mxu0 %v9120
        %10120 = vmatpush1.bf16.msra.mxu0 %v9119
        %10121 = vmatprep.subr.bf16.mxu0 %v9128
        %10122 = vmatpush1.bf16.msra.mxu0 %v9127
        %10123 = vmatprep.subr.bf16.mxu0 %v9136
        %10124 = vmatpush1.bf16.msra.mxu0 %v9135
        %10125 = vmatprep.subr.bf16.mxu0 %v9144
        %10126 = vmatpush1.bf16.msra.mxu0 %v9143
        %10127 = vmatprep.subr.bf16.mxu0 %v9152
        %10128 = vmatpush1.bf16.msra.mxu0 %v9151
        %10129 = vmatprep.subr.bf16.mxu0 %v9160
        %10130 = vmatpush1.bf16.msra.mxu0 %v9159
        %10131 = vmatprep.subr.bf16.mxu0 %v9168
        %10132 = vmatpush1.bf16.msra.mxu0 %v9167
        %10133 = vmatprep.subr.bf16.mxu0 %v9176
        %10134 = vmatpush1.bf16.msra.mxu0 %v9175
        %10135 = vmatprep.subr.bf16.mxu0 %v9184
        %10136 = vmatpush1.bf16.msra.mxu0 %v9183
        %10137 = vmatprep.subr.bf16.mxu0 %v9192
        %10138 = vmatpush1.bf16.msra.mxu0 %v9191
        %10139 = vmatprep.subr.bf16.mxu0 %v9200
        %10140 = vmatpush1.bf16.msra.mxu0 %v9199
        %10141 = vmatprep.subr.bf16.mxu0 %v9208
        %10142 = vmatpush1.bf16.msra.mxu0 %v9207
        %10143 = vmatprep.subr.bf16.mxu0 %v9216
        %10144 = vmatpush1.bf16.msra.mxu0 %v9215
        %10145 = vmatprep.subr.bf16.mxu0 %v9224
        %10146 = vmatpush1.bf16.msra.mxu0 %v9223
        %10147 = vmatprep.mubr.bf16.mxu0 %v6752
        %10148 = vmatmul.mubr.bf16.gmra.mrb[0].mxu0 %v6751
        %v10149 = vpop.f32.mrb[0].mxu0
        %v10150 = vadd.f32 %v10109, %v10149
        %v10151 = vpop.f32.mrb[0].mxu0
        %v10152 = vadd.f32 %v10111, %v10151
        %v10153 = vpop.f32.mrb[0].mxu0
        %v10154 = vpop.f32.mrb[0].mxu0
        %10155 = vdwg.mxu0
        %10156 = vmatprep.subr.bf16.mxu0 %v9232
        %10157 = vmatpush1.bf16.msra.mxu0 %v9231
        %10158 = vmatprep.subr.bf16.mxu0 %v9240
        %10159 = vmatpush1.bf16.msra.mxu0 %v9239
        %10160 = vmatprep.subr.bf16.mxu0 %v9248
        %10161 = vmatpush1.bf16.msra.mxu0 %v9247
        %10162 = vmatprep.subr.bf16.mxu0 %v9256
        %10163 = vmatpush1.bf16.msra.mxu0 %v9255
        %10164 = vmatprep.subr.bf16.mxu0 %v9264
        %10165 = vmatpush1.bf16.msra.mxu0 %v9263
        %10166 = vmatprep.subr.bf16.mxu0 %v9272
        %10167 = vmatpush1.bf16.msra.mxu0 %v9271
        %10168 = vmatprep.subr.bf16.mxu0 %v9280
        %10169 = vmatpush1.bf16.msra.mxu0 %v9279
        %10170 = vmatprep.subr.bf16.mxu0 %v9288
        %10171 = vmatpush1.bf16.msra.mxu0 %v9287
        %10172 = vmatprep.subr.bf16.mxu0 %v9296
        %10173 = vmatpush1.bf16.msra.mxu0 %v9295
        %10174 = vmatprep.subr.bf16.mxu0 %v9304
        %10175 = vmatpush1.bf16.msra.mxu0 %v9303
        %10176 = vmatprep.subr.bf16.mxu0 %v9312
        %10177 = vmatpush1.bf16.msra.mxu0 %v9311
        %10178 = vmatprep.subr.bf16.mxu0 %v9320
        %10179 = vmatpush1.bf16.msra.mxu0 %v9319
        %10180 = vmatprep.subr.bf16.mxu0 %v9328
        %10181 = vmatpush1.bf16.msra.mxu0 %v9327
        %10182 = vmatprep.subr.bf16.mxu0 %v9336
        %10183 = vmatpush1.bf16.msra.mxu0 %v9335
        %10184 = vmatprep.subr.bf16.mxu0 %v9344
        %10185 = vmatpush1.bf16.msra.mxu0 %v9343
        %10186 = vmatprep.subr.bf16.mxu0 %v9352
        %10187 = vmatpush1.bf16.msra.mxu0 %v9351
        %10188 = vmatprep.mubr.bf16.mxu0 %v6754
        %10189 = vmatmul.mubr.bf16.gmra.mrb[0].mxu0 %v6753
        %v10190 = vpop.f32.mrb[0].mxu0
        %v10191 = vadd.f32 %v10150, %v10190
        %v10192 = vpop.f32.mrb[0].mxu0
        %v10193 = vadd.f32 %v10152, %v10192
        %v10194 = vpop.f32.mrb[0].mxu0
        %v10195 = vpop.f32.mrb[0].mxu0
        %10196 = vdwg.mxu0
        %10197 = vmatprep.subr.bf16.mxu0 %v8850
        %10198 = vmatpush1.bf16.msra.mxu0 %v8849
        %10199 = vmatprep.subr.bf16.mxu0 %v8858
        %10200 = vmatpush1.bf16.msra.mxu0 %v8857
        %10201 = vmatprep.subr.bf16.mxu0 %v8866
        %10202 = vmatpush1.bf16.msra.mxu0 %v8865
        %10203 = vmatprep.subr.bf16.mxu0 %v8874
        %10204 = vmatpush1.bf16.msra.mxu0 %v8873
        %10205 = vmatprep.subr.bf16.mxu0 %v8882
        %10206 = vmatpush1.bf16.msra.mxu0 %v8881
        %10207 = vmatprep.subr.bf16.mxu0 %v8890
        %10208 = vmatpush1.bf16.msra.mxu0 %v8889
        %10209 = vmatprep.subr.bf16.mxu0 %v8898
        %10210 = vmatpush1.bf16.msra.mxu0 %v8897
        %10211 = vmatprep.subr.bf16.mxu0 %v8906
        %10212 = vmatpush1.bf16.msra.mxu0 %v8905
        %10213 = vmatprep.subr.bf16.mxu0 %v8914
        %10214 = vmatpush1.bf16.msra.mxu0 %v8913
        %10215 = vmatprep.subr.bf16.mxu0 %v8922
        %10216 = vmatpush1.bf16.msra.mxu0 %v8921
        %10217 = vmatprep.subr.bf16.mxu0 %v8930
        %10218 = vmatpush1.bf16.msra.mxu0 %v8929
        %10219 = vmatprep.subr.bf16.mxu0 %v8938
        %10220 = vmatpush1.bf16.msra.mxu0 %v8937
        %10221 = vmatprep.subr.bf16.mxu0 %v8946
        %10222 = vmatpush1.bf16.msra.mxu0 %v8945
        %10223 = vmatprep.subr.bf16.mxu0 %v8954
        %10224 = vmatpush1.bf16.msra.mxu0 %v8953
        %10225 = vmatprep.subr.bf16.mxu0 %v8962
        %10226 = vmatpush1.bf16.msra.mxu0 %v8961
        %10227 = vmatprep.subr.bf16.mxu0 %v8970
        %10228 = vmatpush1.bf16.msra.mxu0 %v8969
        %10229 = vmatprep.mubr.bf16.mxu0 %v6748
        %10230 = vmatmul.mubr.bf16.gmra.mrb[0].mxu0 %v6747
        %v10231 = vpop.f32.mrb[0].mxu0
        %v10232 = vadd.f32 %v7288, %v10231
        %v10233 = vpop.f32.mrb[0].mxu0
        %v10234 = vadd.f32 %v7292, %v10233
        %v10235 = vpop.f32.mrb[0].mxu0
        %v10236 = vpop.f32.mrb[0].mxu0
        %10237 = vdwg.mxu0
        %10238 = vmatprep.subr.bf16.mxu0 %v8978
        %10239 = vmatpush1.bf16.msra.mxu0 %v8977
        %10240 = vmatprep.subr.bf16.mxu0 %v8986
        %10241 = vmatpush1.bf16.msra.mxu0 %v8985
        %10242 = vmatprep.subr.bf16.mxu0 %v8994
        %10243 = vmatpush1.bf16.msra.mxu0 %v8993
        %10244 = vmatprep.subr.bf16.mxu0 %v9002
        %10245 = vmatpush1.bf16.msra.mxu0 %v9001
        %10246 = vmatprep.subr.bf16.mxu0 %v9010
        %10247 = vmatpush1.bf16.msra.mxu0 %v9009
        %10248 = vmatprep.subr.bf16.mxu0 %v9018
        %10249 = vmatpush1.bf16.msra.mxu0 %v9017
        %10250 = vmatprep.subr.bf16.mxu0 %v9026
        %10251 = vmatpush1.bf16.msra.mxu0 %v9025
        %10252 = vmatprep.subr.bf16.mxu0 %v9034
        %10253 = vmatpush1.bf16.msra.mxu0 %v9033
        %10254 = vmatprep.subr.bf16.mxu0 %v9042
        %10255 = vmatpush1.bf16.msra.mxu0 %v9041
        %10256 = vmatprep.subr.bf16.mxu0 %v9050
        %10257 = vmatpush1.bf16.msra.mxu0 %v9049
        %10258 = vmatprep.subr.bf16.mxu0 %v9058
        %10259 = vmatpush1.bf16.msra.mxu0 %v9057
        %10260 = vmatprep.subr.bf16.mxu0 %v9066
        %10261 = vmatpush1.bf16.msra.mxu0 %v9065
        %10262 = vmatprep.subr.bf16.mxu0 %v9074
        %10263 = vmatpush1.bf16.msra.mxu0 %v9073
        %10264 = vmatprep.subr.bf16.mxu0 %v9082
        %10265 = vmatpush1.bf16.msra.mxu0 %v9081
        %10266 = vmatprep.subr.bf16.mxu0 %v9090
        %10267 = vmatpush1.bf16.msra.mxu0 %v9089
        %10268 = vmatprep.subr.bf16.mxu0 %v9098
        %10269 = vmatpush1.bf16.msra.mxu0 %v9097
        %10270 = vmatprep.mubr.bf16.mxu0 %v6750
        %10271 = vmatmul.mubr.bf16.gmra.mrb[0].mxu0 %v6749
        %v10272 = vpop.f32.mrb[0].mxu0
        %v10273 = vadd.f32 %v10232, %v10272
        %v10274 = vpop.f32.mrb[0].mxu0
        %v10275 = vadd.f32 %v10234, %v10274
        %v10276 = vpop.f32.mrb[0].mxu0
        %v10277 = vpop.f32.mrb[0].mxu0
        %10278 = vdwg.mxu0
        %10279 = vmatprep.subr.bf16.mxu0 %v9106
        %10280 = vmatpush1.bf16.msra.mxu0 %v9105
        %10281 = vmatprep.subr.bf16.mxu0 %v9114
        %10282 = vmatpush1.bf16.msra.mxu0 %v9113
        %10283 = vmatprep.subr.bf16.mxu0 %v9122
        %10284 = vmatpush1.bf16.msra.mxu0 %v9121
        %10285 = vmatprep.subr.bf16.mxu0 %v9130
        %10286 = vmatpush1.bf16.msra.mxu0 %v9129
        %10287 = vmatprep.subr.bf16.mxu0 %v9138
        %10288 = vmatpush1.bf16.msra.mxu0 %v9137
        %10289 = vmatprep.subr.bf16.mxu0 %v9146
        %10290 = vmatpush1.bf16.msra.mxu0 %v9145
        %10291 = vmatprep.subr.bf16.mxu0 %v9154
        %10292 = vmatpush1.bf16.msra.mxu0 %v9153
        %10293 = vmatprep.subr.bf16.mxu0 %v9162
        %10294 = vmatpush1.bf16.msra.mxu0 %v9161
        %10295 = vmatprep.subr.bf16.mxu0 %v9170
        %10296 = vmatpush1.bf16.msra.mxu0 %v9169
        %10297 = vmatprep.subr.bf16.mxu0 %v9178
        %10298 = vmatpush1.bf16.msra.mxu0 %v9177
        %10299 = vmatprep.subr.bf16.mxu0 %v9186
        %10300 = vmatpush1.bf16.msra.mxu0 %v9185
        %10301 = vmatprep.subr.bf16.mxu0 %v9194
        %10302 = vmatpush1.bf16.msra.mxu0 %v9193
        %10303 = vmatprep.subr.bf16.mxu0 %v9202
        %10304 = vmatpush1.bf16.msra.mxu0 %v9201
        %10305 = vmatprep.subr.bf16.mxu0 %v9210
        %10306 = vmatpush1.bf16.msra.mxu0 %v9209
        %10307 = vmatprep.subr.bf16.mxu0 %v9218
        %10308 = vmatpush1.bf16.msra.mxu0 %v9217
        %10309 = vmatprep.subr.bf16.mxu0 %v9226
        %10310 = vmatpush1.bf16.msra.mxu0 %v9225
        %10311 = vmatprep.mubr.bf16.mxu0 %v6752
        %10312 = vmatmul.mubr.bf16.gmra.mrb[0].mxu0 %v6751
        %v10313 = vpop.f32.mrb[0].mxu0
        %v10314 = vadd.f32 %v10273, %v10313
        %v10315 = vpop.f32.mrb[0].mxu0
        %v10316 = vadd.f32 %v10275, %v10315
        %v10317 = vpop.f32.mrb[0].mxu0
        %v10318 = vpop.f32.mrb[0].mxu0
        %10319 = vdwg.mxu0
        %10320 = vmatprep.subr.bf16.mxu0 %v9234
        %10321 = vmatpush1.bf16.msra.mxu0 %v9233
        %10322 = vmatprep.subr.bf16.mxu0 %v9242
        %10323 = vmatpush1.bf16.msra.mxu0 %v9241
        %10324 = vmatprep.subr.bf16.mxu0 %v9250
        %10325 = vmatpush1.bf16.msra.mxu0 %v9249
        %10326 = vmatprep.subr.bf16.mxu0 %v9258
        %10327 = vmatpush1.bf16.msra.mxu0 %v9257
        %10328 = vmatprep.subr.bf16.mxu0 %v9266
        %10329 = vmatpush1.bf16.msra.mxu0 %v9265
        %10330 = vmatprep.subr.bf16.mxu0 %v9274
        %10331 = vmatpush1.bf16.msra.mxu0 %v9273
        %10332 = vmatprep.subr.bf16.mxu0 %v9282
        %10333 = vmatpush1.bf16.msra.mxu0 %v9281
        %10334 = vmatprep.subr.bf16.mxu0 %v9290
        %10335 = vmatpush1.bf16.msra.mxu0 %v9289
        %10336 = vmatprep.subr.bf16.mxu0 %v9298
        %10337 = vmatpush1.bf16.msra.mxu0 %v9297
        %10338 = vmatprep.subr.bf16.mxu0 %v9306
        %10339 = vmatpush1.bf16.msra.mxu0 %v9305
        %10340 = vmatprep.subr.bf16.mxu0 %v9314
        %10341 = vmatpush1.bf16.msra.mxu0 %v9313
        %10342 = vmatprep.subr.bf16.mxu0 %v9322
        %10343 = vmatpush1.bf16.msra.mxu0 %v9321
        %10344 = vmatprep.subr.bf16.mxu0 %v9330
        %10345 = vmatpush1.bf16.msra.mxu0 %v9329
        %10346 = vmatprep.subr.bf16.mxu0 %v9338
        %10347 = vmatpush1.bf16.msra.mxu0 %v9337
        %10348 = vmatprep.subr.bf16.mxu0 %v9346
        %10349 = vmatpush1.bf16.msra.mxu0 %v9345
        %10350 = vmatprep.subr.bf16.mxu0 %v9354
        %10351 = vmatpush1.bf16.msra.mxu0 %v9353
        %10352 = vmatprep.mubr.bf16.mxu0 %v6754
        %10353 = vmatmul.mubr.bf16.gmra.mrb[0].mxu0 %v6753
        %v10354 = vpop.f32.mrb[0].mxu0
        %v10355 = vadd.f32 %v10314, %v10354
        %v10356 = vpop.f32.mrb[0].mxu0
        %v10357 = vadd.f32 %v10316, %v10356
        %v10358 = vpop.f32.mrb[0].mxu0
        %v10359 = vpop.f32.mrb[0].mxu0
        %10360 = vdwg.mxu0
        %10361 = vmatprep.subr.bf16.mxu0 %v8852
        %10362 = vmatpush1.bf16.msra.mxu0 %v8851
        %10363 = vmatprep.subr.bf16.mxu0 %v8860
        %10364 = vmatpush1.bf16.msra.mxu0 %v8859
        %10365 = vmatprep.subr.bf16.mxu0 %v8868
        %10366 = vmatpush1.bf16.msra.mxu0 %v8867
        %10367 = vmatprep.subr.bf16.mxu0 %v8876
        %10368 = vmatpush1.bf16.msra.mxu0 %v8875
        %10369 = vmatprep.subr.bf16.mxu0 %v8884
        %10370 = vmatpush1.bf16.msra.mxu0 %v8883
        %10371 = vmatprep.subr.bf16.mxu0 %v8892
        %10372 = vmatpush1.bf16.msra.mxu0 %v8891
        %10373 = vmatprep.subr.bf16.mxu0 %v8900
        %10374 = vmatpush1.bf16.msra.mxu0 %v8899
        %10375 = vmatprep.subr.bf16.mxu0 %v8908
        %10376 = vmatpush1.bf16.msra.mxu0 %v8907
        %10377 = vmatprep.subr.bf16.mxu0 %v8916
        %10378 = vmatpush1.bf16.msra.mxu0 %v8915
        %10379 = vmatprep.subr.bf16.mxu0 %v8924
        %10380 = vmatpush1.bf16.msra.mxu0 %v8923
        %10381 = vmatprep.subr.bf16.mxu0 %v8932
        %10382 = vmatpush1.bf16.msra.mxu0 %v8931
        %10383 = vmatprep.subr.bf16.mxu0 %v8940
        %10384 = vmatpush1.bf16.msra.mxu0 %v8939
        %10385 = vmatprep.subr.bf16.mxu0 %v8948
        %10386 = vmatpush1.bf16.msra.mxu0 %v8947
        %10387 = vmatprep.subr.bf16.mxu0 %v8956
        %10388 = vmatpush1.bf16.msra.mxu0 %v8955
        %10389 = vmatprep.subr.bf16.mxu0 %v8964
        %10390 = vmatpush1.bf16.msra.mxu0 %v8963
        %10391 = vmatprep.subr.bf16.mxu0 %v8972
        %10392 = vmatpush1.bf16.msra.mxu0 %v8971
        %10393 = vmatprep.mubr.bf16.mxu0 %v6748
        %10394 = vmatmul.mubr.bf16.gmra.mrb[0].mxu0 %v6747
        %v10395 = vpop.f32.mrb[0].mxu0
        %v10396 = vadd.f32 %v7296, %v10395
        %v10397 = vpop.f32.mrb[0].mxu0
        %v10398 = vadd.f32 %v7300, %v10397
        %v10399 = vpop.f32.mrb[0].mxu0
        %v10400 = vpop.f32.mrb[0].mxu0
        %10401 = vdwg.mxu0
        %10402 = vmatprep.subr.bf16.mxu0 %v8980
        %10403 = vmatpush1.bf16.msra.mxu0 %v8979
        %10404 = vmatprep.subr.bf16.mxu0 %v8988
        %10405 = vmatpush1.bf16.msra.mxu0 %v8987
        %10406 = vmatprep.subr.bf16.mxu0 %v8996
        %10407 = vmatpush1.bf16.msra.mxu0 %v8995
        %10408 = vmatprep.subr.bf16.mxu0 %v9004
        %10409 = vmatpush1.bf16.msra.mxu0 %v9003
        %10410 = vmatprep.subr.bf16.mxu0 %v9012
        %10411 = vmatpush1.bf16.msra.mxu0 %v9011
        %10412 = vmatprep.subr.bf16.mxu0 %v9020
        %10413 = vmatpush1.bf16.msra.mxu0 %v9019
        %10414 = vmatprep.subr.bf16.mxu0 %v9028
        %10415 = vmatpush1.bf16.msra.mxu0 %v9027
        %10416 = vmatprep.subr.bf16.mxu0 %v9036
        %10417 = vmatpush1.bf16.msra.mxu0 %v9035
        %10418 = vmatprep.subr.bf16.mxu0 %v9044
        %10419 = vmatpush1.bf16.msra.mxu0 %v9043
        %10420 = vmatprep.subr.bf16.mxu0 %v9052
        %10421 = vmatpush1.bf16.msra.mxu0 %v9051
        %10422 = vmatprep.subr.bf16.mxu0 %v9060
        %10423 = vmatpush1.bf16.msra.mxu0 %v9059
        %10424 = vmatprep.subr.bf16.mxu0 %v9068
        %10425 = vmatpush1.bf16.msra.mxu0 %v9067
        %10426 = vmatprep.subr.bf16.mxu0 %v9076
        %10427 = vmatpush1.bf16.msra.mxu0 %v9075
        %10428 = vmatprep.subr.bf16.mxu0 %v9084
        %10429 = vmatpush1.bf16.msra.mxu0 %v9083
        %10430 = vmatprep.subr.bf16.mxu0 %v9092
        %10431 = vmatpush1.bf16.msra.mxu0 %v9091
        %10432 = vmatprep.subr.bf16.mxu0 %v9100
        %10433 = vmatpush1.bf16.msra.mxu0 %v9099
        %10434 = vmatprep.mubr.bf16.mxu0 %v6750
        %10435 = vmatmul.mubr.bf16.gmra.mrb[0].mxu0 %v6749
        %v10436 = vpop.f32.mrb[0].mxu0
        %v10437 = vadd.f32 %v10396, %v10436
        %v10438 = vpop.f32.mrb[0].mxu0
        %v10439 = vadd.f32 %v10398, %v10438
        %v10440 = vpop.f32.mrb[0].mxu0
        %v10441 = vpop.f32.mrb[0].mxu0
        %10442 = vdwg.mxu0
        %10443 = vmatprep.subr.bf16.mxu0 %v9108
        %10444 = vmatpush1.bf16.msra.mxu0 %v9107
        %10445 = vmatprep.subr.bf16.mxu0 %v9116
        %10446 = vmatpush1.bf16.msra.mxu0 %v9115
        %10447 = vmatprep.subr.bf16.mxu0 %v9124
        %10448 = vmatpush1.bf16.msra.mxu0 %v9123
        %10449 = vmatprep.subr.bf16.mxu0 %v9132
        %10450 = vmatpush1.bf16.msra.mxu0 %v9131
        %10451 = vmatprep.subr.bf16.mxu0 %v9140
        %10452 = vmatpush1.bf16.msra.mxu0 %v9139
        %10453 = vmatprep.subr.bf16.mxu0 %v9148
        %10454 = vmatpush1.bf16.msra.mxu0 %v9147
        %10455 = vmatprep.subr.bf16.mxu0 %v9156
        %10456 = vmatpush1.bf16.msra.mxu0 %v9155
        %10457 = vmatprep.subr.bf16.mxu0 %v9164
        %10458 = vmatpush1.bf16.msra.mxu0 %v9163
        %10459 = vmatprep.subr.bf16.mxu0 %v9172
        %10460 = vmatpush1.bf16.msra.mxu0 %v9171
        %10461 = vmatprep.subr.bf16.mxu0 %v9180
        %10462 = vmatpush1.bf16.msra.mxu0 %v9179
        %10463 = vmatprep.subr.bf16.mxu0 %v9188
        %10464 = vmatpush1.bf16.msra.mxu0 %v9187
        %10465 = vmatprep.subr.bf16.mxu0 %v9196
        %10466 = vmatpush1.bf16.msra.mxu0 %v9195
        %10467 = vmatprep.subr.bf16.mxu0 %v9204
        %10468 = vmatpush1.bf16.msra.mxu0 %v9203
        %10469 = vmatprep.subr.bf16.mxu0 %v9212
        %10470 = vmatpush1.bf16.msra.mxu0 %v9211
        %10471 = vmatprep.subr.bf16.mxu0 %v9220
        %10472 = vmatpush1.bf16.msra.mxu0 %v9219
        %10473 = vmatprep.subr.bf16.mxu0 %v9228
        %10474 = vmatpush1.bf16.msra.mxu0 %v9227
        %10475 = vmatprep.mubr.bf16.mxu0 %v6752
        %10476 = vmatmul.mubr.bf16.gmra.mrb[0].mxu0 %v6751
        %v10477 = vpop.f32.mrb[0].mxu0
        %v10478 = vadd.f32 %v10437, %v10477
        %v10479 = vpop.f32.mrb[0].mxu0
        %v10480 = vadd.f32 %v10439, %v10479
        %v10481 = vpop.f32.mrb[0].mxu0
        %v10482 = vpop.f32.mrb[0].mxu0
        %10483 = vdwg.mxu0
        %10484 = vmatprep.subr.bf16.mxu0 %v9236
        %10485 = vmatpush1.bf16.msra.mxu0 %v9235
        %10486 = vmatprep.subr.bf16.mxu0 %v9244
        %10487 = vmatpush1.bf16.msra.mxu0 %v9243
        %10488 = vmatprep.subr.bf16.mxu0 %v9252
        %10489 = vmatpush1.bf16.msra.mxu0 %v9251
        %10490 = vmatprep.subr.bf16.mxu0 %v9260
        %10491 = vmatpush1.bf16.msra.mxu0 %v9259
        %10492 = vmatprep.subr.bf16.mxu0 %v9268
        %10493 = vmatpush1.bf16.msra.mxu0 %v9267
        %10494 = vmatprep.subr.bf16.mxu0 %v9276
        %10495 = vmatpush1.bf16.msra.mxu0 %v9275
        %10496 = vmatprep.subr.bf16.mxu0 %v9284
        %10497 = vmatpush1.bf16.msra.mxu0 %v9283
        %10498 = vmatprep.subr.bf16.mxu0 %v9292
        %10499 = vmatpush1.bf16.msra.mxu0 %v9291
        %10500 = vmatprep.subr.bf16.mxu0 %v9300
        %10501 = vmatpush1.bf16.msra.mxu0 %v9299
        %10502 = vmatprep.subr.bf16.mxu0 %v9308
        %10503 = vmatpush1.bf16.msra.mxu0 %v9307
        %10504 = vmatprep.subr.bf16.mxu0 %v9316
        %10505 = vmatpush1.bf16.msra.mxu0 %v9315
        %10506 = vmatprep.subr.bf16.mxu0 %v9324
        %10507 = vmatpush1.bf16.msra.mxu0 %v9323
        %10508 = vmatprep.subr.bf16.mxu0 %v9332
        %10509 = vmatpush1.bf16.msra.mxu0 %v9331
        %10510 = vmatprep.subr.bf16.mxu0 %v9340
        %10511 = vmatpush1.bf16.msra.mxu0 %v9339
        %10512 = vmatprep.subr.bf16.mxu0 %v9348
        %10513 = vmatpush1.bf16.msra.mxu0 %v9347
        %10514 = vmatprep.subr.bf16.mxu0 %v9356
        %10515 = vmatpush1.bf16.msra.mxu0 %v9355
        %10516 = vmatprep.mubr.bf16.mxu0 %v6754
        %10517 = vmatmul.mubr.bf16.gmra.mrb[0].mxu0 %v6753
        %v10518 = vpop.f32.mrb[0].mxu0
        %v10519 = vadd.f32 %v10478, %v10518
        %v10520 = vpop.f32.mrb[0].mxu0
        %v10521 = vadd.f32 %v10480, %v10520
        %v10522 = vpop.f32.mrb[0].mxu0
        %v10523 = vpop.f32.mrb[0].mxu0
        %10524 = vdwg.mxu0
        %v10525 = vmax.f32 %v10027, 0.0
        %v10526 = vmax.f32 %v10029, 0.0
        %v10527 = vmax.f32 %v10191, 0.0
        %v10528 = vmax.f32 %v10193, 0.0
        %v10529 = vmax.f32 %v10355, 0.0
        %v10530 = vmax.f32 %v10357, 0.0
        %v10531 = vmax.f32 %v10519, 0.0
        %v10532 = vmax.f32 %v10521, 0.0
        %v10533 = vpack.c.bf16 %v10525, %v10525
        %v10534 = vpack.c.bf16 %v10526, %v10526
        %v10535 = vpack.c.bf16 %v10527, %v10527
        %v10536 = vpack.c.bf16 %v10528, %v10528
        %v10537 = vpack.c.bf16 %v10529, %v10529
        %v10538 = vpack.c.bf16 %v10530, %v10530
        %v10539 = vpack.c.bf16 %v10531, %v10531
        %v10540 = vpack.c.bf16 %v10532, %v10532
        %v10541 = vld [vmem:[%s436] sm:$0xf]
        %v10542 = vld [vmem:[%s436 + $0x4] sm:$0xf]
        %v10543 = vld [vmem:[%s436 + $0x8] sm:$0xf]
        %v10544 = vld [vmem:[%s436 + $0xc] sm:$0xf]
        %v10545 = vld [vmem:[%s436 + $0x10] sm:$0xf]
        %v10546 = vld [vmem:[%s436 + $0x14] sm:$0xf]
        %v10547 = vld [vmem:[%s436 + $0x18] sm:$0xf]
        %v10548 = vld [vmem:[%s436 + $0x1c] sm:$0xf]
        %v10549 = vld [vmem:[%s436 + $0x20] sm:$0xf]
        %v10550 = vld [vmem:[%s436 + $0x24] sm:$0xf]
        %v10551 = vld [vmem:[%s436 + $0x28] sm:$0xf]
        %v10552 = vld [vmem:[%s436 + $0x2c] sm:$0xf]
        %v10553 = vld [vmem:[%s436 + $0x30] sm:$0xf]
        %v10554 = vld [vmem:[%s436 + $0x34] sm:$0xf]
        %v10555 = vld [vmem:[%s436 + $0x38] sm:$0xf]
        %v10556 = vld [vmem:[%s436 + $0x3c] sm:$0xf]
        %v10557 = vld [vmem:[%s436 + $0x40] sm:$0xf]
        %v10558 = vld [vmem:[%s436 + $0x44] sm:$0xf]
        %v10559 = vld [vmem:[%s436 + $0x48] sm:$0xf]
        %v10560 = vld [vmem:[%s436 + $0x4c] sm:$0xf]
        %v10561 = vld [vmem:[%s436 + $0x50] sm:$0xf]
        %v10562 = vld [vmem:[%s436 + $0x54] sm:$0xf]
        %v10563 = vld [vmem:[%s436 + $0x58] sm:$0xf]
        %v10564 = vld [vmem:[%s436 + $0x5c] sm:$0xf]
        %v10565 = vld [vmem:[%s436 + $0x60] sm:$0xf]
        %v10566 = vld [vmem:[%s436 + $0x64] sm:$0xf]
        %v10567 = vld [vmem:[%s436 + $0x68] sm:$0xf]
        %v10568 = vld [vmem:[%s436 + $0x6c] sm:$0xf]
        %v10569 = vld [vmem:[%s436 + $0x70] sm:$0xf]
        %v10570 = vld [vmem:[%s436 + $0x74] sm:$0xf]
        %v10571 = vld [vmem:[%s436 + $0x78] sm:$0xf]
        %v10572 = vld [vmem:[%s436 + $0x7c] sm:$0xf]
        %v10573 = vld [vmem:[%s436 + $0x80] sm:$0xf]
        %v10574 = vld [vmem:[%s436 + $0x84] sm:$0xf]
        %v10575 = vld [vmem:[%s436 + $0x88] sm:$0xf]
        %v10576 = vld [vmem:[%s436 + $0x8c] sm:$0xf]
        %v10577 = vld [vmem:[%s436 + $0x90] sm:$0xf]
        %v10578 = vld [vmem:[%s436 + $0x94] sm:$0xf]
        %v10579 = vld [vmem:[%s436 + $0x98] sm:$0xf]
        %v10580 = vld [vmem:[%s436 + $0x9c] sm:$0xf]
        %v10581 = vld [vmem:[%s436 + $0xa0] sm:$0xf]
        %v10582 = vld [vmem:[%s436 + $0xa4] sm:$0xf]
        %v10583 = vld [vmem:[%s436 + $0xa8] sm:$0xf]
        %v10584 = vld [vmem:[%s436 + $0xac] sm:$0xf]
        %v10585 = vld [vmem:[%s436 + $0xb0] sm:$0xf]
        %v10586 = vld [vmem:[%s436 + $0xb4] sm:$0xf]
        %v10587 = vld [vmem:[%s436 + $0xb8] sm:$0xf]
        %v10588 = vld [vmem:[%s436 + $0xbc] sm:$0xf]
        %v10589 = vld [vmem:[%s436 + $0xc0] sm:$0xf]
        %v10590 = vld [vmem:[%s436 + $0xc4] sm:$0xf]
        %v10591 = vld [vmem:[%s436 + $0xc8] sm:$0xf]
        %v10592 = vld [vmem:[%s436 + $0xcc] sm:$0xf]
        %v10593 = vld [vmem:[%s436 + $0xd0] sm:$0xf]
        %v10594 = vld [vmem:[%s436 + $0xd4] sm:$0xf]
        %v10595 = vld [vmem:[%s436 + $0xd8] sm:$0xf]
        %v10596 = vld [vmem:[%s436 + $0xdc] sm:$0xf]
        %v10597 = vld [vmem:[%s436 + $0xe0] sm:$0xf]
        %v10598 = vld [vmem:[%s436 + $0xe4] sm:$0xf]
        %v10599 = vld [vmem:[%s436 + $0xe8] sm:$0xf]
        %v10600 = vld [vmem:[%s436 + $0xec] sm:$0xf]
        %v10601 = vld [vmem:[%s436 + $0xf0] sm:$0xf]
        %v10602 = vld [vmem:[%s436 + $0xf4] sm:$0xf]
        %v10603 = vld [vmem:[%s436 + $0xf8] sm:$0xf]
        %v10604 = vld [vmem:[%s436 + $0xfc] sm:$0xf]
        %v10605 = vld [vmem:[%s436 + $0x100] sm:$0xf]
        %v10606 = vld [vmem:[%s436 + $0x104] sm:$0xf]
        %v10607 = vld [vmem:[%s436 + $0x108] sm:$0xf]
        %v10608 = vld [vmem:[%s436 + $0x10c] sm:$0xf]
        %v10609 = vld [vmem:[%s436 + $0x110] sm:$0xf]
        %v10610 = vld [vmem:[%s436 + $0x114] sm:$0xf]
        %v10611 = vld [vmem:[%s436 + $0x118] sm:$0xf]
        %v10612 = vld [vmem:[%s436 + $0x11c] sm:$0xf]
        %v10613 = vld [vmem:[%s436 + $0x120] sm:$0xf]
        %v10614 = vld [vmem:[%s436 + $0x124] sm:$0xf]
        %v10615 = vld [vmem:[%s436 + $0x128] sm:$0xf]
        %v10616 = vld [vmem:[%s436 + $0x12c] sm:$0xf]
        %v10617 = vld [vmem:[%s436 + $0x130] sm:$0xf]
        %v10618 = vld [vmem:[%s436 + $0x134] sm:$0xf]
        %v10619 = vld [vmem:[%s436 + $0x138] sm:$0xf]
        %v10620 = vld [vmem:[%s436 + $0x13c] sm:$0xf]
        %v10621 = vld [vmem:[%s436 + $0x140] sm:$0xf]
        %v10622 = vld [vmem:[%s436 + $0x144] sm:$0xf]
        %v10623 = vld [vmem:[%s436 + $0x148] sm:$0xf]
        %v10624 = vld [vmem:[%s436 + $0x14c] sm:$0xf]
        %v10625 = vld [vmem:[%s436 + $0x150] sm:$0xf]
        %v10626 = vld [vmem:[%s436 + $0x154] sm:$0xf]
        %v10627 = vld [vmem:[%s436 + $0x158] sm:$0xf]
        %v10628 = vld [vmem:[%s436 + $0x15c] sm:$0xf]
        %v10629 = vld [vmem:[%s436 + $0x160] sm:$0xf]
        %v10630 = vld [vmem:[%s436 + $0x164] sm:$0xf]
        %v10631 = vld [vmem:[%s436 + $0x168] sm:$0xf]
        %v10632 = vld [vmem:[%s436 + $0x16c] sm:$0xf]
        %v10633 = vld [vmem:[%s436 + $0x170] sm:$0xf]
        %v10634 = vld [vmem:[%s436 + $0x174] sm:$0xf]
        %v10635 = vld [vmem:[%s436 + $0x178] sm:$0xf]
        %v10636 = vld [vmem:[%s436 + $0x17c] sm:$0xf]
        %v10637 = vld [vmem:[%s436 + $0x180] sm:$0xf]
        %v10638 = vld [vmem:[%s436 + $0x184] sm:$0xf]
        %v10639 = vld [vmem:[%s436 + $0x188] sm:$0xf]
        %v10640 = vld [vmem:[%s436 + $0x18c] sm:$0xf]
        %v10641 = vld [vmem:[%s436 + $0x190] sm:$0xf]
        %v10642 = vld [vmem:[%s436 + $0x194] sm:$0xf]
        %v10643 = vld [vmem:[%s436 + $0x198] sm:$0xf]
        %v10644 = vld [vmem:[%s436 + $0x19c] sm:$0xf]
        %v10645 = vld [vmem:[%s436 + $0x1a0] sm:$0xf]
        %v10646 = vld [vmem:[%s436 + $0x1a4] sm:$0xf]
        %v10647 = vld [vmem:[%s436 + $0x1a8] sm:$0xf]
        %v10648 = vld [vmem:[%s436 + $0x1ac] sm:$0xf]
        %v10649 = vld [vmem:[%s436 + $0x1b0] sm:$0xf]
        %v10650 = vld [vmem:[%s436 + $0x1b4] sm:$0xf]
        %v10651 = vld [vmem:[%s436 + $0x1b8] sm:$0xf]
        %v10652 = vld [vmem:[%s436 + $0x1bc] sm:$0xf]
        %v10653 = vld [vmem:[%s436 + $0x1c0] sm:$0xf]
        %v10654 = vld [vmem:[%s436 + $0x1c4] sm:$0xf]
        %v10655 = vld [vmem:[%s436 + $0x1c8] sm:$0xf]
        %v10656 = vld [vmem:[%s436 + $0x1cc] sm:$0xf]
        %v10657 = vld [vmem:[%s436 + $0x1d0] sm:$0xf]
        %v10658 = vld [vmem:[%s436 + $0x1d4] sm:$0xf]
        %v10659 = vld [vmem:[%s436 + $0x1d8] sm:$0xf]
        %v10660 = vld [vmem:[%s436 + $0x1dc] sm:$0xf]
        %v10661 = vld [vmem:[%s436 + $0x1e0] sm:$0xf]
        %v10662 = vld [vmem:[%s436 + $0x1e4] sm:$0xf]
        %v10663 = vld [vmem:[%s436 + $0x1e8] sm:$0xf]
        %v10664 = vld [vmem:[%s436 + $0x1ec] sm:$0xf]
        %v10665 = vld [vmem:[%s436 + $0x1f0] sm:$0xf]
        %v10666 = vld [vmem:[%s436 + $0x1f4] sm:$0xf]
        %v10667 = vld [vmem:[%s436 + $0x1f8] sm:$0xf]
        %v10668 = vld [vmem:[%s436 + $0x1fc] sm:$0xf]
        %v10669 = vld [vmem:[%s439] sm:$0x1]
        %v10671 = vlaneseq
        %v10672 = vshrl.u32 %v10671, 7
        %v10673 = vsub.s32 0, %v10672
        %v10674 = vrot.slane %v10669, %v10673
        %v10804 = vunpack.c.l.b16 %v10541
        %v10805 = vunpack.c.l.b16 %v10542
        %v10806 = vunpack.c.l.b16 %v10543
        %v10807 = vunpack.c.l.b16 %v10544
        %v10808 = vunpack.c.l.b16 %v10545
        %v10809 = vunpack.c.l.b16 %v10546
        %v10810 = vunpack.c.l.b16 %v10547
        %v10811 = vunpack.c.l.b16 %v10548
        %v10812 = vunpack.c.l.b16 %v10549
        %v10813 = vunpack.c.l.b16 %v10550
        %v10814 = vunpack.c.l.b16 %v10551
        %v10815 = vunpack.c.l.b16 %v10552
        %v10816 = vunpack.c.l.b16 %v10553
        %v10817 = vunpack.c.l.b16 %v10554
        %v10818 = vunpack.c.l.b16 %v10555
        %v10819 = vunpack.c.l.b16 %v10556
        %v10820 = vunpack.c.l.b16 %v10557
        %v10821 = vunpack.c.l.b16 %v10558
        %v10822 = vunpack.c.l.b16 %v10559
        %v10823 = vunpack.c.l.b16 %v10560
        %v10824 = vunpack.c.l.b16 %v10561
        %v10825 = vunpack.c.l.b16 %v10562
        %v10826 = vunpack.c.l.b16 %v10563
        %v10827 = vunpack.c.l.b16 %v10564
        %v10828 = vunpack.c.l.b16 %v10565
        %v10829 = vunpack.c.l.b16 %v10566
        %v10830 = vunpack.c.l.b16 %v10567
        %v10831 = vunpack.c.l.b16 %v10568
        %v10832 = vunpack.c.l.b16 %v10569
        %v10833 = vunpack.c.l.b16 %v10570
        %v10834 = vunpack.c.l.b16 %v10571
        %v10835 = vunpack.c.l.b16 %v10572
        %v10836 = vunpack.c.l.b16 %v10573
        %v10837 = vunpack.c.l.b16 %v10574
        %v10838 = vunpack.c.l.b16 %v10575
        %v10839 = vunpack.c.l.b16 %v10576
        %v10840 = vunpack.c.l.b16 %v10577
        %v10841 = vunpack.c.l.b16 %v10578
        %v10842 = vunpack.c.l.b16 %v10579
        %v10843 = vunpack.c.l.b16 %v10580
        %v10844 = vunpack.c.l.b16 %v10581
        %v10845 = vunpack.c.l.b16 %v10582
        %v10846 = vunpack.c.l.b16 %v10583
        %v10847 = vunpack.c.l.b16 %v10584
        %v10848 = vunpack.c.l.b16 %v10585
        %v10849 = vunpack.c.l.b16 %v10586
        %v10850 = vunpack.c.l.b16 %v10587
        %v10851 = vunpack.c.l.b16 %v10588
        %v10852 = vunpack.c.l.b16 %v10589
        %v10853 = vunpack.c.l.b16 %v10590
        %v10854 = vunpack.c.l.b16 %v10591
        %v10855 = vunpack.c.l.b16 %v10592
        %v10856 = vunpack.c.l.b16 %v10593
        %v10857 = vunpack.c.l.b16 %v10594
        %v10858 = vunpack.c.l.b16 %v10595
        %v10859 = vunpack.c.l.b16 %v10596
        %v10860 = vunpack.c.l.b16 %v10597
        %v10861 = vunpack.c.l.b16 %v10598
        %v10862 = vunpack.c.l.b16 %v10599
        %v10863 = vunpack.c.l.b16 %v10600
        %v10864 = vunpack.c.l.b16 %v10601
        %v10865 = vunpack.c.l.b16 %v10602
        %v10866 = vunpack.c.l.b16 %v10603
        %v10867 = vunpack.c.l.b16 %v10604
        %v10868 = vunpack.c.l.b16 %v10605
        %v10869 = vunpack.c.l.b16 %v10606
        %v10870 = vunpack.c.l.b16 %v10607
        %v10871 = vunpack.c.l.b16 %v10608
        %v10872 = vunpack.c.l.b16 %v10609
        %v10873 = vunpack.c.l.b16 %v10610
        %v10874 = vunpack.c.l.b16 %v10611
        %v10875 = vunpack.c.l.b16 %v10612
        %v10876 = vunpack.c.l.b16 %v10613
        %v10877 = vunpack.c.l.b16 %v10614
        %v10878 = vunpack.c.l.b16 %v10615
        %v10879 = vunpack.c.l.b16 %v10616
        %v10880 = vunpack.c.l.b16 %v10617
        %v10881 = vunpack.c.l.b16 %v10618
        %v10882 = vunpack.c.l.b16 %v10619
        %v10883 = vunpack.c.l.b16 %v10620
        %v10884 = vunpack.c.l.b16 %v10621
        %v10885 = vunpack.c.l.b16 %v10622
        %v10886 = vunpack.c.l.b16 %v10623
        %v10887 = vunpack.c.l.b16 %v10624
        %v10888 = vunpack.c.l.b16 %v10625
        %v10889 = vunpack.c.l.b16 %v10626
        %v10890 = vunpack.c.l.b16 %v10627
        %v10891 = vunpack.c.l.b16 %v10628
        %v10892 = vunpack.c.l.b16 %v10629
        %v10893 = vunpack.c.l.b16 %v10630
        %v10894 = vunpack.c.l.b16 %v10631
        %v10895 = vunpack.c.l.b16 %v10632
        %v10896 = vunpack.c.l.b16 %v10633
        %v10897 = vunpack.c.l.b16 %v10634
        %v10898 = vunpack.c.l.b16 %v10635
        %v10899 = vunpack.c.l.b16 %v10636
        %v10900 = vunpack.c.l.b16 %v10637
        %v10901 = vunpack.c.l.b16 %v10638
        %v10902 = vunpack.c.l.b16 %v10639
        %v10903 = vunpack.c.l.b16 %v10640
        %v10904 = vunpack.c.l.b16 %v10641
        %v10905 = vunpack.c.l.b16 %v10642
        %v10906 = vunpack.c.l.b16 %v10643
        %v10907 = vunpack.c.l.b16 %v10644
        %v10908 = vunpack.c.l.b16 %v10645
        %v10909 = vunpack.c.l.b16 %v10646
        %v10910 = vunpack.c.l.b16 %v10647
        %v10911 = vunpack.c.l.b16 %v10648
        %v10912 = vunpack.c.l.b16 %v10649
        %v10913 = vunpack.c.l.b16 %v10650
        %v10914 = vunpack.c.l.b16 %v10651
        %v10915 = vunpack.c.l.b16 %v10652
        %v10916 = vunpack.c.l.b16 %v10653
        %v10917 = vunpack.c.l.b16 %v10654
        %v10918 = vunpack.c.l.b16 %v10655
        %v10919 = vunpack.c.l.b16 %v10656
        %v10920 = vunpack.c.l.b16 %v10657
        %v10921 = vunpack.c.l.b16 %v10658
        %v10922 = vunpack.c.l.b16 %v10659
        %v10923 = vunpack.c.l.b16 %v10660
        %v10924 = vunpack.c.l.b16 %v10661
        %v10925 = vunpack.c.l.b16 %v10662
        %v10926 = vunpack.c.l.b16 %v10663
        %v10927 = vunpack.c.l.b16 %v10664
        %v10928 = vunpack.c.l.b16 %v10665
        %v10929 = vunpack.c.l.b16 %v10666
        %v10930 = vunpack.c.l.b16 %v10667
        %v10931 = vunpack.c.l.b16 %v10668
        %v10932 = vpack.c.b16 %v10805, %v10804
        %v10933 = vpack.c.b16 %v10807, %v10806
        %v10934 = vpack.c.b16 %v10809, %v10808
        %v10935 = vpack.c.b16 %v10811, %v10810
        %v10936 = vpack.c.b16 %v10813, %v10812
        %v10937 = vpack.c.b16 %v10815, %v10814
        %v10938 = vpack.c.b16 %v10817, %v10816
        %v10939 = vpack.c.b16 %v10819, %v10818
        %v10940 = vpack.c.b16 %v10821, %v10820
        %v10941 = vpack.c.b16 %v10823, %v10822
        %v10942 = vpack.c.b16 %v10825, %v10824
        %v10943 = vpack.c.b16 %v10827, %v10826
        %v10944 = vpack.c.b16 %v10829, %v10828
        %v10945 = vpack.c.b16 %v10831, %v10830
        %v10946 = vpack.c.b16 %v10833, %v10832
        %v10947 = vpack.c.b16 %v10835, %v10834
        %v10948 = vpack.c.b16 %v10837, %v10836
        %v10949 = vpack.c.b16 %v10839, %v10838
        %v10950 = vpack.c.b16 %v10841, %v10840
        %v10951 = vpack.c.b16 %v10843, %v10842
        %v10952 = vpack.c.b16 %v10845, %v10844
        %v10953 = vpack.c.b16 %v10847, %v10846
        %v10954 = vpack.c.b16 %v10849, %v10848
        %v10955 = vpack.c.b16 %v10851, %v10850
        %v10956 = vpack.c.b16 %v10853, %v10852
        %v10957 = vpack.c.b16 %v10855, %v10854
        %v10958 = vpack.c.b16 %v10857, %v10856
        %v10959 = vpack.c.b16 %v10859, %v10858
        %v10960 = vpack.c.b16 %v10861, %v10860
        %v10961 = vpack.c.b16 %v10863, %v10862
        %v10962 = vpack.c.b16 %v10865, %v10864
        %v10963 = vpack.c.b16 %v10867, %v10866
        %v10964 = vpack.c.b16 %v10869, %v10868
        %v10965 = vpack.c.b16 %v10871, %v10870
        %v10966 = vpack.c.b16 %v10873, %v10872
        %v10967 = vpack.c.b16 %v10875, %v10874
        %v10968 = vpack.c.b16 %v10877, %v10876
        %v10969 = vpack.c.b16 %v10879, %v10878
        %v10970 = vpack.c.b16 %v10881, %v10880
        %v10971 = vpack.c.b16 %v10883, %v10882
        %v10972 = vpack.c.b16 %v10885, %v10884
        %v10973 = vpack.c.b16 %v10887, %v10886
        %v10974 = vpack.c.b16 %v10889, %v10888
        %v10975 = vpack.c.b16 %v10891, %v10890
        %v10976 = vpack.c.b16 %v10893, %v10892
        %v10977 = vpack.c.b16 %v10895, %v10894
        %v10978 = vpack.c.b16 %v10897, %v10896
        %v10979 = vpack.c.b16 %v10899, %v10898
        %v10980 = vpack.c.b16 %v10901, %v10900
        %v10981 = vpack.c.b16 %v10903, %v10902
        %v10982 = vpack.c.b16 %v10905, %v10904
        %v10983 = vpack.c.b16 %v10907, %v10906
        %v10984 = vpack.c.b16 %v10909, %v10908
        %v10985 = vpack.c.b16 %v10911, %v10910
        %v10986 = vpack.c.b16 %v10913, %v10912
        %v10987 = vpack.c.b16 %v10915, %v10914
        %v10988 = vpack.c.b16 %v10917, %v10916
        %v10989 = vpack.c.b16 %v10919, %v10918
        %v10990 = vpack.c.b16 %v10921, %v10920
        %v10991 = vpack.c.b16 %v10923, %v10922
        %v10992 = vpack.c.b16 %v10925, %v10924
        %v10993 = vpack.c.b16 %v10927, %v10926
        %v10994 = vpack.c.b16 %v10929, %v10928
        %v10995 = vpack.c.b16 %v10931, %v10930
        %11060 = vmatprep.subr.bf16.mxu0 0
        %11061 = vmatpush1.bf16.msra.mxu0 %v10932
        %11062 = vmatprep.subr.bf16.mxu0 0
        %11063 = vmatpush1.bf16.msra.mxu0 %v10933
        %11064 = vmatprep.subr.bf16.mxu0 0
        %11065 = vmatpush1.bf16.msra.mxu0 %v10934
        %11066 = vmatprep.subr.bf16.mxu0 0
        %11067 = vmatpush1.bf16.msra.mxu0 %v10935
        %11068 = vmatprep.subr.bf16.mxu0 0
        %11069 = vmatpush1.bf16.msra.mxu0 %v10936
        %11070 = vmatprep.subr.bf16.mxu0 0
        %11071 = vmatpush1.bf16.msra.mxu0 %v10937
        %11072 = vmatprep.subr.bf16.mxu0 0
        %11073 = vmatpush1.bf16.msra.mxu0 %v10938
        %11074 = vmatprep.subr.bf16.mxu0 0
        %11075 = vmatpush1.bf16.msra.mxu0 %v10939
        %11076 = vmatprep.subr.bf16.mxu0 0
        %11077 = vmatpush1.bf16.msra.mxu0 %v10940
        %11078 = vmatprep.subr.bf16.mxu0 0
        %11079 = vmatpush1.bf16.msra.mxu0 %v10941
        %11080 = vmatprep.subr.bf16.mxu0 0
        %11081 = vmatpush1.bf16.msra.mxu0 %v10942
        %11082 = vmatprep.subr.bf16.mxu0 0
        %11083 = vmatpush1.bf16.msra.mxu0 %v10943
        %11084 = vmatprep.subr.bf16.mxu0 0
        %11085 = vmatpush1.bf16.msra.mxu0 %v10944
        %11086 = vmatprep.subr.bf16.mxu0 0
        %11087 = vmatpush1.bf16.msra.mxu0 %v10945
        %11088 = vmatprep.subr.bf16.mxu0 0
        %11089 = vmatpush1.bf16.msra.mxu0 %v10946
        %11090 = vmatprep.subr.bf16.mxu0 0
        %11091 = vmatpush1.bf16.msra.mxu0 %v10947
        %11092 = vmatprep.mubr.bf16.mxu0 %v10534
        %11093 = vmatmul.mubr.bf16.gmra.mrb[0].mxu0 %v10533
        %v11094 = vpop.f32.mrb[0].mxu0
        %v11095 = vadd.f32 %v10674, %v11094
        %v11096 = vpop.f32.mrb[0].mxu0
        %v11097 = vpop.f32.mrb[0].mxu0
        %v11098 = vpop.f32.mrb[0].mxu0
        %11099 = vdwg.mxu0
        %11100 = vmatprep.subr.bf16.mxu0 0
        %11101 = vmatpush1.bf16.msra.mxu0 %v10948
        %11102 = vmatprep.subr.bf16.mxu0 0
        %11103 = vmatpush1.bf16.msra.mxu0 %v10949
        %11104 = vmatprep.subr.bf16.mxu0 0
        %11105 = vmatpush1.bf16.msra.mxu0 %v10950
        %11106 = vmatprep.subr.bf16.mxu0 0
        %11107 = vmatpush1.bf16.msra.mxu0 %v10951
        %11108 = vmatprep.subr.bf16.mxu0 0
        %11109 = vmatpush1.bf16.msra.mxu0 %v10952
        %11110 = vmatprep.subr.bf16.mxu0 0
        %11111 = vmatpush1.bf16.msra.mxu0 %v10953
        %11112 = vmatprep.subr.bf16.mxu0 0
        %11113 = vmatpush1.bf16.msra.mxu0 %v10954
        %11114 = vmatprep.subr.bf16.mxu0 0
        %11115 = vmatpush1.bf16.msra.mxu0 %v10955
        %11116 = vmatprep.subr.bf16.mxu0 0
        %11117 = vmatpush1.bf16.msra.mxu0 %v10956
        %11118 = vmatprep.subr.bf16.mxu0 0
        %11119 = vmatpush1.bf16.msra.mxu0 %v10957
        %11120 = vmatprep.subr.bf16.mxu0 0
        %11121 = vmatpush1.bf16.msra.mxu0 %v10958
        %11122 = vmatprep.subr.bf16.mxu0 0
        %11123 = vmatpush1.bf16.msra.mxu0 %v10959
        %11124 = vmatprep.subr.bf16.mxu0 0
        %11125 = vmatpush1.bf16.msra.mxu0 %v10960
        %11126 = vmatprep.subr.bf16.mxu0 0
        %11127 = vmatpush1.bf16.msra.mxu0 %v10961
        %11128 = vmatprep.subr.bf16.mxu0 0
        %11129 = vmatpush1.bf16.msra.mxu0 %v10962
        %11130 = vmatprep.subr.bf16.mxu0 0
        %11131 = vmatpush1.bf16.msra.mxu0 %v10963
        %11132 = vmatprep.mubr.bf16.mxu0 %v10536
        %11133 = vmatmul.mubr.bf16.gmra.mrb[0].mxu0 %v10535
        %v11134 = vpop.f32.mrb[0].mxu0
        %v11135 = vadd.f32 %v11095, %v11134
        %v11136 = vpop.f32.mrb[0].mxu0
        %v11137 = vpop.f32.mrb[0].mxu0
        %v11138 = vpop.f32.mrb[0].mxu0
        %11139 = vdwg.mxu0
        %11140 = vmatprep.subr.bf16.mxu0 0
        %11141 = vmatpush1.bf16.msra.mxu0 %v10964
        %11142 = vmatprep.subr.bf16.mxu0 0
        %11143 = vmatpush1.bf16.msra.mxu0 %v10965
        %11144 = vmatprep.subr.bf16.mxu0 0
        %11145 = vmatpush1.bf16.msra.mxu0 %v10966
        %11146 = vmatprep.subr.bf16.mxu0 0
        %11147 = vmatpush1.bf16.msra.mxu0 %v10967
        %11148 = vmatprep.subr.bf16.mxu0 0
        %11149 = vmatpush1.bf16.msra.mxu0 %v10968
        %11150 = vmatprep.subr.bf16.mxu0 0
        %11151 = vmatpush1.bf16.msra.mxu0 %v10969
        %11152 = vmatprep.subr.bf16.mxu0 0
        %11153 = vmatpush1.bf16.msra.mxu0 %v10970
        %11154 = vmatprep.subr.bf16.mxu0 0
        %11155 = vmatpush1.bf16.msra.mxu0 %v10971
        %11156 = vmatprep.subr.bf16.mxu0 0
        %11157 = vmatpush1.bf16.msra.mxu0 %v10972
        %11158 = vmatprep.subr.bf16.mxu0 0
        %11159 = vmatpush1.bf16.msra.mxu0 %v10973
        %11160 = vmatprep.subr.bf16.mxu0 0
        %11161 = vmatpush1.bf16.msra.mxu0 %v10974
        %11162 = vmatprep.subr.bf16.mxu0 0
        %11163 = vmatpush1.bf16.msra.mxu0 %v10975
        %11164 = vmatprep.subr.bf16.mxu0 0
        %11165 = vmatpush1.bf16.msra.mxu0 %v10976
        %11166 = vmatprep.subr.bf16.mxu0 0
        %11167 = vmatpush1.bf16.msra.mxu0 %v10977
        %11168 = vmatprep.subr.bf16.mxu0 0
        %11169 = vmatpush1.bf16.msra.mxu0 %v10978
        %11170 = vmatprep.subr.bf16.mxu0 0
        %11171 = vmatpush1.bf16.msra.mxu0 %v10979
        %11172 = vmatprep.mubr.bf16.mxu0 %v10538
        %11173 = vmatmul.mubr.bf16.gmra.mrb[0].mxu0 %v10537
        %v11174 = vpop.f32.mrb[0].mxu0
        %v11175 = vadd.f32 %v11135, %v11174
        %v11176 = vpop.f32.mrb[0].mxu0
        %v11177 = vpop.f32.mrb[0].mxu0
        %v11178 = vpop.f32.mrb[0].mxu0
        %11179 = vdwg.mxu0
        %11180 = vmatprep.subr.bf16.mxu0 0
        %11181 = vmatpush1.bf16.msra.mxu0 %v10980
        %11182 = vmatprep.subr.bf16.mxu0 0
        %11183 = vmatpush1.bf16.msra.mxu0 %v10981
        %11184 = vmatprep.subr.bf16.mxu0 0
        %11185 = vmatpush1.bf16.msra.mxu0 %v10982
        %11186 = vmatprep.subr.bf16.mxu0 0
        %11187 = vmatpush1.bf16.msra.mxu0 %v10983
        %11188 = vmatprep.subr.bf16.mxu0 0
        %11189 = vmatpush1.bf16.msra.mxu0 %v10984
        %11190 = vmatprep.subr.bf16.mxu0 0
        %11191 = vmatpush1.bf16.msra.mxu0 %v10985
        %11192 = vmatprep.subr.bf16.mxu0 0
        %11193 = vmatpush1.bf16.msra.mxu0 %v10986
        %11194 = vmatprep.subr.bf16.mxu0 0
        %11195 = vmatpush1.bf16.msra.mxu0 %v10987
        %11196 = vmatprep.subr.bf16.mxu0 0
        %11197 = vmatpush1.bf16.msra.mxu0 %v10988
        %11198 = vmatprep.subr.bf16.mxu0 0
        %11199 = vmatpush1.bf16.msra.mxu0 %v10989
        %11200 = vmatprep.subr.bf16.mxu0 0
        %11201 = vmatpush1.bf16.msra.mxu0 %v10990
        %11202 = vmatprep.subr.bf16.mxu0 0
        %11203 = vmatpush1.bf16.msra.mxu0 %v10991
        %11204 = vmatprep.subr.bf16.mxu0 0
        %11205 = vmatpush1.bf16.msra.mxu0 %v10992
        %11206 = vmatprep.subr.bf16.mxu0 0
        %11207 = vmatpush1.bf16.msra.mxu0 %v10993
        %11208 = vmatprep.subr.bf16.mxu0 0
        %11209 = vmatpush1.bf16.msra.mxu0 %v10994
        %11210 = vmatprep.subr.bf16.mxu0 0
        %11211 = vmatpush1.bf16.msra.mxu0 %v10995
        %11212 = vmatprep.mubr.bf16.mxu0 %v10540
        %11213 = vmatmul.mubr.bf16.gmra.mrb[0].mxu0 %v10539
        %v11214 = vpop.f32.mrb[0].mxu0
        %v11215 = vadd.f32 %v11175, %v11214
        %v11216 = vpop.f32.mrb[0].mxu0
        %v11217 = vpop.f32.mrb[0].mxu0
        %v11218 = vpop.f32.mrb[0].mxu0
        %11219 = vdwg.mxu0
        %11220 = vst [vmem:[%s446] sm:$0xff] %v11215
      $region56: #{atari_net_forward.7} parent=47 // pred_fallthru
        _
      %p11221 = scmp.lt.s32.totalorder %s23, 1
      %s11222 = scalar_select %p11221, %s23, 1
      %p11223 = scmp.lt.s32.totalorder %s24, 0
      %s11224 = scalar_select %p11223, %s24, 0
      %s11225 = sadd.s32 %s11224, %s11222
      %s11226 = smul.addr %s11225, 8
      %s11227 = scalar_lea.vmem %s7, %s11226
      // Predicated region
      $region57: #{atari_net_forward.7} parent=47 // pred_check
        %p11228 = pneg %p243
      $region58: #{atari_net_forward.7} parent=47 // pred_check_branch
        %11230 = sbr.rel (%p11228) target = $region60
      $region59: #{atari_net_forward.7} parent=47 // pred_region
        _
      $region60: #{atari_net_forward.7} parent=47 // pred_fallthru
        _
    $region48: #{atari_net_forward.7} parent=5 // pred_fallthru
      _
    %p11231 = scmp.le.s32.totalorder 2, %s13
    // Predicated region
    $region61: #{atari_net_forward.7} parent=5 // pred_check
      %p11232 = pneg %p11231
    $region62: #{atari_net_forward.7} parent=5 // pred_check_branch
      %11234 = sbr.rel (%p11232) target = $region64
    $region63: #{atari_net_forward.7} parent=5 // pred_region
      %s11235 = ssub.s32 %s13, 2
      // Predicated region
      $region65: #{atari_net_forward.7} parent=63 // pred_check
        %p11236 = pneg %p249
      $region66: #{atari_net_forward.7} parent=63 // pred_check_branch
        %11238 = sbr.rel (%p11236) target = $region68
      $region67: #{atari_net_forward.7} parent=63 // pred_region
        %p11239 = scmp.lt.s32.totalorder %s26, 1
        %s11240 = scalar_select %p11239, %s26, 1
        %p11241 = scmp.lt.s32.totalorder %s27, 0
        %s11242 = scalar_select %p11241, %s27, 0
        %s11243 = sadd.s32 %s11242, %s11240
        %s11244 = smul.addr %s11243, 8
        %s11245 = scalar_lea.vmem %s7, %s11244
      $region68: #{atari_net_forward.7} parent=63 // pred_fallthru
        _
    $region64: #{atari_net_forward.7} parent=5 // pred_fallthru
      _
  $region6: #{atari_net_forward.7} parent=0 // loop_footer
    %s17 = sadd.s32 1, %s13
  $region7: #{atari_net_forward.7} parent=0 // loop_footer_branch
    %12 = sbr.rel target = $region3
  $region8: #{atari_net_forward.7} parent=0 // loop_exit
    _

</llo_original>
